<compile_context>
chip_gen: v7x
topology: tpu7x:2x2x1
jax: 0.10.0
libtpu: 0.0.40
codegen_flags: <defaults>
</compile_context>

<pallas_src>
import functools

import jax
import jax.numpy as jnp
from jax import lax
from jax.experimental import pallas as pl
from jax.experimental.pallas import tpu as pltpu


# ----------------------------- tiling helpers -----------------------------

def _pick_tile(n, max_tile):
    """Largest multiple-of-8 divisor of n that is <= max_tile, else n (full dim is always legal)."""
    if n <= max_tile:
        return n
    for t in range(min(max_tile, n), 0, -1):
        if n % t == 0 and t % 8 == 0:
            return t
    return n


def _pick_row_tile(n, max_tile=512):
    """Row tile for the 'parallel' axis: prefer >= 2 tiles (megacore) when n is big enough."""
    cap = min(max_tile, max(8, n // 2)) if n >= 16 else max_tile
    return _pick_tile(n, cap)


def _pick_batch_tile(b, s, target_rows=512):
    """Batch tile for the biaffine kernels so that Bt*S ~ target_rows (MXU fill)."""
    cap = max(1, target_rows // max(s, 1))
    for t in range(min(b, cap), 0, -1):
        if b % t == 0:
            return t
    return 1


# ----------------------------- linear / fused-MLP kernel -----------------------------

def _linear_kernel(x_ref, w_ref, b_ref, o_ref, *, leaky):
    y = jnp.dot(x_ref[...], w_ref[...], preferred_element_type=jnp.float32) + b_ref[...]
    if leaky:
        y = jnp.where(y > 0, y, 0.1 * y)   # LeakyReLU(negative_slope=0.1)
    o_ref[...] = y


def linear(x, w_t, b, *, leaky=False, max_tile_m=512):
    """y = x @ w_t + b (optionally LeakyReLU).  x: [M, Din], w_t: [Din, Dout], b: [1, Dout]."""
    M, Din = x.shape
    Dout = w_t.shape[1]
    # VMEM budget for the streamed row tiles (x + out, double-buffered), ~8 MiB.
    bytes_per_row = 8 * (Din + Dout)
    tile_m = _pick_tile(M, min(max_tile_m, max(8, (8 << 20) // max(bytes_per_row, 1))))
    grid = (M // tile_m,)
    return pl.pallas_call(
        functools.partial(_linear_kernel, leaky=leaky),
        grid=grid,
        in_specs=[pl.BlockSpec((tile_m, Din), lambda i: (i, 0)),
                  pl.BlockSpec((Din, Dout), lambda i: (0, 0)),
                  pl.BlockSpec((1, Dout), lambda i: (0, 0))],
        out_specs=pl.BlockSpec((tile_m, Dout), lambda i: (i, 0)),
        out_shape=jax.ShapeDtypeStruct((M, Dout), jnp.float32),
        compiler_params=pltpu.CompilerParams(dimension_semantics=("parallel",)),
    )(x, w_t, b)


# ----------------------------- fused LSTM scan kernel -----------------------------

def _lstm_scan_kernel(*refs, reverse, unroll, with_hs):
    """Masked LSTM over `unroll` timesteps per grid step.

    refs (with_hs=True):  g_ref [U, tile_n, 4H], whh_ref [H, 4H], lens_ref [tile_n, 1],
                          hs_ref [U, tile_n, H], hT_ref [tile_n, H], h_sc, c_sc
    refs (with_hs=False): same without hs_ref.
    Padded timesteps (pos >= lens) carry the previous state through (pack_padded semantics);
    hs is zero at padded positions (pad_packed semantics).
    """
    if with_hs:
        g_ref, whh_ref, lens_ref, hs_ref, hT_ref, h_sc, c_sc = refs
    else:
        g_ref, whh_ref, lens_ref, hT_ref, h_sc, c_sc = refs
        hs_ref = None

    t = pl.program_id(1)
    n_t = pl.num_programs(1)
    # Original time offset of the first row of the fetched gate block.
    base = ((n_t - 1 - t) if reverse else t) * unroll
    H = h_sc.shape[-1]

    @pl.when(t == 0)
    def _():
        h_sc[...] = jnp.zeros_like(h_sc)
        c_sc[...] = jnp.zeros_like(c_sc)

    h = h_sc[...]
    c = c_sc[...]
    lens = lens_ref[...]
    whh = whh_ref[...]

    order = range(unroll - 1, -1, -1) if reverse else range(unroll)
    for u in order:
        gates = g_ref[u] + jnp.dot(h, whh, preferred_element_type=jnp.float32)
        i_g = jax.nn.sigmoid(gates[:, 0 * H:1 * H])    # PyTorch gate order (i, f, g, o)
        f_g = jax.nn.sigmoid(gates[:, 1 * H:2 * H])
        g_g = jnp.tanh(gates[:, 2 * H:3 * H])
        o_g = jax.nn.sigmoid(gates[:, 3 * H:4 * H])
        c_new = f_g * c + i_g * g_g
        h_new = o_g * jnp.tanh(c_new)
        valid = lens > (base + u)                      # [tile_n, 1] bool
        h = jnp.where(valid, h_new, h)
        c = jnp.where(valid, c_new, c)
        if with_hs:
            hs_ref[u] = jnp.where(valid, h_new, 0.0)   # zeros past length

    h_sc[...] = h
    c_sc[...] = c

    @pl.when(t == n_t - 1)
    def _():
        hT_ref[...] = h                                # final hidden, written once


def lstm_scan(gates_in, whh_t, lens, *, reverse, with_hs=True):
    """Masked LSTM scan.  gates_in: [T, N, 4H] time-major (= x @ Wih + b).
    Returns (hs [T, N, H] with zeros at pads, hT [N, H]) or just hT if with_hs=False."""
    T, N, H4 = gates_in.shape
    H = H4 // 4
    U = min(8, T)
    Tc = (T + U - 1) // U
    Tp = Tc * U
    if Tp != T:
        gates_in = jnp.pad(gates_in, ((0, Tp - T), (0, 0), (0, 0)))   # padded steps are masked
    lens2d = lens.reshape(N, 1).astype(jnp.int32)

    # Size the row tile from an explicit VMEM budget (~12 MiB for the streamed/row-resident data)
    # instead of requesting a large vmem_limit (v7x only has 64 MiB physical VMEM per core).
    bytes_per_row = 4 * (2 * U * H4 + (2 * U * H if with_hs else 0) + 6 * H + 2)
    tile_n = _pick_row_tile(N, min(512, max(8, (12 << 20) // max(bytes_per_row, 1))))
    R = N // tile_n

    if reverse:
        t_map = lambda r, t: (Tc - 1 - t, r, 0)    # walk time blocks backwards; no data flips
    else:
        t_map = lambda r, t: (t, r, 0)

    in_specs = [pl.BlockSpec((U, tile_n, H4), t_map),
                pl.BlockSpec((H, H4), lambda r, t: (0, 0)),
                pl.BlockSpec((tile_n, 1), lambda r, t: (r, 0))]
    hT_spec = pl.BlockSpec((tile_n, H), lambda r, t: (r, 0))
    hT_shape = jax.ShapeDtypeStruct((N, H), jnp.float32)
    if with_hs:
        out_specs = (pl.BlockSpec((U, tile_n, H), t_map), hT_spec)
        out_shape = (jax.ShapeDtypeStruct((Tp, N, H), jnp.float32), hT_shape)
    else:
        out_specs = hT_spec
        out_shape = hT_shape

    out = pl.pallas_call(
        functools.partial(_lstm_scan_kernel, reverse=reverse, unroll=U, with_hs=with_hs),
        grid=(R, Tc),
        in_specs=in_specs,
        out_specs=out_specs,
        out_shape=out_shape,
        scratch_shapes=[pltpu.VMEM((tile_n, H), jnp.float32),
                        pltpu.VMEM((tile_n, H), jnp.float32)],
        compiler_params=pltpu.CompilerParams(
            dimension_semantics=("parallel", "arbitrary")),
    )(gates_in, whh_t, lens2d)

    if with_hs:
        hs, hT = out
        if Tp != T:
            hs = hs[:T]
        return hs, hT
    return out


def lstm_dir_tm(x_tm, lens, p, *, reverse, with_hs=True):
    """One LSTM direction on time-major input [T, N, Din].
    The input projection is hoisted into one big matmul; the recurrence is one fused kernel."""
    T, N, Din = x_tm.shape
    H = p['whh_t'].shape[0]
    gates_in = linear(x_tm.reshape(T * N, Din), p['wih_t'], p['b']).reshape(T, N, 4 * H)
    return lstm_scan(gates_in, p['whh_t'], lens, reverse=reverse, with_hs=with_hs)


# ----------------------------- biaffine kernels -----------------------------

def _biaffine_arc_kernel(xd_ref, w_ref, yh_ref, o_ref):
    # s[b, i, j] = sum_{k,l} xd_ext[b,i,k] W[k,l] yh[b,j,l]
    Bt, S, A1 = xd_ref.shape
    xd = xd_ref[...].reshape(Bt * S, A1)
    tmp = jnp.dot(xd, w_ref[...], preferred_element_type=jnp.float32)       # [Bt*S, A]
    tmp3 = tmp.reshape(Bt, S, -1)
    o_ref[...] = lax.dot_general(tmp3, yh_ref[...],
                                 (((2,), (2,)), ((0,), (0,))),
                                 preferred_element_type=jnp.float32)        # [Bt, S, S]


def biaffine_arc(xd_ext, w, yh):
    B, S, A1 = xd_ext.shape
    A = yh.shape[-1]
    Bt = _pick_batch_tile(B, S)
    return pl.pallas_call(
        _biaffine_arc_kernel,
        grid=(B // Bt,),
        in_specs=[pl.BlockSpec((Bt, S, A1), lambda b: (b, 0, 0)),
                  pl.BlockSpec((A1, A), lambda b: (0, 0)),
                  pl.BlockSpec((Bt, S, A), lambda b: (b, 0, 0))],
        out_specs=pl.BlockSpec((Bt, S, S), lambda b: (b, 0, 0)),
        out_shape=jax.ShapeDtypeStruct((B, S, S), jnp.float32),
        compiler_params=pltpu.CompilerParams(dimension_semantics=("parallel",)),
    )(xd_ext, w, yh)


def _biaffine_rel_kernel(xd_ref, w2_ref, yh_ref, o_ref, *, n_out, r1):
    # s[b, o, i, j] = xd_ext[b,i,:] @ W[o] @ yh_ext[b,j,:]^T
    # First matmul fused across batch tile and heads: tmp[i, o*R1+l] = sum_k xd[i,k] W[o,k,l].
    Bt, S, R1 = xd_ref.shape
    xd = xd_ref[...].reshape(Bt * S, R1)
    tmp = jnp.dot(xd, w2_ref[...], preferred_element_type=jnp.float32)      # [Bt*S, O*R1]
    yh = yh_ref[...]                                                        # [Bt, S, R1]
    heads = []
    for o in range(n_out):
        t_o = tmp[:, o * r1:(o + 1) * r1].reshape(Bt, S, r1)
        heads.append(lax.dot_general(t_o, yh, (((2,), (2,)), ((0,), (0,))),
                                     preferred_element_type=jnp.float32))   # [Bt, S, S]
    o_ref[...] = jnp.stack(heads, axis=1)                                   # [Bt, O, S, S]


def biaffine_rel(xd_ext, w, yh_ext):
    B, S, R1 = xd_ext.shape
    O = w.shape[0]
    # Head-fused weight layout: w2[k, o*R1 + l] = w[o, k, l]
    w2 = jnp.transpose(w, (1, 0, 2)).reshape(R1, O * R1)
    Bt = _pick_batch_tile(B, S)
    return pl.pallas_call(
        functools.partial(_biaffine_rel_kernel, n_out=O, r1=R1),
        grid=(B // Bt,),
        in_specs=[pl.BlockSpec((Bt, S, R1), lambda b: (b, 0, 0)),
                  pl.BlockSpec((R1, O * R1), lambda b: (0, 0)),
                  pl.BlockSpec((Bt, S, R1), lambda b: (b, 0, 0))],
        out_specs=pl.BlockSpec((Bt, O, S, S), lambda b: (b, 0, 0, 0)),
        out_shape=jax.ShapeDtypeStruct((B, O, S, S), jnp.float32),
        compiler_params=pltpu.CompilerParams(dimension_semantics=("parallel",)),
    )(xd_ext, w2, yh_ext)   # pass the head-fused weight (compile fix)


# ----------------------------- forward pass -----------------------------

def char_parser_forward(params, words, chars, pad_index=0):
    B, S = words.shape
    fix_len = chars.shape[-1]
    mask = words != pad_index                  # [B, S]
    lens = mask.sum(axis=1).astype(jnp.int32)  # [B]
    # NOTE: inputs are constructed with pads at the end and max(lens) == S, so the in-kernel
    # length masking reproduces pack_padded / pad_packed / sort+unsort semantics exactly.

    # ---------------- CHAR_LSTM (final hidden of both directions; no per-step output) --------
    ch = chars.reshape(B * S, fix_len)
    ch_lens = (ch != 0).sum(axis=1).astype(jnp.int32)
    ch_emb = params['char_embed'][ch]                              # [B*S, fix_len, 2*n_char_embed]
    ch_tm = jnp.swapaxes(ch_emb, 0, 1)                             # time-major [fix_len, B*S, E]
    p = params['char_lstm']
    h_f = lstm_dir_tm(ch_tm, ch_lens, p['f'], reverse=False, with_hs=False)
    h_b = lstm_dir_tm(ch_tm, ch_lens, p['b'], reverse=True, with_hs=False)
    char_feat = jnp.concatenate([h_f, h_b], axis=-1)               # [B*S, 2*n_char_out]
    x = jnp.where(mask.reshape(B * S, 1), char_feat, 0.0).reshape(B, S, -1)
    # embed_dropout: identity in eval mode

    # ---------------- BiLSTM (time-major through the stack; packed-sequence semantics) --------
    x_tm = jnp.swapaxes(x, 0, 1)                                   # [S, B, D]
    for layer in params['bilstm']:
        hs_f, _ = lstm_dir_tm(x_tm, lens, layer['f'], reverse=False)
        hs_b, _ = lstm_dir_tm(x_tm, lens, layer['b'], reverse=True)
        x_tm = jnp.concatenate([hs_f, hs_b], axis=-1)
    x = jnp.swapaxes(x_tm, 0, 1)                                   # [B, S, 2H], zeros at pads
    # lstm_dropout: identity in eval mode; sort/unsort by length cancels out.

    # ---------------- fused MLPs: one matmul for [arc_h | arc_d | rel_h | rel_d] ----------------
    flat = x.reshape(B * S, -1)
    A = params['mlp_arc_h']['w_t'].shape[1]
    Rr = params['mlp_rel_h']['w_t'].shape[1]
    w_cat = jnp.concatenate([params['mlp_arc_h']['w_t'], params['mlp_arc_d']['w_t'],
                             params['mlp_rel_h']['w_t'], params['mlp_rel_d']['w_t']], axis=1)
    b_cat = jnp.concatenate([params['mlp_arc_h']['b'], params['mlp_arc_d']['b'],
                             params['mlp_rel_h']['b'], params['mlp_rel_d']['b']], axis=1)
    d2 = 2 * A + 2 * Rr
    dpad = (-d2) % 128                                             # lane-dense output store
    if dpad:
        w_cat = jnp.pad(w_cat, ((0, 0), (0, dpad)))
        b_cat = jnp.pad(b_cat, ((0, 0), (0, dpad)))
    y = linear(flat, w_cat, b_cat, leaky=True)                     # [B*S, round_up(2A+2R,128)]
    arc_h = y[:, :A].reshape(B, S, A)
    arc_d = y[:, A:2 * A].reshape(B, S, A)
    rel_h = y[:, 2 * A:2 * A + Rr].reshape(B, S, Rr)
    rel_d = y[:, 2 * A + Rr:d2].reshape(B, S, Rr)

    # ---------------- Biaffine attention ----------------
    ones = jnp.ones((B, S, 1), jnp.float32)
    arc_d_ext = jnp.concatenate([arc_d, ones], axis=-1)            # bias_x=True
    s_arc = biaffine_arc(arc_d_ext, params['w_arc'], arc_h)        # [B, S, S]
    rel_d_ext = jnp.concatenate([rel_d, ones], axis=-1)            # bias_x=True
    rel_h_ext = jnp.concatenate([rel_h, ones], axis=-1)            # bias_y=True
    s_rel = biaffine_rel(rel_d_ext, params['w_rel'], rel_h_ext)    # [B, n_rels, S, S]
    s_rel = jnp.transpose(s_rel, (0, 2, 3, 1))                     # .permute(0, 2, 3, 1)

    # s_arc.masked_fill_(~mask.unsqueeze(1), -inf)
    s_arc = jnp.where(mask[:, None, :], s_arc, -jnp.inf)
    return s_arc, s_rel


# ----------------------------- parameter init -----------------------------

def init_lstm_dir(key, din, H):
    k1, k2, k3 = jax.random.split(key, 3)
    return {'wih_t': 0.1 * jax.random.normal(k1, (din, 4 * H), jnp.float32),
            'whh_t': 0.1 * jax.random.normal(k2, (H, 4 * H), jnp.float32),
            'b': 0.1 * jax.random.normal(k3, (1, 4 * H), jnp.float32)}


def init_mlp(key, din, dout):
    k1, k2 = jax.random.split(key)
    return {'w_t': 0.1 * jax.random.normal(k1, (din, dout), jnp.float32),
            'b': 0.1 * jax.random.normal(k2, (1, dout), jnp.float32)}


if __name__ == "__main__":
    key = jax.random.PRNGKey(0)
    # config (small, consistent with CharParser.__init__)
    B, S, FIX = 2, 8, 6
    n_chars = 30
    n_char_embed, n_char_out = 8, 16           # char embed dim = 16, char lstm out = 32
    n_lstm_hidden, n_lstm_layers = 32, 2
    n_mlp_arc, n_mlp_rel, n_rels = 32, 16, 4
    pad_index = 0

    keys = jax.random.split(key, 16)

    # deterministic inputs: pads at sequence ends, longest sentence fills S
    sent_lens = jnp.array([S, 5], dtype=jnp.int32)
    pos = jnp.arange(S)
    wmask = pos[None, :] < sent_lens[:, None]
    words = jnp.where(wmask, jax.random.randint(keys[0], (B, S), 2, 100), pad_index).astype(jnp.int32)
    char_lens = jnp.where(wmask, 1 + jax.random.randint(keys[1], (B, S), 0, FIX), 0)
    cmask = jnp.arange(FIX)[None, None, :] < char_lens[:, :, None]
    chars = jnp.where(cmask, jax.random.randint(keys[2], (B, S, FIX), 1, n_chars), 0).astype(jnp.int32)

    # deterministic parameters
    params = {
        'char_embed': 0.1 * jax.random.normal(keys[3], (n_chars, n_char_embed * 2), jnp.float32),
        'char_lstm': {'f': init_lstm_dir(keys[4], n_char_embed * 2, n_char_out),
                      'b': init_lstm_dir(keys[5], n_char_embed * 2, n_char_out)},
        'mlp_arc_h': init_mlp(keys[7], 2 * n_lstm_hidden, n_mlp_arc),
        'mlp_arc_d': init_mlp(keys[8], 2 * n_lstm_hidden, n_mlp_arc),
        'mlp_rel_h': init_mlp(keys[9], 2 * n_lstm_hidden, n_mlp_rel),
        'mlp_rel_d': init_mlp(keys[10], 2 * n_lstm_hidden, n_mlp_rel),
        'w_arc': 0.1 * jax.random.normal(keys[11], (n_mlp_arc + 1, n_mlp_arc), jnp.float32),
        'w_rel': 0.1 * jax.random.normal(keys[12], (n_rels, n_mlp_rel + 1, n_mlp_rel + 1), jnp.float32),
    }
    bilstm = []
    din = n_char_out * 2
    kk = jax.random.split(keys[6], n_lstm_layers * 2)
    for l in range(n_lstm_layers):
        bilstm.append({'f': init_lstm_dir(kk[2 * l], din, n_lstm_hidden),
                       'b': init_lstm_dir(kk[2 * l + 1], din, n_lstm_hidden)})
        din = 2 * n_lstm_hidden
    params['bilstm'] = bilstm

    fwd = jax.jit(functools.partial(char_parser_forward, pad_index=pad_index))
    s_arc, s_rel = fwd(params, words, chars)
    jax.block_until_ready((s_arc, s_rel))

    assert s_arc.shape == (B, S, S) and s_arc.dtype == jnp.float32
    assert s_rel.shape == (B, S, S, n_rels) and s_rel.dtype == jnp.float32
    print("KERNEL_OK")
</pallas_src>

<mosaic_0001>
module attributes {stable_mosaic.version = 11 : i64} {
  func.func @_linear_kernel(%arg0: i32, %arg1: memref<96x16xf32, #tpu.memory_space<vmem>>, %arg2: memref<16x64xf32, #tpu.memory_space<vmem>>, %arg3: memref<1x64xf32, #tpu.memory_space<vmem>>, %arg4: memref<96x64xf32, #tpu.memory_space<vmem>>) attributes {dimension_semantics = [#tpu.dimension_semantics<parallel>], iteration_bounds = array<i64: 1>, scalar_prefetch = 0 : i64, scratch_operands = 0 : i64, tpu.core_type = #tpu.core_type<tc>, window_params = [{transform_indices = @transform_0, window_bounds = array<i64: 96, 16>}, {pipeline_mode = #tpu.pipeline_mode<synchronous>, transform_indices = @transform_1, window_bounds = array<i64: 16, 64>}, {pipeline_mode = #tpu.pipeline_mode<synchronous>, transform_indices = @transform_2, window_bounds = array<i64: 1, 64>}, {transform_indices = @transform_3, window_bounds = array<i64: 96, 64>}]} {
    %c0 = arith.constant 0 : index
    %c0_0 = arith.constant 0 : index
    %0 = vector.load %arg1[%c0, %c0_0] : memref<96x16xf32, #tpu.memory_space<vmem>>, vector<96x16xf32>
    %c0_1 = arith.constant 0 : index
    %c0_2 = arith.constant 0 : index
    %1 = vector.load %arg2[%c0_1, %c0_2] : memref<16x64xf32, #tpu.memory_space<vmem>>, vector<16x64xf32>
    %cst = arith.constant dense<0.000000e+00> : vector<96x64xf32>
    %2 = tpu.matmul %0, %1, %cst {dimension_numbers = #tpu.dot_dimension_numbers<[1], [0], [0], [1], [0, 0, 1, 1], [], []>} : vector<96x16xf32>, vector<16x64xf32>, vector<96x64xf32> -> vector<96x64xf32>
    %c0_3 = arith.constant 0 : index
    %c0_4 = arith.constant 0 : index
    %3 = vector.load %arg3[%c0_3, %c0_4] : memref<1x64xf32, #tpu.memory_space<vmem>>, vector<1x64xf32>
    %4 = vector.broadcast %3 : vector<1x64xf32> to vector<96x64xf32>
    %5 = arith.addf %2, %4 : vector<96x64xf32>
    %c0_5 = arith.constant 0 : index
    %c0_6 = arith.constant 0 : index
    %6 = vector.load %arg4[%c0_5, %c0_6] : memref<96x64xf32, #tpu.memory_space<vmem>>, vector<96x64xf32>
    tpu.vector_store %arg4[%c0_5, %c0_6], %5 {strides = array<i32>} : memref<96x64xf32, #tpu.memory_space<vmem>>, vector<96x64xf32>,
    return
  }
  func.func @transform_0(%arg0: i32) -> (i32, i32) {
    %c0_i32 = arith.constant 0 : i32
    %c0_i32_0 = arith.constant 0 : i32
    return %arg0, %c0_i32 : i32, i32
  }
  func.func @transform_1(%arg0: i32) -> (i32, i32) {
    %c0_i32 = arith.constant 0 : i32
    %c0_i32_0 = arith.constant 0 : i32
    %c0_i32_1 = arith.constant 0 : i32
    return %c0_i32, %c0_i32_0 : i32, i32
  }
  func.func @transform_2(%arg0: i32) -> (i32, i32) {
    %c0_i32 = arith.constant 0 : i32
    %c0_i32_0 = arith.constant 0 : i32
    %c0_i32_1 = arith.constant 0 : i32
    return %c0_i32, %c0_i32_0 : i32, i32
  }
  func.func @transform_3(%arg0: i32) -> (i32, i32) {
    %c0_i32 = arith.constant 0 : i32
    %c0_i32_0 = arith.constant 0 : i32
    return %arg0, %c0_i32 : i32, i32
  }
}

module attributes {stable_mosaic.version = 11 : i64} {
  func.func @_lstm_scan_kernel(%arg0: i32, %arg1: i32, %arg2: memref<6x8x64xf32, #tpu.memory_space<vmem>>, %arg3: memref<16x64xf32, #tpu.memory_space<vmem>>, %arg4: memref<8x1xi32, #tpu.memory_space<vmem>>, %arg5: memref<8x16xf32, #tpu.memory_space<vmem>>, %arg6: memref<8x16xf32, #tpu.memory_space<vmem>>, %arg7: memref<8x16xf32, #tpu.memory_space<vmem>>) attributes {dimension_semantics = [#tpu.dimension_semantics<parallel>, #tpu.dimension_semantics<arbitrary>], iteration_bounds = array<i64: 2, 1>, scalar_prefetch = 0 : i64, scratch_operands = 2 : i64, tpu.core_type = #tpu.core_type<tc>, window_params = [{transform_indices = @transform_0, window_bounds = array<i64: 6, 8, 64>}, {pipeline_mode = #tpu.pipeline_mode<synchronous>, transform_indices = @transform_1, window_bounds = array<i64: 16, 64>}, {transform_indices = @transform_2, window_bounds = array<i64: 8, 1>}, {transform_indices = @transform_3, window_bounds = array<i64: 8, 16>}]} {
    %c6_i32 = arith.constant 6 : i32
    %0 = arith.muli %arg1, %c6_i32 : i32
    %c0_i32 = arith.constant 0 : i32
    %1 = arith.cmpi eq, %arg1, %c0_i32 : i32
    %2 = arith.extui %1 : i1 to i32
    %c0_i32_0 = arith.constant 0 : i32
    %3 = arith.cmpi ne, %2, %c0_i32_0 : i32
    scf.if %3 {
      %cst_51 = arith.constant 0.000000e+00 : f32
      %241 = vector.broadcast %cst_51 : f32 to vector<8x16xf32>
      %c0_52 = arith.constant 0 : index
      %c0_53 = arith.constant 0 : index
      %242 = vector.load %arg6[%c0_52, %c0_53] : memref<8x16xf32, #tpu.memory_space<vmem>>, vector<8x16xf32>
      tpu.vector_store %arg6[%c0_52, %c0_53], %241 {strides = array<i32>} : memref<8x16xf32, #tpu.memory_space<vmem>>, vector<8x16xf32>,
      %cst_54 = arith.constant 0.000000e+00 : f32
      %243 = vector.broadcast %cst_54 : f32 to vector<8x16xf32>
      %c0_55 = arith.constant 0 : index
      %c0_56 = arith.constant 0 : index
      %244 = vector.load %arg7[%c0_55, %c0_56] : memref<8x16xf32, #tpu.memory_space<vmem>>, vector<8x16xf32>
      tpu.vector_store %arg7[%c0_55, %c0_56], %243 {strides = array<i32>} : memref<8x16xf32, #tpu.memory_space<vmem>>, vector<8x16xf32>,
    } else {
    }
    %c0 = arith.constant 0 : index
    %c0_1 = arith.constant 0 : index
    %4 = vector.load %arg6[%c0, %c0_1] : memref<8x16xf32, #tpu.memory_space<vmem>>, vector<8x16xf32>
    %c0_2 = arith.constant 0 : index
    %c0_3 = arith.constant 0 : index
    %5 = vector.load %arg7[%c0_2, %c0_3] : memref<8x16xf32, #tpu.memory_space<vmem>>, vector<8x16xf32>
    %c0_4 = arith.constant 0 : index
    %c0_5 = arith.constant 0 : index
    %6 = vector.load %arg4[%c0_4, %c0_5] : memref<8x1xi32, #tpu.memory_space<vmem>>, vector<8x1xi32>
    %c0_6 = arith.constant 0 : index
    %c0_7 = arith.constant 0 : index
    %7 = vector.load %arg3[%c0_6, %c0_7] : memref<16x64xf32, #tpu.memory_space<vmem>>, vector<16x64xf32>
    %c0_8 = arith.constant 0 : index
    %c0_9 = arith.constant 0 : index
    %c0_10 = arith.constant 0 : index
    %8 = vector.load %arg2[%c0_8, %c0_9, %c0_10] : memref<6x8x64xf32, #tpu.memory_space<vmem>>, vector<1x8x64xf32>
    %9 = vector.shape_cast %8 : vector<1x8x64xf32> to vector<8x64xf32>
    %cst = arith.constant dense<0.000000e+00> : vector<8x64xf32>
    %10 = tpu.matmul %4, %7, %cst {dimension_numbers = #tpu.dot_dimension_numbers<[1], [0], [0], [1], [0, 0, 1, 1], [], []>} : vector<8x16xf32>, vector<16x64xf32>, vector<8x64xf32> -> vector<8x64xf32>
    %11 = arith.addf %9, %10 : vector<8x64xf32>
    %12 = vector.extract_strided_slice %11 {offsets = [0, 0], sizes = [8, 16], strides = [1, 1]} : vector<8x64xf32> to vector<8x16xf32>
    %13 = arith.negf %12 : vector<8x16xf32>
    %14 = math.exp %13 : vector<8x16xf32>
    %cst_11 = arith.constant 1.000000e+00 : f32
    %15 = vector.broadcast %cst_11 : f32 to vector<8x16xf32>
    %16 = arith.addf %15, %14 : vector<8x16xf32>
    %17 = arith.divf %15, %16 : vector<8x16xf32>
    %18 = vector.extract_strided_slice %11 {offsets = [0, 16], sizes = [8, 16], strides = [1, 1]} : vector<8x64xf32> to vector<8x16xf32>
    %19 = arith.negf %18 : vector<8x16xf32>
    %20 = math.exp %19 : vector<8x16xf32>
    %cst_12 = arith.constant 1.000000e+00 : f32
    %21 = vector.broadcast %cst_12 : f32 to vector<8x16xf32>
    %22 = arith.addf %21, %20 : vector<8x16xf32>
    %23 = arith.divf %21, %22 : vector<8x16xf32>
    %24 = vector.extract_strided_slice %11 {offsets = [0, 32], sizes = [8, 16], strides = [1, 1]} : vector<8x64xf32> to vector<8x16xf32>
    %25 = math.tanh %24 : vector<8x16xf32>
    %26 = vector.extract_strided_slice %11 {offsets = [0, 48], sizes = [8, 16], strides = [1, 1]} : vector<8x64xf32> to vector<8x16xf32>
    %27 = arith.negf %26 : vector<8x16xf32>
    %28 = math.exp %27 : vector<8x16xf32>
    %cst_13 = arith.constant 1.000000e+00 : f32
    %29 = vector.broadcast %cst_13 : f32 to vector<8x16xf32>
    %30 = arith.addf %29, %28 : vector<8x16xf32>
    %31 = arith.divf %29, %30 : vector<8x16xf32>
    %32 = arith.mulf %23, %5 : vector<8x16xf32>
    %33 = arith.mulf %17, %25 : vector<8x16xf32>
    %34 = arith.addf %32, %33 : vector<8x16xf32>
    %35 = math.tanh %34 : vector<8x16xf32>
    %36 = arith.mulf %31, %35 : vector<8x16xf32>
    %c0_i32_14 = arith.constant 0 : i32
    %37 = arith.addi %0, %c0_i32_14 : i32
    %38 = vector.broadcast %37 : i32 to vector<8x1xi32>
    %39 = arith.cmpi sgt, %6, %38 : vector<8x1xi32>
    %40 = vector.shape_cast %39 : vector<8x1xi1> to vector<8x1xi1>
    %41 = vector.broadcast %40 : vector<8x1xi1> to vector<8x16xi1>
    %42 = arith.select %41, %36, %4 : vector<8x16xi1>, vector<8x16xf32>
    %43 = vector.shape_cast %39 : vector<8x1xi1> to vector<8x1xi1>
    %44 = vector.broadcast %43 : vector<8x1xi1> to vector<8x16xi1>
    %45 = arith.select %44, %34, %5 : vector<8x16xi1>, vector<8x16xf32>
    %c1 = arith.constant 1 : index
    %c0_15 = arith.constant 0 : index
    %c0_16 = arith.constant 0 : index
    %46 = vector.load %arg2[%c1, %c0_15, %c0_16] : memref<6x8x64xf32, #tpu.memory_space<vmem>>, vector<1x8x64xf32>
    %47 = vector.shape_cast %46 : vector<1x8x64xf32> to vector<8x64xf32>
    %cst_17 = arith.constant dense<0.000000e+00> : vector<8x64xf32>
    %48 = tpu.matmul %42, %7, %cst_17 {dimension_numbers = #tpu.dot_dimension_numbers<[1], [0], [0], [1], [0, 0, 1, 1], [], []>} : vector<8x16xf32>, vector<16x64xf32>, vector<8x64xf32> -> vector<8x64xf32>
    %49 = arith.addf %47, %48 : vector<8x64xf32>
    %50 = vector.extract_strided_slice %49 {offsets = [0, 0], sizes = [8, 16], strides = [1, 1]} : vector<8x64xf32> to vector<8x16xf32>
    %51 = arith.negf %50 : vector<8x16xf32>
    %52 = math.exp %51 : vector<8x16xf32>
    %cst_18 = arith.constant 1.000000e+00 : f32
    %53 = vector.broadcast %cst_18 : f32 to vector<8x16xf32>
    %54 = arith.addf %53, %52 : vector<8x16xf32>
    %55 = arith.divf %53, %54 : vector<8x16xf32>
    %56 = vector.extract_strided_slice %49 {offsets = [0, 16], sizes = [8, 16], strides = [1, 1]} : vector<8x64xf32> to vector<8x16xf32>
    %57 = arith.negf %56 : vector<8x16xf32>
    %58 = math.exp %57 : vector<8x16xf32>
    %cst_19 = arith.constant 1.000000e+00 : f32
    %59 = vector.broadcast %cst_19 : f32 to vector<8x16xf32>
    %60 = arith.addf %59, %58 : vector<8x16xf32>
    %61 = arith.divf %59, %60 : vector<8x16xf32>
    %62 = vector.extract_strided_slice %49 {offsets = [0, 32], sizes = [8, 16], strides = [1, 1]} : vector<8x64xf32> to vector<8x16xf32>
    %63 = math.tanh %62 : vector<8x16xf32>
    %64 = vector.extract_strided_slice %49 {offsets = [0, 48], sizes = [8, 16], strides = [1, 1]} : vector<8x64xf32> to vector<8x16xf32>
    %65 = arith.negf %64 : vector<8x16xf32>
    %66 = math.exp %65 : vector<8x16xf32>
    %cst_20 = arith.constant 1.000000e+00 : f32
    %67 = vector.broadcast %cst_20 : f32 to vector<8x16xf32>
    %68 = arith.addf %67, %66 : vector<8x16xf32>
    %69 = arith.divf %67, %68 : vector<8x16xf32>
    %70 = arith.mulf %61, %45 : vector<8x16xf32>
    %71 = arith.mulf %55, %63 : vector<8x16xf32>
    %72 = arith.addf %70, %71 : vector<8x16xf32>
    %73 = math.tanh %72 : vector<8x16xf32>
    %74 = arith.mulf %69, %73 : vector<8x16xf32>
    %c1_i32 = arith.constant 1 : i32
    %75 = arith.addi %0, %c1_i32 : i32
    %76 = vector.broadcast %75 : i32 to vector<8x1xi32>
    %77 = arith.cmpi sgt, %6, %76 : vector<8x1xi32>
    %78 = vector.shape_cast %77 : vector<8x1xi1> to vector<8x1xi1>
    %79 = vector.broadcast %78 : vector<8x1xi1> to vector<8x16xi1>
    %80 = arith.select %79, %74, %42 : vector<8x16xi1>, vector<8x16xf32>
    %81 = vector.shape_cast %77 : vector<8x1xi1> to vector<8x1xi1>
    %82 = vector.broadcast %81 : vector<8x1xi1> to vector<8x16xi1>
    %83 = arith.select %82, %72, %45 : vector<8x16xi1>, vector<8x16xf32>
    %c2 = arith.constant 2 : index
    %c0_21 = arith.constant 0 : index
    %c0_22 = arith.constant 0 : index
    %84 = vector.load %arg2[%c2, %c0_21, %c0_22] : memref<6x8x64xf32, #tpu.memory_space<vmem>>, vector<1x8x64xf32>
    %85 = vector.shape_cast %84 : vector<1x8x64xf32> to vector<8x64xf32>
    %cst_23 = arith.constant dense<0.000000e+00> : vector<8x64xf32>
    %86 = tpu.matmul %80, %7, %cst_23 {dimension_numbers = #tpu.dot_dimension_numbers<[1], [0], [0], [1], [0, 0, 1, 1], [], []>} : vector<8x16xf32>, vector<16x64xf32>, vector<8x64xf32> -> vector<8x64xf32>
    %87 = arith.addf %85, %86 : vector<8x64xf32>
    %88 = vector.extract_strided_slice %87 {offsets = [0, 0], sizes = [8, 16], strides = [1, 1]} : vector<8x64xf32> to vector<8x16xf32>
    %89 = arith.negf %88 : vector<8x16xf32>
    %90 = math.exp %89 : vector<8x16xf32>
    %cst_24 = arith.constant 1.000000e+00 : f32
    %91 = vector.broadcast %cst_24 : f32 to vector<8x16xf32>
    %92 = arith.addf %91, %90 : vector<8x16xf32>
    %93 = arith.divf %91, %92 : vector<8x16xf32>
    %94 = vector.extract_strided_slice %87 {offsets = [0, 16], sizes = [8, 16], strides = [1, 1]} : vector<8x64xf32> to vector<8x16xf32>
    %95 = arith.negf %94 : vector<8x16xf32>
    %96 = math.exp %95 : vector<8x16xf32>
    %cst_25 = arith.constant 1.000000e+00 : f32
    %97 = vector.broadcast %cst_25 : f32 to vector<8x16xf32>
    %98 = arith.addf %97, %96 : vector<8x16xf32>
    %99 = arith.divf %97, %98 : vector<8x16xf32>
    %100 = vector.extract_strided_slice %87 {offsets = [0, 32], sizes = [8, 16], strides = [1, 1]} : vector<8x64xf32> to vector<8x16xf32>
    %101 = math.tanh %100 : vector<8x16xf32>
    %102 = vector.extract_strided_slice %87 {offsets = [0, 48], sizes = [8, 16], strides = [1, 1]} : vector<8x64xf32> to vector<8x16xf32>
    %103 = arith.negf %102 : vector<8x16xf32>
    %104 = math.exp %103 : vector<8x16xf32>
    %cst_26 = arith.constant 1.000000e+00 : f32
    %105 = vector.broadcast %cst_26 : f32 to vector<8x16xf32>
    %106 = arith.addf %105, %104 : vector<8x16xf32>
    %107 = arith.divf %105, %106 : vector<8x16xf32>
    %108 = arith.mulf %99, %83 : vector<8x16xf32>
    %109 = arith.mulf %93, %101 : vector<8x16xf32>
    %110 = arith.addf %108, %109 : vector<8x16xf32>
    %111 = math.tanh %110 : vector<8x16xf32>
    %112 = arith.mulf %107, %111 : vector<8x16xf32>
    %c2_i32 = arith.constant 2 : i32
    %113 = arith.addi %0, %c2_i32 : i32
    %114 = vector.broadcast %113 : i32 to vector<8x1xi32>
    %115 = arith.cmpi sgt, %6, %114 : vector<8x1xi32>
    %116 = vector.shape_cast %115 : vector<8x1xi1> to vector<8x1xi1>
    %117 = vector.broadcast %116 : vector<8x1xi1> to vector<8x16xi1>
    %118 = arith.select %117, %112, %80 : vector<8x16xi1>, vector<8x16xf32>
    %119 = vector.shape_cast %115 : vector<8x1xi1> to vector<8x1xi1>
    %120 = vector.broadcast %119 : vector<8x1xi1> to vector<8x16xi1>
    %121 = arith.select %120, %110, %83 : vector<8x16xi1>, vector<8x16xf32>
    %c3 = arith.constant 3 : index
    %c0_27 = arith.constant 0 : index
    %c0_28 = arith.constant 0 : index
    %122 = vector.load %arg2[%c3, %c0_27, %c0_28] : memref<6x8x64xf32, #tpu.memory_space<vmem>>, vector<1x8x64xf32>
    %123 = vector.shape_cast %122 : vector<1x8x64xf32> to vector<8x64xf32>
    %cst_29 = arith.constant dense<0.000000e+00> : vector<8x64xf32>
    %124 = tpu.matmul %118, %7, %cst_29 {dimension_numbers = #tpu.dot_dimension_numbers<[1], [0], [0], [1], [0, 0, 1, 1], [], []>} : vector<8x16xf32>, vector<16x64xf32>, vector<8x64xf32> -> vector<8x64xf32>
    %125 = arith.addf %123, %124 : vector<8x64xf32>
    %126 = vector.extract_strided_slice %125 {offsets = [0, 0], sizes = [8, 16], strides = [1, 1]} : vector<8x64xf32> to vector<8x16xf32>
    %127 = arith.negf %126 : vector<8x16xf32>
    %128 = math.exp %127 : vector<8x16xf32>
    %cst_30 = arith.constant 1.000000e+00 : f32
    %129 = vector.broadcast %cst_30 : f32 to vector<8x16xf32>
    %130 = arith.addf %129, %128 : vector<8x16xf32>
    %131 = arith.divf %129, %130 : vector<8x16xf32>
    %132 = vector.extract_strided_slice %125 {offsets = [0, 16], sizes = [8, 16], strides = [1, 1]} : vector<8x64xf32> to vector<8x16xf32>
    %133 = arith.negf %132 : vector<8x16xf32>
    %134 = math.exp %133 : vector<8x16xf32>
    %cst_31 = arith.constant 1.000000e+00 : f32
    %135 = vector.broadcast %cst_31 : f32 to vector<8x16xf32>
    %136 = arith.addf %135, %134 : vector<8x16xf32>
    %137 = arith.divf %135, %136 : vector<8x16xf32>
    %138 = vector.extract_strided_slice %125 {offsets = [0, 32], sizes = [8, 16], strides = [1, 1]} : vector<8x64xf32> to vector<8x16xf32>
    %139 = math.tanh %138 : vector<8x16xf32>
    %140 = vector.extract_strided_slice %125 {offsets = [0, 48], sizes = [8, 16], strides = [1, 1]} : vector<8x64xf32> to vector<8x16xf32>
    %141 = arith.negf %140 : vector<8x16xf32>
    %142 = math.exp %141 : vector<8x16xf32>
    %cst_32 = arith.constant 1.000000e+00 : f32
    %143 = vector.broadcast %cst_32 : f32 to vector<8x16xf32>
    %144 = arith.addf %143, %142 : vector<8x16xf32>
    %145 = arith.divf %143, %144 : vector<8x16xf32>
    %146 = arith.mulf %137, %121 : vector<8x16xf32>
    %147 = arith.mulf %131, %139 : vector<8x16xf32>
    %148 = arith.addf %146, %147 : vector<8x16xf32>
    %149 = math.tanh %148 : vector<8x16xf32>
    %150 = arith.mulf %145, %149 : vector<8x16xf32>
    %c3_i32 = arith.constant 3 : i32
    %151 = arith.addi %0, %c3_i32 : i32
    %152 = vector.broadcast %151 : i32 to vector<8x1xi32>
    %153 = arith.cmpi sgt, %6, %152 : vector<8x1xi32>
    %154 = vector.shape_cast %153 : vector<8x1xi1> to vector<8x1xi1>
    %155 = vector.broadcast %154 : vector<8x1xi1> to vector<8x16xi1>
    %156 = arith.select %155, %150, %118 : vector<8x16xi1>, vector<8x16xf32>
    %157 = vector.shape_cast %153 : vector<8x1xi1> to vector<8x1xi1>
    %158 = vector.broadcast %157 : vector<8x1xi1> to vector<8x16xi1>
    %159 = arith.select %158, %148, %121 : vector<8x16xi1>, vector<8x16xf32>
    %c4 = arith.constant 4 : index
    %c0_33 = arith.constant 0 : index
    %c0_34 = arith.constant 0 : index
    %160 = vector.load %arg2[%c4, %c0_33, %c0_34] : memref<6x8x64xf32, #tpu.memory_space<vmem>>, vector<1x8x64xf32>
    %161 = vector.shape_cast %160 : vector<1x8x64xf32> to vector<8x64xf32>
    %cst_35 = arith.constant dense<0.000000e+00> : vector<8x64xf32>
    %162 = tpu.matmul %156, %7, %cst_35 {dimension_numbers = #tpu.dot_dimension_numbers<[1], [0], [0], [1], [0, 0, 1, 1], [], []>} : vector<8x16xf32>, vector<16x64xf32>, vector<8x64xf32> -> vector<8x64xf32>
    %163 = arith.addf %161, %162 : vector<8x64xf32>
    %164 = vector.extract_strided_slice %163 {offsets = [0, 0], sizes = [8, 16], strides = [1, 1]} : vector<8x64xf32> to vector<8x16xf32>
    %165 = arith.negf %164 : vector<8x16xf32>
    %166 = math.exp %165 : vector<8x16xf32>
    %cst_36 = arith.constant 1.000000e+00 : f32
    %167 = vector.broadcast %cst_36 : f32 to vector<8x16xf32>
    %168 = arith.addf %167, %166 : vector<8x16xf32>
    %169 = arith.divf %167, %168 : vector<8x16xf32>
    %170 = vector.extract_strided_slice %163 {offsets = [0, 16], sizes = [8, 16], strides = [1, 1]} : vector<8x64xf32> to vector<8x16xf32>
    %171 = arith.negf %170 : vector<8x16xf32>
    %172 = math.exp %171 : vector<8x16xf32>
    %cst_37 = arith.constant 1.000000e+00 : f32
    %173 = vector.broadcast %cst_37 : f32 to vector<8x16xf32>
    %174 = arith.addf %173, %172 : vector<8x16xf32>
    %175 = arith.divf %173, %174 : vector<8x16xf32>
    %176 = vector.extract_strided_slice %163 {offsets = [0, 32], sizes = [8, 16], strides = [1, 1]} : vector<8x64xf32> to vector<8x16xf32>
    %177 = math.tanh %176 : vector<8x16xf32>
    %178 = vector.extract_strided_slice %163 {offsets = [0, 48], sizes = [8, 16], strides = [1, 1]} : vector<8x64xf32> to vector<8x16xf32>
    %179 = arith.negf %178 : vector<8x16xf32>
    %180 = math.exp %179 : vector<8x16xf32>
    %cst_38 = arith.constant 1.000000e+00 : f32
    %181 = vector.broadcast %cst_38 : f32 to vector<8x16xf32>
    %182 = arith.addf %181, %180 : vector<8x16xf32>
    %183 = arith.divf %181, %182 : vector<8x16xf32>
    %184 = arith.mulf %175, %159 : vector<8x16xf32>
    %185 = arith.mulf %169, %177 : vector<8x16xf32>
    %186 = arith.addf %184, %185 : vector<8x16xf32>
    %187 = math.tanh %186 : vector<8x16xf32>
    %188 = arith.mulf %183, %187 : vector<8x16xf32>
    %c4_i32 = arith.constant 4 : i32
    %189 = arith.addi %0, %c4_i32 : i32
    %190 = vector.broadcast %189 : i32 to vector<8x1xi32>
    %191 = arith.cmpi sgt, %6, %190 : vector<8x1xi32>
    %192 = vector.shape_cast %191 : vector<8x1xi1> to vector<8x1xi1>
    %193 = vector.broadcast %192 : vector<8x1xi1> to vector<8x16xi1>
    %194 = arith.select %193, %188, %156 : vector<8x16xi1>, vector<8x16xf32>
    %195 = vector.shape_cast %191 : vector<8x1xi1> to vector<8x1xi1>
    %196 = vector.broadcast %195 : vector<8x1xi1> to vector<8x16xi1>
    %197 = arith.select %196, %186, %159 : vector<8x16xi1>, vector<8x16xf32>
    %c5 = arith.constant 5 : index
    %c0_39 = arith.constant 0 : index
    %c0_40 = arith.constant 0 : index
    %198 = vector.load %arg2[%c5, %c0_39, %c0_40] : memref<6x8x64xf32, #tpu.memory_space<vmem>>, vector<1x8x64xf32>
    %199 = vector.shape_cast %198 : vector<1x8x64xf32> to vector<8x64xf32>
    %cst_41 = arith.constant dense<0.000000e+00> : vector<8x64xf32>
    %200 = tpu.matmul %194, %7, %cst_41 {dimension_numbers = #tpu.dot_dimension_numbers<[1], [0], [0], [1], [0, 0, 1, 1], [], []>} : vector<8x16xf32>, vector<16x64xf32>, vector<8x64xf32> -> vector<8x64xf32>
    %201 = arith.addf %199, %200 : vector<8x64xf32>
    %202 = vector.extract_strided_slice %201 {offsets = [0, 0], sizes = [8, 16], strides = [1, 1]} : vector<8x64xf32> to vector<8x16xf32>
    %203 = arith.negf %202 : vector<8x16xf32>
    %204 = math.exp %203 : vector<8x16xf32>
    %cst_42 = arith.constant 1.000000e+00 : f32
    %205 = vector.broadcast %cst_42 : f32 to vector<8x16xf32>
    %206 = arith.addf %205, %204 : vector<8x16xf32>
    %207 = arith.divf %205, %206 : vector<8x16xf32>
    %208 = vector.extract_strided_slice %201 {offsets = [0, 16], sizes = [8, 16], strides = [1, 1]} : vector<8x64xf32> to vector<8x16xf32>
    %209 = arith.negf %208 : vector<8x16xf32>
    %210 = math.exp %209 : vector<8x16xf32>
    %cst_43 = arith.constant 1.000000e+00 : f32
    %211 = vector.broadcast %cst_43 : f32 to vector<8x16xf32>
    %212 = arith.addf %211, %210 : vector<8x16xf32>
    %213 = arith.divf %211, %212 : vector<8x16xf32>
    %214 = vector.extract_strided_slice %201 {offsets = [0, 32], sizes = [8, 16], strides = [1, 1]} : vector<8x64xf32> to vector<8x16xf32>
    %215 = math.tanh %214 : vector<8x16xf32>
    %216 = vector.extract_strided_slice %201 {offsets = [0, 48], sizes = [8, 16], strides = [1, 1]} : vector<8x64xf32> to vector<8x16xf32>
    %217 = arith.negf %216 : vector<8x16xf32>
    %218 = math.exp %217 : vector<8x16xf32>
    %cst_44 = arith.constant 1.000000e+00 : f32
    %219 = vector.broadcast %cst_44 : f32 to vector<8x16xf32>
    %220 = arith.addf %219, %218 : vector<8x16xf32>
    %221 = arith.divf %219, %220 : vector<8x16xf32>
    %222 = arith.mulf %213, %197 : vector<8x16xf32>
    %223 = arith.mulf %207, %215 : vector<8x16xf32>
    %224 = arith.addf %222, %223 : vector<8x16xf32>
    %225 = math.tanh %224 : vector<8x16xf32>
    %226 = arith.mulf %221, %225 : vector<8x16xf32>
    %c5_i32 = arith.constant 5 : i32
    %227 = arith.addi %0, %c5_i32 : i32
    %228 = vector.broadcast %227 : i32 to vector<8x1xi32>
    %229 = arith.cmpi sgt, %6, %228 : vector<8x1xi32>
    %230 = vector.shape_cast %229 : vector<8x1xi1> to vector<8x1xi1>
    %231 = vector.broadcast %230 : vector<8x1xi1> to vector<8x16xi1>
    %232 = arith.select %231, %226, %194 : vector<8x16xi1>, vector<8x16xf32>
    %233 = vector.shape_cast %229 : vector<8x1xi1> to vector<8x1xi1>
    %234 = vector.broadcast %233 : vector<8x1xi1> to vector<8x16xi1>
    %235 = arith.select %234, %224, %197 : vector<8x16xi1>, vector<8x16xf32>
    %c0_45 = arith.constant 0 : index
    %c0_46 = arith.constant 0 : index
    %236 = vector.load %arg6[%c0_45, %c0_46] : memref<8x16xf32, #tpu.memory_space<vmem>>, vector<8x16xf32>
    tpu.vector_store %arg6[%c0_45, %c0_46], %232 {strides = array<i32>} : memref<8x16xf32, #tpu.memory_space<vmem>>, vector<8x16xf32>,
    %c0_47 = arith.constant 0 : index
    %c0_48 = arith.constant 0 : index
    %237 = vector.load %arg7[%c0_47, %c0_48] : memref<8x16xf32, #tpu.memory_space<vmem>>, vector<8x16xf32>
    tpu.vector_store %arg7[%c0_47, %c0_48], %235 {strides = array<i32>} : memref<8x16xf32, #tpu.memory_space<vmem>>, vector<8x16xf32>,
    %c0_i32_49 = arith.constant 0 : i32
    %238 = arith.cmpi eq, %arg1, %c0_i32_49 : i32
    %239 = arith.extui %238 : i1 to i32
    %c0_i32_50 = arith.constant 0 : i32
    %240 = arith.cmpi ne, %239, %c0_i32_50 : i32
    scf.if %240 {
      %c0_51 = arith.constant 0 : index
      %c0_52 = arith.constant 0 : index
      %241 = vector.load %arg5[%c0_51, %c0_52] : memref<8x16xf32, #tpu.memory_space<vmem>>, vector<8x16xf32>
      tpu.vector_store %arg5[%c0_51, %c0_52], %232 {strides = array<i32>} : memref<8x16xf32, #tpu.memory_space<vmem>>, vector<8x16xf32>,
    } else {
    }
    return
  }
  func.func @transform_0(%arg0: i32, %arg1: i32) -> (i32, i32, i32) {
    %c0_i32 = arith.constant 0 : i32
    %c0_i32_0 = arith.constant 0 : i32
    return %arg1, %arg0, %c0_i32 : i32, i32, i32
  }
  func.func @transform_1(%arg0: i32, %arg1: i32) -> (i32, i32) {
    %c0_i32 = arith.constant 0 : i32
    %c0_i32_0 = arith.constant 0 : i32
    %c0_i32_1 = arith.constant 0 : i32
    return %c0_i32, %c0_i32_0 : i32, i32
  }
  func.func @transform_2(%arg0: i32, %arg1: i32) -> (i32, i32) {
    %c0_i32 = arith.constant 0 : i32
    %c0_i32_0 = arith.constant 0 : i32
    return %arg0, %c0_i32 : i32, i32
  }
  func.func @transform_3(%arg0: i32, %arg1: i32) -> (i32, i32) {
    %c0_i32 = arith.constant 0 : i32
    %c0_i32_0 = arith.constant 0 : i32
    return %arg0, %c0_i32 : i32, i32
  }
}

module attributes {stable_mosaic.version = 11 : i64} {
  func.func @_lstm_scan_kernel(%arg0: i32, %arg1: i32, %arg2: memref<6x8x64xf32, #tpu.memory_space<vmem>>, %arg3: memref<16x64xf32, #tpu.memory_space<vmem>>, %arg4: memref<8x1xi32, #tpu.memory_space<vmem>>, %arg5: memref<8x16xf32, #tpu.memory_space<vmem>>, %arg6: memref<8x16xf32, #tpu.memory_space<vmem>>, %arg7: memref<8x16xf32, #tpu.memory_space<vmem>>) attributes {dimension_semantics = [#tpu.dimension_semantics<parallel>, #tpu.dimension_semantics<arbitrary>], iteration_bounds = array<i64: 2, 1>, scalar_prefetch = 0 : i64, scratch_operands = 2 : i64, tpu.core_type = #tpu.core_type<tc>, window_params = [{transform_indices = @transform_0, window_bounds = array<i64: 6, 8, 64>}, {pipeline_mode = #tpu.pipeline_mode<synchronous>, transform_indices = @transform_1, window_bounds = array<i64: 16, 64>}, {transform_indices = @transform_2, window_bounds = array<i64: 8, 1>}, {transform_indices = @transform_3, window_bounds = array<i64: 8, 16>}]} {
    %c0_i32 = arith.constant 0 : i32
    %0 = arith.subi %c0_i32, %arg1 : i32
    %c6_i32 = arith.constant 6 : i32
    %1 = arith.muli %0, %c6_i32 : i32
    %c0_i32_0 = arith.constant 0 : i32
    %2 = arith.cmpi eq, %arg1, %c0_i32_0 : i32
    %3 = arith.extui %2 : i1 to i32
    %c0_i32_1 = arith.constant 0 : i32
    %4 = arith.cmpi ne, %3, %c0_i32_1 : i32
    scf.if %4 {
      %cst_52 = arith.constant 0.000000e+00 : f32
      %242 = vector.broadcast %cst_52 : f32 to vector<8x16xf32>
      %c0_53 = arith.constant 0 : index
      %c0_54 = arith.constant 0 : index
      %243 = vector.load %arg6[%c0_53, %c0_54] : memref<8x16xf32, #tpu.memory_space<vmem>>, vector<8x16xf32>
      tpu.vector_store %arg6[%c0_53, %c0_54], %242 {strides = array<i32>} : memref<8x16xf32, #tpu.memory_space<vmem>>, vector<8x16xf32>,
      %cst_55 = arith.constant 0.000000e+00 : f32
      %244 = vector.broadcast %cst_55 : f32 to vector<8x16xf32>
      %c0_56 = arith.constant 0 : index
      %c0_57 = arith.constant 0 : index
      %245 = vector.load %arg7[%c0_56, %c0_57] : memref<8x16xf32, #tpu.memory_space<vmem>>, vector<8x16xf32>
      tpu.vector_store %arg7[%c0_56, %c0_57], %244 {strides = array<i32>} : memref<8x16xf32, #tpu.memory_space<vmem>>, vector<8x16xf32>,
    } else {
    }
    %c0 = arith.constant 0 : index
    %c0_2 = arith.constant 0 : index
    %5 = vector.load %arg6[%c0, %c0_2] : memref<8x16xf32, #tpu.memory_space<vmem>>, vector<8x16xf32>
    %c0_3 = arith.constant 0 : index
    %c0_4 = arith.constant 0 : index
    %6 = vector.load %arg7[%c0_3, %c0_4] : memref<8x16xf32, #tpu.memory_space<vmem>>, vector<8x16xf32>
    %c0_5 = arith.constant 0 : index
    %c0_6 = arith.constant 0 : index
    %7 = vector.load %arg4[%c0_5, %c0_6] : memref<8x1xi32, #tpu.memory_space<vmem>>, vector<8x1xi32>
    %c0_7 = arith.constant 0 : index
    %c0_8 = arith.constant 0 : index
    %8 = vector.load %arg3[%c0_7, %c0_8] : memref<16x64xf32, #tpu.memory_space<vmem>>, vector<16x64xf32>
    %c5 = arith.constant 5 : index
    %c0_9 = arith.constant 0 : index
    %c0_10 = arith.constant 0 : index
    %9 = vector.load %arg2[%c5, %c0_9, %c0_10] : memref<6x8x64xf32, #tpu.memory_space<vmem>>, vector<1x8x64xf32>
    %10 = vector.shape_cast %9 : vector<1x8x64xf32> to vector<8x64xf32>
    %cst = arith.constant dense<0.000000e+00> : vector<8x64xf32>
    %11 = tpu.matmul %5, %8, %cst {dimension_numbers = #tpu.dot_dimension_numbers<[1], [0], [0], [1], [0, 0, 1, 1], [], []>} : vector<8x16xf32>, vector<16x64xf32>, vector<8x64xf32> -> vector<8x64xf32>
    %12 = arith.addf %10, %11 : vector<8x64xf32>
    %13 = vector.extract_strided_slice %12 {offsets = [0, 0], sizes = [8, 16], strides = [1, 1]} : vector<8x64xf32> to vector<8x16xf32>
    %14 = arith.negf %13 : vector<8x16xf32>
    %15 = math.exp %14 : vector<8x16xf32>
    %cst_11 = arith.constant 1.000000e+00 : f32
    %16 = vector.broadcast %cst_11 : f32 to vector<8x16xf32>
    %17 = arith.addf %16, %15 : vector<8x16xf32>
    %18 = arith.divf %16, %17 : vector<8x16xf32>
    %19 = vector.extract_strided_slice %12 {offsets = [0, 16], sizes = [8, 16], strides = [1, 1]} : vector<8x64xf32> to vector<8x16xf32>
    %20 = arith.negf %19 : vector<8x16xf32>
    %21 = math.exp %20 : vector<8x16xf32>
    %cst_12 = arith.constant 1.000000e+00 : f32
    %22 = vector.broadcast %cst_12 : f32 to vector<8x16xf32>
    %23 = arith.addf %22, %21 : vector<8x16xf32>
    %24 = arith.divf %22, %23 : vector<8x16xf32>
    %25 = vector.extract_strided_slice %12 {offsets = [0, 32], sizes = [8, 16], strides = [1, 1]} : vector<8x64xf32> to vector<8x16xf32>
    %26 = math.tanh %25 : vector<8x16xf32>
    %27 = vector.extract_strided_slice %12 {offsets = [0, 48], sizes = [8, 16], strides = [1, 1]} : vector<8x64xf32> to vector<8x16xf32>
    %28 = arith.negf %27 : vector<8x16xf32>
    %29 = math.exp %28 : vector<8x16xf32>
    %cst_13 = arith.constant 1.000000e+00 : f32
    %30 = vector.broadcast %cst_13 : f32 to vector<8x16xf32>
    %31 = arith.addf %30, %29 : vector<8x16xf32>
    %32 = arith.divf %30, %31 : vector<8x16xf32>
    %33 = arith.mulf %24, %6 : vector<8x16xf32>
    %34 = arith.mulf %18, %26 : vector<8x16xf32>
    %35 = arith.addf %33, %34 : vector<8x16xf32>
    %36 = math.tanh %35 : vector<8x16xf32>
    %37 = arith.mulf %32, %36 : vector<8x16xf32>
    %c5_i32 = arith.constant 5 : i32
    %38 = arith.addi %1, %c5_i32 : i32
    %39 = vector.broadcast %38 : i32 to vector<8x1xi32>
    %40 = arith.cmpi sgt, %7, %39 : vector<8x1xi32>
    %41 = vector.shape_cast %40 : vector<8x1xi1> to vector<8x1xi1>
    %42 = vector.broadcast %41 : vector<8x1xi1> to vector<8x16xi1>
    %43 = arith.select %42, %37, %5 : vector<8x16xi1>, vector<8x16xf32>
    %44 = vector.shape_cast %40 : vector<8x1xi1> to vector<8x1xi1>
    %45 = vector.broadcast %44 : vector<8x1xi1> to vector<8x16xi1>
    %46 = arith.select %45, %35, %6 : vector<8x16xi1>, vector<8x16xf32>
    %c4 = arith.constant 4 : index
    %c0_14 = arith.constant 0 : index
    %c0_15 = arith.constant 0 : index
    %47 = vector.load %arg2[%c4, %c0_14, %c0_15] : memref<6x8x64xf32, #tpu.memory_space<vmem>>, vector<1x8x64xf32>
    %48 = vector.shape_cast %47 : vector<1x8x64xf32> to vector<8x64xf32>
    %cst_16 = arith.constant dense<0.000000e+00> : vector<8x64xf32>
    %49 = tpu.matmul %43, %8, %cst_16 {dimension_numbers = #tpu.dot_dimension_numbers<[1], [0], [0], [1], [0, 0, 1, 1], [], []>} : vector<8x16xf32>, vector<16x64xf32>, vector<8x64xf32> -> vector<8x64xf32>
    %50 = arith.addf %48, %49 : vector<8x64xf32>
    %51 = vector.extract_strided_slice %50 {offsets = [0, 0], sizes = [8, 16], strides = [1, 1]} : vector<8x64xf32> to vector<8x16xf32>
    %52 = arith.negf %51 : vector<8x16xf32>
    %53 = math.exp %52 : vector<8x16xf32>
    %cst_17 = arith.constant 1.000000e+00 : f32
    %54 = vector.broadcast %cst_17 : f32 to vector<8x16xf32>
    %55 = arith.addf %54, %53 : vector<8x16xf32>
    %56 = arith.divf %54, %55 : vector<8x16xf32>
    %57 = vector.extract_strided_slice %50 {offsets = [0, 16], sizes = [8, 16], strides = [1, 1]} : vector<8x64xf32> to vector<8x16xf32>
    %58 = arith.negf %57 : vector<8x16xf32>
    %59 = math.exp %58 : vector<8x16xf32>
    %cst_18 = arith.constant 1.000000e+00 : f32
    %60 = vector.broadcast %cst_18 : f32 to vector<8x16xf32>
    %61 = arith.addf %60, %59 : vector<8x16xf32>
    %62 = arith.divf %60, %61 : vector<8x16xf32>
    %63 = vector.extract_strided_slice %50 {offsets = [0, 32], sizes = [8, 16], strides = [1, 1]} : vector<8x64xf32> to vector<8x16xf32>
    %64 = math.tanh %63 : vector<8x16xf32>
    %65 = vector.extract_strided_slice %50 {offsets = [0, 48], sizes = [8, 16], strides = [1, 1]} : vector<8x64xf32> to vector<8x16xf32>
    %66 = arith.negf %65 : vector<8x16xf32>
    %67 = math.exp %66 : vector<8x16xf32>
    %cst_19 = arith.constant 1.000000e+00 : f32
    %68 = vector.broadcast %cst_19 : f32 to vector<8x16xf32>
    %69 = arith.addf %68, %67 : vector<8x16xf32>
    %70 = arith.divf %68, %69 : vector<8x16xf32>
    %71 = arith.mulf %62, %46 : vector<8x16xf32>
    %72 = arith.mulf %56, %64 : vector<8x16xf32>
    %73 = arith.addf %71, %72 : vector<8x16xf32>
    %74 = math.tanh %73 : vector<8x16xf32>
    %75 = arith.mulf %70, %74 : vector<8x16xf32>
    %c4_i32 = arith.constant 4 : i32
    %76 = arith.addi %1, %c4_i32 : i32
    %77 = vector.broadcast %76 : i32 to vector<8x1xi32>
    %78 = arith.cmpi sgt, %7, %77 : vector<8x1xi32>
    %79 = vector.shape_cast %78 : vector<8x1xi1> to vector<8x1xi1>
    %80 = vector.broadcast %79 : vector<8x1xi1> to vector<8x16xi1>
    %81 = arith.select %80, %75, %43 : vector<8x16xi1>, vector<8x16xf32>
    %82 = vector.shape_cast %78 : vector<8x1xi1> to vector<8x1xi1>
    %83 = vector.broadcast %82 : vector<8x1xi1> to vector<8x16xi1>
    %84 = arith.select %83, %73, %46 : vector<8x16xi1>, vector<8x16xf32>
    %c3 = arith.constant 3 : index
    %c0_20 = arith.constant 0 : index
    %c0_21 = arith.constant 0 : index
    %85 = vector.load %arg2[%c3, %c0_20, %c0_21] : memref<6x8x64xf32, #tpu.memory_space<vmem>>, vector<1x8x64xf32>
    %86 = vector.shape_cast %85 : vector<1x8x64xf32> to vector<8x64xf32>
    %cst_22 = arith.constant dense<0.000000e+00> : vector<8x64xf32>
    %87 = tpu.matmul %81, %8, %cst_22 {dimension_numbers = #tpu.dot_dimension_numbers<[1], [0], [0], [1], [0, 0, 1, 1], [], []>} : vector<8x16xf32>, vector<16x64xf32>, vector<8x64xf32> -> vector<8x64xf32>
    %88 = arith.addf %86, %87 : vector<8x64xf32>
    %89 = vector.extract_strided_slice %88 {offsets = [0, 0], sizes = [8, 16], strides = [1, 1]} : vector<8x64xf32> to vector<8x16xf32>
    %90 = arith.negf %89 : vector<8x16xf32>
    %91 = math.exp %90 : vector<8x16xf32>
    %cst_23 = arith.constant 1.000000e+00 : f32
    %92 = vector.broadcast %cst_23 : f32 to vector<8x16xf32>
    %93 = arith.addf %92, %91 : vector<8x16xf32>
    %94 = arith.divf %92, %93 : vector<8x16xf32>
    %95 = vector.extract_strided_slice %88 {offsets = [0, 16], sizes = [8, 16], strides = [1, 1]} : vector<8x64xf32> to vector<8x16xf32>
    %96 = arith.negf %95 : vector<8x16xf32>
    %97 = math.exp %96 : vector<8x16xf32>
    %cst_24 = arith.constant 1.000000e+00 : f32
    %98 = vector.broadcast %cst_24 : f32 to vector<8x16xf32>
    %99 = arith.addf %98, %97 : vector<8x16xf32>
    %100 = arith.divf %98, %99 : vector<8x16xf32>
    %101 = vector.extract_strided_slice %88 {offsets = [0, 32], sizes = [8, 16], strides = [1, 1]} : vector<8x64xf32> to vector<8x16xf32>
    %102 = math.tanh %101 : vector<8x16xf32>
    %103 = vector.extract_strided_slice %88 {offsets = [0, 48], sizes = [8, 16], strides = [1, 1]} : vector<8x64xf32> to vector<8x16xf32>
    %104 = arith.negf %103 : vector<8x16xf32>
    %105 = math.exp %104 : vector<8x16xf32>
    %cst_25 = arith.constant 1.000000e+00 : f32
    %106 = vector.broadcast %cst_25 : f32 to vector<8x16xf32>
    %107 = arith.addf %106, %105 : vector<8x16xf32>
    %108 = arith.divf %106, %107 : vector<8x16xf32>
    %109 = arith.mulf %100, %84 : vector<8x16xf32>
    %110 = arith.mulf %94, %102 : vector<8x16xf32>
    %111 = arith.addf %109, %110 : vector<8x16xf32>
    %112 = math.tanh %111 : vector<8x16xf32>
    %113 = arith.mulf %108, %112 : vector<8x16xf32>
    %c3_i32 = arith.constant 3 : i32
    %114 = arith.addi %1, %c3_i32 : i32
    %115 = vector.broadcast %114 : i32 to vector<8x1xi32>
    %116 = arith.cmpi sgt, %7, %115 : vector<8x1xi32>
    %117 = vector.shape_cast %116 : vector<8x1xi1> to vector<8x1xi1>
    %118 = vector.broadcast %117 : vector<8x1xi1> to vector<8x16xi1>
    %119 = arith.select %118, %113, %81 : vector<8x16xi1>, vector<8x16xf32>
    %120 = vector.shape_cast %116 : vector<8x1xi1> to vector<8x1xi1>
    %121 = vector.broadcast %120 : vector<8x1xi1> to vector<8x16xi1>
    %122 = arith.select %121, %111, %84 : vector<8x16xi1>, vector<8x16xf32>
    %c2 = arith.constant 2 : index
    %c0_26 = arith.constant 0 : index
    %c0_27 = arith.constant 0 : index
    %123 = vector.load %arg2[%c2, %c0_26, %c0_27] : memref<6x8x64xf32, #tpu.memory_space<vmem>>, vector<1x8x64xf32>
    %124 = vector.shape_cast %123 : vector<1x8x64xf32> to vector<8x64xf32>
    %cst_28 = arith.constant dense<0.000000e+00> : vector<8x64xf32>
    %125 = tpu.matmul %119, %8, %cst_28 {dimension_numbers = #tpu.dot_dimension_numbers<[1], [0], [0], [1], [0, 0, 1, 1], [], []>} : vector<8x16xf32>, vector<16x64xf32>, vector<8x64xf32> -> vector<8x64xf32>
    %126 = arith.addf %124, %125 : vector<8x64xf32>
    %127 = vector.extract_strided_slice %126 {offsets = [0, 0], sizes = [8, 16], strides = [1, 1]} : vector<8x64xf32> to vector<8x16xf32>
    %128 = arith.negf %127 : vector<8x16xf32>
    %129 = math.exp %128 : vector<8x16xf32>
    %cst_29 = arith.constant 1.000000e+00 : f32
    %130 = vector.broadcast %cst_29 : f32 to vector<8x16xf32>
    %131 = arith.addf %130, %129 : vector<8x16xf32>
    %132 = arith.divf %130, %131 : vector<8x16xf32>
    %133 = vector.extract_strided_slice %126 {offsets = [0, 16], sizes = [8, 16], strides = [1, 1]} : vector<8x64xf32> to vector<8x16xf32>
    %134 = arith.negf %133 : vector<8x16xf32>
    %135 = math.exp %134 : vector<8x16xf32>
    %cst_30 = arith.constant 1.000000e+00 : f32
    %136 = vector.broadcast %cst_30 : f32 to vector<8x16xf32>
    %137 = arith.addf %136, %135 : vector<8x16xf32>
    %138 = arith.divf %136, %137 : vector<8x16xf32>
    %139 = vector.extract_strided_slice %126 {offsets = [0, 32], sizes = [8, 16], strides = [1, 1]} : vector<8x64xf32> to vector<8x16xf32>
    %140 = math.tanh %139 : vector<8x16xf32>
    %141 = vector.extract_strided_slice %126 {offsets = [0, 48], sizes = [8, 16], strides = [1, 1]} : vector<8x64xf32> to vector<8x16xf32>
    %142 = arith.negf %141 : vector<8x16xf32>
    %143 = math.exp %142 : vector<8x16xf32>
    %cst_31 = arith.constant 1.000000e+00 : f32
    %144 = vector.broadcast %cst_31 : f32 to vector<8x16xf32>
    %145 = arith.addf %144, %143 : vector<8x16xf32>
    %146 = arith.divf %144, %145 : vector<8x16xf32>
    %147 = arith.mulf %138, %122 : vector<8x16xf32>
    %148 = arith.mulf %132, %140 : vector<8x16xf32>
    %149 = arith.addf %147, %148 : vector<8x16xf32>
    %150 = math.tanh %149 : vector<8x16xf32>
    %151 = arith.mulf %146, %150 : vector<8x16xf32>
    %c2_i32 = arith.constant 2 : i32
    %152 = arith.addi %1, %c2_i32 : i32
    %153 = vector.broadcast %152 : i32 to vector<8x1xi32>
    %154 = arith.cmpi sgt, %7, %153 : vector<8x1xi32>
    %155 = vector.shape_cast %154 : vector<8x1xi1> to vector<8x1xi1>
    %156 = vector.broadcast %155 : vector<8x1xi1> to vector<8x16xi1>
    %157 = arith.select %156, %151, %119 : vector<8x16xi1>, vector<8x16xf32>
    %158 = vector.shape_cast %154 : vector<8x1xi1> to vector<8x1xi1>
    %159 = vector.broadcast %158 : vector<8x1xi1> to vector<8x16xi1>
    %160 = arith.select %159, %149, %122 : vector<8x16xi1>, vector<8x16xf32>
    %c1 = arith.constant 1 : index
    %c0_32 = arith.constant 0 : index
    %c0_33 = arith.constant 0 : index
    %161 = vector.load %arg2[%c1, %c0_32, %c0_33] : memref<6x8x64xf32, #tpu.memory_space<vmem>>, vector<1x8x64xf32>
    %162 = vector.shape_cast %161 : vector<1x8x64xf32> to vector<8x64xf32>
    %cst_34 = arith.constant dense<0.000000e+00> : vector<8x64xf32>
    %163 = tpu.matmul %157, %8, %cst_34 {dimension_numbers = #tpu.dot_dimension_numbers<[1], [0], [0], [1], [0, 0, 1, 1], [], []>} : vector<8x16xf32>, vector<16x64xf32>, vector<8x64xf32> -> vector<8x64xf32>
    %164 = arith.addf %162, %163 : vector<8x64xf32>
    %165 = vector.extract_strided_slice %164 {offsets = [0, 0], sizes = [8, 16], strides = [1, 1]} : vector<8x64xf32> to vector<8x16xf32>
    %166 = arith.negf %165 : vector<8x16xf32>
    %167 = math.exp %166 : vector<8x16xf32>
    %cst_35 = arith.constant 1.000000e+00 : f32
    %168 = vector.broadcast %cst_35 : f32 to vector<8x16xf32>
    %169 = arith.addf %168, %167 : vector<8x16xf32>
    %170 = arith.divf %168, %169 : vector<8x16xf32>
    %171 = vector.extract_strided_slice %164 {offsets = [0, 16], sizes = [8, 16], strides = [1, 1]} : vector<8x64xf32> to vector<8x16xf32>
    %172 = arith.negf %171 : vector<8x16xf32>
    %173 = math.exp %172 : vector<8x16xf32>
    %cst_36 = arith.constant 1.000000e+00 : f32
    %174 = vector.broadcast %cst_36 : f32 to vector<8x16xf32>
    %175 = arith.addf %174, %173 : vector<8x16xf32>
    %176 = arith.divf %174, %175 : vector<8x16xf32>
    %177 = vector.extract_strided_slice %164 {offsets = [0, 32], sizes = [8, 16], strides = [1, 1]} : vector<8x64xf32> to vector<8x16xf32>
    %178 = math.tanh %177 : vector<8x16xf32>
    %179 = vector.extract_strided_slice %164 {offsets = [0, 48], sizes = [8, 16], strides = [1, 1]} : vector<8x64xf32> to vector<8x16xf32>
    %180 = arith.negf %179 : vector<8x16xf32>
    %181 = math.exp %180 : vector<8x16xf32>
    %cst_37 = arith.constant 1.000000e+00 : f32
    %182 = vector.broadcast %cst_37 : f32 to vector<8x16xf32>
    %183 = arith.addf %182, %181 : vector<8x16xf32>
    %184 = arith.divf %182, %183 : vector<8x16xf32>
    %185 = arith.mulf %176, %160 : vector<8x16xf32>
    %186 = arith.mulf %170, %178 : vector<8x16xf32>
    %187 = arith.addf %185, %186 : vector<8x16xf32>
    %188 = math.tanh %187 : vector<8x16xf32>
    %189 = arith.mulf %184, %188 : vector<8x16xf32>
    %c1_i32 = arith.constant 1 : i32
    %190 = arith.addi %1, %c1_i32 : i32
    %191 = vector.broadcast %190 : i32 to vector<8x1xi32>
    %192 = arith.cmpi sgt, %7, %191 : vector<8x1xi32>
    %193 = vector.shape_cast %192 : vector<8x1xi1> to vector<8x1xi1>
    %194 = vector.broadcast %193 : vector<8x1xi1> to vector<8x16xi1>
    %195 = arith.select %194, %189, %157 : vector<8x16xi1>, vector<8x16xf32>
    %196 = vector.shape_cast %192 : vector<8x1xi1> to vector<8x1xi1>
    %197 = vector.broadcast %196 : vector<8x1xi1> to vector<8x16xi1>
    %198 = arith.select %197, %187, %160 : vector<8x16xi1>, vector<8x16xf32>
    %c0_38 = arith.constant 0 : index
    %c0_39 = arith.constant 0 : index
    %c0_40 = arith.constant 0 : index
    %199 = vector.load %arg2[%c0_38, %c0_39, %c0_40] : memref<6x8x64xf32, #tpu.memory_space<vmem>>, vector<1x8x64xf32>
    %200 = vector.shape_cast %199 : vector<1x8x64xf32> to vector<8x64xf32>
    %cst_41 = arith.constant dense<0.000000e+00> : vector<8x64xf32>
    %201 = tpu.matmul %195, %8, %cst_41 {dimension_numbers = #tpu.dot_dimension_numbers<[1], [0], [0], [1], [0, 0, 1, 1], [], []>} : vector<8x16xf32>, vector<16x64xf32>, vector<8x64xf32> -> vector<8x64xf32>
    %202 = arith.addf %200, %201 : vector<8x64xf32>
    %203 = vector.extract_strided_slice %202 {offsets = [0, 0], sizes = [8, 16], strides = [1, 1]} : vector<8x64xf32> to vector<8x16xf32>
    %204 = arith.negf %203 : vector<8x16xf32>
    %205 = math.exp %204 : vector<8x16xf32>
    %cst_42 = arith.constant 1.000000e+00 : f32
    %206 = vector.broadcast %cst_42 : f32 to vector<8x16xf32>
    %207 = arith.addf %206, %205 : vector<8x16xf32>
    %208 = arith.divf %206, %207 : vector<8x16xf32>
    %209 = vector.extract_strided_slice %202 {offsets = [0, 16], sizes = [8, 16], strides = [1, 1]} : vector<8x64xf32> to vector<8x16xf32>
    %210 = arith.negf %209 : vector<8x16xf32>
    %211 = math.exp %210 : vector<8x16xf32>
    %cst_43 = arith.constant 1.000000e+00 : f32
    %212 = vector.broadcast %cst_43 : f32 to vector<8x16xf32>
    %213 = arith.addf %212, %211 : vector<8x16xf32>
    %214 = arith.divf %212, %213 : vector<8x16xf32>
    %215 = vector.extract_strided_slice %202 {offsets = [0, 32], sizes = [8, 16], strides = [1, 1]} : vector<8x64xf32> to vector<8x16xf32>
    %216 = math.tanh %215 : vector<8x16xf32>
    %217 = vector.extract_strided_slice %202 {offsets = [0, 48], sizes = [8, 16], strides = [1, 1]} : vector<8x64xf32> to vector<8x16xf32>
    %218 = arith.negf %217 : vector<8x16xf32>
    %219 = math.exp %218 : vector<8x16xf32>
    %cst_44 = arith.constant 1.000000e+00 : f32
    %220 = vector.broadcast %cst_44 : f32 to vector<8x16xf32>
    %221 = arith.addf %220, %219 : vector<8x16xf32>
    %222 = arith.divf %220, %221 : vector<8x16xf32>
    %223 = arith.mulf %214, %198 : vector<8x16xf32>
    %224 = arith.mulf %208, %216 : vector<8x16xf32>
    %225 = arith.addf %223, %224 : vector<8x16xf32>
    %226 = math.tanh %225 : vector<8x16xf32>
    %227 = arith.mulf %222, %226 : vector<8x16xf32>
    %c0_i32_45 = arith.constant 0 : i32
    %228 = arith.addi %1, %c0_i32_45 : i32
    %229 = vector.broadcast %228 : i32 to vector<8x1xi32>
    %230 = arith.cmpi sgt, %7, %229 : vector<8x1xi32>
    %231 = vector.shape_cast %230 : vector<8x1xi1> to vector<8x1xi1>
    %232 = vector.broadcast %231 : vector<8x1xi1> to vector<8x16xi1>
    %233 = arith.select %232, %227, %195 : vector<8x16xi1>, vector<8x16xf32>
    %234 = vector.shape_cast %230 : vector<8x1xi1> to vector<8x1xi1>
    %235 = vector.broadcast %234 : vector<8x1xi1> to vector<8x16xi1>
    %236 = arith.select %235, %225, %198 : vector<8x16xi1>, vector<8x16xf32>
    %c0_46 = arith.constant 0 : index
    %c0_47 = arith.constant 0 : index
    %237 = vector.load %arg6[%c0_46, %c0_47] : memref<8x16xf32, #tpu.memory_space<vmem>>, vector<8x16xf32>
    tpu.vector_store %arg6[%c0_46, %c0_47], %233 {strides = array<i32>} : memref<8x16xf32, #tpu.memory_space<vmem>>, vector<8x16xf32>,
    %c0_48 = arith.constant 0 : index
    %c0_49 = arith.constant 0 : index
    %238 = vector.load %arg7[%c0_48, %c0_49] : memref<8x16xf32, #tpu.memory_space<vmem>>, vector<8x16xf32>
    tpu.vector_store %arg7[%c0_48, %c0_49], %236 {strides = array<i32>} : memref<8x16xf32, #tpu.memory_space<vmem>>, vector<8x16xf32>,
    %c0_i32_50 = arith.constant 0 : i32
    %239 = arith.cmpi eq, %arg1, %c0_i32_50 : i32
    %240 = arith.extui %239 : i1 to i32
    %c0_i32_51 = arith.constant 0 : i32
    %241 = arith.cmpi ne, %240, %c0_i32_51 : i32
    scf.if %241 {
      %c0_52 = arith.constant 0 : index
      %c0_53 = arith.constant 0 : index
      %242 = vector.load %arg5[%c0_52, %c0_53] : memref<8x16xf32, #tpu.memory_space<vmem>>, vector<8x16xf32>
      tpu.vector_store %arg5[%c0_52, %c0_53], %233 {strides = array<i32>} : memref<8x16xf32, #tpu.memory_space<vmem>>, vector<8x16xf32>,
    } else {
    }
    return
  }
  func.func @transform_0(%arg0: i32, %arg1: i32) -> (i32, i32, i32) {
    %c0_i32 = arith.constant 0 : i32
    %0 = arith.subi %c0_i32, %arg1 : i32
    %c0_i32_0 = arith.constant 0 : i32
    %c0_i32_1 = arith.constant 0 : i32
    return %0, %arg0, %c0_i32_0 : i32, i32, i32
  }
  func.func @transform_1(%arg0: i32, %arg1: i32) -> (i32, i32) {
    %c0_i32 = arith.constant 0 : i32
    %c0_i32_0 = arith.constant 0 : i32
    %c0_i32_1 = arith.constant 0 : i32
    return %c0_i32, %c0_i32_0 : i32, i32
  }
  func.func @transform_2(%arg0: i32, %arg1: i32) -> (i32, i32) {
    %c0_i32 = arith.constant 0 : i32
    %c0_i32_0 = arith.constant 0 : i32
    return %arg0, %c0_i32 : i32, i32
  }
  func.func @transform_3(%arg0: i32, %arg1: i32) -> (i32, i32) {
    %c0_i32 = arith.constant 0 : i32
    %c0_i32_0 = arith.constant 0 : i32
    return %arg0, %c0_i32 : i32, i32
  }
}

module attributes {stable_mosaic.version = 11 : i64} {
  func.func @_linear_kernel(%arg0: i32, %arg1: memref<16x32xf32, #tpu.memory_space<vmem>>, %arg2: memref<32x128xf32, #tpu.memory_space<vmem>>, %arg3: memref<1x128xf32, #tpu.memory_space<vmem>>, %arg4: memref<16x128xf32, #tpu.memory_space<vmem>>) attributes {dimension_semantics = [#tpu.dimension_semantics<parallel>], iteration_bounds = array<i64: 1>, scalar_prefetch = 0 : i64, scratch_operands = 0 : i64, tpu.core_type = #tpu.core_type<tc>, window_params = [{transform_indices = @transform_0, window_bounds = array<i64: 16, 32>}, {pipeline_mode = #tpu.pipeline_mode<synchronous>, transform_indices = @transform_1, window_bounds = array<i64: 32, 128>}, {pipeline_mode = #tpu.pipeline_mode<synchronous>, transform_indices = @transform_2, window_bounds = array<i64: 1, 128>}, {transform_indices = @transform_3, window_bounds = array<i64: 16, 128>}]} {
    %c0 = arith.constant 0 : index
    %c0_0 = arith.constant 0 : index
    %0 = vector.load %arg1[%c0, %c0_0] : memref<16x32xf32, #tpu.memory_space<vmem>>, vector<16x32xf32>
    %c0_1 = arith.constant 0 : index
    %c0_2 = arith.constant 0 : index
    %1 = vector.load %arg2[%c0_1, %c0_2] : memref<32x128xf32, #tpu.memory_space<vmem>>, vector<32x128xf32>
    %cst = arith.constant dense<0.000000e+00> : vector<16x128xf32>
    %2 = tpu.matmul %0, %1, %cst {dimension_numbers = #tpu.dot_dimension_numbers<[1], [0], [0], [1], [0, 0, 1, 1], [], []>} : vector<16x32xf32>, vector<32x128xf32>, vector<16x128xf32> -> vector<16x128xf32>
    %c0_3 = arith.constant 0 : index
    %c0_4 = arith.constant 0 : index
    %3 = vector.load %arg3[%c0_3, %c0_4] : memref<1x128xf32, #tpu.memory_space<vmem>>, vector<1x128xf32>
    %4 = vector.broadcast %3 : vector<1x128xf32> to vector<16x128xf32>
    %5 = arith.addf %2, %4 : vector<16x128xf32>
    %c0_5 = arith.constant 0 : index
    %c0_6 = arith.constant 0 : index
    %6 = vector.load %arg4[%c0_5, %c0_6] : memref<16x128xf32, #tpu.memory_space<vmem>>, vector<16x128xf32>
    tpu.vector_store %arg4[%c0_5, %c0_6], %5 {strides = array<i32>} : memref<16x128xf32, #tpu.memory_space<vmem>>, vector<16x128xf32>,
    return
  }
  func.func @transform_0(%arg0: i32) -> (i32, i32) {
    %c0_i32 = arith.constant 0 : i32
    %c0_i32_0 = arith.constant 0 : i32
    return %arg0, %c0_i32 : i32, i32
  }
  func.func @transform_1(%arg0: i32) -> (i32, i32) {
    %c0_i32 = arith.constant 0 : i32
    %c0_i32_0 = arith.constant 0 : i32
    %c0_i32_1 = arith.constant 0 : i32
    return %c0_i32, %c0_i32_0 : i32, i32
  }
  func.func @transform_2(%arg0: i32) -> (i32, i32) {
    %c0_i32 = arith.constant 0 : i32
    %c0_i32_0 = arith.constant 0 : i32
    %c0_i32_1 = arith.constant 0 : i32
    return %c0_i32, %c0_i32_0 : i32, i32
  }
  func.func @transform_3(%arg0: i32) -> (i32, i32) {
    %c0_i32 = arith.constant 0 : i32
    %c0_i32_0 = arith.constant 0 : i32
    return %arg0, %c0_i32 : i32, i32
  }
}

module attributes {stable_mosaic.version = 11 : i64} {
  func.func @_lstm_scan_kernel(%arg0: i32, %arg1: i32, %arg2: memref<8x2x128xf32, #tpu.memory_space<vmem>>, %arg3: memref<32x128xf32, #tpu.memory_space<vmem>>, %arg4: memref<2x1xi32, #tpu.memory_space<vmem>>, %arg5: memref<8x2x32xf32, #tpu.memory_space<vmem>>, %arg6: memref<2x32xf32, #tpu.memory_space<vmem>>, %arg7: memref<2x32xf32, #tpu.memory_space<vmem>>, %arg8: memref<2x32xf32, #tpu.memory_space<vmem>>) attributes {dimension_semantics = [#tpu.dimension_semantics<parallel>, #tpu.dimension_semantics<arbitrary>], iteration_bounds = array<i64: 1, 1>, scalar_prefetch = 0 : i64, scratch_operands = 2 : i64, tpu.core_type = #tpu.core_type<tc>, window_params = [{transform_indices = @transform_0, window_bounds = array<i64: 8, 2, 128>}, {pipeline_mode = #tpu.pipeline_mode<synchronous>, transform_indices = @transform_1, window_bounds = array<i64: 32, 128>}, {transform_indices = @transform_2, window_bounds = array<i64: 2, 1>}, {transform_indices = @transform_3, window_bounds = array<i64: 8, 2, 32>}, {transform_indices = @transform_4, window_bounds = array<i64: 2, 32>}]} {
    %c8_i32 = arith.constant 8 : i32
    %0 = arith.muli %arg1, %c8_i32 : i32
    %c0_i32 = arith.constant 0 : i32
    %1 = arith.cmpi eq, %arg1, %c0_i32 : i32
    %2 = arith.extui %1 : i1 to i32
    %c0_i32_0 = arith.constant 0 : i32
    %3 = arith.cmpi ne, %2, %c0_i32_0 : i32
    scf.if %3 {
      %cst_95 = arith.constant 0.000000e+00 : f32
      %373 = vector.broadcast %cst_95 : f32 to vector<2x32xf32>
      %c0_96 = arith.constant 0 : index
      %c0_97 = arith.constant 0 : index
      %374 = vector.load %arg7[%c0_96, %c0_97] : memref<2x32xf32, #tpu.memory_space<vmem>>, vector<2x32xf32>
      tpu.vector_store %arg7[%c0_96, %c0_97], %373 {strides = array<i32>} : memref<2x32xf32, #tpu.memory_space<vmem>>, vector<2x32xf32>,
      %cst_98 = arith.constant 0.000000e+00 : f32
      %375 = vector.broadcast %cst_98 : f32 to vector<2x32xf32>
      %c0_99 = arith.constant 0 : index
      %c0_100 = arith.constant 0 : index
      %376 = vector.load %arg8[%c0_99, %c0_100] : memref<2x32xf32, #tpu.memory_space<vmem>>, vector<2x32xf32>
      tpu.vector_store %arg8[%c0_99, %c0_100], %375 {strides = array<i32>} : memref<2x32xf32, #tpu.memory_space<vmem>>, vector<2x32xf32>,
    } else {
    }
    %c0 = arith.constant 0 : index
    %c0_1 = arith.constant 0 : index
    %4 = vector.load %arg7[%c0, %c0_1] : memref<2x32xf32, #tpu.memory_space<vmem>>, vector<2x32xf32>
    %c0_2 = arith.constant 0 : index
    %c0_3 = arith.constant 0 : index
    %5 = vector.load %arg8[%c0_2, %c0_3] : memref<2x32xf32, #tpu.memory_space<vmem>>, vector<2x32xf32>
    %c0_4 = arith.constant 0 : index
    %c0_5 = arith.constant 0 : index
    %6 = vector.load %arg4[%c0_4, %c0_5] : memref<2x1xi32, #tpu.memory_space<vmem>>, vector<2x1xi32>
    %c0_6 = arith.constant 0 : index
    %c0_7 = arith.constant 0 : index
    %7 = vector.load %arg3[%c0_6, %c0_7] : memref<32x128xf32, #tpu.memory_space<vmem>>, vector<32x128xf32>
    %c0_8 = arith.constant 0 : index
    %c0_9 = arith.constant 0 : index
    %c0_10 = arith.constant 0 : index
    %8 = vector.load %arg2[%c0_8, %c0_9, %c0_10] : memref<8x2x128xf32, #tpu.memory_space<vmem>>, vector<1x2x128xf32>
    %9 = vector.shape_cast %8 : vector<1x2x128xf32> to vector<2x128xf32>
    %cst = arith.constant dense<0.000000e+00> : vector<2x128xf32>
    %10 = tpu.matmul %4, %7, %cst {dimension_numbers = #tpu.dot_dimension_numbers<[1], [0], [0], [1], [0, 0, 1, 1], [], []>} : vector<2x32xf32>, vector<32x128xf32>, vector<2x128xf32> -> vector<2x128xf32>
    %11 = arith.addf %9, %10 : vector<2x128xf32>
    %12 = vector.extract_strided_slice %11 {offsets = [0, 0], sizes = [2, 32], strides = [1, 1]} : vector<2x128xf32> to vector<2x32xf32>
    %13 = arith.negf %12 : vector<2x32xf32>
    %14 = math.exp %13 : vector<2x32xf32>
    %cst_11 = arith.constant 1.000000e+00 : f32
    %15 = vector.broadcast %cst_11 : f32 to vector<2x32xf32>
    %16 = arith.addf %15, %14 : vector<2x32xf32>
    %17 = arith.divf %15, %16 : vector<2x32xf32>
    %18 = vector.extract_strided_slice %11 {offsets = [0, 32], sizes = [2, 32], strides = [1, 1]} : vector<2x128xf32> to vector<2x32xf32>
    %19 = arith.negf %18 : vector<2x32xf32>
    %20 = math.exp %19 : vector<2x32xf32>
    %cst_12 = arith.constant 1.000000e+00 : f32
    %21 = vector.broadcast %cst_12 : f32 to vector<2x32xf32>
    %22 = arith.addf %21, %20 : vector<2x32xf32>
    %23 = arith.divf %21, %22 : vector<2x32xf32>
    %24 = vector.extract_strided_slice %11 {offsets = [0, 64], sizes = [2, 32], strides = [1, 1]} : vector<2x128xf32> to vector<2x32xf32>
    %25 = math.tanh %24 : vector<2x32xf32>
    %26 = vector.extract_strided_slice %11 {offsets = [0, 96], sizes = [2, 32], strides = [1, 1]} : vector<2x128xf32> to vector<2x32xf32>
    %27 = arith.negf %26 : vector<2x32xf32>
    %28 = math.exp %27 : vector<2x32xf32>
    %cst_13 = arith.constant 1.000000e+00 : f32
    %29 = vector.broadcast %cst_13 : f32 to vector<2x32xf32>
    %30 = arith.addf %29, %28 : vector<2x32xf32>
    %31 = arith.divf %29, %30 : vector<2x32xf32>
    %32 = arith.mulf %23, %5 : vector<2x32xf32>
    %33 = arith.mulf %17, %25 : vector<2x32xf32>
    %34 = arith.addf %32, %33 : vector<2x32xf32>
    %35 = math.tanh %34 : vector<2x32xf32>
    %36 = arith.mulf %31, %35 : vector<2x32xf32>
    %c0_i32_14 = arith.constant 0 : i32
    %37 = arith.addi %0, %c0_i32_14 : i32
    %38 = vector.broadcast %37 : i32 to vector<2x1xi32>
    %39 = arith.cmpi sgt, %6, %38 : vector<2x1xi32>
    %40 = vector.shape_cast %39 : vector<2x1xi1> to vector<2x1xi1>
    %41 = vector.broadcast %40 : vector<2x1xi1> to vector<2x32xi1>
    %42 = arith.select %41, %36, %4 : vector<2x32xi1>, vector<2x32xf32>
    %43 = vector.shape_cast %39 : vector<2x1xi1> to vector<2x1xi1>
    %44 = vector.broadcast %43 : vector<2x1xi1> to vector<2x32xi1>
    %45 = arith.select %44, %34, %5 : vector<2x32xi1>, vector<2x32xf32>
    %cst_15 = arith.constant 0.000000e+00 : f32
    %46 = vector.shape_cast %39 : vector<2x1xi1> to vector<2x1xi1>
    %47 = vector.broadcast %46 : vector<2x1xi1> to vector<2x32xi1>
    %48 = vector.broadcast %cst_15 : f32 to vector<2x32xf32>
    %49 = arith.select %47, %36, %48 : vector<2x32xi1>, vector<2x32xf32>
    %c0_16 = arith.constant 0 : index
    %c0_17 = arith.constant 0 : index
    %c0_18 = arith.constant 0 : index
    %50 = vector.load %arg5[%c0_16, %c0_17, %c0_18] : memref<8x2x32xf32, #tpu.memory_space<vmem>>, vector<1x2x32xf32>
    %51 = vector.shape_cast %50 : vector<1x2x32xf32> to vector<2x32xf32>
    %52 = vector.shape_cast %49 : vector<2x32xf32> to vector<1x2x32xf32>
    tpu.vector_store %arg5[%c0_16, %c0_17, %c0_18], %52 {strides = array<i32>} : memref<8x2x32xf32, #tpu.memory_space<vmem>>, vector<1x2x32xf32>,
    %c1 = arith.constant 1 : index
    %c0_19 = arith.constant 0 : index
    %c0_20 = arith.constant 0 : index
    %53 = vector.load %arg2[%c1, %c0_19, %c0_20] : memref<8x2x128xf32, #tpu.memory_space<vmem>>, vector<1x2x128xf32>
    %54 = vector.shape_cast %53 : vector<1x2x128xf32> to vector<2x128xf32>
    %cst_21 = arith.constant dense<0.000000e+00> : vector<2x128xf32>
    %55 = tpu.matmul %42, %7, %cst_21 {dimension_numbers = #tpu.dot_dimension_numbers<[1], [0], [0], [1], [0, 0, 1, 1], [], []>} : vector<2x32xf32>, vector<32x128xf32>, vector<2x128xf32> -> vector<2x128xf32>
    %56 = arith.addf %54, %55 : vector<2x128xf32>
    %57 = vector.extract_strided_slice %56 {offsets = [0, 0], sizes = [2, 32], strides = [1, 1]} : vector<2x128xf32> to vector<2x32xf32>
    %58 = arith.negf %57 : vector<2x32xf32>
    %59 = math.exp %58 : vector<2x32xf32>
    %cst_22 = arith.constant 1.000000e+00 : f32
    %60 = vector.broadcast %cst_22 : f32 to vector<2x32xf32>
    %61 = arith.addf %60, %59 : vector<2x32xf32>
    %62 = arith.divf %60, %61 : vector<2x32xf32>
    %63 = vector.extract_strided_slice %56 {offsets = [0, 32], sizes = [2, 32], strides = [1, 1]} : vector<2x128xf32> to vector<2x32xf32>
    %64 = arith.negf %63 : vector<2x32xf32>
    %65 = math.exp %64 : vector<2x32xf32>
    %cst_23 = arith.constant 1.000000e+00 : f32
    %66 = vector.broadcast %cst_23 : f32 to vector<2x32xf32>
    %67 = arith.addf %66, %65 : vector<2x32xf32>
    %68 = arith.divf %66, %67 : vector<2x32xf32>
    %69 = vector.extract_strided_slice %56 {offsets = [0, 64], sizes = [2, 32], strides = [1, 1]} : vector<2x128xf32> to vector<2x32xf32>
    %70 = math.tanh %69 : vector<2x32xf32>
    %71 = vector.extract_strided_slice %56 {offsets = [0, 96], sizes = [2, 32], strides = [1, 1]} : vector<2x128xf32> to vector<2x32xf32>
    %72 = arith.negf %71 : vector<2x32xf32>
    %73 = math.exp %72 : vector<2x32xf32>
    %cst_24 = arith.constant 1.000000e+00 : f32
    %74 = vector.broadcast %cst_24 : f32 to vector<2x32xf32>
    %75 = arith.addf %74, %73 : vector<2x32xf32>
    %76 = arith.divf %74, %75 : vector<2x32xf32>
    %77 = arith.mulf %68, %45 : vector<2x32xf32>
    %78 = arith.mulf %62, %70 : vector<2x32xf32>
    %79 = arith.addf %77, %78 : vector<2x32xf32>
    %80 = math.tanh %79 : vector<2x32xf32>
    %81 = arith.mulf %76, %80 : vector<2x32xf32>
    %c1_i32 = arith.constant 1 : i32
    %82 = arith.addi %0, %c1_i32 : i32
    %83 = vector.broadcast %82 : i32 to vector<2x1xi32>
    %84 = arith.cmpi sgt, %6, %83 : vector<2x1xi32>
    %85 = vector.shape_cast %84 : vector<2x1xi1> to vector<2x1xi1>
    %86 = vector.broadcast %85 : vector<2x1xi1> to vector<2x32xi1>
    %87 = arith.select %86, %81, %42 : vector<2x32xi1>, vector<2x32xf32>
    %88 = vector.shape_cast %84 : vector<2x1xi1> to vector<2x1xi1>
    %89 = vector.broadcast %88 : vector<2x1xi1> to vector<2x32xi1>
    %90 = arith.select %89, %79, %45 : vector<2x32xi1>, vector<2x32xf32>
    %cst_25 = arith.constant 0.000000e+00 : f32
    %91 = vector.shape_cast %84 : vector<2x1xi1> to vector<2x1xi1>
    %92 = vector.broadcast %91 : vector<2x1xi1> to vector<2x32xi1>
    %93 = vector.broadcast %cst_25 : f32 to vector<2x32xf32>
    %94 = arith.select %92, %81, %93 : vector<2x32xi1>, vector<2x32xf32>
    %c1_26 = arith.constant 1 : index
    %c0_27 = arith.constant 0 : index
    %c0_28 = arith.constant 0 : index
    %95 = vector.load %arg5[%c1_26, %c0_27, %c0_28] : memref<8x2x32xf32, #tpu.memory_space<vmem>>, vector<1x2x32xf32>
    %96 = vector.shape_cast %95 : vector<1x2x32xf32> to vector<2x32xf32>
    %97 = vector.shape_cast %94 : vector<2x32xf32> to vector<1x2x32xf32>
    tpu.vector_store %arg5[%c1_26, %c0_27, %c0_28], %97 {strides = array<i32>} : memref<8x2x32xf32, #tpu.memory_space<vmem>>, vector<1x2x32xf32>,
    %c2 = arith.constant 2 : index
    %c0_29 = arith.constant 0 : index
    %c0_30 = arith.constant 0 : index
    %98 = vector.load %arg2[%c2, %c0_29, %c0_30] : memref<8x2x128xf32, #tpu.memory_space<vmem>>, vector<1x2x128xf32>
    %99 = vector.shape_cast %98 : vector<1x2x128xf32> to vector<2x128xf32>
    %cst_31 = arith.constant dense<0.000000e+00> : vector<2x128xf32>
    %100 = tpu.matmul %87, %7, %cst_31 {dimension_numbers = #tpu.dot_dimension_numbers<[1], [0], [0], [1], [0, 0, 1, 1], [], []>} : vector<2x32xf32>, vector<32x128xf32>, vector<2x128xf32> -> vector<2x128xf32>
    %101 = arith.addf %99, %100 : vector<2x128xf32>
    %102 = vector.extract_strided_slice %101 {offsets = [0, 0], sizes = [2, 32], strides = [1, 1]} : vector<2x128xf32> to vector<2x32xf32>
    %103 = arith.negf %102 : vector<2x32xf32>
    %104 = math.exp %103 : vector<2x32xf32>
    %cst_32 = arith.constant 1.000000e+00 : f32
    %105 = vector.broadcast %cst_32 : f32 to vector<2x32xf32>
    %106 = arith.addf %105, %104 : vector<2x32xf32>
    %107 = arith.divf %105, %106 : vector<2x32xf32>
    %108 = vector.extract_strided_slice %101 {offsets = [0, 32], sizes = [2, 32], strides = [1, 1]} : vector<2x128xf32> to vector<2x32xf32>
    %109 = arith.negf %108 : vector<2x32xf32>
    %110 = math.exp %109 : vector<2x32xf32>
    %cst_33 = arith.constant 1.000000e+00 : f32
    %111 = vector.broadcast %cst_33 : f32 to vector<2x32xf32>
    %112 = arith.addf %111, %110 : vector<2x32xf32>
    %113 = arith.divf %111, %112 : vector<2x32xf32>
    %114 = vector.extract_strided_slice %101 {offsets = [0, 64], sizes = [2, 32], strides = [1, 1]} : vector<2x128xf32> to vector<2x32xf32>
    %115 = math.tanh %114 : vector<2x32xf32>
    %116 = vector.extract_strided_slice %101 {offsets = [0, 96], sizes = [2, 32], strides = [1, 1]} : vector<2x128xf32> to vector<2x32xf32>
    %117 = arith.negf %116 : vector<2x32xf32>
    %118 = math.exp %117 : vector<2x32xf32>
    %cst_34 = arith.constant 1.000000e+00 : f32
    %119 = vector.broadcast %cst_34 : f32 to vector<2x32xf32>
    %120 = arith.addf %119, %118 : vector<2x32xf32>
    %121 = arith.divf %119, %120 : vector<2x32xf32>
    %122 = arith.mulf %113, %90 : vector<2x32xf32>
    %123 = arith.mulf %107, %115 : vector<2x32xf32>
    %124 = arith.addf %122, %123 : vector<2x32xf32>
    %125 = math.tanh %124 : vector<2x32xf32>
    %126 = arith.mulf %121, %125 : vector<2x32xf32>
    %c2_i32 = arith.constant 2 : i32
    %127 = arith.addi %0, %c2_i32 : i32
    %128 = vector.broadcast %127 : i32 to vector<2x1xi32>
    %129 = arith.cmpi sgt, %6, %128 : vector<2x1xi32>
    %130 = vector.shape_cast %129 : vector<2x1xi1> to vector<2x1xi1>
    %131 = vector.broadcast %130 : vector<2x1xi1> to vector<2x32xi1>
    %132 = arith.select %131, %126, %87 : vector<2x32xi1>, vector<2x32xf32>
    %133 = vector.shape_cast %129 : vector<2x1xi1> to vector<2x1xi1>
    %134 = vector.broadcast %133 : vector<2x1xi1> to vector<2x32xi1>
    %135 = arith.select %134, %124, %90 : vector<2x32xi1>, vector<2x32xf32>
    %cst_35 = arith.constant 0.000000e+00 : f32
    %136 = vector.shape_cast %129 : vector<2x1xi1> to vector<2x1xi1>
    %137 = vector.broadcast %136 : vector<2x1xi1> to vector<2x32xi1>
    %138 = vector.broadcast %cst_35 : f32 to vector<2x32xf32>
    %139 = arith.select %137, %126, %138 : vector<2x32xi1>, vector<2x32xf32>
    %c2_36 = arith.constant 2 : index
    %c0_37 = arith.constant 0 : index
    %c0_38 = arith.constant 0 : index
    %140 = vector.load %arg5[%c2_36, %c0_37, %c0_38] : memref<8x2x32xf32, #tpu.memory_space<vmem>>, vector<1x2x32xf32>
    %141 = vector.shape_cast %140 : vector<1x2x32xf32> to vector<2x32xf32>
    %142 = vector.shape_cast %139 : vector<2x32xf32> to vector<1x2x32xf32>
    tpu.vector_store %arg5[%c2_36, %c0_37, %c0_38], %142 {strides = array<i32>} : memref<8x2x32xf32, #tpu.memory_space<vmem>>, vector<1x2x32xf32>,
    %c3 = arith.constant 3 : index
    %c0_39 = arith.constant 0 : index
    %c0_40 = arith.constant 0 : index
    %143 = vector.load %arg2[%c3, %c0_39, %c0_40] : memref<8x2x128xf32, #tpu.memory_space<vmem>>, vector<1x2x128xf32>
    %144 = vector.shape_cast %143 : vector<1x2x128xf32> to vector<2x128xf32>
    %cst_41 = arith.constant dense<0.000000e+00> : vector<2x128xf32>
    %145 = tpu.matmul %132, %7, %cst_41 {dimension_numbers = #tpu.dot_dimension_numbers<[1], [0], [0], [1], [0, 0, 1, 1], [], []>} : vector<2x32xf32>, vector<32x128xf32>, vector<2x128xf32> -> vector<2x128xf32>
    %146 = arith.addf %144, %145 : vector<2x128xf32>
    %147 = vector.extract_strided_slice %146 {offsets = [0, 0], sizes = [2, 32], strides = [1, 1]} : vector<2x128xf32> to vector<2x32xf32>
    %148 = arith.negf %147 : vector<2x32xf32>
    %149 = math.exp %148 : vector<2x32xf32>
    %cst_42 = arith.constant 1.000000e+00 : f32
    %150 = vector.broadcast %cst_42 : f32 to vector<2x32xf32>
    %151 = arith.addf %150, %149 : vector<2x32xf32>
    %152 = arith.divf %150, %151 : vector<2x32xf32>
    %153 = vector.extract_strided_slice %146 {offsets = [0, 32], sizes = [2, 32], strides = [1, 1]} : vector<2x128xf32> to vector<2x32xf32>
    %154 = arith.negf %153 : vector<2x32xf32>
    %155 = math.exp %154 : vector<2x32xf32>
    %cst_43 = arith.constant 1.000000e+00 : f32
    %156 = vector.broadcast %cst_43 : f32 to vector<2x32xf32>
    %157 = arith.addf %156, %155 : vector<2x32xf32>
    %158 = arith.divf %156, %157 : vector<2x32xf32>
    %159 = vector.extract_strided_slice %146 {offsets = [0, 64], sizes = [2, 32], strides = [1, 1]} : vector<2x128xf32> to vector<2x32xf32>
    %160 = math.tanh %159 : vector<2x32xf32>
    %161 = vector.extract_strided_slice %146 {offsets = [0, 96], sizes = [2, 32], strides = [1, 1]} : vector<2x128xf32> to vector<2x32xf32>
    %162 = arith.negf %161 : vector<2x32xf32>
    %163 = math.exp %162 : vector<2x32xf32>
    %cst_44 = arith.constant 1.000000e+00 : f32
    %164 = vector.broadcast %cst_44 : f32 to vector<2x32xf32>
    %165 = arith.addf %164, %163 : vector<2x32xf32>
    %166 = arith.divf %164, %165 : vector<2x32xf32>
    %167 = arith.mulf %158, %135 : vector<2x32xf32>
    %168 = arith.mulf %152, %160 : vector<2x32xf32>
    %169 = arith.addf %167, %168 : vector<2x32xf32>
    %170 = math.tanh %169 : vector<2x32xf32>
    %171 = arith.mulf %166, %170 : vector<2x32xf32>
    %c3_i32 = arith.constant 3 : i32
    %172 = arith.addi %0, %c3_i32 : i32
    %173 = vector.broadcast %172 : i32 to vector<2x1xi32>
    %174 = arith.cmpi sgt, %6, %173 : vector<2x1xi32>
    %175 = vector.shape_cast %174 : vector<2x1xi1> to vector<2x1xi1>
    %176 = vector.broadcast %175 : vector<2x1xi1> to vector<2x32xi1>
    %177 = arith.select %176, %171, %132 : vector<2x32xi1>, vector<2x32xf32>
    %178 = vector.shape_cast %174 : vector<2x1xi1> to vector<2x1xi1>
    %179 = vector.broadcast %178 : vector<2x1xi1> to vector<2x32xi1>
    %180 = arith.select %179, %169, %135 : vector<2x32xi1>, vector<2x32xf32>
    %cst_45 = arith.constant 0.000000e+00 : f32
    %181 = vector.shape_cast %174 : vector<2x1xi1> to vector<2x1xi1>
    %182 = vector.broadcast %181 : vector<2x1xi1> to vector<2x32xi1>
    %183 = vector.broadcast %cst_45 : f32 to vector<2x32xf32>
    %184 = arith.select %182, %171, %183 : vector<2x32xi1>, vector<2x32xf32>
    %c3_46 = arith.constant 3 : index
    %c0_47 = arith.constant 0 : index
    %c0_48 = arith.constant 0 : index
    %185 = vector.load %arg5[%c3_46, %c0_47, %c0_48] : memref<8x2x32xf32, #tpu.memory_space<vmem>>, vector<1x2x32xf32>
    %186 = vector.shape_cast %185 : vector<1x2x32xf32> to vector<2x32xf32>
    %187 = vector.shape_cast %184 : vector<2x32xf32> to vector<1x2x32xf32>
    tpu.vector_store %arg5[%c3_46, %c0_47, %c0_48], %187 {strides = array<i32>} : memref<8x2x32xf32, #tpu.memory_space<vmem>>, vector<1x2x32xf32>,
    %c4 = arith.constant 4 : index
    %c0_49 = arith.constant 0 : index
    %c0_50 = arith.constant 0 : index
    %188 = vector.load %arg2[%c4, %c0_49, %c0_50] : memref<8x2x128xf32, #tpu.memory_space<vmem>>, vector<1x2x128xf32>
    %189 = vector.shape_cast %188 : vector<1x2x128xf32> to vector<2x128xf32>
    %cst_51 = arith.constant dense<0.000000e+00> : vector<2x128xf32>
    %190 = tpu.matmul %177, %7, %cst_51 {dimension_numbers = #tpu.dot_dimension_numbers<[1], [0], [0], [1], [0, 0, 1, 1], [], []>} : vector<2x32xf32>, vector<32x128xf32>, vector<2x128xf32> -> vector<2x128xf32>
    %191 = arith.addf %189, %190 : vector<2x128xf32>
    %192 = vector.extract_strided_slice %191 {offsets = [0, 0], sizes = [2, 32], strides = [1, 1]} : vector<2x128xf32> to vector<2x32xf32>
    %193 = arith.negf %192 : vector<2x32xf32>
    %194 = math.exp %193 : vector<2x32xf32>
    %cst_52 = arith.constant 1.000000e+00 : f32
    %195 = vector.broadcast %cst_52 : f32 to vector<2x32xf32>
    %196 = arith.addf %195, %194 : vector<2x32xf32>
    %197 = arith.divf %195, %196 : vector<2x32xf32>
    %198 = vector.extract_strided_slice %191 {offsets = [0, 32], sizes = [2, 32], strides = [1, 1]} : vector<2x128xf32> to vector<2x32xf32>
    %199 = arith.negf %198 : vector<2x32xf32>
    %200 = math.exp %199 : vector<2x32xf32>
    %cst_53 = arith.constant 1.000000e+00 : f32
    %201 = vector.broadcast %cst_53 : f32 to vector<2x32xf32>
    %202 = arith.addf %201, %200 : vector<2x32xf32>
    %203 = arith.divf %201, %202 : vector<2x32xf32>
    %204 = vector.extract_strided_slice %191 {offsets = [0, 64], sizes = [2, 32], strides = [1, 1]} : vector<2x128xf32> to vector<2x32xf32>
    %205 = math.tanh %204 : vector<2x32xf32>
    %206 = vector.extract_strided_slice %191 {offsets = [0, 96], sizes = [2, 32], strides = [1, 1]} : vector<2x128xf32> to vector<2x32xf32>
    %207 = arith.negf %206 : vector<2x32xf32>
    %208 = math.exp %207 : vector<2x32xf32>
    %cst_54 = arith.constant 1.000000e+00 : f32
    %209 = vector.broadcast %cst_54 : f32 to vector<2x32xf32>
    %210 = arith.addf %209, %208 : vector<2x32xf32>
    %211 = arith.divf %209, %210 : vector<2x32xf32>
    %212 = arith.mulf %203, %180 : vector<2x32xf32>
    %213 = arith.mulf %197, %205 : vector<2x32xf32>
    %214 = arith.addf %212, %213 : vector<2x32xf32>
    %215 = math.tanh %214 : vector<2x32xf32>
    %216 = arith.mulf %211, %215 : vector<2x32xf32>
    %c4_i32 = arith.constant 4 : i32
    %217 = arith.addi %0, %c4_i32 : i32
    %218 = vector.broadcast %217 : i32 to vector<2x1xi32>
    %219 = arith.cmpi sgt, %6, %218 : vector<2x1xi32>
    %220 = vector.shape_cast %219 : vector<2x1xi1> to vector<2x1xi1>
    %221 = vector.broadcast %220 : vector<2x1xi1> to vector<2x32xi1>
    %222 = arith.select %221, %216, %177 : vector<2x32xi1>, vector<2x32xf32>
    %223 = vector.shape_cast %219 : vector<2x1xi1> to vector<2x1xi1>
    %224 = vector.broadcast %223 : vector<2x1xi1> to vector<2x32xi1>
    %225 = arith.select %224, %214, %180 : vector<2x32xi1>, vector<2x32xf32>
    %cst_55 = arith.constant 0.000000e+00 : f32
    %226 = vector.shape_cast %219 : vector<2x1xi1> to vector<2x1xi1>
    %227 = vector.broadcast %226 : vector<2x1xi1> to vector<2x32xi1>
    %228 = vector.broadcast %cst_55 : f32 to vector<2x32xf32>
    %229 = arith.select %227, %216, %228 : vector<2x32xi1>, vector<2x32xf32>
    %c4_56 = arith.constant 4 : index
    %c0_57 = arith.constant 0 : index
    %c0_58 = arith.constant 0 : index
    %230 = vector.load %arg5[%c4_56, %c0_57, %c0_58] : memref<8x2x32xf32, #tpu.memory_space<vmem>>, vector<1x2x32xf32>
    %231 = vector.shape_cast %230 : vector<1x2x32xf32> to vector<2x32xf32>
    %232 = vector.shape_cast %229 : vector<2x32xf32> to vector<1x2x32xf32>
    tpu.vector_store %arg5[%c4_56, %c0_57, %c0_58], %232 {strides = array<i32>} : memref<8x2x32xf32, #tpu.memory_space<vmem>>, vector<1x2x32xf32>,
    %c5 = arith.constant 5 : index
    %c0_59 = arith.constant 0 : index
    %c0_60 = arith.constant 0 : index
    %233 = vector.load %arg2[%c5, %c0_59, %c0_60] : memref<8x2x128xf32, #tpu.memory_space<vmem>>, vector<1x2x128xf32>
    %234 = vector.shape_cast %233 : vector<1x2x128xf32> to vector<2x128xf32>
    %cst_61 = arith.constant dense<0.000000e+00> : vector<2x128xf32>
    %235 = tpu.matmul %222, %7, %cst_61 {dimension_numbers = #tpu.dot_dimension_numbers<[1], [0], [0], [1], [0, 0, 1, 1], [], []>} : vector<2x32xf32>, vector<32x128xf32>, vector<2x128xf32> -> vector<2x128xf32>
    %236 = arith.addf %234, %235 : vector<2x128xf32>
    %237 = vector.extract_strided_slice %236 {offsets = [0, 0], sizes = [2, 32], strides = [1, 1]} : vector<2x128xf32> to vector<2x32xf32>
    %238 = arith.negf %237 : vector<2x32xf32>
    %239 = math.exp %238 : vector<2x32xf32>
    %cst_62 = arith.constant 1.000000e+00 : f32
    %240 = vector.broadcast %cst_62 : f32 to vector<2x32xf32>
    %241 = arith.addf %240, %239 : vector<2x32xf32>
    %242 = arith.divf %240, %241 : vector<2x32xf32>
    %243 = vector.extract_strided_slice %236 {offsets = [0, 32], sizes = [2, 32], strides = [1, 1]} : vector<2x128xf32> to vector<2x32xf32>
    %244 = arith.negf %243 : vector<2x32xf32>
    %245 = math.exp %244 : vector<2x32xf32>
    %cst_63 = arith.constant 1.000000e+00 : f32
    %246 = vector.broadcast %cst_63 : f32 to vector<2x32xf32>
    %247 = arith.addf %246, %245 : vector<2x32xf32>
    %248 = arith.divf %246, %247 : vector<2x32xf32>
    %249 = vector.extract_strided_slice %236 {offsets = [0, 64], sizes = [2, 32], strides = [1, 1]} : vector<2x128xf32> to vector<2x32xf32>
    %250 = math.tanh %249 : vector<2x32xf32>
    %251 = vector.extract_strided_slice %236 {offsets = [0, 96], sizes = [2, 32], strides = [1, 1]} : vector<2x128xf32> to vector<2x32xf32>
    %252 = arith.negf %251 : vector<2x32xf32>
    %253 = math.exp %252 : vector<2x32xf32>
    %cst_64 = arith.constant 1.000000e+00 : f32
    %254 = vector.broadcast %cst_64 : f32 to vector<2x32xf32>
    %255 = arith.addf %254, %253 : vector<2x32xf32>
    %256 = arith.divf %254, %255 : vector<2x32xf32>
    %257 = arith.mulf %248, %225 : vector<2x32xf32>
    %258 = arith.mulf %242, %250 : vector<2x32xf32>
    %259 = arith.addf %257, %258 : vector<2x32xf32>
    %260 = math.tanh %259 : vector<2x32xf32>
    %261 = arith.mulf %256, %260 : vector<2x32xf32>
    %c5_i32 = arith.constant 5 : i32
    %262 = arith.addi %0, %c5_i32 : i32
    %263 = vector.broadcast %262 : i32 to vector<2x1xi32>
    %264 = arith.cmpi sgt, %6, %263 : vector<2x1xi32>
    %265 = vector.shape_cast %264 : vector<2x1xi1> to vector<2x1xi1>
    %266 = vector.broadcast %265 : vector<2x1xi1> to vector<2x32xi1>
    %267 = arith.select %266, %261, %222 : vector<2x32xi1>, vector<2x32xf32>
    %268 = vector.shape_cast %264 : vector<2x1xi1> to vector<2x1xi1>
    %269 = vector.broadcast %268 : vector<2x1xi1> to vector<2x32xi1>
    %270 = arith.select %269, %259, %225 : vector<2x32xi1>, vector<2x32xf32>
    %cst_65 = arith.constant 0.000000e+00 : f32
    %271 = vector.shape_cast %264 : vector<2x1xi1> to vector<2x1xi1>
    %272 = vector.broadcast %271 : vector<2x1xi1> to vector<2x32xi1>
    %273 = vector.broadcast %cst_65 : f32 to vector<2x32xf32>
    %274 = arith.select %272, %261, %273 : vector<2x32xi1>, vector<2x32xf32>
    %c5_66 = arith.constant 5 : index
    %c0_67 = arith.constant 0 : index
    %c0_68 = arith.constant 0 : index
    %275 = vector.load %arg5[%c5_66, %c0_67, %c0_68] : memref<8x2x32xf32, #tpu.memory_space<vmem>>, vector<1x2x32xf32>
    %276 = vector.shape_cast %275 : vector<1x2x32xf32> to vector<2x32xf32>
    %277 = vector.shape_cast %274 : vector<2x32xf32> to vector<1x2x32xf32>
    tpu.vector_store %arg5[%c5_66, %c0_67, %c0_68], %277 {strides = array<i32>} : memref<8x2x32xf32, #tpu.memory_space<vmem>>, vector<1x2x32xf32>,
    %c6 = arith.constant 6 : index
    %c0_69 = arith.constant 0 : index
    %c0_70 = arith.constant 0 : index
    %278 = vector.load %arg2[%c6, %c0_69, %c0_70] : memref<8x2x128xf32, #tpu.memory_space<vmem>>, vector<1x2x128xf32>
    %279 = vector.shape_cast %278 : vector<1x2x128xf32> to vector<2x128xf32>
    %cst_71 = arith.constant dense<0.000000e+00> : vector<2x128xf32>
    %280 = tpu.matmul %267, %7, %cst_71 {dimension_numbers = #tpu.dot_dimension_numbers<[1], [0], [0], [1], [0, 0, 1, 1], [], []>} : vector<2x32xf32>, vector<32x128xf32>, vector<2x128xf32> -> vector<2x128xf32>
    %281 = arith.addf %279, %280 : vector<2x128xf32>
    %282 = vector.extract_strided_slice %281 {offsets = [0, 0], sizes = [2, 32], strides = [1, 1]} : vector<2x128xf32> to vector<2x32xf32>
    %283 = arith.negf %282 : vector<2x32xf32>
    %284 = math.exp %283 : vector<2x32xf32>
    %cst_72 = arith.constant 1.000000e+00 : f32
    %285 = vector.broadcast %cst_72 : f32 to vector<2x32xf32>
    %286 = arith.addf %285, %284 : vector<2x32xf32>
    %287 = arith.divf %285, %286 : vector<2x32xf32>
    %288 = vector.extract_strided_slice %281 {offsets = [0, 32], sizes = [2, 32], strides = [1, 1]} : vector<2x128xf32> to vector<2x32xf32>
    %289 = arith.negf %288 : vector<2x32xf32>
    %290 = math.exp %289 : vector<2x32xf32>
    %cst_73 = arith.constant 1.000000e+00 : f32
    %291 = vector.broadcast %cst_73 : f32 to vector<2x32xf32>
    %292 = arith.addf %291, %290 : vector<2x32xf32>
    %293 = arith.divf %291, %292 : vector<2x32xf32>
    %294 = vector.extract_strided_slice %281 {offsets = [0, 64], sizes = [2, 32], strides = [1, 1]} : vector<2x128xf32> to vector<2x32xf32>
    %295 = math.tanh %294 : vector<2x32xf32>
    %296 = vector.extract_strided_slice %281 {offsets = [0, 96], sizes = [2, 32], strides = [1, 1]} : vector<2x128xf32> to vector<2x32xf32>
    %297 = arith.negf %296 : vector<2x32xf32>
    %298 = math.exp %297 : vector<2x32xf32>
    %cst_74 = arith.constant 1.000000e+00 : f32
    %299 = vector.broadcast %cst_74 : f32 to vector<2x32xf32>
    %300 = arith.addf %299, %298 : vector<2x32xf32>
    %301 = arith.divf %299, %300 : vector<2x32xf32>
    %302 = arith.mulf %293, %270 : vector<2x32xf32>
    %303 = arith.mulf %287, %295 : vector<2x32xf32>
    %304 = arith.addf %302, %303 : vector<2x32xf32>
    %305 = math.tanh %304 : vector<2x32xf32>
    %306 = arith.mulf %301, %305 : vector<2x32xf32>
    %c6_i32 = arith.constant 6 : i32
    %307 = arith.addi %0, %c6_i32 : i32
    %308 = vector.broadcast %307 : i32 to vector<2x1xi32>
    %309 = arith.cmpi sgt, %6, %308 : vector<2x1xi32>
    %310 = vector.shape_cast %309 : vector<2x1xi1> to vector<2x1xi1>
    %311 = vector.broadcast %310 : vector<2x1xi1> to vector<2x32xi1>
    %312 = arith.select %311, %306, %267 : vector<2x32xi1>, vector<2x32xf32>
    %313 = vector.shape_cast %309 : vector<2x1xi1> to vector<2x1xi1>
    %314 = vector.broadcast %313 : vector<2x1xi1> to vector<2x32xi1>
    %315 = arith.select %314, %304, %270 : vector<2x32xi1>, vector<2x32xf32>
    %cst_75 = arith.constant 0.000000e+00 : f32
    %316 = vector.shape_cast %309 : vector<2x1xi1> to vector<2x1xi1>
    %317 = vector.broadcast %316 : vector<2x1xi1> to vector<2x32xi1>
    %318 = vector.broadcast %cst_75 : f32 to vector<2x32xf32>
    %319 = arith.select %317, %306, %318 : vector<2x32xi1>, vector<2x32xf32>
    %c6_76 = arith.constant 6 : index
    %c0_77 = arith.constant 0 : index
    %c0_78 = arith.constant 0 : index
    %320 = vector.load %arg5[%c6_76, %c0_77, %c0_78] : memref<8x2x32xf32, #tpu.memory_space<vmem>>, vector<1x2x32xf32>
    %321 = vector.shape_cast %320 : vector<1x2x32xf32> to vector<2x32xf32>
    %322 = vector.shape_cast %319 : vector<2x32xf32> to vector<1x2x32xf32>
    tpu.vector_store %arg5[%c6_76, %c0_77, %c0_78], %322 {strides = array<i32>} : memref<8x2x32xf32, #tpu.memory_space<vmem>>, vector<1x2x32xf32>,
    %c7 = arith.constant 7 : index
    %c0_79 = arith.constant 0 : index
    %c0_80 = arith.constant 0 : index
    %323 = vector.load %arg2[%c7, %c0_79, %c0_80] : memref<8x2x128xf32, #tpu.memory_space<vmem>>, vector<1x2x128xf32>
    %324 = vector.shape_cast %323 : vector<1x2x128xf32> to vector<2x128xf32>
    %cst_81 = arith.constant dense<0.000000e+00> : vector<2x128xf32>
    %325 = tpu.matmul %312, %7, %cst_81 {dimension_numbers = #tpu.dot_dimension_numbers<[1], [0], [0], [1], [0, 0, 1, 1], [], []>} : vector<2x32xf32>, vector<32x128xf32>, vector<2x128xf32> -> vector<2x128xf32>
    %326 = arith.addf %324, %325 : vector<2x128xf32>
    %327 = vector.extract_strided_slice %326 {offsets = [0, 0], sizes = [2, 32], strides = [1, 1]} : vector<2x128xf32> to vector<2x32xf32>
    %328 = arith.negf %327 : vector<2x32xf32>
    %329 = math.exp %328 : vector<2x32xf32>
    %cst_82 = arith.constant 1.000000e+00 : f32
    %330 = vector.broadcast %cst_82 : f32 to vector<2x32xf32>
    %331 = arith.addf %330, %329 : vector<2x32xf32>
    %332 = arith.divf %330, %331 : vector<2x32xf32>
    %333 = vector.extract_strided_slice %326 {offsets = [0, 32], sizes = [2, 32], strides = [1, 1]} : vector<2x128xf32> to vector<2x32xf32>
    %334 = arith.negf %333 : vector<2x32xf32>
    %335 = math.exp %334 : vector<2x32xf32>
    %cst_83 = arith.constant 1.000000e+00 : f32
    %336 = vector.broadcast %cst_83 : f32 to vector<2x32xf32>
    %337 = arith.addf %336, %335 : vector<2x32xf32>
    %338 = arith.divf %336, %337 : vector<2x32xf32>
    %339 = vector.extract_strided_slice %326 {offsets = [0, 64], sizes = [2, 32], strides = [1, 1]} : vector<2x128xf32> to vector<2x32xf32>
    %340 = math.tanh %339 : vector<2x32xf32>
    %341 = vector.extract_strided_slice %326 {offsets = [0, 96], sizes = [2, 32], strides = [1, 1]} : vector<2x128xf32> to vector<2x32xf32>
    %342 = arith.negf %341 : vector<2x32xf32>
    %343 = math.exp %342 : vector<2x32xf32>
    %cst_84 = arith.constant 1.000000e+00 : f32
    %344 = vector.broadcast %cst_84 : f32 to vector<2x32xf32>
    %345 = arith.addf %344, %343 : vector<2x32xf32>
    %346 = arith.divf %344, %345 : vector<2x32xf32>
    %347 = arith.mulf %338, %315 : vector<2x32xf32>
    %348 = arith.mulf %332, %340 : vector<2x32xf32>
    %349 = arith.addf %347, %348 : vector<2x32xf32>
    %350 = math.tanh %349 : vector<2x32xf32>
    %351 = arith.mulf %346, %350 : vector<2x32xf32>
    %c7_i32 = arith.constant 7 : i32
    %352 = arith.addi %0, %c7_i32 : i32
    %353 = vector.broadcast %352 : i32 to vector<2x1xi32>
    %354 = arith.cmpi sgt, %6, %353 : vector<2x1xi32>
    %355 = vector.shape_cast %354 : vector<2x1xi1> to vector<2x1xi1>
    %356 = vector.broadcast %355 : vector<2x1xi1> to vector<2x32xi1>
    %357 = arith.select %356, %351, %312 : vector<2x32xi1>, vector<2x32xf32>
    %358 = vector.shape_cast %354 : vector<2x1xi1> to vector<2x1xi1>
    %359 = vector.broadcast %358 : vector<2x1xi1> to vector<2x32xi1>
    %360 = arith.select %359, %349, %315 : vector<2x32xi1>, vector<2x32xf32>
    %cst_85 = arith.constant 0.000000e+00 : f32
    %361 = vector.shape_cast %354 : vector<2x1xi1> to vector<2x1xi1>
    %362 = vector.broadcast %361 : vector<2x1xi1> to vector<2x32xi1>
    %363 = vector.broadcast %cst_85 : f32 to vector<2x32xf32>
    %364 = arith.select %362, %351, %363 : vector<2x32xi1>, vector<2x32xf32>
    %c7_86 = arith.constant 7 : index
    %c0_87 = arith.constant 0 : index
    %c0_88 = arith.constant 0 : index
    %365 = vector.load %arg5[%c7_86, %c0_87, %c0_88] : memref<8x2x32xf32, #tpu.memory_space<vmem>>, vector<1x2x32xf32>
    %366 = vector.shape_cast %365 : vector<1x2x32xf32> to vector<2x32xf32>
    %367 = vector.shape_cast %364 : vector<2x32xf32> to vector<1x2x32xf32>
    tpu.vector_store %arg5[%c7_86, %c0_87, %c0_88], %367 {strides = array<i32>} : memref<8x2x32xf32, #tpu.memory_space<vmem>>, vector<1x2x32xf32>,
    %c0_89 = arith.constant 0 : index
    %c0_90 = arith.constant 0 : index
    %368 = vector.load %arg7[%c0_89, %c0_90] : memref<2x32xf32, #tpu.memory_space<vmem>>, vector<2x32xf32>
    tpu.vector_store %arg7[%c0_89, %c0_90], %357 {strides = array<i32>} : memref<2x32xf32, #tpu.memory_space<vmem>>, vector<2x32xf32>,
    %c0_91 = arith.constant 0 : index
    %c0_92 = arith.constant 0 : index
    %369 = vector.load %arg8[%c0_91, %c0_92] : memref<2x32xf32, #tpu.memory_space<vmem>>, vector<2x32xf32>
    tpu.vector_store %arg8[%c0_91, %c0_92], %360 {strides = array<i32>} : memref<2x32xf32, #tpu.memory_space<vmem>>, vector<2x32xf32>,
    %c0_i32_93 = arith.constant 0 : i32
    %370 = arith.cmpi eq, %arg1, %c0_i32_93 : i32
    %371 = arith.extui %370 : i1 to i32
    %c0_i32_94 = arith.constant 0 : i32
    %372 = arith.cmpi ne, %371, %c0_i32_94 : i32
    scf.if %372 {
      %c0_95 = arith.constant 0 : index
      %c0_96 = arith.constant 0 : index
      %373 = vector.load %arg6[%c0_95, %c0_96] : memref<2x32xf32, #tpu.memory_space<vmem>>, vector<2x32xf32>
      tpu.vector_store %arg6[%c0_95, %c0_96], %357 {strides = array<i32>} : memref<2x32xf32, #tpu.memory_space<vmem>>, vector<2x32xf32>,
    } else {
    }
    return
  }
  func.func @transform_0(%arg0: i32, %arg1: i32) -> (i32, i32, i32) {
    %c0_i32 = arith.constant 0 : i32
    %c0_i32_0 = arith.constant 0 : i32
    return %arg1, %arg0, %c0_i32 : i32, i32, i32
  }
  func.func @transform_1(%arg0: i32, %arg1: i32) -> (i32, i32) {
    %c0_i32 = arith.constant 0 : i32
    %c0_i32_0 = arith.constant 0 : i32
    %c0_i32_1 = arith.constant 0 : i32
    return %c0_i32, %c0_i32_0 : i32, i32
  }
  func.func @transform_2(%arg0: i32, %arg1: i32) -> (i32, i32) {
    %c0_i32 = arith.constant 0 : i32
    %c0_i32_0 = arith.constant 0 : i32
    return %arg0, %c0_i32 : i32, i32
  }
  func.func @transform_3(%arg0: i32, %arg1: i32) -> (i32, i32, i32) {
    %c0_i32 = arith.constant 0 : i32
    %c0_i32_0 = arith.constant 0 : i32
    return %arg1, %arg0, %c0_i32 : i32, i32, i32
  }
  func.func @transform_4(%arg0: i32, %arg1: i32) -> (i32, i32) {
    %c0_i32 = arith.constant 0 : i32
    %c0_i32_0 = arith.constant 0 : i32
    return %arg0, %c0_i32 : i32, i32
  }
}

module attributes {stable_mosaic.version = 11 : i64} {
  func.func @_lstm_scan_kernel(%arg0: i32, %arg1: i32, %arg2: memref<8x2x128xf32, #tpu.memory_space<vmem>>, %arg3: memref<32x128xf32, #tpu.memory_space<vmem>>, %arg4: memref<2x1xi32, #tpu.memory_space<vmem>>, %arg5: memref<8x2x32xf32, #tpu.memory_space<vmem>>, %arg6: memref<2x32xf32, #tpu.memory_space<vmem>>, %arg7: memref<2x32xf32, #tpu.memory_space<vmem>>, %arg8: memref<2x32xf32, #tpu.memory_space<vmem>>) attributes {dimension_semantics = [#tpu.dimension_semantics<parallel>, #tpu.dimension_semantics<arbitrary>], iteration_bounds = array<i64: 1, 1>, scalar_prefetch = 0 : i64, scratch_operands = 2 : i64, tpu.core_type = #tpu.core_type<tc>, window_params = [{transform_indices = @transform_0, window_bounds = array<i64: 8, 2, 128>}, {pipeline_mode = #tpu.pipeline_mode<synchronous>, transform_indices = @transform_1, window_bounds = array<i64: 32, 128>}, {transform_indices = @transform_2, window_bounds = array<i64: 2, 1>}, {transform_indices = @transform_3, window_bounds = array<i64: 8, 2, 32>}, {transform_indices = @transform_4, window_bounds = array<i64: 2, 32>}]} {
    %c0_i32 = arith.constant 0 : i32
    %0 = arith.subi %c0_i32, %arg1 : i32
    %c8_i32 = arith.constant 8 : i32
    %1 = arith.muli %0, %c8_i32 : i32
    %c0_i32_0 = arith.constant 0 : i32
    %2 = arith.cmpi eq, %arg1, %c0_i32_0 : i32
    %3 = arith.extui %2 : i1 to i32
    %c0_i32_1 = arith.constant 0 : i32
    %4 = arith.cmpi ne, %3, %c0_i32_1 : i32
    scf.if %4 {
      %cst_96 = arith.constant 0.000000e+00 : f32
      %374 = vector.broadcast %cst_96 : f32 to vector<2x32xf32>
      %c0_97 = arith.constant 0 : index
      %c0_98 = arith.constant 0 : index
      %375 = vector.load %arg7[%c0_97, %c0_98] : memref<2x32xf32, #tpu.memory_space<vmem>>, vector<2x32xf32>
      tpu.vector_store %arg7[%c0_97, %c0_98], %374 {strides = array<i32>} : memref<2x32xf32, #tpu.memory_space<vmem>>, vector<2x32xf32>,
      %cst_99 = arith.constant 0.000000e+00 : f32
      %376 = vector.broadcast %cst_99 : f32 to vector<2x32xf32>
      %c0_100 = arith.constant 0 : index
      %c0_101 = arith.constant 0 : index
      %377 = vector.load %arg8[%c0_100, %c0_101] : memref<2x32xf32, #tpu.memory_space<vmem>>, vector<2x32xf32>
      tpu.vector_store %arg8[%c0_100, %c0_101], %376 {strides = array<i32>} : memref<2x32xf32, #tpu.memory_space<vmem>>, vector<2x32xf32>,
    } else {
    }
    %c0 = arith.constant 0 : index
    %c0_2 = arith.constant 0 : index
    %5 = vector.load %arg7[%c0, %c0_2] : memref<2x32xf32, #tpu.memory_space<vmem>>, vector<2x32xf32>
    %c0_3 = arith.constant 0 : index
    %c0_4 = arith.constant 0 : index
    %6 = vector.load %arg8[%c0_3, %c0_4] : memref<2x32xf32, #tpu.memory_space<vmem>>, vector<2x32xf32>
    %c0_5 = arith.constant 0 : index
    %c0_6 = arith.constant 0 : index
    %7 = vector.load %arg4[%c0_5, %c0_6] : memref<2x1xi32, #tpu.memory_space<vmem>>, vector<2x1xi32>
    %c0_7 = arith.constant 0 : index
    %c0_8 = arith.constant 0 : index
    %8 = vector.load %arg3[%c0_7, %c0_8] : memref<32x128xf32, #tpu.memory_space<vmem>>, vector<32x128xf32>
    %c7 = arith.constant 7 : index
    %c0_9 = arith.constant 0 : index
    %c0_10 = arith.constant 0 : index
    %9 = vector.load %arg2[%c7, %c0_9, %c0_10] : memref<8x2x128xf32, #tpu.memory_space<vmem>>, vector<1x2x128xf32>
    %10 = vector.shape_cast %9 : vector<1x2x128xf32> to vector<2x128xf32>
    %cst = arith.constant dense<0.000000e+00> : vector<2x128xf32>
    %11 = tpu.matmul %5, %8, %cst {dimension_numbers = #tpu.dot_dimension_numbers<[1], [0], [0], [1], [0, 0, 1, 1], [], []>} : vector<2x32xf32>, vector<32x128xf32>, vector<2x128xf32> -> vector<2x128xf32>
    %12 = arith.addf %10, %11 : vector<2x128xf32>
    %13 = vector.extract_strided_slice %12 {offsets = [0, 0], sizes = [2, 32], strides = [1, 1]} : vector<2x128xf32> to vector<2x32xf32>
    %14 = arith.negf %13 : vector<2x32xf32>
    %15 = math.exp %14 : vector<2x32xf32>
    %cst_11 = arith.constant 1.000000e+00 : f32
    %16 = vector.broadcast %cst_11 : f32 to vector<2x32xf32>
    %17 = arith.addf %16, %15 : vector<2x32xf32>
    %18 = arith.divf %16, %17 : vector<2x32xf32>
    %19 = vector.extract_strided_slice %12 {offsets = [0, 32], sizes = [2, 32], strides = [1, 1]} : vector<2x128xf32> to vector<2x32xf32>
    %20 = arith.negf %19 : vector<2x32xf32>
    %21 = math.exp %20 : vector<2x32xf32>
    %cst_12 = arith.constant 1.000000e+00 : f32
    %22 = vector.broadcast %cst_12 : f32 to vector<2x32xf32>
    %23 = arith.addf %22, %21 : vector<2x32xf32>
    %24 = arith.divf %22, %23 : vector<2x32xf32>
    %25 = vector.extract_strided_slice %12 {offsets = [0, 64], sizes = [2, 32], strides = [1, 1]} : vector<2x128xf32> to vector<2x32xf32>
    %26 = math.tanh %25 : vector<2x32xf32>
    %27 = vector.extract_strided_slice %12 {offsets = [0, 96], sizes = [2, 32], strides = [1, 1]} : vector<2x128xf32> to vector<2x32xf32>
    %28 = arith.negf %27 : vector<2x32xf32>
    %29 = math.exp %28 : vector<2x32xf32>
    %cst_13 = arith.constant 1.000000e+00 : f32
    %30 = vector.broadcast %cst_13 : f32 to vector<2x32xf32>
    %31 = arith.addf %30, %29 : vector<2x32xf32>
    %32 = arith.divf %30, %31 : vector<2x32xf32>
    %33 = arith.mulf %24, %6 : vector<2x32xf32>
    %34 = arith.mulf %18, %26 : vector<2x32xf32>
    %35 = arith.addf %33, %34 : vector<2x32xf32>
    %36 = math.tanh %35 : vector<2x32xf32>
    %37 = arith.mulf %32, %36 : vector<2x32xf32>
    %c7_i32 = arith.constant 7 : i32
    %38 = arith.addi %1, %c7_i32 : i32
    %39 = vector.broadcast %38 : i32 to vector<2x1xi32>
    %40 = arith.cmpi sgt, %7, %39 : vector<2x1xi32>
    %41 = vector.shape_cast %40 : vector<2x1xi1> to vector<2x1xi1>
    %42 = vector.broadcast %41 : vector<2x1xi1> to vector<2x32xi1>
    %43 = arith.select %42, %37, %5 : vector<2x32xi1>, vector<2x32xf32>
    %44 = vector.shape_cast %40 : vector<2x1xi1> to vector<2x1xi1>
    %45 = vector.broadcast %44 : vector<2x1xi1> to vector<2x32xi1>
    %46 = arith.select %45, %35, %6 : vector<2x32xi1>, vector<2x32xf32>
    %cst_14 = arith.constant 0.000000e+00 : f32
    %47 = vector.shape_cast %40 : vector<2x1xi1> to vector<2x1xi1>
    %48 = vector.broadcast %47 : vector<2x1xi1> to vector<2x32xi1>
    %49 = vector.broadcast %cst_14 : f32 to vector<2x32xf32>
    %50 = arith.select %48, %37, %49 : vector<2x32xi1>, vector<2x32xf32>
    %c7_15 = arith.constant 7 : index
    %c0_16 = arith.constant 0 : index
    %c0_17 = arith.constant 0 : index
    %51 = vector.load %arg5[%c7_15, %c0_16, %c0_17] : memref<8x2x32xf32, #tpu.memory_space<vmem>>, vector<1x2x32xf32>
    %52 = vector.shape_cast %51 : vector<1x2x32xf32> to vector<2x32xf32>
    %53 = vector.shape_cast %50 : vector<2x32xf32> to vector<1x2x32xf32>
    tpu.vector_store %arg5[%c7_15, %c0_16, %c0_17], %53 {strides = array<i32>} : memref<8x2x32xf32, #tpu.memory_space<vmem>>, vector<1x2x32xf32>,
    %c6 = arith.constant 6 : index
    %c0_18 = arith.constant 0 : index
    %c0_19 = arith.constant 0 : index
    %54 = vector.load %arg2[%c6, %c0_18, %c0_19] : memref<8x2x128xf32, #tpu.memory_space<vmem>>, vector<1x2x128xf32>
    %55 = vector.shape_cast %54 : vector<1x2x128xf32> to vector<2x128xf32>
    %cst_20 = arith.constant dense<0.000000e+00> : vector<2x128xf32>
    %56 = tpu.matmul %43, %8, %cst_20 {dimension_numbers = #tpu.dot_dimension_numbers<[1], [0], [0], [1], [0, 0, 1, 1], [], []>} : vector<2x32xf32>, vector<32x128xf32>, vector<2x128xf32> -> vector<2x128xf32>
    %57 = arith.addf %55, %56 : vector<2x128xf32>
    %58 = vector.extract_strided_slice %57 {offsets = [0, 0], sizes = [2, 32], strides = [1, 1]} : vector<2x128xf32> to vector<2x32xf32>
    %59 = arith.negf %58 : vector<2x32xf32>
    %60 = math.exp %59 : vector<2x32xf32>
    %cst_21 = arith.constant 1.000000e+00 : f32
    %61 = vector.broadcast %cst_21 : f32 to vector<2x32xf32>
    %62 = arith.addf %61, %60 : vector<2x32xf32>
    %63 = arith.divf %61, %62 : vector<2x32xf32>
    %64 = vector.extract_strided_slice %57 {offsets = [0, 32], sizes = [2, 32], strides = [1, 1]} : vector<2x128xf32> to vector<2x32xf32>
    %65 = arith.negf %64 : vector<2x32xf32>
    %66 = math.exp %65 : vector<2x32xf32>
    %cst_22 = arith.constant 1.000000e+00 : f32
    %67 = vector.broadcast %cst_22 : f32 to vector<2x32xf32>
    %68 = arith.addf %67, %66 : vector<2x32xf32>
    %69 = arith.divf %67, %68 : vector<2x32xf32>
    %70 = vector.extract_strided_slice %57 {offsets = [0, 64], sizes = [2, 32], strides = [1, 1]} : vector<2x128xf32> to vector<2x32xf32>
    %71 = math.tanh %70 : vector<2x32xf32>
    %72 = vector.extract_strided_slice %57 {offsets = [0, 96], sizes = [2, 32], strides = [1, 1]} : vector<2x128xf32> to vector<2x32xf32>
    %73 = arith.negf %72 : vector<2x32xf32>
    %74 = math.exp %73 : vector<2x32xf32>
    %cst_23 = arith.constant 1.000000e+00 : f32
    %75 = vector.broadcast %cst_23 : f32 to vector<2x32xf32>
    %76 = arith.addf %75, %74 : vector<2x32xf32>
    %77 = arith.divf %75, %76 : vector<2x32xf32>
    %78 = arith.mulf %69, %46 : vector<2x32xf32>
    %79 = arith.mulf %63, %71 : vector<2x32xf32>
    %80 = arith.addf %78, %79 : vector<2x32xf32>
    %81 = math.tanh %80 : vector<2x32xf32>
    %82 = arith.mulf %77, %81 : vector<2x32xf32>
    %c6_i32 = arith.constant 6 : i32
    %83 = arith.addi %1, %c6_i32 : i32
    %84 = vector.broadcast %83 : i32 to vector<2x1xi32>
    %85 = arith.cmpi sgt, %7, %84 : vector<2x1xi32>
    %86 = vector.shape_cast %85 : vector<2x1xi1> to vector<2x1xi1>
    %87 = vector.broadcast %86 : vector<2x1xi1> to vector<2x32xi1>
    %88 = arith.select %87, %82, %43 : vector<2x32xi1>, vector<2x32xf32>
    %89 = vector.shape_cast %85 : vector<2x1xi1> to vector<2x1xi1>
    %90 = vector.broadcast %89 : vector<2x1xi1> to vector<2x32xi1>
    %91 = arith.select %90, %80, %46 : vector<2x32xi1>, vector<2x32xf32>
    %cst_24 = arith.constant 0.000000e+00 : f32
    %92 = vector.shape_cast %85 : vector<2x1xi1> to vector<2x1xi1>
    %93 = vector.broadcast %92 : vector<2x1xi1> to vector<2x32xi1>
    %94 = vector.broadcast %cst_24 : f32 to vector<2x32xf32>
    %95 = arith.select %93, %82, %94 : vector<2x32xi1>, vector<2x32xf32>
    %c6_25 = arith.constant 6 : index
    %c0_26 = arith.constant 0 : index
    %c0_27 = arith.constant 0 : index
    %96 = vector.load %arg5[%c6_25, %c0_26, %c0_27] : memref<8x2x32xf32, #tpu.memory_space<vmem>>, vector<1x2x32xf32>
    %97 = vector.shape_cast %96 : vector<1x2x32xf32> to vector<2x32xf32>
    %98 = vector.shape_cast %95 : vector<2x32xf32> to vector<1x2x32xf32>
    tpu.vector_store %arg5[%c6_25, %c0_26, %c0_27], %98 {strides = array<i32>} : memref<8x2x32xf32, #tpu.memory_space<vmem>>, vector<1x2x32xf32>,
    %c5 = arith.constant 5 : index
    %c0_28 = arith.constant 0 : index
    %c0_29 = arith.constant 0 : index
    %99 = vector.load %arg2[%c5, %c0_28, %c0_29] : memref<8x2x128xf32, #tpu.memory_space<vmem>>, vector<1x2x128xf32>
    %100 = vector.shape_cast %99 : vector<1x2x128xf32> to vector<2x128xf32>
    %cst_30 = arith.constant dense<0.000000e+00> : vector<2x128xf32>
    %101 = tpu.matmul %88, %8, %cst_30 {dimension_numbers = #tpu.dot_dimension_numbers<[1], [0], [0], [1], [0, 0, 1, 1], [], []>} : vector<2x32xf32>, vector<32x128xf32>, vector<2x128xf32> -> vector<2x128xf32>
    %102 = arith.addf %100, %101 : vector<2x128xf32>
    %103 = vector.extract_strided_slice %102 {offsets = [0, 0], sizes = [2, 32], strides = [1, 1]} : vector<2x128xf32> to vector<2x32xf32>
    %104 = arith.negf %103 : vector<2x32xf32>
    %105 = math.exp %104 : vector<2x32xf32>
    %cst_31 = arith.constant 1.000000e+00 : f32
    %106 = vector.broadcast %cst_31 : f32 to vector<2x32xf32>
    %107 = arith.addf %106, %105 : vector<2x32xf32>
    %108 = arith.divf %106, %107 : vector<2x32xf32>
    %109 = vector.extract_strided_slice %102 {offsets = [0, 32], sizes = [2, 32], strides = [1, 1]} : vector<2x128xf32> to vector<2x32xf32>
    %110 = arith.negf %109 : vector<2x32xf32>
    %111 = math.exp %110 : vector<2x32xf32>
    %cst_32 = arith.constant 1.000000e+00 : f32
    %112 = vector.broadcast %cst_32 : f32 to vector<2x32xf32>
    %113 = arith.addf %112, %111 : vector<2x32xf32>
    %114 = arith.divf %112, %113 : vector<2x32xf32>
    %115 = vector.extract_strided_slice %102 {offsets = [0, 64], sizes = [2, 32], strides = [1, 1]} : vector<2x128xf32> to vector<2x32xf32>
    %116 = math.tanh %115 : vector<2x32xf32>
    %117 = vector.extract_strided_slice %102 {offsets = [0, 96], sizes = [2, 32], strides = [1, 1]} : vector<2x128xf32> to vector<2x32xf32>
    %118 = arith.negf %117 : vector<2x32xf32>
    %119 = math.exp %118 : vector<2x32xf32>
    %cst_33 = arith.constant 1.000000e+00 : f32
    %120 = vector.broadcast %cst_33 : f32 to vector<2x32xf32>
    %121 = arith.addf %120, %119 : vector<2x32xf32>
    %122 = arith.divf %120, %121 : vector<2x32xf32>
    %123 = arith.mulf %114, %91 : vector<2x32xf32>
    %124 = arith.mulf %108, %116 : vector<2x32xf32>
    %125 = arith.addf %123, %124 : vector<2x32xf32>
    %126 = math.tanh %125 : vector<2x32xf32>
    %127 = arith.mulf %122, %126 : vector<2x32xf32>
    %c5_i32 = arith.constant 5 : i32
    %128 = arith.addi %1, %c5_i32 : i32
    %129 = vector.broadcast %128 : i32 to vector<2x1xi32>
    %130 = arith.cmpi sgt, %7, %129 : vector<2x1xi32>
    %131 = vector.shape_cast %130 : vector<2x1xi1> to vector<2x1xi1>
    %132 = vector.broadcast %131 : vector<2x1xi1> to vector<2x32xi1>
    %133 = arith.select %132, %127, %88 : vector<2x32xi1>, vector<2x32xf32>
    %134 = vector.shape_cast %130 : vector<2x1xi1> to vector<2x1xi1>
    %135 = vector.broadcast %134 : vector<2x1xi1> to vector<2x32xi1>
    %136 = arith.select %135, %125, %91 : vector<2x32xi1>, vector<2x32xf32>
    %cst_34 = arith.constant 0.000000e+00 : f32
    %137 = vector.shape_cast %130 : vector<2x1xi1> to vector<2x1xi1>
    %138 = vector.broadcast %137 : vector<2x1xi1> to vector<2x32xi1>
    %139 = vector.broadcast %cst_34 : f32 to vector<2x32xf32>
    %140 = arith.select %138, %127, %139 : vector<2x32xi1>, vector<2x32xf32>
    %c5_35 = arith.constant 5 : index
    %c0_36 = arith.constant 0 : index
    %c0_37 = arith.constant 0 : index
    %141 = vector.load %arg5[%c5_35, %c0_36, %c0_37] : memref<8x2x32xf32, #tpu.memory_space<vmem>>, vector<1x2x32xf32>
    %142 = vector.shape_cast %141 : vector<1x2x32xf32> to vector<2x32xf32>
    %143 = vector.shape_cast %140 : vector<2x32xf32> to vector<1x2x32xf32>
    tpu.vector_store %arg5[%c5_35, %c0_36, %c0_37], %143 {strides = array<i32>} : memref<8x2x32xf32, #tpu.memory_space<vmem>>, vector<1x2x32xf32>,
    %c4 = arith.constant 4 : index
    %c0_38 = arith.constant 0 : index
    %c0_39 = arith.constant 0 : index
    %144 = vector.load %arg2[%c4, %c0_38, %c0_39] : memref<8x2x128xf32, #tpu.memory_space<vmem>>, vector<1x2x128xf32>
    %145 = vector.shape_cast %144 : vector<1x2x128xf32> to vector<2x128xf32>
    %cst_40 = arith.constant dense<0.000000e+00> : vector<2x128xf32>
    %146 = tpu.matmul %133, %8, %cst_40 {dimension_numbers = #tpu.dot_dimension_numbers<[1], [0], [0], [1], [0, 0, 1, 1], [], []>} : vector<2x32xf32>, vector<32x128xf32>, vector<2x128xf32> -> vector<2x128xf32>
    %147 = arith.addf %145, %146 : vector<2x128xf32>
    %148 = vector.extract_strided_slice %147 {offsets = [0, 0], sizes = [2, 32], strides = [1, 1]} : vector<2x128xf32> to vector<2x32xf32>
    %149 = arith.negf %148 : vector<2x32xf32>
    %150 = math.exp %149 : vector<2x32xf32>
    %cst_41 = arith.constant 1.000000e+00 : f32
    %151 = vector.broadcast %cst_41 : f32 to vector<2x32xf32>
    %152 = arith.addf %151, %150 : vector<2x32xf32>
    %153 = arith.divf %151, %152 : vector<2x32xf32>
    %154 = vector.extract_strided_slice %147 {offsets = [0, 32], sizes = [2, 32], strides = [1, 1]} : vector<2x128xf32> to vector<2x32xf32>
    %155 = arith.negf %154 : vector<2x32xf32>
    %156 = math.exp %155 : vector<2x32xf32>
    %cst_42 = arith.constant 1.000000e+00 : f32
    %157 = vector.broadcast %cst_42 : f32 to vector<2x32xf32>
    %158 = arith.addf %157, %156 : vector<2x32xf32>
    %159 = arith.divf %157, %158 : vector<2x32xf32>
    %160 = vector.extract_strided_slice %147 {offsets = [0, 64], sizes = [2, 32], strides = [1, 1]} : vector<2x128xf32> to vector<2x32xf32>
    %161 = math.tanh %160 : vector<2x32xf32>
    %162 = vector.extract_strided_slice %147 {offsets = [0, 96], sizes = [2, 32], strides = [1, 1]} : vector<2x128xf32> to vector<2x32xf32>
    %163 = arith.negf %162 : vector<2x32xf32>
    %164 = math.exp %163 : vector<2x32xf32>
    %cst_43 = arith.constant 1.000000e+00 : f32
    %165 = vector.broadcast %cst_43 : f32 to vector<2x32xf32>
    %166 = arith.addf %165, %164 : vector<2x32xf32>
    %167 = arith.divf %165, %166 : vector<2x32xf32>
    %168 = arith.mulf %159, %136 : vector<2x32xf32>
    %169 = arith.mulf %153, %161 : vector<2x32xf32>
    %170 = arith.addf %168, %169 : vector<2x32xf32>
    %171 = math.tanh %170 : vector<2x32xf32>
    %172 = arith.mulf %167, %171 : vector<2x32xf32>
    %c4_i32 = arith.constant 4 : i32
    %173 = arith.addi %1, %c4_i32 : i32
    %174 = vector.broadcast %173 : i32 to vector<2x1xi32>
    %175 = arith.cmpi sgt, %7, %174 : vector<2x1xi32>
    %176 = vector.shape_cast %175 : vector<2x1xi1> to vector<2x1xi1>
    %177 = vector.broadcast %176 : vector<2x1xi1> to vector<2x32xi1>
    %178 = arith.select %177, %172, %133 : vector<2x32xi1>, vector<2x32xf32>
    %179 = vector.shape_cast %175 : vector<2x1xi1> to vector<2x1xi1>
    %180 = vector.broadcast %179 : vector<2x1xi1> to vector<2x32xi1>
    %181 = arith.select %180, %170, %136 : vector<2x32xi1>, vector<2x32xf32>
    %cst_44 = arith.constant 0.000000e+00 : f32
    %182 = vector.shape_cast %175 : vector<2x1xi1> to vector<2x1xi1>
    %183 = vector.broadcast %182 : vector<2x1xi1> to vector<2x32xi1>
    %184 = vector.broadcast %cst_44 : f32 to vector<2x32xf32>
    %185 = arith.select %183, %172, %184 : vector<2x32xi1>, vector<2x32xf32>
    %c4_45 = arith.constant 4 : index
    %c0_46 = arith.constant 0 : index
    %c0_47 = arith.constant 0 : index
    %186 = vector.load %arg5[%c4_45, %c0_46, %c0_47] : memref<8x2x32xf32, #tpu.memory_space<vmem>>, vector<1x2x32xf32>
    %187 = vector.shape_cast %186 : vector<1x2x32xf32> to vector<2x32xf32>
    %188 = vector.shape_cast %185 : vector<2x32xf32> to vector<1x2x32xf32>
    tpu.vector_store %arg5[%c4_45, %c0_46, %c0_47], %188 {strides = array<i32>} : memref<8x2x32xf32, #tpu.memory_space<vmem>>, vector<1x2x32xf32>,
    %c3 = arith.constant 3 : index
    %c0_48 = arith.constant 0 : index
    %c0_49 = arith.constant 0 : index
    %189 = vector.load %arg2[%c3, %c0_48, %c0_49] : memref<8x2x128xf32, #tpu.memory_space<vmem>>, vector<1x2x128xf32>
    %190 = vector.shape_cast %189 : vector<1x2x128xf32> to vector<2x128xf32>
    %cst_50 = arith.constant dense<0.000000e+00> : vector<2x128xf32>
    %191 = tpu.matmul %178, %8, %cst_50 {dimension_numbers = #tpu.dot_dimension_numbers<[1], [0], [0], [1], [0, 0, 1, 1], [], []>} : vector<2x32xf32>, vector<32x128xf32>, vector<2x128xf32> -> vector<2x128xf32>
    %192 = arith.addf %190, %191 : vector<2x128xf32>
    %193 = vector.extract_strided_slice %192 {offsets = [0, 0], sizes = [2, 32], strides = [1, 1]} : vector<2x128xf32> to vector<2x32xf32>
    %194 = arith.negf %193 : vector<2x32xf32>
    %195 = math.exp %194 : vector<2x32xf32>
    %cst_51 = arith.constant 1.000000e+00 : f32
    %196 = vector.broadcast %cst_51 : f32 to vector<2x32xf32>
    %197 = arith.addf %196, %195 : vector<2x32xf32>
    %198 = arith.divf %196, %197 : vector<2x32xf32>
    %199 = vector.extract_strided_slice %192 {offsets = [0, 32], sizes = [2, 32], strides = [1, 1]} : vector<2x128xf32> to vector<2x32xf32>
    %200 = arith.negf %199 : vector<2x32xf32>
    %201 = math.exp %200 : vector<2x32xf32>
    %cst_52 = arith.constant 1.000000e+00 : f32
    %202 = vector.broadcast %cst_52 : f32 to vector<2x32xf32>
    %203 = arith.addf %202, %201 : vector<2x32xf32>
    %204 = arith.divf %202, %203 : vector<2x32xf32>
    %205 = vector.extract_strided_slice %192 {offsets = [0, 64], sizes = [2, 32], strides = [1, 1]} : vector<2x128xf32> to vector<2x32xf32>
    %206 = math.tanh %205 : vector<2x32xf32>
    %207 = vector.extract_strided_slice %192 {offsets = [0, 96], sizes = [2, 32], strides = [1, 1]} : vector<2x128xf32> to vector<2x32xf32>
    %208 = arith.negf %207 : vector<2x32xf32>
    %209 = math.exp %208 : vector<2x32xf32>
    %cst_53 = arith.constant 1.000000e+00 : f32
    %210 = vector.broadcast %cst_53 : f32 to vector<2x32xf32>
    %211 = arith.addf %210, %209 : vector<2x32xf32>
    %212 = arith.divf %210, %211 : vector<2x32xf32>
    %213 = arith.mulf %204, %181 : vector<2x32xf32>
    %214 = arith.mulf %198, %206 : vector<2x32xf32>
    %215 = arith.addf %213, %214 : vector<2x32xf32>
    %216 = math.tanh %215 : vector<2x32xf32>
    %217 = arith.mulf %212, %216 : vector<2x32xf32>
    %c3_i32 = arith.constant 3 : i32
    %218 = arith.addi %1, %c3_i32 : i32
    %219 = vector.broadcast %218 : i32 to vector<2x1xi32>
    %220 = arith.cmpi sgt, %7, %219 : vector<2x1xi32>
    %221 = vector.shape_cast %220 : vector<2x1xi1> to vector<2x1xi1>
    %222 = vector.broadcast %221 : vector<2x1xi1> to vector<2x32xi1>
    %223 = arith.select %222, %217, %178 : vector<2x32xi1>, vector<2x32xf32>
    %224 = vector.shape_cast %220 : vector<2x1xi1> to vector<2x1xi1>
    %225 = vector.broadcast %224 : vector<2x1xi1> to vector<2x32xi1>
    %226 = arith.select %225, %215, %181 : vector<2x32xi1>, vector<2x32xf32>
    %cst_54 = arith.constant 0.000000e+00 : f32
    %227 = vector.shape_cast %220 : vector<2x1xi1> to vector<2x1xi1>
    %228 = vector.broadcast %227 : vector<2x1xi1> to vector<2x32xi1>
    %229 = vector.broadcast %cst_54 : f32 to vector<2x32xf32>
    %230 = arith.select %228, %217, %229 : vector<2x32xi1>, vector<2x32xf32>
    %c3_55 = arith.constant 3 : index
    %c0_56 = arith.constant 0 : index
    %c0_57 = arith.constant 0 : index
    %231 = vector.load %arg5[%c3_55, %c0_56, %c0_57] : memref<8x2x32xf32, #tpu.memory_space<vmem>>, vector<1x2x32xf32>
    %232 = vector.shape_cast %231 : vector<1x2x32xf32> to vector<2x32xf32>
    %233 = vector.shape_cast %230 : vector<2x32xf32> to vector<1x2x32xf32>
    tpu.vector_store %arg5[%c3_55, %c0_56, %c0_57], %233 {strides = array<i32>} : memref<8x2x32xf32, #tpu.memory_space<vmem>>, vector<1x2x32xf32>,
    %c2 = arith.constant 2 : index
    %c0_58 = arith.constant 0 : index
    %c0_59 = arith.constant 0 : index
    %234 = vector.load %arg2[%c2, %c0_58, %c0_59] : memref<8x2x128xf32, #tpu.memory_space<vmem>>, vector<1x2x128xf32>
    %235 = vector.shape_cast %234 : vector<1x2x128xf32> to vector<2x128xf32>
    %cst_60 = arith.constant dense<0.000000e+00> : vector<2x128xf32>
    %236 = tpu.matmul %223, %8, %cst_60 {dimension_numbers = #tpu.dot_dimension_numbers<[1], [0], [0], [1], [0, 0, 1, 1], [], []>} : vector<2x32xf32>, vector<32x128xf32>, vector<2x128xf32> -> vector<2x128xf32>
    %237 = arith.addf %235, %236 : vector<2x128xf32>
    %238 = vector.extract_strided_slice %237 {offsets = [0, 0], sizes = [2, 32], strides = [1, 1]} : vector<2x128xf32> to vector<2x32xf32>
    %239 = arith.negf %238 : vector<2x32xf32>
    %240 = math.exp %239 : vector<2x32xf32>
    %cst_61 = arith.constant 1.000000e+00 : f32
    %241 = vector.broadcast %cst_61 : f32 to vector<2x32xf32>
    %242 = arith.addf %241, %240 : vector<2x32xf32>
    %243 = arith.divf %241, %242 : vector<2x32xf32>
    %244 = vector.extract_strided_slice %237 {offsets = [0, 32], sizes = [2, 32], strides = [1, 1]} : vector<2x128xf32> to vector<2x32xf32>
    %245 = arith.negf %244 : vector<2x32xf32>
    %246 = math.exp %245 : vector<2x32xf32>
    %cst_62 = arith.constant 1.000000e+00 : f32
    %247 = vector.broadcast %cst_62 : f32 to vector<2x32xf32>
    %248 = arith.addf %247, %246 : vector<2x32xf32>
    %249 = arith.divf %247, %248 : vector<2x32xf32>
    %250 = vector.extract_strided_slice %237 {offsets = [0, 64], sizes = [2, 32], strides = [1, 1]} : vector<2x128xf32> to vector<2x32xf32>
    %251 = math.tanh %250 : vector<2x32xf32>
    %252 = vector.extract_strided_slice %237 {offsets = [0, 96], sizes = [2, 32], strides = [1, 1]} : vector<2x128xf32> to vector<2x32xf32>
    %253 = arith.negf %252 : vector<2x32xf32>
    %254 = math.exp %253 : vector<2x32xf32>
    %cst_63 = arith.constant 1.000000e+00 : f32
    %255 = vector.broadcast %cst_63 : f32 to vector<2x32xf32>
    %256 = arith.addf %255, %254 : vector<2x32xf32>
    %257 = arith.divf %255, %256 : vector<2x32xf32>
    %258 = arith.mulf %249, %226 : vector<2x32xf32>
    %259 = arith.mulf %243, %251 : vector<2x32xf32>
    %260 = arith.addf %258, %259 : vector<2x32xf32>
    %261 = math.tanh %260 : vector<2x32xf32>
    %262 = arith.mulf %257, %261 : vector<2x32xf32>
    %c2_i32 = arith.constant 2 : i32
    %263 = arith.addi %1, %c2_i32 : i32
    %264 = vector.broadcast %263 : i32 to vector<2x1xi32>
    %265 = arith.cmpi sgt, %7, %264 : vector<2x1xi32>
    %266 = vector.shape_cast %265 : vector<2x1xi1> to vector<2x1xi1>
    %267 = vector.broadcast %266 : vector<2x1xi1> to vector<2x32xi1>
    %268 = arith.select %267, %262, %223 : vector<2x32xi1>, vector<2x32xf32>
    %269 = vector.shape_cast %265 : vector<2x1xi1> to vector<2x1xi1>
    %270 = vector.broadcast %269 : vector<2x1xi1> to vector<2x32xi1>
    %271 = arith.select %270, %260, %226 : vector<2x32xi1>, vector<2x32xf32>
    %cst_64 = arith.constant 0.000000e+00 : f32
    %272 = vector.shape_cast %265 : vector<2x1xi1> to vector<2x1xi1>
    %273 = vector.broadcast %272 : vector<2x1xi1> to vector<2x32xi1>
    %274 = vector.broadcast %cst_64 : f32 to vector<2x32xf32>
    %275 = arith.select %273, %262, %274 : vector<2x32xi1>, vector<2x32xf32>
    %c2_65 = arith.constant 2 : index
    %c0_66 = arith.constant 0 : index
    %c0_67 = arith.constant 0 : index
    %276 = vector.load %arg5[%c2_65, %c0_66, %c0_67] : memref<8x2x32xf32, #tpu.memory_space<vmem>>, vector<1x2x32xf32>
    %277 = vector.shape_cast %276 : vector<1x2x32xf32> to vector<2x32xf32>
    %278 = vector.shape_cast %275 : vector<2x32xf32> to vector<1x2x32xf32>
    tpu.vector_store %arg5[%c2_65, %c0_66, %c0_67], %278 {strides = array<i32>} : memref<8x2x32xf32, #tpu.memory_space<vmem>>, vector<1x2x32xf32>,
    %c1 = arith.constant 1 : index
    %c0_68 = arith.constant 0 : index
    %c0_69 = arith.constant 0 : index
    %279 = vector.load %arg2[%c1, %c0_68, %c0_69] : memref<8x2x128xf32, #tpu.memory_space<vmem>>, vector<1x2x128xf32>
    %280 = vector.shape_cast %279 : vector<1x2x128xf32> to vector<2x128xf32>
    %cst_70 = arith.constant dense<0.000000e+00> : vector<2x128xf32>
    %281 = tpu.matmul %268, %8, %cst_70 {dimension_numbers = #tpu.dot_dimension_numbers<[1], [0], [0], [1], [0, 0, 1, 1], [], []>} : vector<2x32xf32>, vector<32x128xf32>, vector<2x128xf32> -> vector<2x128xf32>
    %282 = arith.addf %280, %281 : vector<2x128xf32>
    %283 = vector.extract_strided_slice %282 {offsets = [0, 0], sizes = [2, 32], strides = [1, 1]} : vector<2x128xf32> to vector<2x32xf32>
    %284 = arith.negf %283 : vector<2x32xf32>
    %285 = math.exp %284 : vector<2x32xf32>
    %cst_71 = arith.constant 1.000000e+00 : f32
    %286 = vector.broadcast %cst_71 : f32 to vector<2x32xf32>
    %287 = arith.addf %286, %285 : vector<2x32xf32>
    %288 = arith.divf %286, %287 : vector<2x32xf32>
    %289 = vector.extract_strided_slice %282 {offsets = [0, 32], sizes = [2, 32], strides = [1, 1]} : vector<2x128xf32> to vector<2x32xf32>
    %290 = arith.negf %289 : vector<2x32xf32>
    %291 = math.exp %290 : vector<2x32xf32>
    %cst_72 = arith.constant 1.000000e+00 : f32
    %292 = vector.broadcast %cst_72 : f32 to vector<2x32xf32>
    %293 = arith.addf %292, %291 : vector<2x32xf32>
    %294 = arith.divf %292, %293 : vector<2x32xf32>
    %295 = vector.extract_strided_slice %282 {offsets = [0, 64], sizes = [2, 32], strides = [1, 1]} : vector<2x128xf32> to vector<2x32xf32>
    %296 = math.tanh %295 : vector<2x32xf32>
    %297 = vector.extract_strided_slice %282 {offsets = [0, 96], sizes = [2, 32], strides = [1, 1]} : vector<2x128xf32> to vector<2x32xf32>
    %298 = arith.negf %297 : vector<2x32xf32>
    %299 = math.exp %298 : vector<2x32xf32>
    %cst_73 = arith.constant 1.000000e+00 : f32
    %300 = vector.broadcast %cst_73 : f32 to vector<2x32xf32>
    %301 = arith.addf %300, %299 : vector<2x32xf32>
    %302 = arith.divf %300, %301 : vector<2x32xf32>
    %303 = arith.mulf %294, %271 : vector<2x32xf32>
    %304 = arith.mulf %288, %296 : vector<2x32xf32>
    %305 = arith.addf %303, %304 : vector<2x32xf32>
    %306 = math.tanh %305 : vector<2x32xf32>
    %307 = arith.mulf %302, %306 : vector<2x32xf32>
    %c1_i32 = arith.constant 1 : i32
    %308 = arith.addi %1, %c1_i32 : i32
    %309 = vector.broadcast %308 : i32 to vector<2x1xi32>
    %310 = arith.cmpi sgt, %7, %309 : vector<2x1xi32>
    %311 = vector.shape_cast %310 : vector<2x1xi1> to vector<2x1xi1>
    %312 = vector.broadcast %311 : vector<2x1xi1> to vector<2x32xi1>
    %313 = arith.select %312, %307, %268 : vector<2x32xi1>, vector<2x32xf32>
    %314 = vector.shape_cast %310 : vector<2x1xi1> to vector<2x1xi1>
    %315 = vector.broadcast %314 : vector<2x1xi1> to vector<2x32xi1>
    %316 = arith.select %315, %305, %271 : vector<2x32xi1>, vector<2x32xf32>
    %cst_74 = arith.constant 0.000000e+00 : f32
    %317 = vector.shape_cast %310 : vector<2x1xi1> to vector<2x1xi1>
    %318 = vector.broadcast %317 : vector<2x1xi1> to vector<2x32xi1>
    %319 = vector.broadcast %cst_74 : f32 to vector<2x32xf32>
    %320 = arith.select %318, %307, %319 : vector<2x32xi1>, vector<2x32xf32>
    %c1_75 = arith.constant 1 : index
    %c0_76 = arith.constant 0 : index
    %c0_77 = arith.constant 0 : index
    %321 = vector.load %arg5[%c1_75, %c0_76, %c0_77] : memref<8x2x32xf32, #tpu.memory_space<vmem>>, vector<1x2x32xf32>
    %322 = vector.shape_cast %321 : vector<1x2x32xf32> to vector<2x32xf32>
    %323 = vector.shape_cast %320 : vector<2x32xf32> to vector<1x2x32xf32>
    tpu.vector_store %arg5[%c1_75, %c0_76, %c0_77], %323 {strides = array<i32>} : memref<8x2x32xf32, #tpu.memory_space<vmem>>, vector<1x2x32xf32>,
    %c0_78 = arith.constant 0 : index
    %c0_79 = arith.constant 0 : index
    %c0_80 = arith.constant 0 : index
    %324 = vector.load %arg2[%c0_78, %c0_79, %c0_80] : memref<8x2x128xf32, #tpu.memory_space<vmem>>, vector<1x2x128xf32>
    %325 = vector.shape_cast %324 : vector<1x2x128xf32> to vector<2x128xf32>
    %cst_81 = arith.constant dense<0.000000e+00> : vector<2x128xf32>
    %326 = tpu.matmul %313, %8, %cst_81 {dimension_numbers = #tpu.dot_dimension_numbers<[1], [0], [0], [1], [0, 0, 1, 1], [], []>} : vector<2x32xf32>, vector<32x128xf32>, vector<2x128xf32> -> vector<2x128xf32>
    %327 = arith.addf %325, %326 : vector<2x128xf32>
    %328 = vector.extract_strided_slice %327 {offsets = [0, 0], sizes = [2, 32], strides = [1, 1]} : vector<2x128xf32> to vector<2x32xf32>
    %329 = arith.negf %328 : vector<2x32xf32>
    %330 = math.exp %329 : vector<2x32xf32>
    %cst_82 = arith.constant 1.000000e+00 : f32
    %331 = vector.broadcast %cst_82 : f32 to vector<2x32xf32>
    %332 = arith.addf %331, %330 : vector<2x32xf32>
    %333 = arith.divf %331, %332 : vector<2x32xf32>
    %334 = vector.extract_strided_slice %327 {offsets = [0, 32], sizes = [2, 32], strides = [1, 1]} : vector<2x128xf32> to vector<2x32xf32>
    %335 = arith.negf %334 : vector<2x32xf32>
    %336 = math.exp %335 : vector<2x32xf32>
    %cst_83 = arith.constant 1.000000e+00 : f32
    %337 = vector.broadcast %cst_83 : f32 to vector<2x32xf32>
    %338 = arith.addf %337, %336 : vector<2x32xf32>
    %339 = arith.divf %337, %338 : vector<2x32xf32>
    %340 = vector.extract_strided_slice %327 {offsets = [0, 64], sizes = [2, 32], strides = [1, 1]} : vector<2x128xf32> to vector<2x32xf32>
    %341 = math.tanh %340 : vector<2x32xf32>
    %342 = vector.extract_strided_slice %327 {offsets = [0, 96], sizes = [2, 32], strides = [1, 1]} : vector<2x128xf32> to vector<2x32xf32>
    %343 = arith.negf %342 : vector<2x32xf32>
    %344 = math.exp %343 : vector<2x32xf32>
    %cst_84 = arith.constant 1.000000e+00 : f32
    %345 = vector.broadcast %cst_84 : f32 to vector<2x32xf32>
    %346 = arith.addf %345, %344 : vector<2x32xf32>
    %347 = arith.divf %345, %346 : vector<2x32xf32>
    %348 = arith.mulf %339, %316 : vector<2x32xf32>
    %349 = arith.mulf %333, %341 : vector<2x32xf32>
    %350 = arith.addf %348, %349 : vector<2x32xf32>
    %351 = math.tanh %350 : vector<2x32xf32>
    %352 = arith.mulf %347, %351 : vector<2x32xf32>
    %c0_i32_85 = arith.constant 0 : i32
    %353 = arith.addi %1, %c0_i32_85 : i32
    %354 = vector.broadcast %353 : i32 to vector<2x1xi32>
    %355 = arith.cmpi sgt, %7, %354 : vector<2x1xi32>
    %356 = vector.shape_cast %355 : vector<2x1xi1> to vector<2x1xi1>
    %357 = vector.broadcast %356 : vector<2x1xi1> to vector<2x32xi1>
    %358 = arith.select %357, %352, %313 : vector<2x32xi1>, vector<2x32xf32>
    %359 = vector.shape_cast %355 : vector<2x1xi1> to vector<2x1xi1>
    %360 = vector.broadcast %359 : vector<2x1xi1> to vector<2x32xi1>
    %361 = arith.select %360, %350, %316 : vector<2x32xi1>, vector<2x32xf32>
    %cst_86 = arith.constant 0.000000e+00 : f32
    %362 = vector.shape_cast %355 : vector<2x1xi1> to vector<2x1xi1>
    %363 = vector.broadcast %362 : vector<2x1xi1> to vector<2x32xi1>
    %364 = vector.broadcast %cst_86 : f32 to vector<2x32xf32>
    %365 = arith.select %363, %352, %364 : vector<2x32xi1>, vector<2x32xf32>
    %c0_87 = arith.constant 0 : index
    %c0_88 = arith.constant 0 : index
    %c0_89 = arith.constant 0 : index
    %366 = vector.load %arg5[%c0_87, %c0_88, %c0_89] : memref<8x2x32xf32, #tpu.memory_space<vmem>>, vector<1x2x32xf32>
    %367 = vector.shape_cast %366 : vector<1x2x32xf32> to vector<2x32xf32>
    %368 = vector.shape_cast %365 : vector<2x32xf32> to vector<1x2x32xf32>
    tpu.vector_store %arg5[%c0_87, %c0_88, %c0_89], %368 {strides = array<i32>} : memref<8x2x32xf32, #tpu.memory_space<vmem>>, vector<1x2x32xf32>,
    %c0_90 = arith.constant 0 : index
    %c0_91 = arith.constant 0 : index
    %369 = vector.load %arg7[%c0_90, %c0_91] : memref<2x32xf32, #tpu.memory_space<vmem>>, vector<2x32xf32>
    tpu.vector_store %arg7[%c0_90, %c0_91], %358 {strides = array<i32>} : memref<2x32xf32, #tpu.memory_space<vmem>>, vector<2x32xf32>,
    %c0_92 = arith.constant 0 : index
    %c0_93 = arith.constant 0 : index
    %370 = vector.load %arg8[%c0_92, %c0_93] : memref<2x32xf32, #tpu.memory_space<vmem>>, vector<2x32xf32>
    tpu.vector_store %arg8[%c0_92, %c0_93], %361 {strides = array<i32>} : memref<2x32xf32, #tpu.memory_space<vmem>>, vector<2x32xf32>,
    %c0_i32_94 = arith.constant 0 : i32
    %371 = arith.cmpi eq, %arg1, %c0_i32_94 : i32
    %372 = arith.extui %371 : i1 to i32
    %c0_i32_95 = arith.constant 0 : i32
    %373 = arith.cmpi ne, %372, %c0_i32_95 : i32
    scf.if %373 {
      %c0_96 = arith.constant 0 : index
      %c0_97 = arith.constant 0 : index
      %374 = vector.load %arg6[%c0_96, %c0_97] : memref<2x32xf32, #tpu.memory_space<vmem>>, vector<2x32xf32>
      tpu.vector_store %arg6[%c0_96, %c0_97], %358 {strides = array<i32>} : memref<2x32xf32, #tpu.memory_space<vmem>>, vector<2x32xf32>,
    } else {
    }
    return
  }
  func.func @transform_0(%arg0: i32, %arg1: i32) -> (i32, i32, i32) {
    %c0_i32 = arith.constant 0 : i32
    %0 = arith.subi %c0_i32, %arg1 : i32
    %c0_i32_0 = arith.constant 0 : i32
    %c0_i32_1 = arith.constant 0 : i32
    return %0, %arg0, %c0_i32_0 : i32, i32, i32
  }
  func.func @transform_1(%arg0: i32, %arg1: i32) -> (i32, i32) {
    %c0_i32 = arith.constant 0 : i32
    %c0_i32_0 = arith.constant 0 : i32
    %c0_i32_1 = arith.constant 0 : i32
    return %c0_i32, %c0_i32_0 : i32, i32
  }
  func.func @transform_2(%arg0: i32, %arg1: i32) -> (i32, i32) {
    %c0_i32 = arith.constant 0 : i32
    %c0_i32_0 = arith.constant 0 : i32
    return %arg0, %c0_i32 : i32, i32
  }
  func.func @transform_3(%arg0: i32, %arg1: i32) -> (i32, i32, i32) {
    %c0_i32 = arith.constant 0 : i32
    %0 = arith.subi %c0_i32, %arg1 : i32
    %c0_i32_0 = arith.constant 0 : i32
    %c0_i32_1 = arith.constant 0 : i32
    return %0, %arg0, %c0_i32_0 : i32, i32, i32
  }
  func.func @transform_4(%arg0: i32, %arg1: i32) -> (i32, i32) {
    %c0_i32 = arith.constant 0 : i32
    %c0_i32_0 = arith.constant 0 : i32
    return %arg0, %c0_i32 : i32, i32
  }
}

module attributes {stable_mosaic.version = 11 : i64} {
  func.func @_linear_kernel(%arg0: i32, %arg1: memref<16x64xf32, #tpu.memory_space<vmem>>, %arg2: memref<64x128xf32, #tpu.memory_space<vmem>>, %arg3: memref<1x128xf32, #tpu.memory_space<vmem>>, %arg4: memref<16x128xf32, #tpu.memory_space<vmem>>) attributes {dimension_semantics = [#tpu.dimension_semantics<parallel>], iteration_bounds = array<i64: 1>, scalar_prefetch = 0 : i64, scratch_operands = 0 : i64, tpu.core_type = #tpu.core_type<tc>, window_params = [{transform_indices = @transform_0, window_bounds = array<i64: 16, 64>}, {pipeline_mode = #tpu.pipeline_mode<synchronous>, transform_indices = @transform_1, window_bounds = array<i64: 64, 128>}, {pipeline_mode = #tpu.pipeline_mode<synchronous>, transform_indices = @transform_2, window_bounds = array<i64: 1, 128>}, {transform_indices = @transform_3, window_bounds = array<i64: 16, 128>}]} {
    %c0 = arith.constant 0 : index
    %c0_0 = arith.constant 0 : index
    %0 = vector.load %arg1[%c0, %c0_0] : memref<16x64xf32, #tpu.memory_space<vmem>>, vector<16x64xf32>
    %c0_1 = arith.constant 0 : index
    %c0_2 = arith.constant 0 : index
    %1 = vector.load %arg2[%c0_1, %c0_2] : memref<64x128xf32, #tpu.memory_space<vmem>>, vector<64x128xf32>
    %cst = arith.constant dense<0.000000e+00> : vector<16x128xf32>
    %2 = tpu.matmul %0, %1, %cst {dimension_numbers = #tpu.dot_dimension_numbers<[1], [0], [0], [1], [0, 0, 1, 1], [], []>} : vector<16x64xf32>, vector<64x128xf32>, vector<16x128xf32> -> vector<16x128xf32>
    %c0_3 = arith.constant 0 : index
    %c0_4 = arith.constant 0 : index
    %3 = vector.load %arg3[%c0_3, %c0_4] : memref<1x128xf32, #tpu.memory_space<vmem>>, vector<1x128xf32>
    %4 = vector.broadcast %3 : vector<1x128xf32> to vector<16x128xf32>
    %5 = arith.addf %2, %4 : vector<16x128xf32>
    %c0_5 = arith.constant 0 : index
    %c0_6 = arith.constant 0 : index
    %6 = vector.load %arg4[%c0_5, %c0_6] : memref<16x128xf32, #tpu.memory_space<vmem>>, vector<16x128xf32>
    tpu.vector_store %arg4[%c0_5, %c0_6], %5 {strides = array<i32>} : memref<16x128xf32, #tpu.memory_space<vmem>>, vector<16x128xf32>,
    return
  }
  func.func @transform_0(%arg0: i32) -> (i32, i32) {
    %c0_i32 = arith.constant 0 : i32
    %c0_i32_0 = arith.constant 0 : i32
    return %arg0, %c0_i32 : i32, i32
  }
  func.func @transform_1(%arg0: i32) -> (i32, i32) {
    %c0_i32 = arith.constant 0 : i32
    %c0_i32_0 = arith.constant 0 : i32
    %c0_i32_1 = arith.constant 0 : i32
    return %c0_i32, %c0_i32_0 : i32, i32
  }
  func.func @transform_2(%arg0: i32) -> (i32, i32) {
    %c0_i32 = arith.constant 0 : i32
    %c0_i32_0 = arith.constant 0 : i32
    %c0_i32_1 = arith.constant 0 : i32
    return %c0_i32, %c0_i32_0 : i32, i32
  }
  func.func @transform_3(%arg0: i32) -> (i32, i32) {
    %c0_i32 = arith.constant 0 : i32
    %c0_i32_0 = arith.constant 0 : i32
    return %arg0, %c0_i32 : i32, i32
  }
}

module attributes {stable_mosaic.version = 11 : i64} {
  func.func @_linear_kernel(%arg0: i32, %arg1: memref<16x64xf32, #tpu.memory_space<vmem>>, %arg2: memref<64x128xf32, #tpu.memory_space<vmem>>, %arg3: memref<1x128xf32, #tpu.memory_space<vmem>>, %arg4: memref<16x128xf32, #tpu.memory_space<vmem>>) attributes {dimension_semantics = [#tpu.dimension_semantics<parallel>], iteration_bounds = array<i64: 1>, scalar_prefetch = 0 : i64, scratch_operands = 0 : i64, tpu.core_type = #tpu.core_type<tc>, window_params = [{transform_indices = @transform_0, window_bounds = array<i64: 16, 64>}, {pipeline_mode = #tpu.pipeline_mode<synchronous>, transform_indices = @transform_1, window_bounds = array<i64: 64, 128>}, {pipeline_mode = #tpu.pipeline_mode<synchronous>, transform_indices = @transform_2, window_bounds = array<i64: 1, 128>}, {transform_indices = @transform_3, window_bounds = array<i64: 16, 128>}]} {
    %c0 = arith.constant 0 : index
    %c0_0 = arith.constant 0 : index
    %0 = vector.load %arg1[%c0, %c0_0] : memref<16x64xf32, #tpu.memory_space<vmem>>, vector<16x64xf32>
    %c0_1 = arith.constant 0 : index
    %c0_2 = arith.constant 0 : index
    %1 = vector.load %arg2[%c0_1, %c0_2] : memref<64x128xf32, #tpu.memory_space<vmem>>, vector<64x128xf32>
    %cst = arith.constant dense<0.000000e+00> : vector<16x128xf32>
    %2 = tpu.matmul %0, %1, %cst {dimension_numbers = #tpu.dot_dimension_numbers<[1], [0], [0], [1], [0, 0, 1, 1], [], []>} : vector<16x64xf32>, vector<64x128xf32>, vector<16x128xf32> -> vector<16x128xf32>
    %c0_3 = arith.constant 0 : index
    %c0_4 = arith.constant 0 : index
    %3 = vector.load %arg3[%c0_3, %c0_4] : memref<1x128xf32, #tpu.memory_space<vmem>>, vector<1x128xf32>
    %4 = vector.broadcast %3 : vector<1x128xf32> to vector<16x128xf32>
    %5 = arith.addf %2, %4 : vector<16x128xf32>
    %cst_5 = arith.constant 0.000000e+00 : f32
    %6 = vector.broadcast %cst_5 : f32 to vector<16x128xf32>
    %7 = arith.cmpf ogt, %5, %6 : vector<16x128xf32>
    %cst_6 = arith.constant 1.000000e-01 : f32
    %8 = vector.broadcast %cst_6 : f32 to vector<16x128xf32>
    %9 = arith.mulf %8, %5 : vector<16x128xf32>
    %10 = arith.select %7, %5, %9 : vector<16x128xi1>, vector<16x128xf32>
    %c0_7 = arith.constant 0 : index
    %c0_8 = arith.constant 0 : index
    %11 = vector.load %arg4[%c0_7, %c0_8] : memref<16x128xf32, #tpu.memory_space<vmem>>, vector<16x128xf32>
    tpu.vector_store %arg4[%c0_7, %c0_8], %10 {strides = array<i32>} : memref<16x128xf32, #tpu.memory_space<vmem>>, vector<16x128xf32>,
    return
  }
  func.func @transform_0(%arg0: i32) -> (i32, i32) {
    %c0_i32 = arith.constant 0 : i32
    %c0_i32_0 = arith.constant 0 : i32
    return %arg0, %c0_i32 : i32, i32
  }
  func.func @transform_1(%arg0: i32) -> (i32, i32) {
    %c0_i32 = arith.constant 0 : i32
    %c0_i32_0 = arith.constant 0 : i32
    %c0_i32_1 = arith.constant 0 : i32
    return %c0_i32, %c0_i32_0 : i32, i32
  }
  func.func @transform_2(%arg0: i32) -> (i32, i32) {
    %c0_i32 = arith.constant 0 : i32
    %c0_i32_0 = arith.constant 0 : i32
    %c0_i32_1 = arith.constant 0 : i32
    return %c0_i32, %c0_i32_0 : i32, i32
  }
  func.func @transform_3(%arg0: i32) -> (i32, i32) {
    %c0_i32 = arith.constant 0 : i32
    %c0_i32_0 = arith.constant 0 : i32
    return %arg0, %c0_i32 : i32, i32
  }
}

module attributes {stable_mosaic.version = 11 : i64} {
  func.func @_biaffine_rel_kernel(%arg0: i32, %arg1: memref<2x8x17xf32, #tpu.memory_space<vmem>>, %arg2: memref<17x68xf32, #tpu.memory_space<vmem>>, %arg3: memref<2x8x17xf32, #tpu.memory_space<vmem>>, %arg4: memref<2x4x8x8xf32, #tpu.memory_space<vmem>>) attributes {dimension_semantics = [#tpu.dimension_semantics<parallel>], iteration_bounds = array<i64: 1>, scalar_prefetch = 0 : i64, scratch_operands = 0 : i64, tpu.core_type = #tpu.core_type<tc>, window_params = [{transform_indices = @transform_0, window_bounds = array<i64: 2, 8, 17>}, {pipeline_mode = #tpu.pipeline_mode<synchronous>, transform_indices = @transform_1, window_bounds = array<i64: 17, 68>}, {transform_indices = @transform_2, window_bounds = array<i64: 2, 8, 17>}, {transform_indices = @transform_3, window_bounds = array<i64: 2, 4, 8, 8>}]} {
    %c0 = arith.constant 0 : index
    %c0_0 = arith.constant 0 : index
    %c0_1 = arith.constant 0 : index
    %0 = vector.load %arg1[%c0, %c0_0, %c0_1] : memref<2x8x17xf32, #tpu.memory_space<vmem>>, vector<2x8x17xf32>
    %1 = vector.shape_cast %0 : vector<2x8x17xf32> to vector<16x17xf32>
    %c0_2 = arith.constant 0 : index
    %c0_3 = arith.constant 0 : index
    %2 = vector.load %arg2[%c0_2, %c0_3] : memref<17x68xf32, #tpu.memory_space<vmem>>, vector<17x68xf32>
    %cst = arith.constant dense<0.000000e+00> : vector<16x68xf32>
    %3 = tpu.matmul %1, %2, %cst {dimension_numbers = #tpu.dot_dimension_numbers<[1], [0], [0], [1], [0, 0, 1, 1], [], []>} : vector<16x17xf32>, vector<17x68xf32>, vector<16x68xf32> -> vector<16x68xf32>
    %c0_4 = arith.constant 0 : index
    %c0_5 = arith.constant 0 : index
    %c0_6 = arith.constant 0 : index
    %4 = vector.load %arg3[%c0_4, %c0_5, %c0_6] : memref<2x8x17xf32, #tpu.memory_space<vmem>>, vector<2x8x17xf32>
    %5 = vector.extract_strided_slice %3 {offsets = [0, 0], sizes = [16, 17], strides = [1, 1]} : vector<16x68xf32> to vector<16x17xf32>
    %6 = vector.shape_cast %5 : vector<16x17xf32> to vector<2x8x17xf32>
    %cst_7 = arith.constant dense<0.000000e+00> : vector<2x8x8xf32>
    %7 = tpu.matmul %6, %4, %cst_7 {dimension_numbers = #tpu.dot_dimension_numbers<[2], [2], [1], [1], [0, 0, 0, 1, 1, 1], [0], [0]>} : vector<2x8x17xf32>, vector<2x8x17xf32>, vector<2x8x8xf32> -> vector<2x8x8xf32>
    %8 = vector.extract_strided_slice %3 {offsets = [0, 17], sizes = [16, 17], strides = [1, 1]} : vector<16x68xf32> to vector<16x17xf32>
    %9 = vector.shape_cast %8 : vector<16x17xf32> to vector<2x8x17xf32>
    %cst_8 = arith.constant dense<0.000000e+00> : vector<2x8x8xf32>
    %10 = tpu.matmul %9, %4, %cst_8 {dimension_numbers = #tpu.dot_dimension_numbers<[2], [2], [1], [1], [0, 0, 0, 1, 1, 1], [0], [0]>} : vector<2x8x17xf32>, vector<2x8x17xf32>, vector<2x8x8xf32> -> vector<2x8x8xf32>
    %11 = vector.extract_strided_slice %3 {offsets = [0, 34], sizes = [16, 17], strides = [1, 1]} : vector<16x68xf32> to vector<16x17xf32>
    %12 = vector.shape_cast %11 : vector<16x17xf32> to vector<2x8x17xf32>
    %cst_9 = arith.constant dense<0.000000e+00> : vector<2x8x8xf32>
    %13 = tpu.matmul %12, %4, %cst_9 {dimension_numbers = #tpu.dot_dimension_numbers<[2], [2], [1], [1], [0, 0, 0, 1, 1, 1], [0], [0]>} : vector<2x8x17xf32>, vector<2x8x17xf32>, vector<2x8x8xf32> -> vector<2x8x8xf32>
    %14 = vector.extract_strided_slice %3 {offsets = [0, 51], sizes = [16, 17], strides = [1, 1]} : vector<16x68xf32> to vector<16x17xf32>
    %15 = vector.shape_cast %14 : vector<16x17xf32> to vector<2x8x17xf32>
    %cst_10 = arith.constant dense<0.000000e+00> : vector<2x8x8xf32>
    %16 = tpu.matmul %15, %4, %cst_10 {dimension_numbers = #tpu.dot_dimension_numbers<[2], [2], [1], [1], [0, 0, 0, 1, 1, 1], [0], [0]>} : vector<2x8x17xf32>, vector<2x8x17xf32>, vector<2x8x8xf32> -> vector<2x8x8xf32>
    %17 = vector.shape_cast %7 : vector<2x8x8xf32> to vector<2x1x8x8xf32>
    %18 = vector.shape_cast %10 : vector<2x8x8xf32> to vector<2x1x8x8xf32>
    %19 = vector.shape_cast %13 : vector<2x8x8xf32> to vector<2x1x8x8xf32>
    %20 = vector.shape_cast %16 : vector<2x8x8xf32> to vector<2x1x8x8xf32>
    %21 = tpu.concatenate %17, %18, %19, %20 in 1 : vector<2x1x8x8xf32>, vector<2x1x8x8xf32>, vector<2x1x8x8xf32>, vector<2x1x8x8xf32> -> vector<2x4x8x8xf32>
    %c0_11 = arith.constant 0 : index
    %c0_12 = arith.constant 0 : index
    %c0_13 = arith.constant 0 : index
    %c0_14 = arith.constant 0 : index
    %22 = vector.load %arg4[%c0_11, %c0_12, %c0_13, %c0_14] : memref<2x4x8x8xf32, #tpu.memory_space<vmem>>, vector<2x4x8x8xf32>
    tpu.vector_store %arg4[%c0_11, %c0_12, %c0_13, %c0_14], %21 {strides = array<i32>} : memref<2x4x8x8xf32, #tpu.memory_space<vmem>>, vector<2x4x8x8xf32>,
    return
  }
  func.func @transform_0(%arg0: i32) -> (i32, i32, i32) {
    %c0_i32 = arith.constant 0 : i32
    %c0_i32_0 = arith.constant 0 : i32
    %c0_i32_1 = arith.constant 0 : i32
    return %arg0, %c0_i32, %c0_i32_0 : i32, i32, i32
  }
  func.func @transform_1(%arg0: i32) -> (i32, i32) {
    %c0_i32 = arith.constant 0 : i32
    %c0_i32_0 = arith.constant 0 : i32
    %c0_i32_1 = arith.constant 0 : i32
    return %c0_i32, %c0_i32_0 : i32, i32
  }
  func.func @transform_2(%arg0: i32) -> (i32, i32, i32) {
    %c0_i32 = arith.constant 0 : i32
    %c0_i32_0 = arith.constant 0 : i32
    %c0_i32_1 = arith.constant 0 : i32
    return %arg0, %c0_i32, %c0_i32_0 : i32, i32, i32
  }
  func.func @transform_3(%arg0: i32) -> (i32, i32, i32, i32) {
    %c0_i32 = arith.constant 0 : i32
    %c0_i32_0 = arith.constant 0 : i32
    %c0_i32_1 = arith.constant 0 : i32
    %c0_i32_2 = arith.constant 0 : i32
    return %arg0, %c0_i32, %c0_i32_0, %c0_i32_1 : i32, i32, i32, i32
  }
}

module attributes {stable_mosaic.version = 11 : i64} {
  func.func @_biaffine_arc_kernel(%arg0: i32, %arg1: memref<2x8x33xf32, #tpu.memory_space<vmem>>, %arg2: memref<33x32xf32, #tpu.memory_space<vmem>>, %arg3: memref<2x8x32xf32, #tpu.memory_space<vmem>>, %arg4: memref<2x8x8xf32, #tpu.memory_space<vmem>>) attributes {dimension_semantics = [#tpu.dimension_semantics<parallel>], iteration_bounds = array<i64: 1>, scalar_prefetch = 0 : i64, scratch_operands = 0 : i64, tpu.core_type = #tpu.core_type<tc>, window_params = [{transform_indices = @transform_0, window_bounds = array<i64: 2, 8, 33>}, {pipeline_mode = #tpu.pipeline_mode<synchronous>, transform_indices = @transform_1, window_bounds = array<i64: 33, 32>}, {transform_indices = @transform_2, window_bounds = array<i64: 2, 8, 32>}, {transform_indices = @transform_3, window_bounds = array<i64: 2, 8, 8>}]} {
    %c0 = arith.constant 0 : index
    %c0_0 = arith.constant 0 : index
    %c0_1 = arith.constant 0 : index
    %0 = vector.load %arg1[%c0, %c0_0, %c0_1] : memref<2x8x33xf32, #tpu.memory_space<vmem>>, vector<2x8x33xf32>
    %1 = vector.shape_cast %0 : vector<2x8x33xf32> to vector<16x33xf32>
    %c0_2 = arith.constant 0 : index
    %c0_3 = arith.constant 0 : index
    %2 = vector.load %arg2[%c0_2, %c0_3] : memref<33x32xf32, #tpu.memory_space<vmem>>, vector<33x32xf32>
    %cst = arith.constant dense<0.000000e+00> : vector<16x32xf32>
    %3 = tpu.matmul %1, %2, %cst {dimension_numbers = #tpu.dot_dimension_numbers<[1], [0], [0], [1], [0, 0, 1, 1], [], []>} : vector<16x33xf32>, vector<33x32xf32>, vector<16x32xf32> -> vector<16x32xf32>
    %4 = vector.shape_cast %3 : vector<16x32xf32> to vector<2x8x32xf32>
    %c0_4 = arith.constant 0 : index
    %c0_5 = arith.constant 0 : index
    %c0_6 = arith.constant 0 : index
    %5 = vector.load %arg3[%c0_4, %c0_5, %c0_6] : memref<2x8x32xf32, #tpu.memory_space<vmem>>, vector<2x8x32xf32>
    %cst_7 = arith.constant dense<0.000000e+00> : vector<2x8x8xf32>
    %6 = tpu.matmul %4, %5, %cst_7 {dimension_numbers = #tpu.dot_dimension_numbers<[2], [2], [1], [1], [0, 0, 0, 1, 1, 1], [0], [0]>} : vector<2x8x32xf32>, vector<2x8x32xf32>, vector<2x8x8xf32> -> vector<2x8x8xf32>
    %c0_8 = arith.constant 0 : index
    %c0_9 = arith.constant 0 : index
    %c0_10 = arith.constant 0 : index
    %7 = vector.load %arg4[%c0_8, %c0_9, %c0_10] : memref<2x8x8xf32, #tpu.memory_space<vmem>>, vector<2x8x8xf32>
    tpu.vector_store %arg4[%c0_8, %c0_9, %c0_10], %6 {strides = array<i32>} : memref<2x8x8xf32, #tpu.memory_space<vmem>>, vector<2x8x8xf32>,
    return
  }
  func.func @transform_0(%arg0: i32) -> (i32, i32, i32) {
    %c0_i32 = arith.constant 0 : i32
    %c0_i32_0 = arith.constant 0 : i32
    %c0_i32_1 = arith.constant 0 : i32
    return %arg0, %c0_i32, %c0_i32_0 : i32, i32, i32
  }
  func.func @transform_1(%arg0: i32) -> (i32, i32) {
    %c0_i32 = arith.constant 0 : i32
    %c0_i32_0 = arith.constant 0 : i32
    %c0_i32_1 = arith.constant 0 : i32
    return %c0_i32, %c0_i32_0 : i32, i32
  }
  func.func @transform_2(%arg0: i32) -> (i32, i32, i32) {
    %c0_i32 = arith.constant 0 : i32
    %c0_i32_0 = arith.constant 0 : i32
    %c0_i32_1 = arith.constant 0 : i32
    return %arg0, %c0_i32, %c0_i32_0 : i32, i32, i32
  }
  func.func @transform_3(%arg0: i32) -> (i32, i32, i32) {
    %c0_i32 = arith.constant 0 : i32
    %c0_i32_0 = arith.constant 0 : i32
    %c0_i32_1 = arith.constant 0 : i32
    return %arg0, %c0_i32, %c0_i32_0 : i32, i32, i32
  }
}

</mosaic_0001>

<llo_original>
// kernel: char_parser_forward.19
$region0: #{char_parser_forward.19}
  #allocation0 [shape = 'u32[]', space=smem, size = 0x4, offset = 0x4, fixed_abs, tag = 'smem constant byte address 0x4 - core index']
  #allocation1 [shape = 'u32[144,128]{1,0:T(1,128)}', space=vmem, size = 0x12000, scoped, tag = 'internal scratch']
  %s0 = inlined_call_operand.vmem [shape: f32[16,32], index: 0, kind: input, shape index: {}]
  %s1 = inlined_call_operand.vmem [shape: f32[32,128], index: 1, kind: input, shape index: {}]
  %s2 = inlined_call_operand.vmem [shape: f32[1,128], index: 2, kind: input, shape index: {}]
  %s3 = inlined_call_operand.vmem [shape: f32[16,128], index: 3, kind: output, shape index: {}]
  %s4 = sld [smem:[#allocation0]]
  $region22: #{char_parser_forward.19} parent=0
    _
  %s6 = ssub.s32 1, %s4
  %s7 = scalar_select 0, %s6, %s4
  // Predicated region
  $region2: #{char_parser_forward.19} parent=0 // pred_check
    _
  $region3: #{char_parser_forward.19} parent=0 // pred_check_branch
    %9 = sbr.rel (0) target = $region5
  $region4: #{char_parser_forward.19} parent=0 // pred_region
    _
  $region5: #{char_parser_forward.19} parent=0 // pred_fallthru
    _
  // Predicated region
  $region6: #{char_parser_forward.19} parent=0 // pred_check
    _
  $region7: #{char_parser_forward.19} parent=0 // pred_check_branch
    %11 = sbr.rel (0) target = $region9
  $region8: #{char_parser_forward.19} parent=0 // pred_region
    _
  $region9: #{char_parser_forward.19} parent=0 // pred_fallthru
    _
  // Predicated region
  $region10: #{char_parser_forward.19} parent=0 // pred_check
    _
  $region11: #{char_parser_forward.19} parent=0 // pred_check_branch
    %13 = sbr.rel (0) target = $region13
  $region12: #{char_parser_forward.19} parent=0 // pred_region
    _
  $region13: #{char_parser_forward.19} parent=0 // pred_fallthru
    _
  %v14 = vld [vmem:[%s0] sm:$0xff]
  %v15 = vld [vmem:[%s0 + $0x8] sm:$0xff]
  %v16 = vld [vmem:[%s1] sm:$0xff]
  %v17 = vld [vmem:[%s1 + $0x8] sm:$0xff]
  %v18 = vld [vmem:[%s1 + $0x10] sm:$0xff]
  %v19 = vld [vmem:[%s1 + $0x18] sm:$0xff]
  %v20 = vld [vmem:[%s2] sm:$0x1]
  %v22 = vlaneseq
  %v23 = vshrl.u32 %v22, 7
  %v24 = vsub.s32 0, %v23
  %v25 = vrot.slane %v20, %v24
  %vm27 = vcmask 261120
  %v29 = vsel %vm27, %v14, 0
  %v32 = vsel %vm27, %v15, 0
  %34 = vmatprep.subr.mxu0 0.0
  %35 = vmatpush1.msra.mxu0 %v16
  %36 = vmatprep.subr.mxu0 0.0
  %37 = vmatpush1.msra.mxu0 %v17
  %38 = vmatprep.subr.mxu0 0.0
  %39 = vmatpush1.msra.mxu0 %v18
  %40 = vmatprep.subr.mxu0 0.0
  %41 = vmatpush1.msra.mxu0 %v19
  %42 = vmatprep.subr.mxu0 0.0
  %43 = vmatpush1.msra.mxu0 0.0
  %44 = vmatprep.subr.mxu0 0.0
  %45 = vmatpush1.msra.mxu0 0.0
  %46 = vmatprep.subr.mxu0 0.0
  %47 = vmatpush1.msra.mxu0 0.0
  %48 = vmatprep.subr.mxu0 0.0
  %49 = vmatpush1.msra.mxu0 0.0
  %50 = vmatprep.subr.mxu0 0.0
  %51 = vmatpush1.msra.mxu0 0.0
  %52 = vmatprep.subr.mxu0 0.0
  %53 = vmatpush1.msra.mxu0 0.0
  %54 = vmatprep.subr.mxu0 0.0
  %55 = vmatpush1.msra.mxu0 0.0
  %56 = vmatprep.subr.mxu0 0.0
  %57 = vmatpush1.msra.mxu0 0.0
  %58 = vmatprep.subr.mxu0 0.0
  %59 = vmatpush1.msra.mxu0 0.0
  %60 = vmatprep.subr.mxu0 0.0
  %61 = vmatpush1.msra.mxu0 0.0
  %62 = vmatprep.subr.mxu0 0.0
  %63 = vmatpush1.msra.mxu0 0.0
  %64 = vmatprep.subr.mxu0 0.0
  %65 = vmatpush1.msra.mxu0 0.0
  %66 = vmatprep.subr.mxu0 0.0
  %67 = vmatpush1.msra.mxu0 0.0
  %68 = vmatprep.subr.mxu0 0.0
  %69 = vmatpush1.msra.mxu0 0.0
  %70 = vmatprep.subr.mxu0 0.0
  %71 = vmatpush1.msra.mxu0 0.0
  %72 = vmatprep.subr.mxu0 0.0
  %73 = vmatpush1.msra.mxu0 0.0
  %74 = vmatprep.subr.mxu0 0.0
  %75 = vmatpush1.msra.mxu0 0.0
  %76 = vmatprep.subr.mxu0 0.0
  %77 = vmatpush1.msra.mxu0 0.0
  %78 = vmatprep.subr.mxu0 0.0
  %79 = vmatpush1.msra.mxu0 0.0
  %80 = vmatprep.subr.mxu0 0.0
  %81 = vmatpush1.msra.mxu0 0.0
  %82 = vmatprep.subr.mxu0 0.0
  %83 = vmatpush1.msra.mxu0 0.0
  %84 = vmatprep.subr.mxu0 0.0
  %85 = vmatpush1.msra.mxu0 0.0
  %86 = vmatprep.subr.mxu0 0.0
  %87 = vmatpush1.msra.mxu0 0.0
  %88 = vmatprep.subr.mxu0 0.0
  %89 = vmatpush1.msra.mxu0 0.0
  %90 = vmatprep.subr.mxu0 0.0
  %91 = vmatpush1.msra.mxu0 0.0
  %92 = vmatprep.subr.mxu0 0.0
  %93 = vmatpush1.msra.mxu0 0.0
  %94 = vmatprep.subr.mxu0 0.0
  %95 = vmatpush1.msra.mxu0 0.0
  %96 = vmatprep.subr.mxu0 0.0
  %97 = vmatpush1.msra.mxu0 0.0
  %98 = vmatprep.mubr.f32.mxu0 0.0
  %99 = vmatmul.mubr.f32.gmra.mrb[0].mxu0 %v29
  %v100 = vpop.f32.mrb[0].mxu0
  %v101 = vadd.f32 %v25, %v100
  %v102 = vpop.f32.mrb[0].mxu0
  %103 = vmatprep.mubr.f32.mxu0 0.0
  %104 = vmatmul.mubr.f32.gmra.mrb[0].mxu0 %v32
  %v105 = vpop.f32.mrb[0].mxu0
  %v106 = vadd.f32 %v25, %v105
  %v107 = vpop.f32.mrb[0].mxu0
  %108 = vdwg.mxu0
  %109 = vst [vmem:[%s3] sm:$0xff] %v101
  %110 = vst [vmem:[%s3 + $0x8] sm:$0xff] %v106
  // Predicated region
  $region14: #{char_parser_forward.19} parent=0 // pred_check
    _
  $region15: #{char_parser_forward.19} parent=0 // pred_check_branch
    %112 = sbr.rel (0) target = $region17
  $region16: #{char_parser_forward.19} parent=0 // pred_region
    _
  $region17: #{char_parser_forward.19} parent=0 // pred_fallthru
    _
  // Predicated region
  $region18: #{char_parser_forward.19} parent=0 // pred_check
    _
  $region19: #{char_parser_forward.19} parent=0 // pred_check_branch
    %114 = sbr.rel (0) target = $region21
  $region20: #{char_parser_forward.19} parent=0 // pred_region
    _
  $region21: #{char_parser_forward.19} parent=0 // pred_fallthru
    _

// kernel: char_parser_forward.15
$region0: #{char_parser_forward.15}
  #allocation0 [shape = 'u32[]', space=smem, size = 0x4, offset = 0x4, fixed_abs, tag = 'smem constant byte address 0x4 - core index']
  #allocation1 [shape = 'u32[144,128]{1,0:T(1,128)}', space=vmem, size = 0x12000, scoped, tag = 'internal scratch']
  %s0 = inlined_call_operand.vmem [shape: f32[96,16], index: 0, kind: input, shape index: {}]
  %s1 = inlined_call_operand.vmem [shape: f32[16,64], index: 1, kind: input, shape index: {}]
  %s2 = inlined_call_operand.vmem [shape: f32[1,64], index: 2, kind: input, shape index: {}]
  %s3 = inlined_call_operand.vmem [shape: f32[96,64], index: 3, kind: output, shape index: {}]
  %s4 = sld [smem:[#allocation0]]
  $region22: #{char_parser_forward.15} parent=0
    _
  %s6 = ssub.s32 1, %s4
  %s7 = scalar_select 0, %s6, %s4
  // Predicated region
  $region2: #{char_parser_forward.15} parent=0 // pred_check
    _
  $region3: #{char_parser_forward.15} parent=0 // pred_check_branch
    %9 = sbr.rel (0) target = $region5
  $region4: #{char_parser_forward.15} parent=0 // pred_region
    _
  $region5: #{char_parser_forward.15} parent=0 // pred_fallthru
    _
  // Predicated region
  $region6: #{char_parser_forward.15} parent=0 // pred_check
    _
  $region7: #{char_parser_forward.15} parent=0 // pred_check_branch
    %11 = sbr.rel (0) target = $region9
  $region8: #{char_parser_forward.15} parent=0 // pred_region
    _
  $region9: #{char_parser_forward.15} parent=0 // pred_fallthru
    _
  // Predicated region
  $region10: #{char_parser_forward.15} parent=0 // pred_check
    _
  $region11: #{char_parser_forward.15} parent=0 // pred_check_branch
    %13 = sbr.rel (0) target = $region13
  $region12: #{char_parser_forward.15} parent=0 // pred_region
    _
  $region13: #{char_parser_forward.15} parent=0 // pred_fallthru
    _
  %v14 = vld [vmem:[%s0] sm:$0xff]
  %v15 = vld [vmem:[%s0 + $0x8] sm:$0xff]
  %v16 = vld [vmem:[%s0 + $0x10] sm:$0xff]
  %v17 = vld [vmem:[%s0 + $0x18] sm:$0xff]
  %v18 = vld [vmem:[%s0 + $0x20] sm:$0xff]
  %v19 = vld [vmem:[%s0 + $0x28] sm:$0xff]
  %v20 = vld [vmem:[%s0 + $0x30] sm:$0xff]
  %v21 = vld [vmem:[%s0 + $0x38] sm:$0xff]
  %v22 = vld [vmem:[%s0 + $0x40] sm:$0xff]
  %v23 = vld [vmem:[%s0 + $0x48] sm:$0xff]
  %v24 = vld [vmem:[%s0 + $0x50] sm:$0xff]
  %v25 = vld [vmem:[%s0 + $0x58] sm:$0xff]
  %v26 = vld [vmem:[%s1] sm:$0xff]
  %v27 = vld [vmem:[%s1 + $0x8] sm:$0xff]
  %v28 = vld [vmem:[%s2] sm:$0x1]
  %v30 = vlaneseq
  %v31 = vshrl.u32 %v30, 7
  %v32 = vsub.s32 0, %v31
  %v33 = vrot.slane %v28, %v32
  %vm35 = vcmask 130048
  %v37 = vsel %vm35, %v14, 0
  %v40 = vsel %vm35, %v15, 0
  %v43 = vsel %vm35, %v16, 0
  %v46 = vsel %vm35, %v17, 0
  %v49 = vsel %vm35, %v18, 0
  %v52 = vsel %vm35, %v19, 0
  %v55 = vsel %vm35, %v20, 0
  %v58 = vsel %vm35, %v21, 0
  %v61 = vsel %vm35, %v22, 0
  %v64 = vsel %vm35, %v23, 0
  %v67 = vsel %vm35, %v24, 0
  %v70 = vsel %vm35, %v25, 0
  %72 = vmatprep.subr.mxu0 0.0
  %73 = vmatpush1.msra.mxu0 %v26
  %74 = vmatprep.subr.mxu0 0.0
  %75 = vmatpush1.msra.mxu0 %v27
  %76 = vmatprep.subr.mxu0 0.0
  %77 = vmatpush1.msra.mxu0 0.0
  %78 = vmatprep.subr.mxu0 0.0
  %79 = vmatpush1.msra.mxu0 0.0
  %80 = vmatprep.subr.mxu0 0.0
  %81 = vmatpush1.msra.mxu0 0.0
  %82 = vmatprep.subr.mxu0 0.0
  %83 = vmatpush1.msra.mxu0 0.0
  %84 = vmatprep.subr.mxu0 0.0
  %85 = vmatpush1.msra.mxu0 0.0
  %86 = vmatprep.subr.mxu0 0.0
  %87 = vmatpush1.msra.mxu0 0.0
  %88 = vmatprep.subr.mxu0 0.0
  %89 = vmatpush1.msra.mxu0 0.0
  %90 = vmatprep.subr.mxu0 0.0
  %91 = vmatpush1.msra.mxu0 0.0
  %92 = vmatprep.subr.mxu0 0.0
  %93 = vmatpush1.msra.mxu0 0.0
  %94 = vmatprep.subr.mxu0 0.0
  %95 = vmatpush1.msra.mxu0 0.0
  %96 = vmatprep.subr.mxu0 0.0
  %97 = vmatpush1.msra.mxu0 0.0
  %98 = vmatprep.subr.mxu0 0.0
  %99 = vmatpush1.msra.mxu0 0.0
  %100 = vmatprep.subr.mxu0 0.0
  %101 = vmatpush1.msra.mxu0 0.0
  %102 = vmatprep.subr.mxu0 0.0
  %103 = vmatpush1.msra.mxu0 0.0
  %104 = vmatprep.subr.mxu0 0.0
  %105 = vmatpush1.msra.mxu0 0.0
  %106 = vmatprep.subr.mxu0 0.0
  %107 = vmatpush1.msra.mxu0 0.0
  %108 = vmatprep.subr.mxu0 0.0
  %109 = vmatpush1.msra.mxu0 0.0
  %110 = vmatprep.subr.mxu0 0.0
  %111 = vmatpush1.msra.mxu0 0.0
  %112 = vmatprep.subr.mxu0 0.0
  %113 = vmatpush1.msra.mxu0 0.0
  %114 = vmatprep.subr.mxu0 0.0
  %115 = vmatpush1.msra.mxu0 0.0
  %116 = vmatprep.subr.mxu0 0.0
  %117 = vmatpush1.msra.mxu0 0.0
  %118 = vmatprep.subr.mxu0 0.0
  %119 = vmatpush1.msra.mxu0 0.0
  %120 = vmatprep.subr.mxu0 0.0
  %121 = vmatpush1.msra.mxu0 0.0
  %122 = vmatprep.subr.mxu0 0.0
  %123 = vmatpush1.msra.mxu0 0.0
  %124 = vmatprep.subr.mxu0 0.0
  %125 = vmatpush1.msra.mxu0 0.0
  %126 = vmatprep.subr.mxu0 0.0
  %127 = vmatpush1.msra.mxu0 0.0
  %128 = vmatprep.subr.mxu0 0.0
  %129 = vmatpush1.msra.mxu0 0.0
  %130 = vmatprep.subr.mxu0 0.0
  %131 = vmatpush1.msra.mxu0 0.0
  %132 = vmatprep.subr.mxu0 0.0
  %133 = vmatpush1.msra.mxu0 0.0
  %134 = vmatprep.subr.mxu0 0.0
  %135 = vmatpush1.msra.mxu0 0.0
  %136 = vmatprep.mubr.f32.mxu0 0.0
  %137 = vmatmul.mubr.f32.gmra.mrb[0].mxu0 %v37
  %v138 = vpop.f32.mrb[0].mxu0
  %v139 = vadd.f32 %v33, %v138
  %v140 = vpop.f32.mrb[0].mxu0
  %141 = vmatprep.mubr.f32.mxu0 0.0
  %142 = vmatmul.mubr.f32.gmra.mrb[0].mxu0 %v40
  %v143 = vpop.f32.mrb[0].mxu0
  %v144 = vadd.f32 %v33, %v143
  %v145 = vpop.f32.mrb[0].mxu0
  %146 = vmatprep.mubr.f32.mxu0 0.0
  %147 = vmatmul.mubr.f32.gmra.mrb[0].mxu0 %v43
  %v148 = vpop.f32.mrb[0].mxu0
  %v149 = vadd.f32 %v33, %v148
  %v150 = vpop.f32.mrb[0].mxu0
  %151 = vmatprep.mubr.f32.mxu0 0.0
  %152 = vmatmul.mubr.f32.gmra.mrb[0].mxu0 %v46
  %v153 = vpop.f32.mrb[0].mxu0
  %v154 = vadd.f32 %v33, %v153
  %v155 = vpop.f32.mrb[0].mxu0
  %156 = vmatprep.mubr.f32.mxu0 0.0
  %157 = vmatmul.mubr.f32.gmra.mrb[0].mxu0 %v49
  %v158 = vpop.f32.mrb[0].mxu0
  %v159 = vadd.f32 %v33, %v158
  %v160 = vpop.f32.mrb[0].mxu0
  %161 = vmatprep.mubr.f32.mxu0 0.0
  %162 = vmatmul.mubr.f32.gmra.mrb[0].mxu0 %v52
  %v163 = vpop.f32.mrb[0].mxu0
  %v164 = vadd.f32 %v33, %v163
  %v165 = vpop.f32.mrb[0].mxu0
  %166 = vmatprep.mubr.f32.mxu0 0.0
  %167 = vmatmul.mubr.f32.gmra.mrb[0].mxu0 %v55
  %v168 = vpop.f32.mrb[0].mxu0
  %v169 = vadd.f32 %v33, %v168
  %v170 = vpop.f32.mrb[0].mxu0
  %171 = vmatprep.mubr.f32.mxu0 0.0
  %172 = vmatmul.mubr.f32.gmra.mrb[0].mxu0 %v58
  %v173 = vpop.f32.mrb[0].mxu0
  %v174 = vadd.f32 %v33, %v173
  %v175 = vpop.f32.mrb[0].mxu0
  %176 = vmatprep.mubr.f32.mxu0 0.0
  %177 = vmatmul.mubr.f32.gmra.mrb[0].mxu0 %v61
  %v178 = vpop.f32.mrb[0].mxu0
  %v179 = vadd.f32 %v33, %v178
  %v180 = vpop.f32.mrb[0].mxu0
  %181 = vmatprep.mubr.f32.mxu0 0.0
  %182 = vmatmul.mubr.f32.gmra.mrb[0].mxu0 %v64
  %v183 = vpop.f32.mrb[0].mxu0
  %v184 = vadd.f32 %v33, %v183
  %v185 = vpop.f32.mrb[0].mxu0
  %186 = vmatprep.mubr.f32.mxu0 0.0
  %187 = vmatmul.mubr.f32.gmra.mrb[0].mxu0 %v67
  %v188 = vpop.f32.mrb[0].mxu0
  %v189 = vadd.f32 %v33, %v188
  %v190 = vpop.f32.mrb[0].mxu0
  %191 = vmatprep.mubr.f32.mxu0 0.0
  %192 = vmatmul.mubr.f32.gmra.mrb[0].mxu0 %v70
  %v193 = vpop.f32.mrb[0].mxu0
  %v194 = vadd.f32 %v33, %v193
  %v195 = vpop.f32.mrb[0].mxu0
  %196 = vdwg.mxu0
  %vm197 = vcmask 523264
  %198 = vst.msk [vmem:[%s3] sm:$0xff] %vm197, %v139
  %199 = vst.msk [vmem:[%s3 + $0x8] sm:$0xff] %vm197, %v144
  %200 = vst.msk [vmem:[%s3 + $0x10] sm:$0xff] %vm197, %v149
  %201 = vst.msk [vmem:[%s3 + $0x18] sm:$0xff] %vm197, %v154
  %202 = vst.msk [vmem:[%s3 + $0x20] sm:$0xff] %vm197, %v159
  %203 = vst.msk [vmem:[%s3 + $0x28] sm:$0xff] %vm197, %v164
  %204 = vst.msk [vmem:[%s3 + $0x30] sm:$0xff] %vm197, %v169
  %205 = vst.msk [vmem:[%s3 + $0x38] sm:$0xff] %vm197, %v174
  %206 = vst.msk [vmem:[%s3 + $0x40] sm:$0xff] %vm197, %v179
  %207 = vst.msk [vmem:[%s3 + $0x48] sm:$0xff] %vm197, %v184
  %208 = vst.msk [vmem:[%s3 + $0x50] sm:$0xff] %vm197, %v189
  %209 = vst.msk [vmem:[%s3 + $0x58] sm:$0xff] %vm197, %v194
  // Predicated region
  $region14: #{char_parser_forward.15} parent=0 // pred_check
    _
  $region15: #{char_parser_forward.15} parent=0 // pred_check_branch
    %211 = sbr.rel (0) target = $region17
  $region16: #{char_parser_forward.15} parent=0 // pred_region
    _
  $region17: #{char_parser_forward.15} parent=0 // pred_fallthru
    _
  // Predicated region
  $region18: #{char_parser_forward.15} parent=0 // pred_check
    _
  $region19: #{char_parser_forward.15} parent=0 // pred_check_branch
    %213 = sbr.rel (0) target = $region21
  $region20: #{char_parser_forward.15} parent=0 // pred_region
    _
  $region21: #{char_parser_forward.15} parent=0 // pred_fallthru
    _

// kernel: char_parser_forward.16
$region0: #{char_parser_forward.16}
  #allocation0 [shape = 'u32[]', space=smem, size = 0x4, offset = 0x4, fixed_abs, tag = 'smem constant byte address 0x4 - core index']
  #allocation1 [shape = 'u32[144,128]{1,0:T(1,128)}', space=vmem, size = 0x12000, scoped, tag = 'internal scratch']
  #allocation2 [shape = 'f32[8,16]{1,0:T(8,128)}', space=vmem, size = 0x1000, scoped, tag = 'scratch operand']
  #allocation3 [shape = 'f32[8,16]{1,0:T(8,128)}', space=vmem, size = 0x1000, scoped, tag = 'scratch operand']
  %s0 = inlined_call_operand.vmem [shape: f32[6,16,64], index: 0, kind: input, shape index: {}]
  %s1 = inlined_call_operand.vmem [shape: f32[16,64], index: 1, kind: input, shape index: {}]
  %s2 = inlined_call_operand.vmem [shape: s32[16,1], index: 2, kind: input, shape index: {}]
  %s3 = inlined_call_operand.vmem [shape: f32[16,16], index: 3, kind: output, shape index: {}]
  %s4 = sld [smem:[#allocation0]]
  $region91: #{char_parser_forward.16} parent=0
    _
  %s6 = ssub.s32 1, %s4
  %s7 = scalar_select 0, %s6, %s4
  $region1: #{char_parser_forward.16} parent=0
    #allocation4 [shape = 'u8[49152]{0}', space=vmem, size = 0xc000, scoped, tag = 'input window, operand 0']
    loop: start=0, step=1, limit=4
    $region2: #{char_parser_forward.16} parent=1 // loop_pre_header
      _
    $region3: #{char_parser_forward.16} parent=1 // loop_header
      %s9 = sphi 0, %s13
      %p10 = scmp.ge.s32.totalorder %s9, 4
      %s16 = sphi 0, %s28
      %s17 = sphi 0, %s24
      %s18 = sphi 0, %s16
      %s19 = sphi 0, %s17
      %s20 = sphi 0, %s18
      %s21 = sphi 0, %s19
      %s33 = sphi 0, %s35
      %s36 = sphi 0, %s33
      %s37 = sphi 0, %s36
      %s53 = sphi 0, %s37
      %s57 = sphi 0, %s57
      %s59 = sphi 0, %s57
      %s60 = sphi 0, %s59
      %s74 = sphi 0, %s60
      %s80 = sphi 0, %s82
      %s83 = sphi 0, %s80
      %s84 = sphi 0, %s83
      %s100 = sphi 0, %s84
      %s106 = sphi 0, %s108
      %s109 = sphi 0, %s106
      %s110 = sphi 0, %s109
      %s126 = sphi 0, %s110
    $region4: #{char_parser_forward.16} parent=1 // loop_header_branch
      %12 = sbr.rel (%p10) target = $region8
    $region5: #{char_parser_forward.16} parent=1 // loop_body
      %s14 = ssub.s32 %s9, 1
      %s15 = ssub.s32 %s9, 2
      %s22 = sadd.s32 1, %s17
      %p23 = scmp.ge.s32.totalorder %s22, 1
      %s24 = scalar_select %p23, 0, %s22
      %s25 = sadd.s32 1, %s16
      %s26 = scalar_select %p23, %s25, %s16
      %p27 = scmp.ge.s32.totalorder %s26, 2
      %s28 = scalar_select %p27, 0, %s26
      %s29 = ssub.s32 %s17, %s24
      %s30 = ssub.s32 %s16, %s28
      %s31 = sor.u32 %s29, %s30
      %p32 = scmp.eq.s32.totalorder %s31, 0
      %s34 = sadd.s32 %s33, 1
      %s35 = scalar_select %p32, %s33, %s34
      %p38 = pneg %p32
      %p39 = scmp.eq.s32.totalorder %s9, 1
      %p40 = por %p38, %p39
      %p41 = scmp.ne.s32.totalorder %s33, %s36
      %p42 = scmp.eq.s32.totalorder %s9, 0
      %p43 = por %p41, %p42
      %p44 = scmp.ne.s32.totalorder %s33, %s36
      %p45 = scmp.eq.s32.totalorder %s14, 1
      %p46 = por %p44, %p45
      %p47 = scmp.ne.s32.totalorder %s36, %s37
      %p48 = scmp.eq.s32.totalorder %s14, 0
      %p49 = por %p47, %p48
      %p50 = scmp.ne.s32.totalorder %s36, %s37
      %p51 = scmp.eq.s32.totalorder %s15, 1
      %p52 = por %p50, %p51
      %p54 = scmp.ne.s32.totalorder %s37, %s53
      %p55 = scmp.eq.s32.totalorder %s15, 0
      %p56 = por %p54, %p55
      %s58 = sadd.s32 %s57, 1
      %p61 = scmp.eq.s32.totalorder %s9, 1
      %p62 = scmp.ne.s32.totalorder %s57, %s59
      %p63 = scmp.eq.s32.totalorder %s9, 0
      %p64 = por %p62, %p63
      %p65 = scmp.ne.s32.totalorder %s57, %s59
      %p66 = scmp.eq.s32.totalorder %s14, 1
      %p67 = por %p65, %p66
      %p68 = scmp.ne.s32.totalorder %s59, %s60
      %p69 = scmp.eq.s32.totalorder %s14, 0
      %p70 = por %p68, %p69
      %p71 = scmp.ne.s32.totalorder %s59, %s60
      %p72 = scmp.eq.s32.totalorder %s15, 1
      %p73 = por %p71, %p72
      %p75 = scmp.ne.s32.totalorder %s60, %s74
      %p76 = scmp.eq.s32.totalorder %s15, 0
      %p77 = por %p75, %p76
      %s78 = ssub.s32 %s16, %s28
      %p79 = scmp.eq.s32.totalorder %s78, 0
      %s81 = sadd.s32 %s80, 1
      %s82 = scalar_select %p79, %s80, %s81
      %p85 = pneg %p79
      %p86 = scmp.eq.s32.totalorder %s9, 1
      %p87 = por %p85, %p86
      %p88 = scmp.ne.s32.totalorder %s80, %s83
      %p89 = scmp.eq.s32.totalorder %s9, 0
      %p90 = por %p88, %p89
      %p91 = scmp.ne.s32.totalorder %s80, %s83
      %p92 = scmp.eq.s32.totalorder %s14, 1
      %p93 = por %p91, %p92
      %p94 = scmp.ne.s32.totalorder %s83, %s84
      %p95 = scmp.eq.s32.totalorder %s14, 0
      %p96 = por %p94, %p95
      %p97 = scmp.ne.s32.totalorder %s83, %s84
      %p98 = scmp.eq.s32.totalorder %s15, 1
      %p99 = por %p97, %p98
      %p101 = scmp.ne.s32.totalorder %s84, %s100
      %p102 = scmp.eq.s32.totalorder %s15, 0
      %p103 = por %p101, %p102
      %s104 = ssub.s32 %s16, %s28
      %p105 = scmp.eq.s32.totalorder %s104, 0
      %s107 = sadd.s32 %s106, 1
      %s108 = scalar_select %p105, %s106, %s107
      %p111 = pneg %p105
      %p112 = scmp.eq.s32.totalorder %s9, 1
      %p113 = por %p111, %p112
      %p114 = scmp.ne.s32.totalorder %s106, %s109
      %p115 = scmp.eq.s32.totalorder %s9, 0
      %p116 = por %p114, %p115
      %p117 = scmp.ne.s32.totalorder %s106, %s109
      %p118 = scmp.eq.s32.totalorder %s14, 1
      %p119 = por %p117, %p118
      %p120 = scmp.ne.s32.totalorder %s109, %s110
      %p121 = scmp.eq.s32.totalorder %s14, 0
      %p122 = por %p120, %p121
      %p123 = scmp.ne.s32.totalorder %s109, %s110
      %p124 = scmp.eq.s32.totalorder %s15, 1
      %p125 = por %p123, %p124
      %p127 = scmp.ne.s32.totalorder %s110, %s126
      %p128 = scmp.eq.s32.totalorder %s15, 0
      %p129 = por %p127, %p128
      %p130 = scmp.le.s32.totalorder 1, %s9
      %p131 = scmp.lt.s32.totalorder %s9, 3
      %p132 = pnand %p130, %p131
      %p133 = pneg %p132
      // Predicated region
      $region9: #{char_parser_forward.16} parent=5 // pred_check
        _
      $region10: #{char_parser_forward.16} parent=5 // pred_check_branch
        %135 = sbr.rel (%p132) target = $region12
      $region11: #{char_parser_forward.16} parent=5 // pred_region
        %s136 = ssub.s32 %s9, 1
        // Predicated region
        $region13: #{char_parser_forward.16} parent=11 // pred_check
          %p137 = pneg %p70
        $region14: #{char_parser_forward.16} parent=11 // pred_check_branch
          %139 = sbr.rel (%p137) target = $region16
        $region15: #{char_parser_forward.16} parent=11 // pred_region
          _
        $region16: #{char_parser_forward.16} parent=11 // pred_fallthru
          _
      $region12: #{char_parser_forward.16} parent=5 // pred_fallthru
        _
      %p140 = scmp.lt.s32.totalorder %s9, 2
      // Predicated region
      $region17: #{char_parser_forward.16} parent=5 // pred_check
        %p141 = pneg %p140
      $region18: #{char_parser_forward.16} parent=5 // pred_check_branch
        %143 = sbr.rel (%p141) target = $region20
      $region19: #{char_parser_forward.16} parent=5 // pred_region
        // Predicated region
        $region21: #{char_parser_forward.16} parent=19 // pred_check
          %p144 = pneg %p43
        $region22: #{char_parser_forward.16} parent=19 // pred_check_branch
          %146 = sbr.rel (%p144) target = $region24
        $region23: #{char_parser_forward.16} parent=19 // pred_region
          %s147 = sand.u32 %s33, 1
          %s148 = sand.u32 %s33, 1
          %s149 = smul.addr %s148, 48
          %s150 = scalar_lea.vmem [#allocation4], %s149
          %s151 = smul.u32 6, %s17
          %s152 = smul.addr %s151, 2
          %s153 = sadd.s32 %s16, %s152
          %s154 = smul.addr %s153, 8
          %s155 = scalar_lea.vmem %s0, %s154
          // Predicated region
          $region25: #{char_parser_forward.16} parent=23 // pred_check
            _
          $region26: #{char_parser_forward.16} parent=23 // pred_check_branch
            %157 = sbr.rel (0) target = $region28
          $region27: #{char_parser_forward.16} parent=23 // pred_region
            // Predicated region
            $region29: #{char_parser_forward.16} parent=27 // pred_check
              _
            $region30: #{char_parser_forward.16} parent=27 // pred_check_branch
              %159 = sbr.rel (0) target = $region32
            $region31: #{char_parser_forward.16} parent=27 // pred_region
              // Predicated region
              $region44: #{char_parser_forward.16} parent=31 // pred_check
                _
              $region45: #{char_parser_forward.16} parent=31 // pred_check_branch
                %184 = sbr.rel (0) target = $region47
              $region46: #{char_parser_forward.16} parent=31 // pred_region
                loop: start=0, step=1, limit=1
                $region48: #{char_parser_forward.16} parent=46 // loop_pre_header
                  _
                $region49: #{char_parser_forward.16} parent=46 // loop_header
                  %s186 = sphi 0, %s190
                  %p187 = scmp.ge.s32.totalorder %s186, 1
                  %s191 = sphi %s155, %s155
                  %s192 = sphi %s150, %s150
                $region50: #{char_parser_forward.16} parent=46 // loop_header_branch
                  %189 = sbr.rel (%p187) target = $region54
                $region51: #{char_parser_forward.16} parent=46 // loop_body
                  %v193 = vld [vmem:[%s191] sm:$0xff]
                  %194 = vst [vmem:[%s192] sm:$0xff] %v193
                  %v195 = vld [vmem:[%s191 + $0x10] sm:$0xff]
                  %196 = vst [vmem:[%s192 + $0x8] sm:$0xff] %v195
                  %v197 = vld [vmem:[%s191 + $0x20] sm:$0xff]
                  %198 = vst [vmem:[%s192 + $0x10] sm:$0xff] %v197
                  %v199 = vld [vmem:[%s191 + $0x30] sm:$0xff]
                  %200 = vst [vmem:[%s192 + $0x18] sm:$0xff] %v199
                  %v201 = vld [vmem:[%s191 + $0x40] sm:$0xff]
                  %202 = vst [vmem:[%s192 + $0x20] sm:$0xff] %v201
                  %v203 = vld [vmem:[%s191 + $0x50] sm:$0xff]
                  %204 = vst [vmem:[%s192 + $0x28] sm:$0xff] %v203
                $region52: #{char_parser_forward.16} parent=46 // loop_footer
                  %s190 = sadd.s32 1, %s186
                $region53: #{char_parser_forward.16} parent=46 // loop_footer_branch
                  %185 = sbr.rel target = $region49
                $region54: #{char_parser_forward.16} parent=46 // loop_exit
                  _
              $region47: #{char_parser_forward.16} parent=31 // pred_fallthru
                _
              // Predicated region
              $region55: #{char_parser_forward.16} parent=31 // pred_check
                _
              $region56: #{char_parser_forward.16} parent=31 // pred_check_branch
                %206 = sbr.rel target = $region58
              $region57: #{char_parser_forward.16} parent=31 // pred_region
                _
              $region58: #{char_parser_forward.16} parent=31 // pred_fallthru
                _
            $region32: #{char_parser_forward.16} parent=27 // pred_fallthru
              _
            // Predicated region
            $region33: #{char_parser_forward.16} parent=27 // pred_check
              _
            $region34: #{char_parser_forward.16} parent=27 // pred_check_branch
              %161 = sbr.rel target = $region36
            $region35: #{char_parser_forward.16} parent=27 // pred_region
              loop: start=0, step=1, limit=1
              $region37: #{char_parser_forward.16} parent=35 // loop_pre_header
                _
              $region38: #{char_parser_forward.16} parent=35 // loop_header
                %s164 = sphi 0, %s168
                %p165 = scmp.ge.s32.totalorder %s164, 1
                %s169 = sphi %s155, %s155
                %s170 = sphi %s150, %s150
              $region39: #{char_parser_forward.16} parent=35 // loop_header_branch
                %167 = sbr.rel (%p165) target = $region43
              $region40: #{char_parser_forward.16} parent=35 // loop_body
                %v171 = vld [vmem:[%s169] sm:$0xff]
                %172 = vst [vmem:[%s170] sm:$0xff] %v171
                %v173 = vld [vmem:[%s169 + $0x10] sm:$0xff]
                %174 = vst [vmem:[%s170 + $0x8] sm:$0xff] %v173
                %v175 = vld [vmem:[%s169 + $0x20] sm:$0xff]
                %176 = vst [vmem:[%s170 + $0x10] sm:$0xff] %v175
                %v177 = vld [vmem:[%s169 + $0x30] sm:$0xff]
                %178 = vst [vmem:[%s170 + $0x18] sm:$0xff] %v177
                %v179 = vld [vmem:[%s169 + $0x40] sm:$0xff]
                %180 = vst [vmem:[%s170 + $0x20] sm:$0xff] %v179
                %v181 = vld [vmem:[%s169 + $0x50] sm:$0xff]
                %182 = vst [vmem:[%s170 + $0x28] sm:$0xff] %v181
              $region41: #{char_parser_forward.16} parent=35 // loop_footer
                %s168 = sadd.s32 1, %s164
              $region42: #{char_parser_forward.16} parent=35 // loop_footer_branch
                %163 = sbr.rel target = $region38
              $region43: #{char_parser_forward.16} parent=35 // loop_exit
                _
            $region36: #{char_parser_forward.16} parent=27 // pred_fallthru
              _
          $region28: #{char_parser_forward.16} parent=23 // pred_fallthru
            _
          %207 = vnop
        $region24: #{char_parser_forward.16} parent=19 // pred_fallthru
          _
        // Predicated region
        $region59: #{char_parser_forward.16} parent=19 // pred_check
          %p208 = pneg %p90
        $region60: #{char_parser_forward.16} parent=19 // pred_check_branch
          %210 = sbr.rel (%p208) target = $region62
        $region61: #{char_parser_forward.16} parent=19 // pred_region
          %p211 = scmp.lt.s32.totalorder %s16, 1
          %s212 = scalar_select %p211, %s16, 1
          %s213 = smul.addr %s212, 8
          %s214 = scalar_lea.vmem %s2, %s213
        $region62: #{char_parser_forward.16} parent=19 // pred_fallthru
          _
      $region20: #{char_parser_forward.16} parent=5 // pred_fallthru
        _
      %p215 = scmp.le.s32.totalorder 1, %s9
      %p216 = scmp.lt.s32.totalorder %s9, 3
      %p217 = pnand %p215, %p216
      %p218 = pneg %p217
      // Predicated region
      $region63: #{char_parser_forward.16} parent=5 // pred_check
        _
      $region64: #{char_parser_forward.16} parent=5 // pred_check_branch
        %220 = sbr.rel (%p217) target = $region66
      $region65: #{char_parser_forward.16} parent=5 // pred_region
        %s221 = ssub.s32 %s9, 1
        %s222 = sand.u32 %s36, 1
        %s223 = sand.u32 %s36, 1
        %s224 = smul.addr %s223, 48
        %s225 = scalar_lea.vmem [#allocation4], %s224
        // Predicated region
        $region67: #{char_parser_forward.16} parent=65 // pred_check
          %p226 = pneg %p49
        $region68: #{char_parser_forward.16} parent=65 // pred_check_branch
          %228 = sbr.rel (%p226) target = $region70
        $region69: #{char_parser_forward.16} parent=65 // pred_region
          _
        $region70: #{char_parser_forward.16} parent=65 // pred_fallthru
          _
        %s229 = sand.u32 %s36, 1
        %s230 = sand.u32 %s36, 1
        %s231 = smul.addr %s230, 48
        %s232 = scalar_lea.vmem [#allocation4], %s231
        %p233 = pneg %p49
        %p234 = pneg %p46
        %p235 = pneg %p70
        %p236 = pneg %p67
        %p237 = scmp.lt.s32.totalorder %s18, 1
        %s238 = scalar_select %p237, %s18, 1
        %s239 = smul.addr %s238, 8
        %s240 = scalar_lea.vmem %s2, %s239
        %p241 = pneg %p96
        %p242 = pneg %p93
        %p243 = pneg %p122
        %p244 = pneg %p119
        %p245 = scmp.lt.s32.totalorder %s18, 1
        %s246 = scalar_select %p245, %s18, 1
        %s247 = smul.addr %s246, 8
        %s248 = scalar_lea.vmem %s3, %s247
        %s249 = smul.u32 6, %s19
        %p250 = scmp.lt.s32.totalorder %s18, 1
        %s251 = scalar_select %p250, %s18, 1
        %s252 = smul.addr %s251, 8
        %s253 = scalar_lea.vmem %s2, %s252
        %p254 = scmp.lt.s32.totalorder %s18, 1
        %s255 = scalar_select %p254, %s18, 1
        %s256 = smul.addr %s255, 8
        %s257 = scalar_lea.vmem %s3, %s256
        %s258 = smul.u32 %s19, 6
        %p259 = scmp.eq.s32.totalorder %s19, 0
        // Predicated region
        $region71: #{char_parser_forward.16} parent=65 // pred_check
          %p260 = pneg %p259
        $region72: #{char_parser_forward.16} parent=65 // pred_check_branch
          %262 = sbr.rel (%p260) target = $region74
        $region73: #{char_parser_forward.16} parent=65 // pred_region
          %vm263 = vcmask 130048
          %264 = vst.msk [vmem:[#allocation2] sm:$0xff] %vm263, 0.0
          %265 = vst.msk [vmem:[#allocation3] sm:$0xff] %vm263, 0.0
        $region74: #{char_parser_forward.16} parent=65 // pred_fallthru
          _
        %v266 = vld [vmem:[#allocation2] sm:$0xff]
        %v267 = vld [vmem:[#allocation3] sm:$0xff]
        %v268 = vld [vmem:[%s253] sm:$0xff]
        %v269 = vld [vmem:[%s1] sm:$0xff]
        %v270 = vld [vmem:[%s1 + $0x8] sm:$0xff]
        %v271 = vld [vmem:[%s225] sm:$0xff]
        %vm272 = vcmask 130048
        %v274 = vsel %vm272, %v266, 0
        %276 = vmatprep.subr.mxu0 0.0
        %277 = vmatpush1.msra.mxu0 %v269
        %278 = vmatprep.subr.mxu0 0.0
        %279 = vmatpush1.msra.mxu0 %v270
        %280 = vmatprep.subr.mxu0 0.0
        %281 = vmatpush1.msra.mxu0 0.0
        %282 = vmatprep.subr.mxu0 0.0
        %283 = vmatpush1.msra.mxu0 0.0
        %284 = vmatprep.subr.mxu0 0.0
        %285 = vmatpush1.msra.mxu0 0.0
        %286 = vmatprep.subr.mxu0 0.0
        %287 = vmatpush1.msra.mxu0 0.0
        %288 = vmatprep.subr.mxu0 0.0
        %289 = vmatpush1.msra.mxu0 0.0
        %290 = vmatprep.subr.mxu0 0.0
        %291 = vmatpush1.msra.mxu0 0.0
        %292 = vmatprep.subr.mxu0 0.0
        %293 = vmatpush1.msra.mxu0 0.0
        %294 = vmatprep.subr.mxu0 0.0
        %295 = vmatpush1.msra.mxu0 0.0
        %296 = vmatprep.subr.mxu0 0.0
        %297 = vmatpush1.msra.mxu0 0.0
        %298 = vmatprep.subr.mxu0 0.0
        %299 = vmatpush1.msra.mxu0 0.0
        %300 = vmatprep.subr.mxu0 0.0
        %301 = vmatpush1.msra.mxu0 0.0
        %302 = vmatprep.subr.mxu0 0.0
        %303 = vmatpush1.msra.mxu0 0.0
        %304 = vmatprep.subr.mxu0 0.0
        %305 = vmatpush1.msra.mxu0 0.0
        %306 = vmatprep.subr.mxu0 0.0
        %307 = vmatpush1.msra.mxu0 0.0
        %308 = vmatprep.subr.mxu0 0.0
        %309 = vmatpush1.msra.mxu0 0.0
        %310 = vmatprep.subr.mxu0 0.0
        %311 = vmatpush1.msra.mxu0 0.0
        %312 = vmatprep.subr.mxu0 0.0
        %313 = vmatpush1.msra.mxu0 0.0
        %314 = vmatprep.subr.mxu0 0.0
        %315 = vmatpush1.msra.mxu0 0.0
        %316 = vmatprep.subr.mxu0 0.0
        %317 = vmatpush1.msra.mxu0 0.0
        %318 = vmatprep.subr.mxu0 0.0
        %319 = vmatpush1.msra.mxu0 0.0
        %320 = vmatprep.subr.mxu0 0.0
        %321 = vmatpush1.msra.mxu0 0.0
        %322 = vmatprep.subr.mxu0 0.0
        %323 = vmatpush1.msra.mxu0 0.0
        %324 = vmatprep.subr.mxu0 0.0
        %325 = vmatpush1.msra.mxu0 0.0
        %326 = vmatprep.subr.mxu0 0.0
        %327 = vmatpush1.msra.mxu0 0.0
        %328 = vmatprep.subr.mxu0 0.0
        %329 = vmatpush1.msra.mxu0 0.0
        %330 = vmatprep.subr.mxu0 0.0
        %331 = vmatpush1.msra.mxu0 0.0
        %332 = vmatprep.subr.mxu0 0.0
        %333 = vmatpush1.msra.mxu0 0.0
        %334 = vmatprep.subr.mxu0 0.0
        %335 = vmatpush1.msra.mxu0 0.0
        %336 = vmatprep.subr.mxu0 0.0
        %337 = vmatpush1.msra.mxu0 0.0
        %338 = vmatprep.subr.mxu0 0.0
        %339 = vmatpush1.msra.mxu0 0.0
        %340 = vmatprep.mubr.f32.mxu0 0.0
        %341 = vmatmul.mubr.f32.gmra.mrb[0].mxu0 %v274
        %v342 = vpop.f32.mrb[0].mxu0
        %v343 = vadd.f32 0.0, %v342
        %v344 = vpop.f32.mrb[0].mxu0
        %345 = vdwg.mxu0
        %v346 = vadd.f32 %v271, %v343
        %v347 = vxor.u32 %v346, 2147483648
        %v348 = vmul.f32 %v347, 1.442695
        %v349 = vpow.pop %v348
        %v350 = vadd.f32 %v349, 1.0
        %v351 = vrcp.pop %v350
        %v352 = vmul.f32 1.0, %v351
        %v353 = vtanh.pop %v346
        %355 = vrot.lane.b32.xlu0 %v267, 16
        %v356 = vpop.permute.xlu0 %355
        %v358 = vmul.f32 %v352, %v356
        %360 = vrot.lane.b32.xlu0 %v353, 96
        %v361 = vpop.permute.xlu0 %360
        %v363 = vmul.f32 %v352, %v361
        %365 = vrot.lane.b32.xlu0 %v363, 16
        %v366 = vpop.permute.xlu0 %365
        %v368 = vadd.f32 %v358, %v366
        %v369 = vtanh.pop %v368
        %371 = vrot.lane.b32.xlu0 %v369, 32
        %v372 = vpop.permute.xlu0 %371
        %v374 = vmul.f32 %v352, %v372
        %v375 = vstv %s258
        %vm376 = vcmp.gt.s32.totalorder %v268, %v375
        %v377 = vsel %vm376, 1, 0
        %378 = vset.pattern.permute.xlu0 0
        %379 = vperm.xlu0 %378, %v377
        %v380 = vpop.permute.xlu0 %379
        %vm381 = vcmp.eq.s32.totalorder %v380, 1
        %382 = vrot.lane.b32.xlu0 %v266, 48
        %v383 = vpop.permute.xlu0 %382
        %v385 = vsel %vm381, %v374, %v383
        %v386 = vsel %vm381, %v368, %v356
        %s387 = scalar_lea.vmem %s225, 8 [#allocation4]
        %v388 = vld [vmem:[%s387] sm:$0xff]
        %390 = vrot.lane.b32.xlu0 %v385, 80
        %v391 = vpop.permute.xlu0 %390
        %v392 = vsel %vm272, %v391, 0
        %394 = vmatprep.subr.mxu0 0.0
        %395 = vmatpush1.msra.mxu0 %v269
        %396 = vmatprep.subr.mxu0 0.0
        %397 = vmatpush1.msra.mxu0 %v270
        %398 = vmatprep.subr.mxu0 0.0
        %399 = vmatpush1.msra.mxu0 0.0
        %400 = vmatprep.subr.mxu0 0.0
        %401 = vmatpush1.msra.mxu0 0.0
        %402 = vmatprep.subr.mxu0 0.0
        %403 = vmatpush1.msra.mxu0 0.0
        %404 = vmatprep.subr.mxu0 0.0
        %405 = vmatpush1.msra.mxu0 0.0
        %406 = vmatprep.subr.mxu0 0.0
        %407 = vmatpush1.msra.mxu0 0.0
        %408 = vmatprep.subr.mxu0 0.0
        %409 = vmatpush1.msra.mxu0 0.0
        %410 = vmatprep.subr.mxu0 0.0
        %411 = vmatpush1.msra.mxu0 0.0
        %412 = vmatprep.subr.mxu0 0.0
        %413 = vmatpush1.msra.mxu0 0.0
        %414 = vmatprep.subr.mxu0 0.0
        %415 = vmatpush1.msra.mxu0 0.0
        %416 = vmatprep.subr.mxu0 0.0
        %417 = vmatpush1.msra.mxu0 0.0
        %418 = vmatprep.subr.mxu0 0.0
        %419 = vmatpush1.msra.mxu0 0.0
        %420 = vmatprep.subr.mxu0 0.0
        %421 = vmatpush1.msra.mxu0 0.0
        %422 = vmatprep.subr.mxu0 0.0
        %423 = vmatpush1.msra.mxu0 0.0
        %424 = vmatprep.subr.mxu0 0.0
        %425 = vmatpush1.msra.mxu0 0.0
        %426 = vmatprep.subr.mxu0 0.0
        %427 = vmatpush1.msra.mxu0 0.0
        %428 = vmatprep.subr.mxu0 0.0
        %429 = vmatpush1.msra.mxu0 0.0
        %430 = vmatprep.subr.mxu0 0.0
        %431 = vmatpush1.msra.mxu0 0.0
        %432 = vmatprep.subr.mxu0 0.0
        %433 = vmatpush1.msra.mxu0 0.0
        %434 = vmatprep.subr.mxu0 0.0
        %435 = vmatpush1.msra.mxu0 0.0
        %436 = vmatprep.subr.mxu0 0.0
        %437 = vmatpush1.msra.mxu0 0.0
        %438 = vmatprep.subr.mxu0 0.0
        %439 = vmatpush1.msra.mxu0 0.0
        %440 = vmatprep.subr.mxu0 0.0
        %441 = vmatpush1.msra.mxu0 0.0
        %442 = vmatprep.subr.mxu0 0.0
        %443 = vmatpush1.msra.mxu0 0.0
        %444 = vmatprep.subr.mxu0 0.0
        %445 = vmatpush1.msra.mxu0 0.0
        %446 = vmatprep.subr.mxu0 0.0
        %447 = vmatpush1.msra.mxu0 0.0
        %448 = vmatprep.subr.mxu0 0.0
        %449 = vmatpush1.msra.mxu0 0.0
        %450 = vmatprep.subr.mxu0 0.0
        %451 = vmatpush1.msra.mxu0 0.0
        %452 = vmatprep.subr.mxu0 0.0
        %453 = vmatpush1.msra.mxu0 0.0
        %454 = vmatprep.subr.mxu0 0.0
        %455 = vmatpush1.msra.mxu0 0.0
        %456 = vmatprep.subr.mxu0 0.0
        %457 = vmatpush1.msra.mxu0 0.0
        %458 = vmatprep.mubr.f32.mxu0 0.0
        %459 = vmatmul.mubr.f32.gmra.mrb[0].mxu0 %v392
        %v460 = vpop.f32.mrb[0].mxu0
        %v461 = vadd.f32 0.0, %v460
        %v462 = vpop.f32.mrb[0].mxu0
        %463 = vdwg.mxu0
        %v464 = vadd.f32 %v388, %v461
        %v465 = vxor.u32 %v464, 2147483648
        %v466 = vmul.f32 %v465, 1.442695
        %v467 = vpow.pop %v466
        %v468 = vadd.f32 %v467, 1.0
        %v469 = vrcp.pop %v468
        %v470 = vmul.f32 1.0, %v469
        %v471 = vtanh.pop %v464
        %v472 = vmul.f32 %v470, %v386
        %474 = vrot.lane.b32.xlu0 %v471, 96
        %v475 = vpop.permute.xlu0 %474
        %v477 = vmul.f32 %v470, %v475
        %479 = vrot.lane.b32.xlu0 %v477, 16
        %v480 = vpop.permute.xlu0 %479
        %v482 = vadd.f32 %v472, %v480
        %v483 = vtanh.pop %v482
        %485 = vrot.lane.b32.xlu0 %v483, 32
        %v486 = vpop.permute.xlu0 %485
        %v488 = vmul.f32 %v470, %v486
        %s489 = sadd.s32 %s258, 1
        %v490 = vstv %s489
        %vm491 = vcmp.gt.s32.totalorder %v268, %v490
        %v492 = vsel %vm491, 1, 0
        %493 = vset.pattern.permute.xlu0 0
        %494 = vperm.xlu0 %493, %v492
        %v495 = vpop.permute.xlu0 %494
        %vm496 = vcmp.eq.s32.totalorder %v495, 1
        %v497 = vsel %vm496, %v488, %v385
        %v498 = vsel %vm496, %v482, %v386
        %s499 = scalar_lea.vmem %s225, 16 [#allocation4]
        %v500 = vld [vmem:[%s499] sm:$0xff]
        %502 = vrot.lane.b32.xlu0 %v497, 80
        %v503 = vpop.permute.xlu0 %502
        %v504 = vsel %vm272, %v503, 0
        %506 = vmatprep.subr.mxu0 0.0
        %507 = vmatpush1.msra.mxu0 %v269
        %508 = vmatprep.subr.mxu0 0.0
        %509 = vmatpush1.msra.mxu0 %v270
        %510 = vmatprep.subr.mxu0 0.0
        %511 = vmatpush1.msra.mxu0 0.0
        %512 = vmatprep.subr.mxu0 0.0
        %513 = vmatpush1.msra.mxu0 0.0
        %514 = vmatprep.subr.mxu0 0.0
        %515 = vmatpush1.msra.mxu0 0.0
        %516 = vmatprep.subr.mxu0 0.0
        %517 = vmatpush1.msra.mxu0 0.0
        %518 = vmatprep.subr.mxu0 0.0
        %519 = vmatpush1.msra.mxu0 0.0
        %520 = vmatprep.subr.mxu0 0.0
        %521 = vmatpush1.msra.mxu0 0.0
        %522 = vmatprep.subr.mxu0 0.0
        %523 = vmatpush1.msra.mxu0 0.0
        %524 = vmatprep.subr.mxu0 0.0
        %525 = vmatpush1.msra.mxu0 0.0
        %526 = vmatprep.subr.mxu0 0.0
        %527 = vmatpush1.msra.mxu0 0.0
        %528 = vmatprep.subr.mxu0 0.0
        %529 = vmatpush1.msra.mxu0 0.0
        %530 = vmatprep.subr.mxu0 0.0
        %531 = vmatpush1.msra.mxu0 0.0
        %532 = vmatprep.subr.mxu0 0.0
        %533 = vmatpush1.msra.mxu0 0.0
        %534 = vmatprep.subr.mxu0 0.0
        %535 = vmatpush1.msra.mxu0 0.0
        %536 = vmatprep.subr.mxu0 0.0
        %537 = vmatpush1.msra.mxu0 0.0
        %538 = vmatprep.subr.mxu0 0.0
        %539 = vmatpush1.msra.mxu0 0.0
        %540 = vmatprep.subr.mxu0 0.0
        %541 = vmatpush1.msra.mxu0 0.0
        %542 = vmatprep.subr.mxu0 0.0
        %543 = vmatpush1.msra.mxu0 0.0
        %544 = vmatprep.subr.mxu0 0.0
        %545 = vmatpush1.msra.mxu0 0.0
        %546 = vmatprep.subr.mxu0 0.0
        %547 = vmatpush1.msra.mxu0 0.0
        %548 = vmatprep.subr.mxu0 0.0
        %549 = vmatpush1.msra.mxu0 0.0
        %550 = vmatprep.subr.mxu0 0.0
        %551 = vmatpush1.msra.mxu0 0.0
        %552 = vmatprep.subr.mxu0 0.0
        %553 = vmatpush1.msra.mxu0 0.0
        %554 = vmatprep.subr.mxu0 0.0
        %555 = vmatpush1.msra.mxu0 0.0
        %556 = vmatprep.subr.mxu0 0.0
        %557 = vmatpush1.msra.mxu0 0.0
        %558 = vmatprep.subr.mxu0 0.0
        %559 = vmatpush1.msra.mxu0 0.0
        %560 = vmatprep.subr.mxu0 0.0
        %561 = vmatpush1.msra.mxu0 0.0
        %562 = vmatprep.subr.mxu0 0.0
        %563 = vmatpush1.msra.mxu0 0.0
        %564 = vmatprep.subr.mxu0 0.0
        %565 = vmatpush1.msra.mxu0 0.0
        %566 = vmatprep.subr.mxu0 0.0
        %567 = vmatpush1.msra.mxu0 0.0
        %568 = vmatprep.subr.mxu0 0.0
        %569 = vmatpush1.msra.mxu0 0.0
        %570 = vmatprep.mubr.f32.mxu0 0.0
        %571 = vmatmul.mubr.f32.gmra.mrb[0].mxu0 %v504
        %v572 = vpop.f32.mrb[0].mxu0
        %v573 = vadd.f32 0.0, %v572
        %v574 = vpop.f32.mrb[0].mxu0
        %575 = vdwg.mxu0
        %v576 = vadd.f32 %v500, %v573
        %v577 = vxor.u32 %v576, 2147483648
        %v578 = vmul.f32 %v577, 1.442695
        %v579 = vpow.pop %v578
        %v580 = vadd.f32 %v579, 1.0
        %v581 = vrcp.pop %v580
        %v582 = vmul.f32 1.0, %v581
        %v583 = vtanh.pop %v576
        %v584 = vmul.f32 %v582, %v498
        %586 = vrot.lane.b32.xlu0 %v583, 96
        %v587 = vpop.permute.xlu0 %586
        %v589 = vmul.f32 %v582, %v587
        %591 = vrot.lane.b32.xlu0 %v589, 16
        %v592 = vpop.permute.xlu0 %591
        %v594 = vadd.f32 %v584, %v592
        %v595 = vtanh.pop %v594
        %597 = vrot.lane.b32.xlu0 %v595, 32
        %v598 = vpop.permute.xlu0 %597
        %v600 = vmul.f32 %v582, %v598
        %s601 = sadd.s32 %s258, 2
        %v602 = vstv %s601
        %vm603 = vcmp.gt.s32.totalorder %v268, %v602
        %v604 = vsel %vm603, 1, 0
        %605 = vset.pattern.permute.xlu0 0
        %606 = vperm.xlu0 %605, %v604
        %v607 = vpop.permute.xlu0 %606
        %vm608 = vcmp.eq.s32.totalorder %v607, 1
        %v609 = vsel %vm608, %v600, %v497
        %v610 = vsel %vm608, %v594, %v498
        %s611 = scalar_lea.vmem %s225, 24 [#allocation4]
        %v612 = vld [vmem:[%s611] sm:$0xff]
        %614 = vrot.lane.b32.xlu0 %v609, 80
        %v615 = vpop.permute.xlu0 %614
        %v616 = vsel %vm272, %v615, 0
        %618 = vmatprep.subr.mxu0 0.0
        %619 = vmatpush1.msra.mxu0 %v269
        %620 = vmatprep.subr.mxu0 0.0
        %621 = vmatpush1.msra.mxu0 %v270
        %622 = vmatprep.subr.mxu0 0.0
        %623 = vmatpush1.msra.mxu0 0.0
        %624 = vmatprep.subr.mxu0 0.0
        %625 = vmatpush1.msra.mxu0 0.0
        %626 = vmatprep.subr.mxu0 0.0
        %627 = vmatpush1.msra.mxu0 0.0
        %628 = vmatprep.subr.mxu0 0.0
        %629 = vmatpush1.msra.mxu0 0.0
        %630 = vmatprep.subr.mxu0 0.0
        %631 = vmatpush1.msra.mxu0 0.0
        %632 = vmatprep.subr.mxu0 0.0
        %633 = vmatpush1.msra.mxu0 0.0
        %634 = vmatprep.subr.mxu0 0.0
        %635 = vmatpush1.msra.mxu0 0.0
        %636 = vmatprep.subr.mxu0 0.0
        %637 = vmatpush1.msra.mxu0 0.0
        %638 = vmatprep.subr.mxu0 0.0
        %639 = vmatpush1.msra.mxu0 0.0
        %640 = vmatprep.subr.mxu0 0.0
        %641 = vmatpush1.msra.mxu0 0.0
        %642 = vmatprep.subr.mxu0 0.0
        %643 = vmatpush1.msra.mxu0 0.0
        %644 = vmatprep.subr.mxu0 0.0
        %645 = vmatpush1.msra.mxu0 0.0
        %646 = vmatprep.subr.mxu0 0.0
        %647 = vmatpush1.msra.mxu0 0.0
        %648 = vmatprep.subr.mxu0 0.0
        %649 = vmatpush1.msra.mxu0 0.0
        %650 = vmatprep.subr.mxu0 0.0
        %651 = vmatpush1.msra.mxu0 0.0
        %652 = vmatprep.subr.mxu0 0.0
        %653 = vmatpush1.msra.mxu0 0.0
        %654 = vmatprep.subr.mxu0 0.0
        %655 = vmatpush1.msra.mxu0 0.0
        %656 = vmatprep.subr.mxu0 0.0
        %657 = vmatpush1.msra.mxu0 0.0
        %658 = vmatprep.subr.mxu0 0.0
        %659 = vmatpush1.msra.mxu0 0.0
        %660 = vmatprep.subr.mxu0 0.0
        %661 = vmatpush1.msra.mxu0 0.0
        %662 = vmatprep.subr.mxu0 0.0
        %663 = vmatpush1.msra.mxu0 0.0
        %664 = vmatprep.subr.mxu0 0.0
        %665 = vmatpush1.msra.mxu0 0.0
        %666 = vmatprep.subr.mxu0 0.0
        %667 = vmatpush1.msra.mxu0 0.0
        %668 = vmatprep.subr.mxu0 0.0
        %669 = vmatpush1.msra.mxu0 0.0
        %670 = vmatprep.subr.mxu0 0.0
        %671 = vmatpush1.msra.mxu0 0.0
        %672 = vmatprep.subr.mxu0 0.0
        %673 = vmatpush1.msra.mxu0 0.0
        %674 = vmatprep.subr.mxu0 0.0
        %675 = vmatpush1.msra.mxu0 0.0
        %676 = vmatprep.subr.mxu0 0.0
        %677 = vmatpush1.msra.mxu0 0.0
        %678 = vmatprep.subr.mxu0 0.0
        %679 = vmatpush1.msra.mxu0 0.0
        %680 = vmatprep.subr.mxu0 0.0
        %681 = vmatpush1.msra.mxu0 0.0
        %682 = vmatprep.mubr.f32.mxu0 0.0
        %683 = vmatmul.mubr.f32.gmra.mrb[0].mxu0 %v616
        %v684 = vpop.f32.mrb[0].mxu0
        %v685 = vadd.f32 0.0, %v684
        %v686 = vpop.f32.mrb[0].mxu0
        %687 = vdwg.mxu0
        %v688 = vadd.f32 %v612, %v685
        %v689 = vxor.u32 %v688, 2147483648
        %v690 = vmul.f32 %v689, 1.442695
        %v691 = vpow.pop %v690
        %v692 = vadd.f32 %v691, 1.0
        %v693 = vrcp.pop %v692
        %v694 = vmul.f32 1.0, %v693
        %v695 = vtanh.pop %v688
        %v696 = vmul.f32 %v694, %v610
        %698 = vrot.lane.b32.xlu0 %v695, 96
        %v699 = vpop.permute.xlu0 %698
        %v701 = vmul.f32 %v694, %v699
        %703 = vrot.lane.b32.xlu0 %v701, 16
        %v704 = vpop.permute.xlu0 %703
        %v706 = vadd.f32 %v696, %v704
        %v707 = vtanh.pop %v706
        %709 = vrot.lane.b32.xlu0 %v707, 32
        %v710 = vpop.permute.xlu0 %709
        %v712 = vmul.f32 %v694, %v710
        %s713 = sadd.s32 %s258, 3
        %v714 = vstv %s713
        %vm715 = vcmp.gt.s32.totalorder %v268, %v714
        %v716 = vsel %vm715, 1, 0
        %717 = vset.pattern.permute.xlu0 0
        %718 = vperm.xlu0 %717, %v716
        %v719 = vpop.permute.xlu0 %718
        %vm720 = vcmp.eq.s32.totalorder %v719, 1
        %v721 = vsel %vm720, %v712, %v609
        %v722 = vsel %vm720, %v706, %v610
        %s723 = scalar_lea.vmem %s225, 32 [#allocation4]
        %v724 = vld [vmem:[%s723] sm:$0xff]
        %726 = vrot.lane.b32.xlu0 %v721, 80
        %v727 = vpop.permute.xlu0 %726
        %v728 = vsel %vm272, %v727, 0
        %730 = vmatprep.subr.mxu0 0.0
        %731 = vmatpush1.msra.mxu0 %v269
        %732 = vmatprep.subr.mxu0 0.0
        %733 = vmatpush1.msra.mxu0 %v270
        %734 = vmatprep.subr.mxu0 0.0
        %735 = vmatpush1.msra.mxu0 0.0
        %736 = vmatprep.subr.mxu0 0.0
        %737 = vmatpush1.msra.mxu0 0.0
        %738 = vmatprep.subr.mxu0 0.0
        %739 = vmatpush1.msra.mxu0 0.0
        %740 = vmatprep.subr.mxu0 0.0
        %741 = vmatpush1.msra.mxu0 0.0
        %742 = vmatprep.subr.mxu0 0.0
        %743 = vmatpush1.msra.mxu0 0.0
        %744 = vmatprep.subr.mxu0 0.0
        %745 = vmatpush1.msra.mxu0 0.0
        %746 = vmatprep.subr.mxu0 0.0
        %747 = vmatpush1.msra.mxu0 0.0
        %748 = vmatprep.subr.mxu0 0.0
        %749 = vmatpush1.msra.mxu0 0.0
        %750 = vmatprep.subr.mxu0 0.0
        %751 = vmatpush1.msra.mxu0 0.0
        %752 = vmatprep.subr.mxu0 0.0
        %753 = vmatpush1.msra.mxu0 0.0
        %754 = vmatprep.subr.mxu0 0.0
        %755 = vmatpush1.msra.mxu0 0.0
        %756 = vmatprep.subr.mxu0 0.0
        %757 = vmatpush1.msra.mxu0 0.0
        %758 = vmatprep.subr.mxu0 0.0
        %759 = vmatpush1.msra.mxu0 0.0
        %760 = vmatprep.subr.mxu0 0.0
        %761 = vmatpush1.msra.mxu0 0.0
        %762 = vmatprep.subr.mxu0 0.0
        %763 = vmatpush1.msra.mxu0 0.0
        %764 = vmatprep.subr.mxu0 0.0
        %765 = vmatpush1.msra.mxu0 0.0
        %766 = vmatprep.subr.mxu0 0.0
        %767 = vmatpush1.msra.mxu0 0.0
        %768 = vmatprep.subr.mxu0 0.0
        %769 = vmatpush1.msra.mxu0 0.0
        %770 = vmatprep.subr.mxu0 0.0
        %771 = vmatpush1.msra.mxu0 0.0
        %772 = vmatprep.subr.mxu0 0.0
        %773 = vmatpush1.msra.mxu0 0.0
        %774 = vmatprep.subr.mxu0 0.0
        %775 = vmatpush1.msra.mxu0 0.0
        %776 = vmatprep.subr.mxu0 0.0
        %777 = vmatpush1.msra.mxu0 0.0
        %778 = vmatprep.subr.mxu0 0.0
        %779 = vmatpush1.msra.mxu0 0.0
        %780 = vmatprep.subr.mxu0 0.0
        %781 = vmatpush1.msra.mxu0 0.0
        %782 = vmatprep.subr.mxu0 0.0
        %783 = vmatpush1.msra.mxu0 0.0
        %784 = vmatprep.subr.mxu0 0.0
        %785 = vmatpush1.msra.mxu0 0.0
        %786 = vmatprep.subr.mxu0 0.0
        %787 = vmatpush1.msra.mxu0 0.0
        %788 = vmatprep.subr.mxu0 0.0
        %789 = vmatpush1.msra.mxu0 0.0
        %790 = vmatprep.subr.mxu0 0.0
        %791 = vmatpush1.msra.mxu0 0.0
        %792 = vmatprep.subr.mxu0 0.0
        %793 = vmatpush1.msra.mxu0 0.0
        %794 = vmatprep.mubr.f32.mxu0 0.0
        %795 = vmatmul.mubr.f32.gmra.mrb[0].mxu0 %v728
        %v796 = vpop.f32.mrb[0].mxu0
        %v797 = vadd.f32 0.0, %v796
        %v798 = vpop.f32.mrb[0].mxu0
        %799 = vdwg.mxu0
        %v800 = vadd.f32 %v724, %v797
        %v801 = vxor.u32 %v800, 2147483648
        %v802 = vmul.f32 %v801, 1.442695
        %v803 = vpow.pop %v802
        %v804 = vadd.f32 %v803, 1.0
        %v805 = vrcp.pop %v804
        %v806 = vmul.f32 1.0, %v805
        %v807 = vtanh.pop %v800
        %v808 = vmul.f32 %v806, %v722
        %810 = vrot.lane.b32.xlu0 %v807, 96
        %v811 = vpop.permute.xlu0 %810
        %v813 = vmul.f32 %v806, %v811
        %815 = vrot.lane.b32.xlu0 %v813, 16
        %v816 = vpop.permute.xlu0 %815
        %v818 = vadd.f32 %v808, %v816
        %v819 = vtanh.pop %v818
        %821 = vrot.lane.b32.xlu0 %v819, 32
        %v822 = vpop.permute.xlu0 %821
        %v824 = vmul.f32 %v806, %v822
        %s825 = sadd.s32 %s258, 4
        %v826 = vstv %s825
        %vm827 = vcmp.gt.s32.totalorder %v268, %v826
        %v828 = vsel %vm827, 1, 0
        %829 = vset.pattern.permute.xlu0 0
        %830 = vperm.xlu0 %829, %v828
        %v831 = vpop.permute.xlu0 %830
        %vm832 = vcmp.eq.s32.totalorder %v831, 1
        %v833 = vsel %vm832, %v824, %v721
        %v834 = vsel %vm832, %v818, %v722
        %s835 = scalar_lea.vmem %s225, 40 [#allocation4]
        %v836 = vld [vmem:[%s835] sm:$0xff]
        %838 = vrot.lane.b32.xlu0 %v833, 80
        %v839 = vpop.permute.xlu0 %838
        %v840 = vsel %vm272, %v839, 0
        %842 = vmatprep.subr.mxu0 0.0
        %843 = vmatpush1.msra.mxu0 %v269
        %844 = vmatprep.subr.mxu0 0.0
        %845 = vmatpush1.msra.mxu0 %v270
        %846 = vmatprep.subr.mxu0 0.0
        %847 = vmatpush1.msra.mxu0 0.0
        %848 = vmatprep.subr.mxu0 0.0
        %849 = vmatpush1.msra.mxu0 0.0
        %850 = vmatprep.subr.mxu0 0.0
        %851 = vmatpush1.msra.mxu0 0.0
        %852 = vmatprep.subr.mxu0 0.0
        %853 = vmatpush1.msra.mxu0 0.0
        %854 = vmatprep.subr.mxu0 0.0
        %855 = vmatpush1.msra.mxu0 0.0
        %856 = vmatprep.subr.mxu0 0.0
        %857 = vmatpush1.msra.mxu0 0.0
        %858 = vmatprep.subr.mxu0 0.0
        %859 = vmatpush1.msra.mxu0 0.0
        %860 = vmatprep.subr.mxu0 0.0
        %861 = vmatpush1.msra.mxu0 0.0
        %862 = vmatprep.subr.mxu0 0.0
        %863 = vmatpush1.msra.mxu0 0.0
        %864 = vmatprep.subr.mxu0 0.0
        %865 = vmatpush1.msra.mxu0 0.0
        %866 = vmatprep.subr.mxu0 0.0
        %867 = vmatpush1.msra.mxu0 0.0
        %868 = vmatprep.subr.mxu0 0.0
        %869 = vmatpush1.msra.mxu0 0.0
        %870 = vmatprep.subr.mxu0 0.0
        %871 = vmatpush1.msra.mxu0 0.0
        %872 = vmatprep.subr.mxu0 0.0
        %873 = vmatpush1.msra.mxu0 0.0
        %874 = vmatprep.subr.mxu0 0.0
        %875 = vmatpush1.msra.mxu0 0.0
        %876 = vmatprep.subr.mxu0 0.0
        %877 = vmatpush1.msra.mxu0 0.0
        %878 = vmatprep.subr.mxu0 0.0
        %879 = vmatpush1.msra.mxu0 0.0
        %880 = vmatprep.subr.mxu0 0.0
        %881 = vmatpush1.msra.mxu0 0.0
        %882 = vmatprep.subr.mxu0 0.0
        %883 = vmatpush1.msra.mxu0 0.0
        %884 = vmatprep.subr.mxu0 0.0
        %885 = vmatpush1.msra.mxu0 0.0
        %886 = vmatprep.subr.mxu0 0.0
        %887 = vmatpush1.msra.mxu0 0.0
        %888 = vmatprep.subr.mxu0 0.0
        %889 = vmatpush1.msra.mxu0 0.0
        %890 = vmatprep.subr.mxu0 0.0
        %891 = vmatpush1.msra.mxu0 0.0
        %892 = vmatprep.subr.mxu0 0.0
        %893 = vmatpush1.msra.mxu0 0.0
        %894 = vmatprep.subr.mxu0 0.0
        %895 = vmatpush1.msra.mxu0 0.0
        %896 = vmatprep.subr.mxu0 0.0
        %897 = vmatpush1.msra.mxu0 0.0
        %898 = vmatprep.subr.mxu0 0.0
        %899 = vmatpush1.msra.mxu0 0.0
        %900 = vmatprep.subr.mxu0 0.0
        %901 = vmatpush1.msra.mxu0 0.0
        %902 = vmatprep.subr.mxu0 0.0
        %903 = vmatpush1.msra.mxu0 0.0
        %904 = vmatprep.subr.mxu0 0.0
        %905 = vmatpush1.msra.mxu0 0.0
        %906 = vmatprep.mubr.f32.mxu0 0.0
        %907 = vmatmul.mubr.f32.gmra.mrb[0].mxu0 %v840
        %v908 = vpop.f32.mrb[0].mxu0
        %v909 = vadd.f32 0.0, %v908
        %v910 = vpop.f32.mrb[0].mxu0
        %911 = vdwg.mxu0
        %v912 = vadd.f32 %v836, %v909
        %v913 = vxor.u32 %v912, 2147483648
        %v914 = vmul.f32 %v913, 1.442695
        %v915 = vpow.pop %v914
        %v916 = vadd.f32 %v915, 1.0
        %v917 = vrcp.pop %v916
        %v918 = vmul.f32 1.0, %v917
        %v919 = vtanh.pop %v912
        %v920 = vmul.f32 %v918, %v834
        %922 = vrot.lane.b32.xlu0 %v919, 96
        %v923 = vpop.permute.xlu0 %922
        %v925 = vmul.f32 %v918, %v923
        %927 = vrot.lane.b32.xlu0 %v925, 16
        %v928 = vpop.permute.xlu0 %927
        %v930 = vadd.f32 %v920, %v928
        %v931 = vtanh.pop %v930
        %933 = vrot.lane.b32.xlu0 %v931, 32
        %v934 = vpop.permute.xlu0 %933
        %v936 = vmul.f32 %v918, %v934
        %s937 = sadd.s32 %s258, 5
        %v938 = vstv %s937
        %vm939 = vcmp.gt.s32.totalorder %v268, %v938
        %v940 = vsel %vm939, 1, 0
        %941 = vset.pattern.permute.xlu0 0
        %942 = vperm.xlu0 %941, %v940
        %v943 = vpop.permute.xlu0 %942
        %vm944 = vcmp.eq.s32.totalorder %v943, 1
        %v945 = vsel %vm944, %v936, %v833
        %v946 = vsel %vm944, %v930, %v834
        %948 = vrot.lane.b32.xlu0 %v945, 80
        %v949 = vpop.permute.xlu0 %948
        %951 = vst.msk [vmem:[#allocation2] sm:$0xff] %vm272, %v949
        %953 = vrot.lane.b32.xlu0 %v946, 112
        %v954 = vpop.permute.xlu0 %953
        %956 = vst.msk [vmem:[#allocation3] sm:$0xff] %vm272, %v954
        // Predicated region
        $region75: #{char_parser_forward.16} parent=65 // pred_check
          %p957 = pneg %p259
        $region76: #{char_parser_forward.16} parent=65 // pred_check_branch
          %959 = sbr.rel (%p957) target = $region78
        $region77: #{char_parser_forward.16} parent=65 // pred_region
          %960 = vst.msk [vmem:[%s257] sm:$0xff] %vm272, %v949
        $region78: #{char_parser_forward.16} parent=65 // pred_fallthru
          _
        %p961 = scmp.lt.s32.totalorder %s18, 1
        %s962 = scalar_select %p961, %s18, 1
        %s963 = smul.addr %s962, 8
        %s964 = scalar_lea.vmem %s3, %s963
        // Predicated region
        $region79: #{char_parser_forward.16} parent=65 // pred_check
          %p965 = pneg %p119
        $region80: #{char_parser_forward.16} parent=65 // pred_check_branch
          %967 = sbr.rel (%p965) target = $region82
        $region81: #{char_parser_forward.16} parent=65 // pred_region
          _
        $region82: #{char_parser_forward.16} parent=65 // pred_fallthru
          _
      $region66: #{char_parser_forward.16} parent=5 // pred_fallthru
        _
      %p968 = scmp.le.s32.totalorder 2, %s9
      // Predicated region
      $region83: #{char_parser_forward.16} parent=5 // pred_check
        %p969 = pneg %p968
      $region84: #{char_parser_forward.16} parent=5 // pred_check_branch
        %971 = sbr.rel (%p969) target = $region86
      $region85: #{char_parser_forward.16} parent=5 // pred_region
        %s972 = ssub.s32 %s9, 2
        // Predicated region
        $region87: #{char_parser_forward.16} parent=85 // pred_check
          %p973 = pneg %p125
        $region88: #{char_parser_forward.16} parent=85 // pred_check_branch
          %975 = sbr.rel (%p973) target = $region90
        $region89: #{char_parser_forward.16} parent=85 // pred_region
          %p976 = scmp.lt.s32.totalorder %s20, 1
          %s977 = scalar_select %p976, %s20, 1
          %s978 = smul.addr %s977, 8
          %s979 = scalar_lea.vmem %s3, %s978
        $region90: #{char_parser_forward.16} parent=85 // pred_fallthru
          _
      $region86: #{char_parser_forward.16} parent=5 // pred_fallthru
        _
    $region6: #{char_parser_forward.16} parent=1 // loop_footer
      %s13 = sadd.s32 1, %s9
    $region7: #{char_parser_forward.16} parent=1 // loop_footer_branch
      %8 = sbr.rel target = $region3
    $region8: #{char_parser_forward.16} parent=1 // loop_exit
      _

// kernel: char_parser_forward.18
$region0: #{char_parser_forward.18}
  #allocation0 [shape = 'u32[]', space=smem, size = 0x4, offset = 0x4, fixed_abs, tag = 'smem constant byte address 0x4 - core index']
  #allocation1 [shape = 'u32[144,128]{1,0:T(1,128)}', space=vmem, size = 0x12000, scoped, tag = 'internal scratch']
  #allocation2 [shape = 'f32[8,16]{1,0:T(8,128)}', space=vmem, size = 0x1000, scoped, tag = 'scratch operand']
  #allocation3 [shape = 'f32[8,16]{1,0:T(8,128)}', space=vmem, size = 0x1000, scoped, tag = 'scratch operand']
  %s0 = inlined_call_operand.vmem [shape: f32[6,16,64], index: 0, kind: input, shape index: {}]
  %s1 = inlined_call_operand.vmem [shape: f32[16,64], index: 1, kind: input, shape index: {}]
  %s2 = inlined_call_operand.vmem [shape: s32[16,1], index: 2, kind: input, shape index: {}]
  %s3 = inlined_call_operand.vmem [shape: f32[16,16], index: 3, kind: output, shape index: {}]
  %s4 = sld [smem:[#allocation0]]
  $region91: #{char_parser_forward.18} parent=0
    _
  %s6 = ssub.s32 1, %s4
  %s7 = scalar_select 0, %s6, %s4
  $region1: #{char_parser_forward.18} parent=0
    #allocation4 [shape = 'u8[49152]{0}', space=vmem, size = 0xc000, scoped, tag = 'input window, operand 0']
    loop: start=0, step=1, limit=4
    $region2: #{char_parser_forward.18} parent=1 // loop_pre_header
      _
    $region3: #{char_parser_forward.18} parent=1 // loop_header
      %s9 = sphi 0, %s13
      %p10 = scmp.ge.s32.totalorder %s9, 4
      %s16 = sphi 0, %s28
      %s17 = sphi 0, %s24
      %s18 = sphi 0, %s16
      %s19 = sphi 0, %s17
      %s20 = sphi 0, %s18
      %s21 = sphi 0, %s19
      %s35 = sphi 0, %s37
      %s38 = sphi 0, %s35
      %s39 = sphi 0, %s38
      %s55 = sphi 0, %s39
      %s59 = sphi 0, %s59
      %s61 = sphi 0, %s59
      %s62 = sphi 0, %s61
      %s76 = sphi 0, %s62
      %s82 = sphi 0, %s84
      %s85 = sphi 0, %s82
      %s86 = sphi 0, %s85
      %s102 = sphi 0, %s86
      %s108 = sphi 0, %s110
      %s111 = sphi 0, %s108
      %s112 = sphi 0, %s111
      %s128 = sphi 0, %s112
    $region4: #{char_parser_forward.18} parent=1 // loop_header_branch
      %12 = sbr.rel (%p10) target = $region8
    $region5: #{char_parser_forward.18} parent=1 // loop_body
      %s14 = ssub.s32 %s9, 1
      %s15 = ssub.s32 %s9, 2
      %s22 = sadd.s32 1, %s17
      %p23 = scmp.ge.s32.totalorder %s22, 1
      %s24 = scalar_select %p23, 0, %s22
      %s25 = sadd.s32 1, %s16
      %s26 = scalar_select %p23, %s25, %s16
      %p27 = scmp.ge.s32.totalorder %s26, 2
      %s28 = scalar_select %p27, 0, %s26
      %s29 = ssub.s32 0, %s17
      %s30 = ssub.s32 0, %s24
      %s31 = ssub.s32 %s29, %s30
      %s32 = ssub.s32 %s16, %s28
      %s33 = sor.u32 %s31, %s32
      %p34 = scmp.eq.s32.totalorder %s33, 0
      %s36 = sadd.s32 %s35, 1
      %s37 = scalar_select %p34, %s35, %s36
      %p40 = pneg %p34
      %p41 = scmp.eq.s32.totalorder %s9, 1
      %p42 = por %p40, %p41
      %p43 = scmp.ne.s32.totalorder %s35, %s38
      %p44 = scmp.eq.s32.totalorder %s9, 0
      %p45 = por %p43, %p44
      %p46 = scmp.ne.s32.totalorder %s35, %s38
      %p47 = scmp.eq.s32.totalorder %s14, 1
      %p48 = por %p46, %p47
      %p49 = scmp.ne.s32.totalorder %s38, %s39
      %p50 = scmp.eq.s32.totalorder %s14, 0
      %p51 = por %p49, %p50
      %p52 = scmp.ne.s32.totalorder %s38, %s39
      %p53 = scmp.eq.s32.totalorder %s15, 1
      %p54 = por %p52, %p53
      %p56 = scmp.ne.s32.totalorder %s39, %s55
      %p57 = scmp.eq.s32.totalorder %s15, 0
      %p58 = por %p56, %p57
      %s60 = sadd.s32 %s59, 1
      %p63 = scmp.eq.s32.totalorder %s9, 1
      %p64 = scmp.ne.s32.totalorder %s59, %s61
      %p65 = scmp.eq.s32.totalorder %s9, 0
      %p66 = por %p64, %p65
      %p67 = scmp.ne.s32.totalorder %s59, %s61
      %p68 = scmp.eq.s32.totalorder %s14, 1
      %p69 = por %p67, %p68
      %p70 = scmp.ne.s32.totalorder %s61, %s62
      %p71 = scmp.eq.s32.totalorder %s14, 0
      %p72 = por %p70, %p71
      %p73 = scmp.ne.s32.totalorder %s61, %s62
      %p74 = scmp.eq.s32.totalorder %s15, 1
      %p75 = por %p73, %p74
      %p77 = scmp.ne.s32.totalorder %s62, %s76
      %p78 = scmp.eq.s32.totalorder %s15, 0
      %p79 = por %p77, %p78
      %s80 = ssub.s32 %s16, %s28
      %p81 = scmp.eq.s32.totalorder %s80, 0
      %s83 = sadd.s32 %s82, 1
      %s84 = scalar_select %p81, %s82, %s83
      %p87 = pneg %p81
      %p88 = scmp.eq.s32.totalorder %s9, 1
      %p89 = por %p87, %p88
      %p90 = scmp.ne.s32.totalorder %s82, %s85
      %p91 = scmp.eq.s32.totalorder %s9, 0
      %p92 = por %p90, %p91
      %p93 = scmp.ne.s32.totalorder %s82, %s85
      %p94 = scmp.eq.s32.totalorder %s14, 1
      %p95 = por %p93, %p94
      %p96 = scmp.ne.s32.totalorder %s85, %s86
      %p97 = scmp.eq.s32.totalorder %s14, 0
      %p98 = por %p96, %p97
      %p99 = scmp.ne.s32.totalorder %s85, %s86
      %p100 = scmp.eq.s32.totalorder %s15, 1
      %p101 = por %p99, %p100
      %p103 = scmp.ne.s32.totalorder %s86, %s102
      %p104 = scmp.eq.s32.totalorder %s15, 0
      %p105 = por %p103, %p104
      %s106 = ssub.s32 %s16, %s28
      %p107 = scmp.eq.s32.totalorder %s106, 0
      %s109 = sadd.s32 %s108, 1
      %s110 = scalar_select %p107, %s108, %s109
      %p113 = pneg %p107
      %p114 = scmp.eq.s32.totalorder %s9, 1
      %p115 = por %p113, %p114
      %p116 = scmp.ne.s32.totalorder %s108, %s111
      %p117 = scmp.eq.s32.totalorder %s9, 0
      %p118 = por %p116, %p117
      %p119 = scmp.ne.s32.totalorder %s108, %s111
      %p120 = scmp.eq.s32.totalorder %s14, 1
      %p121 = por %p119, %p120
      %p122 = scmp.ne.s32.totalorder %s111, %s112
      %p123 = scmp.eq.s32.totalorder %s14, 0
      %p124 = por %p122, %p123
      %p125 = scmp.ne.s32.totalorder %s111, %s112
      %p126 = scmp.eq.s32.totalorder %s15, 1
      %p127 = por %p125, %p126
      %p129 = scmp.ne.s32.totalorder %s112, %s128
      %p130 = scmp.eq.s32.totalorder %s15, 0
      %p131 = por %p129, %p130
      %p132 = scmp.le.s32.totalorder 1, %s9
      %p133 = scmp.lt.s32.totalorder %s9, 3
      %p134 = pnand %p132, %p133
      %p135 = pneg %p134
      // Predicated region
      $region9: #{char_parser_forward.18} parent=5 // pred_check
        _
      $region10: #{char_parser_forward.18} parent=5 // pred_check_branch
        %137 = sbr.rel (%p134) target = $region12
      $region11: #{char_parser_forward.18} parent=5 // pred_region
        %s138 = ssub.s32 %s9, 1
        // Predicated region
        $region13: #{char_parser_forward.18} parent=11 // pred_check
          %p139 = pneg %p72
        $region14: #{char_parser_forward.18} parent=11 // pred_check_branch
          %141 = sbr.rel (%p139) target = $region16
        $region15: #{char_parser_forward.18} parent=11 // pred_region
          _
        $region16: #{char_parser_forward.18} parent=11 // pred_fallthru
          _
      $region12: #{char_parser_forward.18} parent=5 // pred_fallthru
        _
      %p142 = scmp.lt.s32.totalorder %s9, 2
      // Predicated region
      $region17: #{char_parser_forward.18} parent=5 // pred_check
        %p143 = pneg %p142
      $region18: #{char_parser_forward.18} parent=5 // pred_check_branch
        %145 = sbr.rel (%p143) target = $region20
      $region19: #{char_parser_forward.18} parent=5 // pred_region
        // Predicated region
        $region21: #{char_parser_forward.18} parent=19 // pred_check
          %p146 = pneg %p45
        $region22: #{char_parser_forward.18} parent=19 // pred_check_branch
          %148 = sbr.rel (%p146) target = $region24
        $region23: #{char_parser_forward.18} parent=19 // pred_region
          %s149 = sand.u32 %s35, 1
          %s150 = sand.u32 %s35, 1
          %s151 = smul.addr %s150, 48
          %s152 = scalar_lea.vmem [#allocation4], %s151
          %s153 = ssub.s32 0, %s17
          %s154 = smul.u32 6, %s153
          %s155 = smul.addr %s154, 2
          %s156 = sadd.s32 %s16, %s155
          %s157 = smul.addr %s156, 8
          %s158 = scalar_lea.vmem %s0, %s157
          // Predicated region
          $region25: #{char_parser_forward.18} parent=23 // pred_check
            _
          $region26: #{char_parser_forward.18} parent=23 // pred_check_branch
            %160 = sbr.rel (0) target = $region28
          $region27: #{char_parser_forward.18} parent=23 // pred_region
            // Predicated region
            $region29: #{char_parser_forward.18} parent=27 // pred_check
              _
            $region30: #{char_parser_forward.18} parent=27 // pred_check_branch
              %162 = sbr.rel (0) target = $region32
            $region31: #{char_parser_forward.18} parent=27 // pred_region
              // Predicated region
              $region44: #{char_parser_forward.18} parent=31 // pred_check
                _
              $region45: #{char_parser_forward.18} parent=31 // pred_check_branch
                %187 = sbr.rel (0) target = $region47
              $region46: #{char_parser_forward.18} parent=31 // pred_region
                loop: start=0, step=1, limit=1
                $region48: #{char_parser_forward.18} parent=46 // loop_pre_header
                  _
                $region49: #{char_parser_forward.18} parent=46 // loop_header
                  %s189 = sphi 0, %s193
                  %p190 = scmp.ge.s32.totalorder %s189, 1
                  %s194 = sphi %s158, %s158
                  %s195 = sphi %s152, %s152
                $region50: #{char_parser_forward.18} parent=46 // loop_header_branch
                  %192 = sbr.rel (%p190) target = $region54
                $region51: #{char_parser_forward.18} parent=46 // loop_body
                  %v196 = vld [vmem:[%s194] sm:$0xff]
                  %197 = vst [vmem:[%s195] sm:$0xff] %v196
                  %v198 = vld [vmem:[%s194 + $0x10] sm:$0xff]
                  %199 = vst [vmem:[%s195 + $0x8] sm:$0xff] %v198
                  %v200 = vld [vmem:[%s194 + $0x20] sm:$0xff]
                  %201 = vst [vmem:[%s195 + $0x10] sm:$0xff] %v200
                  %v202 = vld [vmem:[%s194 + $0x30] sm:$0xff]
                  %203 = vst [vmem:[%s195 + $0x18] sm:$0xff] %v202
                  %v204 = vld [vmem:[%s194 + $0x40] sm:$0xff]
                  %205 = vst [vmem:[%s195 + $0x20] sm:$0xff] %v204
                  %v206 = vld [vmem:[%s194 + $0x50] sm:$0xff]
                  %207 = vst [vmem:[%s195 + $0x28] sm:$0xff] %v206
                $region52: #{char_parser_forward.18} parent=46 // loop_footer
                  %s193 = sadd.s32 1, %s189
                $region53: #{char_parser_forward.18} parent=46 // loop_footer_branch
                  %188 = sbr.rel target = $region49
                $region54: #{char_parser_forward.18} parent=46 // loop_exit
                  _
              $region47: #{char_parser_forward.18} parent=31 // pred_fallthru
                _
              // Predicated region
              $region55: #{char_parser_forward.18} parent=31 // pred_check
                _
              $region56: #{char_parser_forward.18} parent=31 // pred_check_branch
                %209 = sbr.rel target = $region58
              $region57: #{char_parser_forward.18} parent=31 // pred_region
                _
              $region58: #{char_parser_forward.18} parent=31 // pred_fallthru
                _
            $region32: #{char_parser_forward.18} parent=27 // pred_fallthru
              _
            // Predicated region
            $region33: #{char_parser_forward.18} parent=27 // pred_check
              _
            $region34: #{char_parser_forward.18} parent=27 // pred_check_branch
              %164 = sbr.rel target = $region36
            $region35: #{char_parser_forward.18} parent=27 // pred_region
              loop: start=0, step=1, limit=1
              $region37: #{char_parser_forward.18} parent=35 // loop_pre_header
                _
              $region38: #{char_parser_forward.18} parent=35 // loop_header
                %s167 = sphi 0, %s171
                %p168 = scmp.ge.s32.totalorder %s167, 1
                %s172 = sphi %s158, %s158
                %s173 = sphi %s152, %s152
              $region39: #{char_parser_forward.18} parent=35 // loop_header_branch
                %170 = sbr.rel (%p168) target = $region43
              $region40: #{char_parser_forward.18} parent=35 // loop_body
                %v174 = vld [vmem:[%s172] sm:$0xff]
                %175 = vst [vmem:[%s173] sm:$0xff] %v174
                %v176 = vld [vmem:[%s172 + $0x10] sm:$0xff]
                %177 = vst [vmem:[%s173 + $0x8] sm:$0xff] %v176
                %v178 = vld [vmem:[%s172 + $0x20] sm:$0xff]
                %179 = vst [vmem:[%s173 + $0x10] sm:$0xff] %v178
                %v180 = vld [vmem:[%s172 + $0x30] sm:$0xff]
                %181 = vst [vmem:[%s173 + $0x18] sm:$0xff] %v180
                %v182 = vld [vmem:[%s172 + $0x40] sm:$0xff]
                %183 = vst [vmem:[%s173 + $0x20] sm:$0xff] %v182
                %v184 = vld [vmem:[%s172 + $0x50] sm:$0xff]
                %185 = vst [vmem:[%s173 + $0x28] sm:$0xff] %v184
              $region41: #{char_parser_forward.18} parent=35 // loop_footer
                %s171 = sadd.s32 1, %s167
              $region42: #{char_parser_forward.18} parent=35 // loop_footer_branch
                %166 = sbr.rel target = $region38
              $region43: #{char_parser_forward.18} parent=35 // loop_exit
                _
            $region36: #{char_parser_forward.18} parent=27 // pred_fallthru
              _
          $region28: #{char_parser_forward.18} parent=23 // pred_fallthru
            _
          %210 = vnop
        $region24: #{char_parser_forward.18} parent=19 // pred_fallthru
          _
        // Predicated region
        $region59: #{char_parser_forward.18} parent=19 // pred_check
          %p211 = pneg %p92
        $region60: #{char_parser_forward.18} parent=19 // pred_check_branch
          %213 = sbr.rel (%p211) target = $region62
        $region61: #{char_parser_forward.18} parent=19 // pred_region
          %p214 = scmp.lt.s32.totalorder %s16, 1
          %s215 = scalar_select %p214, %s16, 1
          %s216 = smul.addr %s215, 8
          %s217 = scalar_lea.vmem %s2, %s216
        $region62: #{char_parser_forward.18} parent=19 // pred_fallthru
          _
      $region20: #{char_parser_forward.18} parent=5 // pred_fallthru
        _
      %p218 = scmp.le.s32.totalorder 1, %s9
      %p219 = scmp.lt.s32.totalorder %s9, 3
      %p220 = pnand %p218, %p219
      %p221 = pneg %p220
      // Predicated region
      $region63: #{char_parser_forward.18} parent=5 // pred_check
        _
      $region64: #{char_parser_forward.18} parent=5 // pred_check_branch
        %223 = sbr.rel (%p220) target = $region66
      $region65: #{char_parser_forward.18} parent=5 // pred_region
        %s224 = ssub.s32 %s9, 1
        %s225 = sand.u32 %s38, 1
        %s226 = sand.u32 %s38, 1
        %s227 = smul.addr %s226, 48
        %s228 = scalar_lea.vmem [#allocation4], %s227
        // Predicated region
        $region67: #{char_parser_forward.18} parent=65 // pred_check
          %p229 = pneg %p51
        $region68: #{char_parser_forward.18} parent=65 // pred_check_branch
          %231 = sbr.rel (%p229) target = $region70
        $region69: #{char_parser_forward.18} parent=65 // pred_region
          _
        $region70: #{char_parser_forward.18} parent=65 // pred_fallthru
          _
        %s232 = sand.u32 %s38, 1
        %s233 = sand.u32 %s38, 1
        %s234 = smul.addr %s233, 48
        %s235 = scalar_lea.vmem [#allocation4], %s234
        %p236 = pneg %p51
        %p237 = pneg %p48
        %p238 = pneg %p72
        %p239 = pneg %p69
        %p240 = scmp.lt.s32.totalorder %s18, 1
        %s241 = scalar_select %p240, %s18, 1
        %s242 = smul.addr %s241, 8
        %s243 = scalar_lea.vmem %s2, %s242
        %p244 = pneg %p98
        %p245 = pneg %p95
        %p246 = pneg %p124
        %p247 = pneg %p121
        %p248 = scmp.lt.s32.totalorder %s18, 1
        %s249 = scalar_select %p248, %s18, 1
        %s250 = smul.addr %s249, 8
        %s251 = scalar_lea.vmem %s3, %s250
        %s252 = ssub.s32 0, %s19
        %s253 = smul.u32 6, %s252
        %p254 = scmp.lt.s32.totalorder %s18, 1
        %s255 = scalar_select %p254, %s18, 1
        %s256 = smul.addr %s255, 8
        %s257 = scalar_lea.vmem %s2, %s256
        %p258 = scmp.lt.s32.totalorder %s18, 1
        %s259 = scalar_select %p258, %s18, 1
        %s260 = smul.addr %s259, 8
        %s261 = scalar_lea.vmem %s3, %s260
        %s262 = ssub.s32 0, %s19
        %s263 = smul.u32 %s262, 6
        %p264 = scmp.eq.s32.totalorder %s19, 0
        // Predicated region
        $region71: #{char_parser_forward.18} parent=65 // pred_check
          %p265 = pneg %p264
        $region72: #{char_parser_forward.18} parent=65 // pred_check_branch
          %267 = sbr.rel (%p265) target = $region74
        $region73: #{char_parser_forward.18} parent=65 // pred_region
          %vm268 = vcmask 130048
          %269 = vst.msk [vmem:[#allocation2] sm:$0xff] %vm268, 0.0
          %270 = vst.msk [vmem:[#allocation3] sm:$0xff] %vm268, 0.0
        $region74: #{char_parser_forward.18} parent=65 // pred_fallthru
          _
        %v271 = vld [vmem:[#allocation2] sm:$0xff]
        %v272 = vld [vmem:[#allocation3] sm:$0xff]
        %v273 = vld [vmem:[%s257] sm:$0xff]
        %v274 = vld [vmem:[%s1] sm:$0xff]
        %v275 = vld [vmem:[%s1 + $0x8] sm:$0xff]
        %s276 = scalar_lea.vmem %s228, 40 [#allocation4]
        %v277 = vld [vmem:[%s276] sm:$0xff]
        %vm278 = vcmask 130048
        %v280 = vsel %vm278, %v271, 0
        %282 = vmatprep.subr.mxu0 0.0
        %283 = vmatpush1.msra.mxu0 %v274
        %284 = vmatprep.subr.mxu0 0.0
        %285 = vmatpush1.msra.mxu0 %v275
        %286 = vmatprep.subr.mxu0 0.0
        %287 = vmatpush1.msra.mxu0 0.0
        %288 = vmatprep.subr.mxu0 0.0
        %289 = vmatpush1.msra.mxu0 0.0
        %290 = vmatprep.subr.mxu0 0.0
        %291 = vmatpush1.msra.mxu0 0.0
        %292 = vmatprep.subr.mxu0 0.0
        %293 = vmatpush1.msra.mxu0 0.0
        %294 = vmatprep.subr.mxu0 0.0
        %295 = vmatpush1.msra.mxu0 0.0
        %296 = vmatprep.subr.mxu0 0.0
        %297 = vmatpush1.msra.mxu0 0.0
        %298 = vmatprep.subr.mxu0 0.0
        %299 = vmatpush1.msra.mxu0 0.0
        %300 = vmatprep.subr.mxu0 0.0
        %301 = vmatpush1.msra.mxu0 0.0
        %302 = vmatprep.subr.mxu0 0.0
        %303 = vmatpush1.msra.mxu0 0.0
        %304 = vmatprep.subr.mxu0 0.0
        %305 = vmatpush1.msra.mxu0 0.0
        %306 = vmatprep.subr.mxu0 0.0
        %307 = vmatpush1.msra.mxu0 0.0
        %308 = vmatprep.subr.mxu0 0.0
        %309 = vmatpush1.msra.mxu0 0.0
        %310 = vmatprep.subr.mxu0 0.0
        %311 = vmatpush1.msra.mxu0 0.0
        %312 = vmatprep.subr.mxu0 0.0
        %313 = vmatpush1.msra.mxu0 0.0
        %314 = vmatprep.subr.mxu0 0.0
        %315 = vmatpush1.msra.mxu0 0.0
        %316 = vmatprep.subr.mxu0 0.0
        %317 = vmatpush1.msra.mxu0 0.0
        %318 = vmatprep.subr.mxu0 0.0
        %319 = vmatpush1.msra.mxu0 0.0
        %320 = vmatprep.subr.mxu0 0.0
        %321 = vmatpush1.msra.mxu0 0.0
        %322 = vmatprep.subr.mxu0 0.0
        %323 = vmatpush1.msra.mxu0 0.0
        %324 = vmatprep.subr.mxu0 0.0
        %325 = vmatpush1.msra.mxu0 0.0
        %326 = vmatprep.subr.mxu0 0.0
        %327 = vmatpush1.msra.mxu0 0.0
        %328 = vmatprep.subr.mxu0 0.0
        %329 = vmatpush1.msra.mxu0 0.0
        %330 = vmatprep.subr.mxu0 0.0
        %331 = vmatpush1.msra.mxu0 0.0
        %332 = vmatprep.subr.mxu0 0.0
        %333 = vmatpush1.msra.mxu0 0.0
        %334 = vmatprep.subr.mxu0 0.0
        %335 = vmatpush1.msra.mxu0 0.0
        %336 = vmatprep.subr.mxu0 0.0
        %337 = vmatpush1.msra.mxu0 0.0
        %338 = vmatprep.subr.mxu0 0.0
        %339 = vmatpush1.msra.mxu0 0.0
        %340 = vmatprep.subr.mxu0 0.0
        %341 = vmatpush1.msra.mxu0 0.0
        %342 = vmatprep.subr.mxu0 0.0
        %343 = vmatpush1.msra.mxu0 0.0
        %344 = vmatprep.subr.mxu0 0.0
        %345 = vmatpush1.msra.mxu0 0.0
        %346 = vmatprep.mubr.f32.mxu0 0.0
        %347 = vmatmul.mubr.f32.gmra.mrb[0].mxu0 %v280
        %v348 = vpop.f32.mrb[0].mxu0
        %v349 = vadd.f32 0.0, %v348
        %v350 = vpop.f32.mrb[0].mxu0
        %351 = vdwg.mxu0
        %v352 = vadd.f32 %v277, %v349
        %v353 = vxor.u32 %v352, 2147483648
        %v354 = vmul.f32 %v353, 1.442695
        %v355 = vpow.pop %v354
        %v356 = vadd.f32 %v355, 1.0
        %v357 = vrcp.pop %v356
        %v358 = vmul.f32 1.0, %v357
        %v359 = vtanh.pop %v352
        %361 = vrot.lane.b32.xlu0 %v272, 16
        %v362 = vpop.permute.xlu0 %361
        %v364 = vmul.f32 %v358, %v362
        %366 = vrot.lane.b32.xlu0 %v359, 96
        %v367 = vpop.permute.xlu0 %366
        %v369 = vmul.f32 %v358, %v367
        %371 = vrot.lane.b32.xlu0 %v369, 16
        %v372 = vpop.permute.xlu0 %371
        %v374 = vadd.f32 %v364, %v372
        %v375 = vtanh.pop %v374
        %377 = vrot.lane.b32.xlu0 %v375, 32
        %v378 = vpop.permute.xlu0 %377
        %v380 = vmul.f32 %v358, %v378
        %s381 = sadd.s32 %s263, 5
        %v382 = vstv %s381
        %vm383 = vcmp.gt.s32.totalorder %v273, %v382
        %v384 = vsel %vm383, 1, 0
        %385 = vset.pattern.permute.xlu0 0
        %386 = vperm.xlu0 %385, %v384
        %v387 = vpop.permute.xlu0 %386
        %vm388 = vcmp.eq.s32.totalorder %v387, 1
        %389 = vrot.lane.b32.xlu0 %v271, 48
        %v390 = vpop.permute.xlu0 %389
        %v392 = vsel %vm388, %v380, %v390
        %v393 = vsel %vm388, %v374, %v362
        %s394 = scalar_lea.vmem %s228, 32 [#allocation4]
        %v395 = vld [vmem:[%s394] sm:$0xff]
        %397 = vrot.lane.b32.xlu0 %v392, 80
        %v398 = vpop.permute.xlu0 %397
        %v399 = vsel %vm278, %v398, 0
        %401 = vmatprep.subr.mxu0 0.0
        %402 = vmatpush1.msra.mxu0 %v274
        %403 = vmatprep.subr.mxu0 0.0
        %404 = vmatpush1.msra.mxu0 %v275
        %405 = vmatprep.subr.mxu0 0.0
        %406 = vmatpush1.msra.mxu0 0.0
        %407 = vmatprep.subr.mxu0 0.0
        %408 = vmatpush1.msra.mxu0 0.0
        %409 = vmatprep.subr.mxu0 0.0
        %410 = vmatpush1.msra.mxu0 0.0
        %411 = vmatprep.subr.mxu0 0.0
        %412 = vmatpush1.msra.mxu0 0.0
        %413 = vmatprep.subr.mxu0 0.0
        %414 = vmatpush1.msra.mxu0 0.0
        %415 = vmatprep.subr.mxu0 0.0
        %416 = vmatpush1.msra.mxu0 0.0
        %417 = vmatprep.subr.mxu0 0.0
        %418 = vmatpush1.msra.mxu0 0.0
        %419 = vmatprep.subr.mxu0 0.0
        %420 = vmatpush1.msra.mxu0 0.0
        %421 = vmatprep.subr.mxu0 0.0
        %422 = vmatpush1.msra.mxu0 0.0
        %423 = vmatprep.subr.mxu0 0.0
        %424 = vmatpush1.msra.mxu0 0.0
        %425 = vmatprep.subr.mxu0 0.0
        %426 = vmatpush1.msra.mxu0 0.0
        %427 = vmatprep.subr.mxu0 0.0
        %428 = vmatpush1.msra.mxu0 0.0
        %429 = vmatprep.subr.mxu0 0.0
        %430 = vmatpush1.msra.mxu0 0.0
        %431 = vmatprep.subr.mxu0 0.0
        %432 = vmatpush1.msra.mxu0 0.0
        %433 = vmatprep.subr.mxu0 0.0
        %434 = vmatpush1.msra.mxu0 0.0
        %435 = vmatprep.subr.mxu0 0.0
        %436 = vmatpush1.msra.mxu0 0.0
        %437 = vmatprep.subr.mxu0 0.0
        %438 = vmatpush1.msra.mxu0 0.0
        %439 = vmatprep.subr.mxu0 0.0
        %440 = vmatpush1.msra.mxu0 0.0
        %441 = vmatprep.subr.mxu0 0.0
        %442 = vmatpush1.msra.mxu0 0.0
        %443 = vmatprep.subr.mxu0 0.0
        %444 = vmatpush1.msra.mxu0 0.0
        %445 = vmatprep.subr.mxu0 0.0
        %446 = vmatpush1.msra.mxu0 0.0
        %447 = vmatprep.subr.mxu0 0.0
        %448 = vmatpush1.msra.mxu0 0.0
        %449 = vmatprep.subr.mxu0 0.0
        %450 = vmatpush1.msra.mxu0 0.0
        %451 = vmatprep.subr.mxu0 0.0
        %452 = vmatpush1.msra.mxu0 0.0
        %453 = vmatprep.subr.mxu0 0.0
        %454 = vmatpush1.msra.mxu0 0.0
        %455 = vmatprep.subr.mxu0 0.0
        %456 = vmatpush1.msra.mxu0 0.0
        %457 = vmatprep.subr.mxu0 0.0
        %458 = vmatpush1.msra.mxu0 0.0
        %459 = vmatprep.subr.mxu0 0.0
        %460 = vmatpush1.msra.mxu0 0.0
        %461 = vmatprep.subr.mxu0 0.0
        %462 = vmatpush1.msra.mxu0 0.0
        %463 = vmatprep.subr.mxu0 0.0
        %464 = vmatpush1.msra.mxu0 0.0
        %465 = vmatprep.mubr.f32.mxu0 0.0
        %466 = vmatmul.mubr.f32.gmra.mrb[0].mxu0 %v399
        %v467 = vpop.f32.mrb[0].mxu0
        %v468 = vadd.f32 0.0, %v467
        %v469 = vpop.f32.mrb[0].mxu0
        %470 = vdwg.mxu0
        %v471 = vadd.f32 %v395, %v468
        %v472 = vxor.u32 %v471, 2147483648
        %v473 = vmul.f32 %v472, 1.442695
        %v474 = vpow.pop %v473
        %v475 = vadd.f32 %v474, 1.0
        %v476 = vrcp.pop %v475
        %v477 = vmul.f32 1.0, %v476
        %v478 = vtanh.pop %v471
        %v479 = vmul.f32 %v477, %v393
        %481 = vrot.lane.b32.xlu0 %v478, 96
        %v482 = vpop.permute.xlu0 %481
        %v484 = vmul.f32 %v477, %v482
        %486 = vrot.lane.b32.xlu0 %v484, 16
        %v487 = vpop.permute.xlu0 %486
        %v489 = vadd.f32 %v479, %v487
        %v490 = vtanh.pop %v489
        %492 = vrot.lane.b32.xlu0 %v490, 32
        %v493 = vpop.permute.xlu0 %492
        %v495 = vmul.f32 %v477, %v493
        %s496 = sadd.s32 %s263, 4
        %v497 = vstv %s496
        %vm498 = vcmp.gt.s32.totalorder %v273, %v497
        %v499 = vsel %vm498, 1, 0
        %500 = vset.pattern.permute.xlu0 0
        %501 = vperm.xlu0 %500, %v499
        %v502 = vpop.permute.xlu0 %501
        %vm503 = vcmp.eq.s32.totalorder %v502, 1
        %v504 = vsel %vm503, %v495, %v392
        %v505 = vsel %vm503, %v489, %v393
        %s506 = scalar_lea.vmem %s228, 24 [#allocation4]
        %v507 = vld [vmem:[%s506] sm:$0xff]
        %509 = vrot.lane.b32.xlu0 %v504, 80
        %v510 = vpop.permute.xlu0 %509
        %v511 = vsel %vm278, %v510, 0
        %513 = vmatprep.subr.mxu0 0.0
        %514 = vmatpush1.msra.mxu0 %v274
        %515 = vmatprep.subr.mxu0 0.0
        %516 = vmatpush1.msra.mxu0 %v275
        %517 = vmatprep.subr.mxu0 0.0
        %518 = vmatpush1.msra.mxu0 0.0
        %519 = vmatprep.subr.mxu0 0.0
        %520 = vmatpush1.msra.mxu0 0.0
        %521 = vmatprep.subr.mxu0 0.0
        %522 = vmatpush1.msra.mxu0 0.0
        %523 = vmatprep.subr.mxu0 0.0
        %524 = vmatpush1.msra.mxu0 0.0
        %525 = vmatprep.subr.mxu0 0.0
        %526 = vmatpush1.msra.mxu0 0.0
        %527 = vmatprep.subr.mxu0 0.0
        %528 = vmatpush1.msra.mxu0 0.0
        %529 = vmatprep.subr.mxu0 0.0
        %530 = vmatpush1.msra.mxu0 0.0
        %531 = vmatprep.subr.mxu0 0.0
        %532 = vmatpush1.msra.mxu0 0.0
        %533 = vmatprep.subr.mxu0 0.0
        %534 = vmatpush1.msra.mxu0 0.0
        %535 = vmatprep.subr.mxu0 0.0
        %536 = vmatpush1.msra.mxu0 0.0
        %537 = vmatprep.subr.mxu0 0.0
        %538 = vmatpush1.msra.mxu0 0.0
        %539 = vmatprep.subr.mxu0 0.0
        %540 = vmatpush1.msra.mxu0 0.0
        %541 = vmatprep.subr.mxu0 0.0
        %542 = vmatpush1.msra.mxu0 0.0
        %543 = vmatprep.subr.mxu0 0.0
        %544 = vmatpush1.msra.mxu0 0.0
        %545 = vmatprep.subr.mxu0 0.0
        %546 = vmatpush1.msra.mxu0 0.0
        %547 = vmatprep.subr.mxu0 0.0
        %548 = vmatpush1.msra.mxu0 0.0
        %549 = vmatprep.subr.mxu0 0.0
        %550 = vmatpush1.msra.mxu0 0.0
        %551 = vmatprep.subr.mxu0 0.0
        %552 = vmatpush1.msra.mxu0 0.0
        %553 = vmatprep.subr.mxu0 0.0
        %554 = vmatpush1.msra.mxu0 0.0
        %555 = vmatprep.subr.mxu0 0.0
        %556 = vmatpush1.msra.mxu0 0.0
        %557 = vmatprep.subr.mxu0 0.0
        %558 = vmatpush1.msra.mxu0 0.0
        %559 = vmatprep.subr.mxu0 0.0
        %560 = vmatpush1.msra.mxu0 0.0
        %561 = vmatprep.subr.mxu0 0.0
        %562 = vmatpush1.msra.mxu0 0.0
        %563 = vmatprep.subr.mxu0 0.0
        %564 = vmatpush1.msra.mxu0 0.0
        %565 = vmatprep.subr.mxu0 0.0
        %566 = vmatpush1.msra.mxu0 0.0
        %567 = vmatprep.subr.mxu0 0.0
        %568 = vmatpush1.msra.mxu0 0.0
        %569 = vmatprep.subr.mxu0 0.0
        %570 = vmatpush1.msra.mxu0 0.0
        %571 = vmatprep.subr.mxu0 0.0
        %572 = vmatpush1.msra.mxu0 0.0
        %573 = vmatprep.subr.mxu0 0.0
        %574 = vmatpush1.msra.mxu0 0.0
        %575 = vmatprep.subr.mxu0 0.0
        %576 = vmatpush1.msra.mxu0 0.0
        %577 = vmatprep.mubr.f32.mxu0 0.0
        %578 = vmatmul.mubr.f32.gmra.mrb[0].mxu0 %v511
        %v579 = vpop.f32.mrb[0].mxu0
        %v580 = vadd.f32 0.0, %v579
        %v581 = vpop.f32.mrb[0].mxu0
        %582 = vdwg.mxu0
        %v583 = vadd.f32 %v507, %v580
        %v584 = vxor.u32 %v583, 2147483648
        %v585 = vmul.f32 %v584, 1.442695
        %v586 = vpow.pop %v585
        %v587 = vadd.f32 %v586, 1.0
        %v588 = vrcp.pop %v587
        %v589 = vmul.f32 1.0, %v588
        %v590 = vtanh.pop %v583
        %v591 = vmul.f32 %v589, %v505
        %593 = vrot.lane.b32.xlu0 %v590, 96
        %v594 = vpop.permute.xlu0 %593
        %v596 = vmul.f32 %v589, %v594
        %598 = vrot.lane.b32.xlu0 %v596, 16
        %v599 = vpop.permute.xlu0 %598
        %v601 = vadd.f32 %v591, %v599
        %v602 = vtanh.pop %v601
        %604 = vrot.lane.b32.xlu0 %v602, 32
        %v605 = vpop.permute.xlu0 %604
        %v607 = vmul.f32 %v589, %v605
        %s608 = sadd.s32 %s263, 3
        %v609 = vstv %s608
        %vm610 = vcmp.gt.s32.totalorder %v273, %v609
        %v611 = vsel %vm610, 1, 0
        %612 = vset.pattern.permute.xlu0 0
        %613 = vperm.xlu0 %612, %v611
        %v614 = vpop.permute.xlu0 %613
        %vm615 = vcmp.eq.s32.totalorder %v614, 1
        %v616 = vsel %vm615, %v607, %v504
        %v617 = vsel %vm615, %v601, %v505
        %s618 = scalar_lea.vmem %s228, 16 [#allocation4]
        %v619 = vld [vmem:[%s618] sm:$0xff]
        %621 = vrot.lane.b32.xlu0 %v616, 80
        %v622 = vpop.permute.xlu0 %621
        %v623 = vsel %vm278, %v622, 0
        %625 = vmatprep.subr.mxu0 0.0
        %626 = vmatpush1.msra.mxu0 %v274
        %627 = vmatprep.subr.mxu0 0.0
        %628 = vmatpush1.msra.mxu0 %v275
        %629 = vmatprep.subr.mxu0 0.0
        %630 = vmatpush1.msra.mxu0 0.0
        %631 = vmatprep.subr.mxu0 0.0
        %632 = vmatpush1.msra.mxu0 0.0
        %633 = vmatprep.subr.mxu0 0.0
        %634 = vmatpush1.msra.mxu0 0.0
        %635 = vmatprep.subr.mxu0 0.0
        %636 = vmatpush1.msra.mxu0 0.0
        %637 = vmatprep.subr.mxu0 0.0
        %638 = vmatpush1.msra.mxu0 0.0
        %639 = vmatprep.subr.mxu0 0.0
        %640 = vmatpush1.msra.mxu0 0.0
        %641 = vmatprep.subr.mxu0 0.0
        %642 = vmatpush1.msra.mxu0 0.0
        %643 = vmatprep.subr.mxu0 0.0
        %644 = vmatpush1.msra.mxu0 0.0
        %645 = vmatprep.subr.mxu0 0.0
        %646 = vmatpush1.msra.mxu0 0.0
        %647 = vmatprep.subr.mxu0 0.0
        %648 = vmatpush1.msra.mxu0 0.0
        %649 = vmatprep.subr.mxu0 0.0
        %650 = vmatpush1.msra.mxu0 0.0
        %651 = vmatprep.subr.mxu0 0.0
        %652 = vmatpush1.msra.mxu0 0.0
        %653 = vmatprep.subr.mxu0 0.0
        %654 = vmatpush1.msra.mxu0 0.0
        %655 = vmatprep.subr.mxu0 0.0
        %656 = vmatpush1.msra.mxu0 0.0
        %657 = vmatprep.subr.mxu0 0.0
        %658 = vmatpush1.msra.mxu0 0.0
        %659 = vmatprep.subr.mxu0 0.0
        %660 = vmatpush1.msra.mxu0 0.0
        %661 = vmatprep.subr.mxu0 0.0
        %662 = vmatpush1.msra.mxu0 0.0
        %663 = vmatprep.subr.mxu0 0.0
        %664 = vmatpush1.msra.mxu0 0.0
        %665 = vmatprep.subr.mxu0 0.0
        %666 = vmatpush1.msra.mxu0 0.0
        %667 = vmatprep.subr.mxu0 0.0
        %668 = vmatpush1.msra.mxu0 0.0
        %669 = vmatprep.subr.mxu0 0.0
        %670 = vmatpush1.msra.mxu0 0.0
        %671 = vmatprep.subr.mxu0 0.0
        %672 = vmatpush1.msra.mxu0 0.0
        %673 = vmatprep.subr.mxu0 0.0
        %674 = vmatpush1.msra.mxu0 0.0
        %675 = vmatprep.subr.mxu0 0.0
        %676 = vmatpush1.msra.mxu0 0.0
        %677 = vmatprep.subr.mxu0 0.0
        %678 = vmatpush1.msra.mxu0 0.0
        %679 = vmatprep.subr.mxu0 0.0
        %680 = vmatpush1.msra.mxu0 0.0
        %681 = vmatprep.subr.mxu0 0.0
        %682 = vmatpush1.msra.mxu0 0.0
        %683 = vmatprep.subr.mxu0 0.0
        %684 = vmatpush1.msra.mxu0 0.0
        %685 = vmatprep.subr.mxu0 0.0
        %686 = vmatpush1.msra.mxu0 0.0
        %687 = vmatprep.subr.mxu0 0.0
        %688 = vmatpush1.msra.mxu0 0.0
        %689 = vmatprep.mubr.f32.mxu0 0.0
        %690 = vmatmul.mubr.f32.gmra.mrb[0].mxu0 %v623
        %v691 = vpop.f32.mrb[0].mxu0
        %v692 = vadd.f32 0.0, %v691
        %v693 = vpop.f32.mrb[0].mxu0
        %694 = vdwg.mxu0
        %v695 = vadd.f32 %v619, %v692
        %v696 = vxor.u32 %v695, 2147483648
        %v697 = vmul.f32 %v696, 1.442695
        %v698 = vpow.pop %v697
        %v699 = vadd.f32 %v698, 1.0
        %v700 = vrcp.pop %v699
        %v701 = vmul.f32 1.0, %v700
        %v702 = vtanh.pop %v695
        %v703 = vmul.f32 %v701, %v617
        %705 = vrot.lane.b32.xlu0 %v702, 96
        %v706 = vpop.permute.xlu0 %705
        %v708 = vmul.f32 %v701, %v706
        %710 = vrot.lane.b32.xlu0 %v708, 16
        %v711 = vpop.permute.xlu0 %710
        %v713 = vadd.f32 %v703, %v711
        %v714 = vtanh.pop %v713
        %716 = vrot.lane.b32.xlu0 %v714, 32
        %v717 = vpop.permute.xlu0 %716
        %v719 = vmul.f32 %v701, %v717
        %s720 = sadd.s32 %s263, 2
        %v721 = vstv %s720
        %vm722 = vcmp.gt.s32.totalorder %v273, %v721
        %v723 = vsel %vm722, 1, 0
        %724 = vset.pattern.permute.xlu0 0
        %725 = vperm.xlu0 %724, %v723
        %v726 = vpop.permute.xlu0 %725
        %vm727 = vcmp.eq.s32.totalorder %v726, 1
        %v728 = vsel %vm727, %v719, %v616
        %v729 = vsel %vm727, %v713, %v617
        %s730 = scalar_lea.vmem %s228, 8 [#allocation4]
        %v731 = vld [vmem:[%s730] sm:$0xff]
        %733 = vrot.lane.b32.xlu0 %v728, 80
        %v734 = vpop.permute.xlu0 %733
        %v735 = vsel %vm278, %v734, 0
        %737 = vmatprep.subr.mxu0 0.0
        %738 = vmatpush1.msra.mxu0 %v274
        %739 = vmatprep.subr.mxu0 0.0
        %740 = vmatpush1.msra.mxu0 %v275
        %741 = vmatprep.subr.mxu0 0.0
        %742 = vmatpush1.msra.mxu0 0.0
        %743 = vmatprep.subr.mxu0 0.0
        %744 = vmatpush1.msra.mxu0 0.0
        %745 = vmatprep.subr.mxu0 0.0
        %746 = vmatpush1.msra.mxu0 0.0
        %747 = vmatprep.subr.mxu0 0.0
        %748 = vmatpush1.msra.mxu0 0.0
        %749 = vmatprep.subr.mxu0 0.0
        %750 = vmatpush1.msra.mxu0 0.0
        %751 = vmatprep.subr.mxu0 0.0
        %752 = vmatpush1.msra.mxu0 0.0
        %753 = vmatprep.subr.mxu0 0.0
        %754 = vmatpush1.msra.mxu0 0.0
        %755 = vmatprep.subr.mxu0 0.0
        %756 = vmatpush1.msra.mxu0 0.0
        %757 = vmatprep.subr.mxu0 0.0
        %758 = vmatpush1.msra.mxu0 0.0
        %759 = vmatprep.subr.mxu0 0.0
        %760 = vmatpush1.msra.mxu0 0.0
        %761 = vmatprep.subr.mxu0 0.0
        %762 = vmatpush1.msra.mxu0 0.0
        %763 = vmatprep.subr.mxu0 0.0
        %764 = vmatpush1.msra.mxu0 0.0
        %765 = vmatprep.subr.mxu0 0.0
        %766 = vmatpush1.msra.mxu0 0.0
        %767 = vmatprep.subr.mxu0 0.0
        %768 = vmatpush1.msra.mxu0 0.0
        %769 = vmatprep.subr.mxu0 0.0
        %770 = vmatpush1.msra.mxu0 0.0
        %771 = vmatprep.subr.mxu0 0.0
        %772 = vmatpush1.msra.mxu0 0.0
        %773 = vmatprep.subr.mxu0 0.0
        %774 = vmatpush1.msra.mxu0 0.0
        %775 = vmatprep.subr.mxu0 0.0
        %776 = vmatpush1.msra.mxu0 0.0
        %777 = vmatprep.subr.mxu0 0.0
        %778 = vmatpush1.msra.mxu0 0.0
        %779 = vmatprep.subr.mxu0 0.0
        %780 = vmatpush1.msra.mxu0 0.0
        %781 = vmatprep.subr.mxu0 0.0
        %782 = vmatpush1.msra.mxu0 0.0
        %783 = vmatprep.subr.mxu0 0.0
        %784 = vmatpush1.msra.mxu0 0.0
        %785 = vmatprep.subr.mxu0 0.0
        %786 = vmatpush1.msra.mxu0 0.0
        %787 = vmatprep.subr.mxu0 0.0
        %788 = vmatpush1.msra.mxu0 0.0
        %789 = vmatprep.subr.mxu0 0.0
        %790 = vmatpush1.msra.mxu0 0.0
        %791 = vmatprep.subr.mxu0 0.0
        %792 = vmatpush1.msra.mxu0 0.0
        %793 = vmatprep.subr.mxu0 0.0
        %794 = vmatpush1.msra.mxu0 0.0
        %795 = vmatprep.subr.mxu0 0.0
        %796 = vmatpush1.msra.mxu0 0.0
        %797 = vmatprep.subr.mxu0 0.0
        %798 = vmatpush1.msra.mxu0 0.0
        %799 = vmatprep.subr.mxu0 0.0
        %800 = vmatpush1.msra.mxu0 0.0
        %801 = vmatprep.mubr.f32.mxu0 0.0
        %802 = vmatmul.mubr.f32.gmra.mrb[0].mxu0 %v735
        %v803 = vpop.f32.mrb[0].mxu0
        %v804 = vadd.f32 0.0, %v803
        %v805 = vpop.f32.mrb[0].mxu0
        %806 = vdwg.mxu0
        %v807 = vadd.f32 %v731, %v804
        %v808 = vxor.u32 %v807, 2147483648
        %v809 = vmul.f32 %v808, 1.442695
        %v810 = vpow.pop %v809
        %v811 = vadd.f32 %v810, 1.0
        %v812 = vrcp.pop %v811
        %v813 = vmul.f32 1.0, %v812
        %v814 = vtanh.pop %v807
        %v815 = vmul.f32 %v813, %v729
        %817 = vrot.lane.b32.xlu0 %v814, 96
        %v818 = vpop.permute.xlu0 %817
        %v820 = vmul.f32 %v813, %v818
        %822 = vrot.lane.b32.xlu0 %v820, 16
        %v823 = vpop.permute.xlu0 %822
        %v825 = vadd.f32 %v815, %v823
        %v826 = vtanh.pop %v825
        %828 = vrot.lane.b32.xlu0 %v826, 32
        %v829 = vpop.permute.xlu0 %828
        %v831 = vmul.f32 %v813, %v829
        %s832 = sadd.s32 %s263, 1
        %v833 = vstv %s832
        %vm834 = vcmp.gt.s32.totalorder %v273, %v833
        %v835 = vsel %vm834, 1, 0
        %836 = vset.pattern.permute.xlu0 0
        %837 = vperm.xlu0 %836, %v835
        %v838 = vpop.permute.xlu0 %837
        %vm839 = vcmp.eq.s32.totalorder %v838, 1
        %v840 = vsel %vm839, %v831, %v728
        %v841 = vsel %vm839, %v825, %v729
        %v842 = vld [vmem:[%s228] sm:$0xff]
        %844 = vrot.lane.b32.xlu0 %v840, 80
        %v845 = vpop.permute.xlu0 %844
        %v846 = vsel %vm278, %v845, 0
        %848 = vmatprep.subr.mxu0 0.0
        %849 = vmatpush1.msra.mxu0 %v274
        %850 = vmatprep.subr.mxu0 0.0
        %851 = vmatpush1.msra.mxu0 %v275
        %852 = vmatprep.subr.mxu0 0.0
        %853 = vmatpush1.msra.mxu0 0.0
        %854 = vmatprep.subr.mxu0 0.0
        %855 = vmatpush1.msra.mxu0 0.0
        %856 = vmatprep.subr.mxu0 0.0
        %857 = vmatpush1.msra.mxu0 0.0
        %858 = vmatprep.subr.mxu0 0.0
        %859 = vmatpush1.msra.mxu0 0.0
        %860 = vmatprep.subr.mxu0 0.0
        %861 = vmatpush1.msra.mxu0 0.0
        %862 = vmatprep.subr.mxu0 0.0
        %863 = vmatpush1.msra.mxu0 0.0
        %864 = vmatprep.subr.mxu0 0.0
        %865 = vmatpush1.msra.mxu0 0.0
        %866 = vmatprep.subr.mxu0 0.0
        %867 = vmatpush1.msra.mxu0 0.0
        %868 = vmatprep.subr.mxu0 0.0
        %869 = vmatpush1.msra.mxu0 0.0
        %870 = vmatprep.subr.mxu0 0.0
        %871 = vmatpush1.msra.mxu0 0.0
        %872 = vmatprep.subr.mxu0 0.0
        %873 = vmatpush1.msra.mxu0 0.0
        %874 = vmatprep.subr.mxu0 0.0
        %875 = vmatpush1.msra.mxu0 0.0
        %876 = vmatprep.subr.mxu0 0.0
        %877 = vmatpush1.msra.mxu0 0.0
        %878 = vmatprep.subr.mxu0 0.0
        %879 = vmatpush1.msra.mxu0 0.0
        %880 = vmatprep.subr.mxu0 0.0
        %881 = vmatpush1.msra.mxu0 0.0
        %882 = vmatprep.subr.mxu0 0.0
        %883 = vmatpush1.msra.mxu0 0.0
        %884 = vmatprep.subr.mxu0 0.0
        %885 = vmatpush1.msra.mxu0 0.0
        %886 = vmatprep.subr.mxu0 0.0
        %887 = vmatpush1.msra.mxu0 0.0
        %888 = vmatprep.subr.mxu0 0.0
        %889 = vmatpush1.msra.mxu0 0.0
        %890 = vmatprep.subr.mxu0 0.0
        %891 = vmatpush1.msra.mxu0 0.0
        %892 = vmatprep.subr.mxu0 0.0
        %893 = vmatpush1.msra.mxu0 0.0
        %894 = vmatprep.subr.mxu0 0.0
        %895 = vmatpush1.msra.mxu0 0.0
        %896 = vmatprep.subr.mxu0 0.0
        %897 = vmatpush1.msra.mxu0 0.0
        %898 = vmatprep.subr.mxu0 0.0
        %899 = vmatpush1.msra.mxu0 0.0
        %900 = vmatprep.subr.mxu0 0.0
        %901 = vmatpush1.msra.mxu0 0.0
        %902 = vmatprep.subr.mxu0 0.0
        %903 = vmatpush1.msra.mxu0 0.0
        %904 = vmatprep.subr.mxu0 0.0
        %905 = vmatpush1.msra.mxu0 0.0
        %906 = vmatprep.subr.mxu0 0.0
        %907 = vmatpush1.msra.mxu0 0.0
        %908 = vmatprep.subr.mxu0 0.0
        %909 = vmatpush1.msra.mxu0 0.0
        %910 = vmatprep.subr.mxu0 0.0
        %911 = vmatpush1.msra.mxu0 0.0
        %912 = vmatprep.mubr.f32.mxu0 0.0
        %913 = vmatmul.mubr.f32.gmra.mrb[0].mxu0 %v846
        %v914 = vpop.f32.mrb[0].mxu0
        %v915 = vadd.f32 0.0, %v914
        %v916 = vpop.f32.mrb[0].mxu0
        %917 = vdwg.mxu0
        %v918 = vadd.f32 %v842, %v915
        %v919 = vxor.u32 %v918, 2147483648
        %v920 = vmul.f32 %v919, 1.442695
        %v921 = vpow.pop %v920
        %v922 = vadd.f32 %v921, 1.0
        %v923 = vrcp.pop %v922
        %v924 = vmul.f32 1.0, %v923
        %v925 = vtanh.pop %v918
        %v926 = vmul.f32 %v924, %v841
        %928 = vrot.lane.b32.xlu0 %v925, 96
        %v929 = vpop.permute.xlu0 %928
        %v931 = vmul.f32 %v924, %v929
        %933 = vrot.lane.b32.xlu0 %v931, 16
        %v934 = vpop.permute.xlu0 %933
        %v936 = vadd.f32 %v926, %v934
        %v937 = vtanh.pop %v936
        %939 = vrot.lane.b32.xlu0 %v937, 32
        %v940 = vpop.permute.xlu0 %939
        %v942 = vmul.f32 %v924, %v940
        %v943 = vstv %s263
        %vm944 = vcmp.gt.s32.totalorder %v273, %v943
        %v945 = vsel %vm944, 1, 0
        %946 = vset.pattern.permute.xlu0 0
        %947 = vperm.xlu0 %946, %v945
        %v948 = vpop.permute.xlu0 %947
        %vm949 = vcmp.eq.s32.totalorder %v948, 1
        %v950 = vsel %vm949, %v942, %v840
        %v951 = vsel %vm949, %v936, %v841
        %953 = vrot.lane.b32.xlu0 %v950, 80
        %v954 = vpop.permute.xlu0 %953
        %956 = vst.msk [vmem:[#allocation2] sm:$0xff] %vm278, %v954
        %958 = vrot.lane.b32.xlu0 %v951, 112
        %v959 = vpop.permute.xlu0 %958
        %961 = vst.msk [vmem:[#allocation3] sm:$0xff] %vm278, %v959
        // Predicated region
        $region75: #{char_parser_forward.18} parent=65 // pred_check
          %p962 = pneg %p264
        $region76: #{char_parser_forward.18} parent=65 // pred_check_branch
          %964 = sbr.rel (%p962) target = $region78
        $region77: #{char_parser_forward.18} parent=65 // pred_region
          %965 = vst.msk [vmem:[%s261] sm:$0xff] %vm278, %v954
        $region78: #{char_parser_forward.18} parent=65 // pred_fallthru
          _
        %p966 = scmp.lt.s32.totalorder %s18, 1
        %s967 = scalar_select %p966, %s18, 1
        %s968 = smul.addr %s967, 8
        %s969 = scalar_lea.vmem %s3, %s968
        // Predicated region
        $region79: #{char_parser_forward.18} parent=65 // pred_check
          %p970 = pneg %p121
        $region80: #{char_parser_forward.18} parent=65 // pred_check_branch
          %972 = sbr.rel (%p970) target = $region82
        $region81: #{char_parser_forward.18} parent=65 // pred_region
          _
        $region82: #{char_parser_forward.18} parent=65 // pred_fallthru
          _
      $region66: #{char_parser_forward.18} parent=5 // pred_fallthru
        _
      %p973 = scmp.le.s32.totalorder 2, %s9
      // Predicated region
      $region83: #{char_parser_forward.18} parent=5 // pred_check
        %p974 = pneg %p973
      $region84: #{char_parser_forward.18} parent=5 // pred_check_branch
        %976 = sbr.rel (%p974) target = $region86
      $region85: #{char_parser_forward.18} parent=5 // pred_region
        %s977 = ssub.s32 %s9, 2
        // Predicated region
        $region87: #{char_parser_forward.18} parent=85 // pred_check
          %p978 = pneg %p127
        $region88: #{char_parser_forward.18} parent=85 // pred_check_branch
          %980 = sbr.rel (%p978) target = $region90
        $region89: #{char_parser_forward.18} parent=85 // pred_region
          %p981 = scmp.lt.s32.totalorder %s20, 1
          %s982 = scalar_select %p981, %s20, 1
          %s983 = smul.addr %s982, 8
          %s984 = scalar_lea.vmem %s3, %s983
        $region90: #{char_parser_forward.18} parent=85 // pred_fallthru
          _
      $region86: #{char_parser_forward.18} parent=5 // pred_fallthru
        _
    $region6: #{char_parser_forward.18} parent=1 // loop_footer
      %s13 = sadd.s32 1, %s9
    $region7: #{char_parser_forward.18} parent=1 // loop_footer_branch
      %8 = sbr.rel target = $region3
    $region8: #{char_parser_forward.18} parent=1 // loop_exit
      _

// kernel: char_parser_forward.20
$region0: #{char_parser_forward.20}
  #allocation0 [shape = 'u32[]', space=smem, size = 0x4, offset = 0x4, fixed_abs, tag = 'smem constant byte address 0x4 - core index']
  #allocation1 [shape = 'u32[144,128]{1,0:T(1,128)}', space=vmem, size = 0x12000, scoped, tag = 'internal scratch']
  #allocation2 [shape = 'f32[2,32]{1,0:T(2,128)}', space=vmem, size = 0x400, scoped, tag = 'scratch operand']
  #allocation3 [shape = 'f32[2,32]{1,0:T(2,128)}', space=vmem, size = 0x400, scoped, tag = 'scratch operand']
  %s0 = inlined_call_operand.vmem [shape: f32[8,2,128], index: 0, kind: input, shape index: {}]
  %s1 = inlined_call_operand.vmem [shape: f32[32,128], index: 1, kind: input, shape index: {}]
  %s2 = inlined_call_operand.vmem [shape: s32[2,1], index: 2, kind: input, shape index: {}]
  %s3 = inlined_call_operand.vmem [shape: f32[8,2,32], index: 3, kind: output, shape index: {0}]
  %s4 = inlined_call_operand.hbm [shape: f32[2,32], index: 4, kind: output, shape index: {1}]
  %5 = xla_tuple %s3, %s4
  %s6 = sld [smem:[#allocation0]]
  $region38: #{char_parser_forward.20} parent=0
    _
  %s8 = ssub.s32 1, %s6
  %s9 = scalar_select 0, %s8, %s6
  $region1: #{char_parser_forward.20} parent=0
    #allocation4 [shape = 'u8[1024]{0}', space=vmem, size = 0x400, scoped, tag = 'output window, operand 1, single buffered']
    #allocation5 [shape = 's32[1]{0}', space=sflag, size = 0x4, scoped, tag = 'scoped memory for char_parser_forward.20']
    %10 = vsyncpa [#allocation5], 0
    // Predicated region
    $region2: #{char_parser_forward.20} parent=1 // pred_check
      _
    $region3: #{char_parser_forward.20} parent=1 // pred_check_branch
      %12 = sbr.rel (0) target = $region5
    $region4: #{char_parser_forward.20} parent=1 // pred_region
      _
    $region5: #{char_parser_forward.20} parent=1 // pred_fallthru
      _
    // Predicated region
    $region6: #{char_parser_forward.20} parent=1 // pred_check
      _
    $region7: #{char_parser_forward.20} parent=1 // pred_check_branch
      %14 = sbr.rel (0) target = $region9
    $region8: #{char_parser_forward.20} parent=1 // pred_region
      _
    $region9: #{char_parser_forward.20} parent=1 // pred_fallthru
      _
    // Predicated region
    $region10: #{char_parser_forward.20} parent=1 // pred_check
      _
    $region11: #{char_parser_forward.20} parent=1 // pred_check_branch
      %16 = sbr.rel (0) target = $region13
    $region12: #{char_parser_forward.20} parent=1 // pred_region
      _
    $region13: #{char_parser_forward.20} parent=1 // pred_fallthru
      _
    %s17 = smul.u32 0, 8
    %p18 = scmp.eq.s32.totalorder 0, 0
    // Predicated region
    $region14: #{char_parser_forward.20} parent=1 // pred_check
      %p19 = pneg %p18
    $region15: #{char_parser_forward.20} parent=1 // pred_check_branch
      %21 = sbr.rel (%p19) target = $region17
    $region16: #{char_parser_forward.20} parent=1 // pred_region
      %vm22 = vcmask 254976
      %23 = vst.msk [vmem:[#allocation2] sm:$0x3] %vm22, 0.0
      %24 = vst.msk [vmem:[#allocation3] sm:$0x3] %vm22, 0.0
    $region17: #{char_parser_forward.20} parent=1 // pred_fallthru
      _
    %v25 = vld [vmem:[#allocation2] sm:$0x3]
    %v26 = vld [vmem:[#allocation3] sm:$0x3]
    %v27 = vld [vmem:[%s2] sm:$0x3]
    %v28 = vld [vmem:[%s1] sm:$0xff]
    %v29 = vld [vmem:[%s1 + $0x8] sm:$0xff]
    %v30 = vld [vmem:[%s1 + $0x10] sm:$0xff]
    %v31 = vld [vmem:[%s1 + $0x18] sm:$0xff]
    %v32 = vld [vmem:[%s0] sm:$0x3]
    %vm33 = vcmask 261120
    %v35 = vsel %vm33, %v25, 0
    %37 = vmatprep.subr.mxu0 0.0
    %38 = vmatpush1.msra.mxu0 %v28
    %39 = vmatprep.subr.mxu0 0.0
    %40 = vmatpush1.msra.mxu0 %v29
    %41 = vmatprep.subr.mxu0 0.0
    %42 = vmatpush1.msra.mxu0 %v30
    %43 = vmatprep.subr.mxu0 0.0
    %44 = vmatpush1.msra.mxu0 %v31
    %45 = vmatprep.subr.mxu0 0.0
    %46 = vmatpush1.msra.mxu0 0.0
    %47 = vmatprep.subr.mxu0 0.0
    %48 = vmatpush1.msra.mxu0 0.0
    %49 = vmatprep.subr.mxu0 0.0
    %50 = vmatpush1.msra.mxu0 0.0
    %51 = vmatprep.subr.mxu0 0.0
    %52 = vmatpush1.msra.mxu0 0.0
    %53 = vmatprep.subr.mxu0 0.0
    %54 = vmatpush1.msra.mxu0 0.0
    %55 = vmatprep.subr.mxu0 0.0
    %56 = vmatpush1.msra.mxu0 0.0
    %57 = vmatprep.subr.mxu0 0.0
    %58 = vmatpush1.msra.mxu0 0.0
    %59 = vmatprep.subr.mxu0 0.0
    %60 = vmatpush1.msra.mxu0 0.0
    %61 = vmatprep.subr.mxu0 0.0
    %62 = vmatpush1.msra.mxu0 0.0
    %63 = vmatprep.subr.mxu0 0.0
    %64 = vmatpush1.msra.mxu0 0.0
    %65 = vmatprep.subr.mxu0 0.0
    %66 = vmatpush1.msra.mxu0 0.0
    %67 = vmatprep.subr.mxu0 0.0
    %68 = vmatpush1.msra.mxu0 0.0
    %69 = vmatprep.subr.mxu0 0.0
    %70 = vmatpush1.msra.mxu0 0.0
    %71 = vmatprep.subr.mxu0 0.0
    %72 = vmatpush1.msra.mxu0 0.0
    %73 = vmatprep.subr.mxu0 0.0
    %74 = vmatpush1.msra.mxu0 0.0
    %75 = vmatprep.subr.mxu0 0.0
    %76 = vmatpush1.msra.mxu0 0.0
    %77 = vmatprep.subr.mxu0 0.0
    %78 = vmatpush1.msra.mxu0 0.0
    %79 = vmatprep.subr.mxu0 0.0
    %80 = vmatpush1.msra.mxu0 0.0
    %81 = vmatprep.subr.mxu0 0.0
    %82 = vmatpush1.msra.mxu0 0.0
    %83 = vmatprep.subr.mxu0 0.0
    %84 = vmatpush1.msra.mxu0 0.0
    %85 = vmatprep.subr.mxu0 0.0
    %86 = vmatpush1.msra.mxu0 0.0
    %87 = vmatprep.subr.mxu0 0.0
    %88 = vmatpush1.msra.mxu0 0.0
    %89 = vmatprep.subr.mxu0 0.0
    %90 = vmatpush1.msra.mxu0 0.0
    %91 = vmatprep.subr.mxu0 0.0
    %92 = vmatpush1.msra.mxu0 0.0
    %93 = vmatprep.subr.mxu0 0.0
    %94 = vmatpush1.msra.mxu0 0.0
    %95 = vmatprep.subr.mxu0 0.0
    %96 = vmatpush1.msra.mxu0 0.0
    %97 = vmatprep.subr.mxu0 0.0
    %98 = vmatpush1.msra.mxu0 0.0
    %99 = vmatprep.subr.mxu0 0.0
    %100 = vmatpush1.msra.mxu0 0.0
    %101 = vmatprep.mubr.f32.mxu0 0.0
    %102 = vmatmul.mubr.f32.gmra.mrb[0].mxu0 %v35
    %v103 = vpop.f32.mrb[0].mxu0
    %v104 = vadd.f32 0.0, %v103
    %v105 = vpop.f32.mrb[0].mxu0
    %106 = vdwg.mxu0
    %v107 = vadd.f32 %v32, %v104
    %v108 = vxor.u32 %v107, 2147483648
    %v109 = vmul.f32 %v108, 1.442695
    %v110 = vpow.pop %v109
    %v111 = vadd.f32 %v110, 1.0
    %v112 = vrcp.pop %v111
    %v113 = vmul.f32 1.0, %v112
    %v114 = vtanh.pop %v107
    %116 = vrot.lane.b32.xlu0 %v26, 32
    %v117 = vpop.permute.xlu0 %116
    %v119 = vmul.f32 %v113, %v117
    %121 = vrot.lane.b32.xlu0 %v114, 64
    %v122 = vpop.permute.xlu0 %121
    %v124 = vmul.f32 %v113, %v122
    %126 = vrot.lane.b32.xlu0 %v124, 32
    %v127 = vpop.permute.xlu0 %126
    %v129 = vadd.f32 %v119, %v127
    %v130 = vtanh.pop %v129
    %132 = vrot.lane.b32.xlu0 %v130, 64
    %v133 = vpop.permute.xlu0 %132
    %v135 = vmul.f32 %v113, %v133
    %v136 = vstv %s17
    %vm137 = vcmp.gt.s32.totalorder %v27, %v136
    %v138 = vsel %vm137, 1, 0
    %139 = vset.pattern.permute.xlu0 0
    %140 = vperm.xlu0 %139, %v138
    %v141 = vpop.permute.xlu0 %140
    %vm142 = vcmp.eq.s32.totalorder %v141, 1
    %143 = vrot.lane.b32.xlu0 %v25, 96
    %v144 = vpop.permute.xlu0 %143
    %v146 = vsel %vm142, %v135, %v144
    %v147 = vsel %vm142, %v129, %v117
    %v148 = vsel %vm142, %v135, 0.0
    %150 = vrot.lane.b32.xlu0 %v148, 32
    %v151 = vpop.permute.xlu0 %150
    %vm153 = vcmask 254976
    %154 = vst.msk [vmem:[%s3] sm:$0x3] %vm153, %v151
    %s155 = scalar_lea.vmem %s0, 2
    %v156 = vld [vmem:[%s155] sm:$0x3]
    %158 = vrot.lane.b32.xlu0 %v146, 32
    %v159 = vpop.permute.xlu0 %158
    %v160 = vsel %vm33, %v159, 0
    %162 = vmatprep.subr.mxu0 0.0
    %163 = vmatpush1.msra.mxu0 %v28
    %164 = vmatprep.subr.mxu0 0.0
    %165 = vmatpush1.msra.mxu0 %v29
    %166 = vmatprep.subr.mxu0 0.0
    %167 = vmatpush1.msra.mxu0 %v30
    %168 = vmatprep.subr.mxu0 0.0
    %169 = vmatpush1.msra.mxu0 %v31
    %170 = vmatprep.subr.mxu0 0.0
    %171 = vmatpush1.msra.mxu0 0.0
    %172 = vmatprep.subr.mxu0 0.0
    %173 = vmatpush1.msra.mxu0 0.0
    %174 = vmatprep.subr.mxu0 0.0
    %175 = vmatpush1.msra.mxu0 0.0
    %176 = vmatprep.subr.mxu0 0.0
    %177 = vmatpush1.msra.mxu0 0.0
    %178 = vmatprep.subr.mxu0 0.0
    %179 = vmatpush1.msra.mxu0 0.0
    %180 = vmatprep.subr.mxu0 0.0
    %181 = vmatpush1.msra.mxu0 0.0
    %182 = vmatprep.subr.mxu0 0.0
    %183 = vmatpush1.msra.mxu0 0.0
    %184 = vmatprep.subr.mxu0 0.0
    %185 = vmatpush1.msra.mxu0 0.0
    %186 = vmatprep.subr.mxu0 0.0
    %187 = vmatpush1.msra.mxu0 0.0
    %188 = vmatprep.subr.mxu0 0.0
    %189 = vmatpush1.msra.mxu0 0.0
    %190 = vmatprep.subr.mxu0 0.0
    %191 = vmatpush1.msra.mxu0 0.0
    %192 = vmatprep.subr.mxu0 0.0
    %193 = vmatpush1.msra.mxu0 0.0
    %194 = vmatprep.subr.mxu0 0.0
    %195 = vmatpush1.msra.mxu0 0.0
    %196 = vmatprep.subr.mxu0 0.0
    %197 = vmatpush1.msra.mxu0 0.0
    %198 = vmatprep.subr.mxu0 0.0
    %199 = vmatpush1.msra.mxu0 0.0
    %200 = vmatprep.subr.mxu0 0.0
    %201 = vmatpush1.msra.mxu0 0.0
    %202 = vmatprep.subr.mxu0 0.0
    %203 = vmatpush1.msra.mxu0 0.0
    %204 = vmatprep.subr.mxu0 0.0
    %205 = vmatpush1.msra.mxu0 0.0
    %206 = vmatprep.subr.mxu0 0.0
    %207 = vmatpush1.msra.mxu0 0.0
    %208 = vmatprep.subr.mxu0 0.0
    %209 = vmatpush1.msra.mxu0 0.0
    %210 = vmatprep.subr.mxu0 0.0
    %211 = vmatpush1.msra.mxu0 0.0
    %212 = vmatprep.subr.mxu0 0.0
    %213 = vmatpush1.msra.mxu0 0.0
    %214 = vmatprep.subr.mxu0 0.0
    %215 = vmatpush1.msra.mxu0 0.0
    %216 = vmatprep.subr.mxu0 0.0
    %217 = vmatpush1.msra.mxu0 0.0
    %218 = vmatprep.subr.mxu0 0.0
    %219 = vmatpush1.msra.mxu0 0.0
    %220 = vmatprep.subr.mxu0 0.0
    %221 = vmatpush1.msra.mxu0 0.0
    %222 = vmatprep.subr.mxu0 0.0
    %223 = vmatpush1.msra.mxu0 0.0
    %224 = vmatprep.subr.mxu0 0.0
    %225 = vmatpush1.msra.mxu0 0.0
    %226 = vmatprep.mubr.f32.mxu0 0.0
    %227 = vmatmul.mubr.f32.gmra.mrb[0].mxu0 %v160
    %v228 = vpop.f32.mrb[0].mxu0
    %v229 = vadd.f32 0.0, %v228
    %v230 = vpop.f32.mrb[0].mxu0
    %231 = vdwg.mxu0
    %v232 = vadd.f32 %v156, %v229
    %v233 = vxor.u32 %v232, 2147483648
    %v234 = vmul.f32 %v233, 1.442695
    %v235 = vpow.pop %v234
    %v236 = vadd.f32 %v235, 1.0
    %v237 = vrcp.pop %v236
    %v238 = vmul.f32 1.0, %v237
    %v239 = vtanh.pop %v232
    %v240 = vmul.f32 %v238, %v147
    %242 = vrot.lane.b32.xlu0 %v239, 64
    %v243 = vpop.permute.xlu0 %242
    %v245 = vmul.f32 %v238, %v243
    %247 = vrot.lane.b32.xlu0 %v245, 32
    %v248 = vpop.permute.xlu0 %247
    %v250 = vadd.f32 %v240, %v248
    %v251 = vtanh.pop %v250
    %253 = vrot.lane.b32.xlu0 %v251, 64
    %v254 = vpop.permute.xlu0 %253
    %v256 = vmul.f32 %v238, %v254
    %s257 = sadd.s32 %s17, 1
    %v258 = vstv %s257
    %vm259 = vcmp.gt.s32.totalorder %v27, %v258
    %v260 = vsel %vm259, 1, 0
    %261 = vset.pattern.permute.xlu0 0
    %262 = vperm.xlu0 %261, %v260
    %v263 = vpop.permute.xlu0 %262
    %vm264 = vcmp.eq.s32.totalorder %v263, 1
    %v265 = vsel %vm264, %v256, %v146
    %v266 = vsel %vm264, %v250, %v147
    %v267 = vsel %vm264, %v256, 0.0
    %269 = vrot.lane.b32.xlu0 %v267, 32
    %v270 = vpop.permute.xlu0 %269
    %s272 = scalar_lea.vmem %s3, 2
    %273 = vst.msk [vmem:[%s272] sm:$0x3] %vm153, %v270
    %s274 = scalar_lea.vmem %s0, 4
    %v275 = vld [vmem:[%s274] sm:$0x3]
    %277 = vrot.lane.b32.xlu0 %v265, 32
    %v278 = vpop.permute.xlu0 %277
    %v279 = vsel %vm33, %v278, 0
    %281 = vmatprep.subr.mxu0 0.0
    %282 = vmatpush1.msra.mxu0 %v28
    %283 = vmatprep.subr.mxu0 0.0
    %284 = vmatpush1.msra.mxu0 %v29
    %285 = vmatprep.subr.mxu0 0.0
    %286 = vmatpush1.msra.mxu0 %v30
    %287 = vmatprep.subr.mxu0 0.0
    %288 = vmatpush1.msra.mxu0 %v31
    %289 = vmatprep.subr.mxu0 0.0
    %290 = vmatpush1.msra.mxu0 0.0
    %291 = vmatprep.subr.mxu0 0.0
    %292 = vmatpush1.msra.mxu0 0.0
    %293 = vmatprep.subr.mxu0 0.0
    %294 = vmatpush1.msra.mxu0 0.0
    %295 = vmatprep.subr.mxu0 0.0
    %296 = vmatpush1.msra.mxu0 0.0
    %297 = vmatprep.subr.mxu0 0.0
    %298 = vmatpush1.msra.mxu0 0.0
    %299 = vmatprep.subr.mxu0 0.0
    %300 = vmatpush1.msra.mxu0 0.0
    %301 = vmatprep.subr.mxu0 0.0
    %302 = vmatpush1.msra.mxu0 0.0
    %303 = vmatprep.subr.mxu0 0.0
    %304 = vmatpush1.msra.mxu0 0.0
    %305 = vmatprep.subr.mxu0 0.0
    %306 = vmatpush1.msra.mxu0 0.0
    %307 = vmatprep.subr.mxu0 0.0
    %308 = vmatpush1.msra.mxu0 0.0
    %309 = vmatprep.subr.mxu0 0.0
    %310 = vmatpush1.msra.mxu0 0.0
    %311 = vmatprep.subr.mxu0 0.0
    %312 = vmatpush1.msra.mxu0 0.0
    %313 = vmatprep.subr.mxu0 0.0
    %314 = vmatpush1.msra.mxu0 0.0
    %315 = vmatprep.subr.mxu0 0.0
    %316 = vmatpush1.msra.mxu0 0.0
    %317 = vmatprep.subr.mxu0 0.0
    %318 = vmatpush1.msra.mxu0 0.0
    %319 = vmatprep.subr.mxu0 0.0
    %320 = vmatpush1.msra.mxu0 0.0
    %321 = vmatprep.subr.mxu0 0.0
    %322 = vmatpush1.msra.mxu0 0.0
    %323 = vmatprep.subr.mxu0 0.0
    %324 = vmatpush1.msra.mxu0 0.0
    %325 = vmatprep.subr.mxu0 0.0
    %326 = vmatpush1.msra.mxu0 0.0
    %327 = vmatprep.subr.mxu0 0.0
    %328 = vmatpush1.msra.mxu0 0.0
    %329 = vmatprep.subr.mxu0 0.0
    %330 = vmatpush1.msra.mxu0 0.0
    %331 = vmatprep.subr.mxu0 0.0
    %332 = vmatpush1.msra.mxu0 0.0
    %333 = vmatprep.subr.mxu0 0.0
    %334 = vmatpush1.msra.mxu0 0.0
    %335 = vmatprep.subr.mxu0 0.0
    %336 = vmatpush1.msra.mxu0 0.0
    %337 = vmatprep.subr.mxu0 0.0
    %338 = vmatpush1.msra.mxu0 0.0
    %339 = vmatprep.subr.mxu0 0.0
    %340 = vmatpush1.msra.mxu0 0.0
    %341 = vmatprep.subr.mxu0 0.0
    %342 = vmatpush1.msra.mxu0 0.0
    %343 = vmatprep.subr.mxu0 0.0
    %344 = vmatpush1.msra.mxu0 0.0
    %345 = vmatprep.mubr.f32.mxu0 0.0
    %346 = vmatmul.mubr.f32.gmra.mrb[0].mxu0 %v279
    %v347 = vpop.f32.mrb[0].mxu0
    %v348 = vadd.f32 0.0, %v347
    %v349 = vpop.f32.mrb[0].mxu0
    %350 = vdwg.mxu0
    %v351 = vadd.f32 %v275, %v348
    %v352 = vxor.u32 %v351, 2147483648
    %v353 = vmul.f32 %v352, 1.442695
    %v354 = vpow.pop %v353
    %v355 = vadd.f32 %v354, 1.0
    %v356 = vrcp.pop %v355
    %v357 = vmul.f32 1.0, %v356
    %v358 = vtanh.pop %v351
    %v359 = vmul.f32 %v357, %v266
    %361 = vrot.lane.b32.xlu0 %v358, 64
    %v362 = vpop.permute.xlu0 %361
    %v364 = vmul.f32 %v357, %v362
    %366 = vrot.lane.b32.xlu0 %v364, 32
    %v367 = vpop.permute.xlu0 %366
    %v369 = vadd.f32 %v359, %v367
    %v370 = vtanh.pop %v369
    %372 = vrot.lane.b32.xlu0 %v370, 64
    %v373 = vpop.permute.xlu0 %372
    %v375 = vmul.f32 %v357, %v373
    %s376 = sadd.s32 %s17, 2
    %v377 = vstv %s376
    %vm378 = vcmp.gt.s32.totalorder %v27, %v377
    %v379 = vsel %vm378, 1, 0
    %380 = vset.pattern.permute.xlu0 0
    %381 = vperm.xlu0 %380, %v379
    %v382 = vpop.permute.xlu0 %381
    %vm383 = vcmp.eq.s32.totalorder %v382, 1
    %v384 = vsel %vm383, %v375, %v265
    %v385 = vsel %vm383, %v369, %v266
    %v386 = vsel %vm383, %v375, 0.0
    %388 = vrot.lane.b32.xlu0 %v386, 32
    %v389 = vpop.permute.xlu0 %388
    %s391 = scalar_lea.vmem %s3, 4
    %392 = vst.msk [vmem:[%s391] sm:$0x3] %vm153, %v389
    %s393 = scalar_lea.vmem %s0, 6
    %v394 = vld [vmem:[%s393] sm:$0x3]
    %396 = vrot.lane.b32.xlu0 %v384, 32
    %v397 = vpop.permute.xlu0 %396
    %v398 = vsel %vm33, %v397, 0
    %400 = vmatprep.subr.mxu0 0.0
    %401 = vmatpush1.msra.mxu0 %v28
    %402 = vmatprep.subr.mxu0 0.0
    %403 = vmatpush1.msra.mxu0 %v29
    %404 = vmatprep.subr.mxu0 0.0
    %405 = vmatpush1.msra.mxu0 %v30
    %406 = vmatprep.subr.mxu0 0.0
    %407 = vmatpush1.msra.mxu0 %v31
    %408 = vmatprep.subr.mxu0 0.0
    %409 = vmatpush1.msra.mxu0 0.0
    %410 = vmatprep.subr.mxu0 0.0
    %411 = vmatpush1.msra.mxu0 0.0
    %412 = vmatprep.subr.mxu0 0.0
    %413 = vmatpush1.msra.mxu0 0.0
    %414 = vmatprep.subr.mxu0 0.0
    %415 = vmatpush1.msra.mxu0 0.0
    %416 = vmatprep.subr.mxu0 0.0
    %417 = vmatpush1.msra.mxu0 0.0
    %418 = vmatprep.subr.mxu0 0.0
    %419 = vmatpush1.msra.mxu0 0.0
    %420 = vmatprep.subr.mxu0 0.0
    %421 = vmatpush1.msra.mxu0 0.0
    %422 = vmatprep.subr.mxu0 0.0
    %423 = vmatpush1.msra.mxu0 0.0
    %424 = vmatprep.subr.mxu0 0.0
    %425 = vmatpush1.msra.mxu0 0.0
    %426 = vmatprep.subr.mxu0 0.0
    %427 = vmatpush1.msra.mxu0 0.0
    %428 = vmatprep.subr.mxu0 0.0
    %429 = vmatpush1.msra.mxu0 0.0
    %430 = vmatprep.subr.mxu0 0.0
    %431 = vmatpush1.msra.mxu0 0.0
    %432 = vmatprep.subr.mxu0 0.0
    %433 = vmatpush1.msra.mxu0 0.0
    %434 = vmatprep.subr.mxu0 0.0
    %435 = vmatpush1.msra.mxu0 0.0
    %436 = vmatprep.subr.mxu0 0.0
    %437 = vmatpush1.msra.mxu0 0.0
    %438 = vmatprep.subr.mxu0 0.0
    %439 = vmatpush1.msra.mxu0 0.0
    %440 = vmatprep.subr.mxu0 0.0
    %441 = vmatpush1.msra.mxu0 0.0
    %442 = vmatprep.subr.mxu0 0.0
    %443 = vmatpush1.msra.mxu0 0.0
    %444 = vmatprep.subr.mxu0 0.0
    %445 = vmatpush1.msra.mxu0 0.0
    %446 = vmatprep.subr.mxu0 0.0
    %447 = vmatpush1.msra.mxu0 0.0
    %448 = vmatprep.subr.mxu0 0.0
    %449 = vmatpush1.msra.mxu0 0.0
    %450 = vmatprep.subr.mxu0 0.0
    %451 = vmatpush1.msra.mxu0 0.0
    %452 = vmatprep.subr.mxu0 0.0
    %453 = vmatpush1.msra.mxu0 0.0
    %454 = vmatprep.subr.mxu0 0.0
    %455 = vmatpush1.msra.mxu0 0.0
    %456 = vmatprep.subr.mxu0 0.0
    %457 = vmatpush1.msra.mxu0 0.0
    %458 = vmatprep.subr.mxu0 0.0
    %459 = vmatpush1.msra.mxu0 0.0
    %460 = vmatprep.subr.mxu0 0.0
    %461 = vmatpush1.msra.mxu0 0.0
    %462 = vmatprep.subr.mxu0 0.0
    %463 = vmatpush1.msra.mxu0 0.0
    %464 = vmatprep.mubr.f32.mxu0 0.0
    %465 = vmatmul.mubr.f32.gmra.mrb[0].mxu0 %v398
    %v466 = vpop.f32.mrb[0].mxu0
    %v467 = vadd.f32 0.0, %v466
    %v468 = vpop.f32.mrb[0].mxu0
    %469 = vdwg.mxu0
    %v470 = vadd.f32 %v394, %v467
    %v471 = vxor.u32 %v470, 2147483648
    %v472 = vmul.f32 %v471, 1.442695
    %v473 = vpow.pop %v472
    %v474 = vadd.f32 %v473, 1.0
    %v475 = vrcp.pop %v474
    %v476 = vmul.f32 1.0, %v475
    %v477 = vtanh.pop %v470
    %v478 = vmul.f32 %v476, %v385
    %480 = vrot.lane.b32.xlu0 %v477, 64
    %v481 = vpop.permute.xlu0 %480
    %v483 = vmul.f32 %v476, %v481
    %485 = vrot.lane.b32.xlu0 %v483, 32
    %v486 = vpop.permute.xlu0 %485
    %v488 = vadd.f32 %v478, %v486
    %v489 = vtanh.pop %v488
    %491 = vrot.lane.b32.xlu0 %v489, 64
    %v492 = vpop.permute.xlu0 %491
    %v494 = vmul.f32 %v476, %v492
    %s495 = sadd.s32 %s17, 3
    %v496 = vstv %s495
    %vm497 = vcmp.gt.s32.totalorder %v27, %v496
    %v498 = vsel %vm497, 1, 0
    %499 = vset.pattern.permute.xlu0 0
    %500 = vperm.xlu0 %499, %v498
    %v501 = vpop.permute.xlu0 %500
    %vm502 = vcmp.eq.s32.totalorder %v501, 1
    %v503 = vsel %vm502, %v494, %v384
    %v504 = vsel %vm502, %v488, %v385
    %v505 = vsel %vm502, %v494, 0.0
    %507 = vrot.lane.b32.xlu0 %v505, 32
    %v508 = vpop.permute.xlu0 %507
    %s510 = scalar_lea.vmem %s3, 6
    %511 = vst.msk [vmem:[%s510] sm:$0x3] %vm153, %v508
    %s512 = scalar_lea.vmem %s0, 8
    %v513 = vld [vmem:[%s512] sm:$0x3]
    %515 = vrot.lane.b32.xlu0 %v503, 32
    %v516 = vpop.permute.xlu0 %515
    %v517 = vsel %vm33, %v516, 0
    %519 = vmatprep.subr.mxu0 0.0
    %520 = vmatpush1.msra.mxu0 %v28
    %521 = vmatprep.subr.mxu0 0.0
    %522 = vmatpush1.msra.mxu0 %v29
    %523 = vmatprep.subr.mxu0 0.0
    %524 = vmatpush1.msra.mxu0 %v30
    %525 = vmatprep.subr.mxu0 0.0
    %526 = vmatpush1.msra.mxu0 %v31
    %527 = vmatprep.subr.mxu0 0.0
    %528 = vmatpush1.msra.mxu0 0.0
    %529 = vmatprep.subr.mxu0 0.0
    %530 = vmatpush1.msra.mxu0 0.0
    %531 = vmatprep.subr.mxu0 0.0
    %532 = vmatpush1.msra.mxu0 0.0
    %533 = vmatprep.subr.mxu0 0.0
    %534 = vmatpush1.msra.mxu0 0.0
    %535 = vmatprep.subr.mxu0 0.0
    %536 = vmatpush1.msra.mxu0 0.0
    %537 = vmatprep.subr.mxu0 0.0
    %538 = vmatpush1.msra.mxu0 0.0
    %539 = vmatprep.subr.mxu0 0.0
    %540 = vmatpush1.msra.mxu0 0.0
    %541 = vmatprep.subr.mxu0 0.0
    %542 = vmatpush1.msra.mxu0 0.0
    %543 = vmatprep.subr.mxu0 0.0
    %544 = vmatpush1.msra.mxu0 0.0
    %545 = vmatprep.subr.mxu0 0.0
    %546 = vmatpush1.msra.mxu0 0.0
    %547 = vmatprep.subr.mxu0 0.0
    %548 = vmatpush1.msra.mxu0 0.0
    %549 = vmatprep.subr.mxu0 0.0
    %550 = vmatpush1.msra.mxu0 0.0
    %551 = vmatprep.subr.mxu0 0.0
    %552 = vmatpush1.msra.mxu0 0.0
    %553 = vmatprep.subr.mxu0 0.0
    %554 = vmatpush1.msra.mxu0 0.0
    %555 = vmatprep.subr.mxu0 0.0
    %556 = vmatpush1.msra.mxu0 0.0
    %557 = vmatprep.subr.mxu0 0.0
    %558 = vmatpush1.msra.mxu0 0.0
    %559 = vmatprep.subr.mxu0 0.0
    %560 = vmatpush1.msra.mxu0 0.0
    %561 = vmatprep.subr.mxu0 0.0
    %562 = vmatpush1.msra.mxu0 0.0
    %563 = vmatprep.subr.mxu0 0.0
    %564 = vmatpush1.msra.mxu0 0.0
    %565 = vmatprep.subr.mxu0 0.0
    %566 = vmatpush1.msra.mxu0 0.0
    %567 = vmatprep.subr.mxu0 0.0
    %568 = vmatpush1.msra.mxu0 0.0
    %569 = vmatprep.subr.mxu0 0.0
    %570 = vmatpush1.msra.mxu0 0.0
    %571 = vmatprep.subr.mxu0 0.0
    %572 = vmatpush1.msra.mxu0 0.0
    %573 = vmatprep.subr.mxu0 0.0
    %574 = vmatpush1.msra.mxu0 0.0
    %575 = vmatprep.subr.mxu0 0.0
    %576 = vmatpush1.msra.mxu0 0.0
    %577 = vmatprep.subr.mxu0 0.0
    %578 = vmatpush1.msra.mxu0 0.0
    %579 = vmatprep.subr.mxu0 0.0
    %580 = vmatpush1.msra.mxu0 0.0
    %581 = vmatprep.subr.mxu0 0.0
    %582 = vmatpush1.msra.mxu0 0.0
    %583 = vmatprep.mubr.f32.mxu0 0.0
    %584 = vmatmul.mubr.f32.gmra.mrb[0].mxu0 %v517
    %v585 = vpop.f32.mrb[0].mxu0
    %v586 = vadd.f32 0.0, %v585
    %v587 = vpop.f32.mrb[0].mxu0
    %588 = vdwg.mxu0
    %v589 = vadd.f32 %v513, %v586
    %v590 = vxor.u32 %v589, 2147483648
    %v591 = vmul.f32 %v590, 1.442695
    %v592 = vpow.pop %v591
    %v593 = vadd.f32 %v592, 1.0
    %v594 = vrcp.pop %v593
    %v595 = vmul.f32 1.0, %v594
    %v596 = vtanh.pop %v589
    %v597 = vmul.f32 %v595, %v504
    %599 = vrot.lane.b32.xlu0 %v596, 64
    %v600 = vpop.permute.xlu0 %599
    %v602 = vmul.f32 %v595, %v600
    %604 = vrot.lane.b32.xlu0 %v602, 32
    %v605 = vpop.permute.xlu0 %604
    %v607 = vadd.f32 %v597, %v605
    %v608 = vtanh.pop %v607
    %610 = vrot.lane.b32.xlu0 %v608, 64
    %v611 = vpop.permute.xlu0 %610
    %v613 = vmul.f32 %v595, %v611
    %s614 = sadd.s32 %s17, 4
    %v615 = vstv %s614
    %vm616 = vcmp.gt.s32.totalorder %v27, %v615
    %v617 = vsel %vm616, 1, 0
    %618 = vset.pattern.permute.xlu0 0
    %619 = vperm.xlu0 %618, %v617
    %v620 = vpop.permute.xlu0 %619
    %vm621 = vcmp.eq.s32.totalorder %v620, 1
    %v622 = vsel %vm621, %v613, %v503
    %v623 = vsel %vm621, %v607, %v504
    %v624 = vsel %vm621, %v613, 0.0
    %626 = vrot.lane.b32.xlu0 %v624, 32
    %v627 = vpop.permute.xlu0 %626
    %s629 = scalar_lea.vmem %s3, 8
    %630 = vst.msk [vmem:[%s629] sm:$0x3] %vm153, %v627
    %s631 = scalar_lea.vmem %s0, 10
    %v632 = vld [vmem:[%s631] sm:$0x3]
    %634 = vrot.lane.b32.xlu0 %v622, 32
    %v635 = vpop.permute.xlu0 %634
    %v636 = vsel %vm33, %v635, 0
    %638 = vmatprep.subr.mxu0 0.0
    %639 = vmatpush1.msra.mxu0 %v28
    %640 = vmatprep.subr.mxu0 0.0
    %641 = vmatpush1.msra.mxu0 %v29
    %642 = vmatprep.subr.mxu0 0.0
    %643 = vmatpush1.msra.mxu0 %v30
    %644 = vmatprep.subr.mxu0 0.0
    %645 = vmatpush1.msra.mxu0 %v31
    %646 = vmatprep.subr.mxu0 0.0
    %647 = vmatpush1.msra.mxu0 0.0
    %648 = vmatprep.subr.mxu0 0.0
    %649 = vmatpush1.msra.mxu0 0.0
    %650 = vmatprep.subr.mxu0 0.0
    %651 = vmatpush1.msra.mxu0 0.0
    %652 = vmatprep.subr.mxu0 0.0
    %653 = vmatpush1.msra.mxu0 0.0
    %654 = vmatprep.subr.mxu0 0.0
    %655 = vmatpush1.msra.mxu0 0.0
    %656 = vmatprep.subr.mxu0 0.0
    %657 = vmatpush1.msra.mxu0 0.0
    %658 = vmatprep.subr.mxu0 0.0
    %659 = vmatpush1.msra.mxu0 0.0
    %660 = vmatprep.subr.mxu0 0.0
    %661 = vmatpush1.msra.mxu0 0.0
    %662 = vmatprep.subr.mxu0 0.0
    %663 = vmatpush1.msra.mxu0 0.0
    %664 = vmatprep.subr.mxu0 0.0
    %665 = vmatpush1.msra.mxu0 0.0
    %666 = vmatprep.subr.mxu0 0.0
    %667 = vmatpush1.msra.mxu0 0.0
    %668 = vmatprep.subr.mxu0 0.0
    %669 = vmatpush1.msra.mxu0 0.0
    %670 = vmatprep.subr.mxu0 0.0
    %671 = vmatpush1.msra.mxu0 0.0
    %672 = vmatprep.subr.mxu0 0.0
    %673 = vmatpush1.msra.mxu0 0.0
    %674 = vmatprep.subr.mxu0 0.0
    %675 = vmatpush1.msra.mxu0 0.0
    %676 = vmatprep.subr.mxu0 0.0
    %677 = vmatpush1.msra.mxu0 0.0
    %678 = vmatprep.subr.mxu0 0.0
    %679 = vmatpush1.msra.mxu0 0.0
    %680 = vmatprep.subr.mxu0 0.0
    %681 = vmatpush1.msra.mxu0 0.0
    %682 = vmatprep.subr.mxu0 0.0
    %683 = vmatpush1.msra.mxu0 0.0
    %684 = vmatprep.subr.mxu0 0.0
    %685 = vmatpush1.msra.mxu0 0.0
    %686 = vmatprep.subr.mxu0 0.0
    %687 = vmatpush1.msra.mxu0 0.0
    %688 = vmatprep.subr.mxu0 0.0
    %689 = vmatpush1.msra.mxu0 0.0
    %690 = vmatprep.subr.mxu0 0.0
    %691 = vmatpush1.msra.mxu0 0.0
    %692 = vmatprep.subr.mxu0 0.0
    %693 = vmatpush1.msra.mxu0 0.0
    %694 = vmatprep.subr.mxu0 0.0
    %695 = vmatpush1.msra.mxu0 0.0
    %696 = vmatprep.subr.mxu0 0.0
    %697 = vmatpush1.msra.mxu0 0.0
    %698 = vmatprep.subr.mxu0 0.0
    %699 = vmatpush1.msra.mxu0 0.0
    %700 = vmatprep.subr.mxu0 0.0
    %701 = vmatpush1.msra.mxu0 0.0
    %702 = vmatprep.mubr.f32.mxu0 0.0
    %703 = vmatmul.mubr.f32.gmra.mrb[0].mxu0 %v636
    %v704 = vpop.f32.mrb[0].mxu0
    %v705 = vadd.f32 0.0, %v704
    %v706 = vpop.f32.mrb[0].mxu0
    %707 = vdwg.mxu0
    %v708 = vadd.f32 %v632, %v705
    %v709 = vxor.u32 %v708, 2147483648
    %v710 = vmul.f32 %v709, 1.442695
    %v711 = vpow.pop %v710
    %v712 = vadd.f32 %v711, 1.0
    %v713 = vrcp.pop %v712
    %v714 = vmul.f32 1.0, %v713
    %v715 = vtanh.pop %v708
    %v716 = vmul.f32 %v714, %v623
    %718 = vrot.lane.b32.xlu0 %v715, 64
    %v719 = vpop.permute.xlu0 %718
    %v721 = vmul.f32 %v714, %v719
    %723 = vrot.lane.b32.xlu0 %v721, 32
    %v724 = vpop.permute.xlu0 %723
    %v726 = vadd.f32 %v716, %v724
    %v727 = vtanh.pop %v726
    %729 = vrot.lane.b32.xlu0 %v727, 64
    %v730 = vpop.permute.xlu0 %729
    %v732 = vmul.f32 %v714, %v730
    %s733 = sadd.s32 %s17, 5
    %v734 = vstv %s733
    %vm735 = vcmp.gt.s32.totalorder %v27, %v734
    %v736 = vsel %vm735, 1, 0
    %737 = vset.pattern.permute.xlu0 0
    %738 = vperm.xlu0 %737, %v736
    %v739 = vpop.permute.xlu0 %738
    %vm740 = vcmp.eq.s32.totalorder %v739, 1
    %v741 = vsel %vm740, %v732, %v622
    %v742 = vsel %vm740, %v726, %v623
    %v743 = vsel %vm740, %v732, 0.0
    %745 = vrot.lane.b32.xlu0 %v743, 32
    %v746 = vpop.permute.xlu0 %745
    %s748 = scalar_lea.vmem %s3, 10
    %749 = vst.msk [vmem:[%s748] sm:$0x3] %vm153, %v746
    %s750 = scalar_lea.vmem %s0, 12
    %v751 = vld [vmem:[%s750] sm:$0x3]
    %753 = vrot.lane.b32.xlu0 %v741, 32
    %v754 = vpop.permute.xlu0 %753
    %v755 = vsel %vm33, %v754, 0
    %757 = vmatprep.subr.mxu0 0.0
    %758 = vmatpush1.msra.mxu0 %v28
    %759 = vmatprep.subr.mxu0 0.0
    %760 = vmatpush1.msra.mxu0 %v29
    %761 = vmatprep.subr.mxu0 0.0
    %762 = vmatpush1.msra.mxu0 %v30
    %763 = vmatprep.subr.mxu0 0.0
    %764 = vmatpush1.msra.mxu0 %v31
    %765 = vmatprep.subr.mxu0 0.0
    %766 = vmatpush1.msra.mxu0 0.0
    %767 = vmatprep.subr.mxu0 0.0
    %768 = vmatpush1.msra.mxu0 0.0
    %769 = vmatprep.subr.mxu0 0.0
    %770 = vmatpush1.msra.mxu0 0.0
    %771 = vmatprep.subr.mxu0 0.0
    %772 = vmatpush1.msra.mxu0 0.0
    %773 = vmatprep.subr.mxu0 0.0
    %774 = vmatpush1.msra.mxu0 0.0
    %775 = vmatprep.subr.mxu0 0.0
    %776 = vmatpush1.msra.mxu0 0.0
    %777 = vmatprep.subr.mxu0 0.0
    %778 = vmatpush1.msra.mxu0 0.0
    %779 = vmatprep.subr.mxu0 0.0
    %780 = vmatpush1.msra.mxu0 0.0
    %781 = vmatprep.subr.mxu0 0.0
    %782 = vmatpush1.msra.mxu0 0.0
    %783 = vmatprep.subr.mxu0 0.0
    %784 = vmatpush1.msra.mxu0 0.0
    %785 = vmatprep.subr.mxu0 0.0
    %786 = vmatpush1.msra.mxu0 0.0
    %787 = vmatprep.subr.mxu0 0.0
    %788 = vmatpush1.msra.mxu0 0.0
    %789 = vmatprep.subr.mxu0 0.0
    %790 = vmatpush1.msra.mxu0 0.0
    %791 = vmatprep.subr.mxu0 0.0
    %792 = vmatpush1.msra.mxu0 0.0
    %793 = vmatprep.subr.mxu0 0.0
    %794 = vmatpush1.msra.mxu0 0.0
    %795 = vmatprep.subr.mxu0 0.0
    %796 = vmatpush1.msra.mxu0 0.0
    %797 = vmatprep.subr.mxu0 0.0
    %798 = vmatpush1.msra.mxu0 0.0
    %799 = vmatprep.subr.mxu0 0.0
    %800 = vmatpush1.msra.mxu0 0.0
    %801 = vmatprep.subr.mxu0 0.0
    %802 = vmatpush1.msra.mxu0 0.0
    %803 = vmatprep.subr.mxu0 0.0
    %804 = vmatpush1.msra.mxu0 0.0
    %805 = vmatprep.subr.mxu0 0.0
    %806 = vmatpush1.msra.mxu0 0.0
    %807 = vmatprep.subr.mxu0 0.0
    %808 = vmatpush1.msra.mxu0 0.0
    %809 = vmatprep.subr.mxu0 0.0
    %810 = vmatpush1.msra.mxu0 0.0
    %811 = vmatprep.subr.mxu0 0.0
    %812 = vmatpush1.msra.mxu0 0.0
    %813 = vmatprep.subr.mxu0 0.0
    %814 = vmatpush1.msra.mxu0 0.0
    %815 = vmatprep.subr.mxu0 0.0
    %816 = vmatpush1.msra.mxu0 0.0
    %817 = vmatprep.subr.mxu0 0.0
    %818 = vmatpush1.msra.mxu0 0.0
    %819 = vmatprep.subr.mxu0 0.0
    %820 = vmatpush1.msra.mxu0 0.0
    %821 = vmatprep.mubr.f32.mxu0 0.0
    %822 = vmatmul.mubr.f32.gmra.mrb[0].mxu0 %v755
    %v823 = vpop.f32.mrb[0].mxu0
    %v824 = vadd.f32 0.0, %v823
    %v825 = vpop.f32.mrb[0].mxu0
    %826 = vdwg.mxu0
    %v827 = vadd.f32 %v751, %v824
    %v828 = vxor.u32 %v827, 2147483648
    %v829 = vmul.f32 %v828, 1.442695
    %v830 = vpow.pop %v829
    %v831 = vadd.f32 %v830, 1.0
    %v832 = vrcp.pop %v831
    %v833 = vmul.f32 1.0, %v832
    %v834 = vtanh.pop %v827
    %v835 = vmul.f32 %v833, %v742
    %837 = vrot.lane.b32.xlu0 %v834, 64
    %v838 = vpop.permute.xlu0 %837
    %v840 = vmul.f32 %v833, %v838
    %842 = vrot.lane.b32.xlu0 %v840, 32
    %v843 = vpop.permute.xlu0 %842
    %v845 = vadd.f32 %v835, %v843
    %v846 = vtanh.pop %v845
    %848 = vrot.lane.b32.xlu0 %v846, 64
    %v849 = vpop.permute.xlu0 %848
    %v851 = vmul.f32 %v833, %v849
    %s852 = sadd.s32 %s17, 6
    %v853 = vstv %s852
    %vm854 = vcmp.gt.s32.totalorder %v27, %v853
    %v855 = vsel %vm854, 1, 0
    %856 = vset.pattern.permute.xlu0 0
    %857 = vperm.xlu0 %856, %v855
    %v858 = vpop.permute.xlu0 %857
    %vm859 = vcmp.eq.s32.totalorder %v858, 1
    %v860 = vsel %vm859, %v851, %v741
    %v861 = vsel %vm859, %v845, %v742
    %v862 = vsel %vm859, %v851, 0.0
    %864 = vrot.lane.b32.xlu0 %v862, 32
    %v865 = vpop.permute.xlu0 %864
    %s867 = scalar_lea.vmem %s3, 12
    %868 = vst.msk [vmem:[%s867] sm:$0x3] %vm153, %v865
    %s869 = scalar_lea.vmem %s0, 14
    %v870 = vld [vmem:[%s869] sm:$0x3]
    %872 = vrot.lane.b32.xlu0 %v860, 32
    %v873 = vpop.permute.xlu0 %872
    %v874 = vsel %vm33, %v873, 0
    %876 = vmatprep.subr.mxu0 0.0
    %877 = vmatpush1.msra.mxu0 %v28
    %878 = vmatprep.subr.mxu0 0.0
    %879 = vmatpush1.msra.mxu0 %v29
    %880 = vmatprep.subr.mxu0 0.0
    %881 = vmatpush1.msra.mxu0 %v30
    %882 = vmatprep.subr.mxu0 0.0
    %883 = vmatpush1.msra.mxu0 %v31
    %884 = vmatprep.subr.mxu0 0.0
    %885 = vmatpush1.msra.mxu0 0.0
    %886 = vmatprep.subr.mxu0 0.0
    %887 = vmatpush1.msra.mxu0 0.0
    %888 = vmatprep.subr.mxu0 0.0
    %889 = vmatpush1.msra.mxu0 0.0
    %890 = vmatprep.subr.mxu0 0.0
    %891 = vmatpush1.msra.mxu0 0.0
    %892 = vmatprep.subr.mxu0 0.0
    %893 = vmatpush1.msra.mxu0 0.0
    %894 = vmatprep.subr.mxu0 0.0
    %895 = vmatpush1.msra.mxu0 0.0
    %896 = vmatprep.subr.mxu0 0.0
    %897 = vmatpush1.msra.mxu0 0.0
    %898 = vmatprep.subr.mxu0 0.0
    %899 = vmatpush1.msra.mxu0 0.0
    %900 = vmatprep.subr.mxu0 0.0
    %901 = vmatpush1.msra.mxu0 0.0
    %902 = vmatprep.subr.mxu0 0.0
    %903 = vmatpush1.msra.mxu0 0.0
    %904 = vmatprep.subr.mxu0 0.0
    %905 = vmatpush1.msra.mxu0 0.0
    %906 = vmatprep.subr.mxu0 0.0
    %907 = vmatpush1.msra.mxu0 0.0
    %908 = vmatprep.subr.mxu0 0.0
    %909 = vmatpush1.msra.mxu0 0.0
    %910 = vmatprep.subr.mxu0 0.0
    %911 = vmatpush1.msra.mxu0 0.0
    %912 = vmatprep.subr.mxu0 0.0
    %913 = vmatpush1.msra.mxu0 0.0
    %914 = vmatprep.subr.mxu0 0.0
    %915 = vmatpush1.msra.mxu0 0.0
    %916 = vmatprep.subr.mxu0 0.0
    %917 = vmatpush1.msra.mxu0 0.0
    %918 = vmatprep.subr.mxu0 0.0
    %919 = vmatpush1.msra.mxu0 0.0
    %920 = vmatprep.subr.mxu0 0.0
    %921 = vmatpush1.msra.mxu0 0.0
    %922 = vmatprep.subr.mxu0 0.0
    %923 = vmatpush1.msra.mxu0 0.0
    %924 = vmatprep.subr.mxu0 0.0
    %925 = vmatpush1.msra.mxu0 0.0
    %926 = vmatprep.subr.mxu0 0.0
    %927 = vmatpush1.msra.mxu0 0.0
    %928 = vmatprep.subr.mxu0 0.0
    %929 = vmatpush1.msra.mxu0 0.0
    %930 = vmatprep.subr.mxu0 0.0
    %931 = vmatpush1.msra.mxu0 0.0
    %932 = vmatprep.subr.mxu0 0.0
    %933 = vmatpush1.msra.mxu0 0.0
    %934 = vmatprep.subr.mxu0 0.0
    %935 = vmatpush1.msra.mxu0 0.0
    %936 = vmatprep.subr.mxu0 0.0
    %937 = vmatpush1.msra.mxu0 0.0
    %938 = vmatprep.subr.mxu0 0.0
    %939 = vmatpush1.msra.mxu0 0.0
    %940 = vmatprep.mubr.f32.mxu0 0.0
    %941 = vmatmul.mubr.f32.gmra.mrb[0].mxu0 %v874
    %v942 = vpop.f32.mrb[0].mxu0
    %v943 = vadd.f32 0.0, %v942
    %v944 = vpop.f32.mrb[0].mxu0
    %945 = vdwg.mxu0
    %v946 = vadd.f32 %v870, %v943
    %v947 = vxor.u32 %v946, 2147483648
    %v948 = vmul.f32 %v947, 1.442695
    %v949 = vpow.pop %v948
    %v950 = vadd.f32 %v949, 1.0
    %v951 = vrcp.pop %v950
    %v952 = vmul.f32 1.0, %v951
    %v953 = vtanh.pop %v946
    %v954 = vmul.f32 %v952, %v861
    %956 = vrot.lane.b32.xlu0 %v953, 64
    %v957 = vpop.permute.xlu0 %956
    %v959 = vmul.f32 %v952, %v957
    %961 = vrot.lane.b32.xlu0 %v959, 32
    %v962 = vpop.permute.xlu0 %961
    %v964 = vadd.f32 %v954, %v962
    %v965 = vtanh.pop %v964
    %967 = vrot.lane.b32.xlu0 %v965, 64
    %v968 = vpop.permute.xlu0 %967
    %v970 = vmul.f32 %v952, %v968
    %s971 = sadd.s32 %s17, 7
    %v972 = vstv %s971
    %vm973 = vcmp.gt.s32.totalorder %v27, %v972
    %v974 = vsel %vm973, 1, 0
    %975 = vset.pattern.permute.xlu0 0
    %976 = vperm.xlu0 %975, %v974
    %v977 = vpop.permute.xlu0 %976
    %vm978 = vcmp.eq.s32.totalorder %v977, 1
    %v979 = vsel %vm978, %v970, %v860
    %v980 = vsel %vm978, %v964, %v861
    %v981 = vsel %vm978, %v970, 0.0
    %983 = vrot.lane.b32.xlu0 %v981, 32
    %v984 = vpop.permute.xlu0 %983
    %s986 = scalar_lea.vmem %s3, 14
    %987 = vst.msk [vmem:[%s986] sm:$0x3] %vm153, %v984
    %989 = vrot.lane.b32.xlu0 %v979, 32
    %v990 = vpop.permute.xlu0 %989
    %992 = vst.msk [vmem:[#allocation2] sm:$0x3] %vm153, %v990
    %994 = vrot.lane.b32.xlu0 %v980, 96
    %v995 = vpop.permute.xlu0 %994
    %997 = vst.msk [vmem:[#allocation3] sm:$0x3] %vm153, %v995
    // Predicated region
    $region18: #{char_parser_forward.20} parent=1 // pred_check
      %p998 = pneg %p18
    $region19: #{char_parser_forward.20} parent=1 // pred_check_branch
      %1000 = sbr.rel (%p998) target = $region21
    $region20: #{char_parser_forward.20} parent=1 // pred_region
      %1001 = vst.msk [vmem:[#allocation4] sm:$0x3] %vm153, %v990
    $region21: #{char_parser_forward.20} parent=1 // pred_fallthru
      _
    // Predicated region
    $region22: #{char_parser_forward.20} parent=1 // pred_check
      _
    $region23: #{char_parser_forward.20} parent=1 // pred_check_branch
      %1003 = sbr.rel (0) target = $region25
    $region24: #{char_parser_forward.20} parent=1 // pred_region
      _
    $region25: #{char_parser_forward.20} parent=1 // pred_fallthru
      _
    // Predicated region
    $region26: #{char_parser_forward.20} parent=1 // pred_check
      _
    $region27: #{char_parser_forward.20} parent=1 // pred_check_branch
      %1005 = sbr.rel (0) target = $region29
    $region28: #{char_parser_forward.20} parent=1 // pred_region
      %s1007 = ssub.s32 32, 32
      %1008 = vsyncadd [#allocation5], %s1007
      %s1010 = sshll.u32 [#allocation4], 4
      %s1011 = int_to_ptr.vmem [resolvable:$true] %s1010
      %1013 = dma.vmem_to_hbm [thread:$0]  %s1011, 32, %s4, [#allocation5]
    $region29: #{char_parser_forward.20} parent=1 // pred_fallthru
      _
    // Predicated region
    $region30: #{char_parser_forward.20} parent=1 // pred_check
      _
    $region31: #{char_parser_forward.20} parent=1 // pred_check_branch
      %1015 = sbr.rel (0) target = $region33
    $region32: #{char_parser_forward.20} parent=1 // pred_region
      _
    $region33: #{char_parser_forward.20} parent=1 // pred_fallthru
      _
    // Predicated region
    $region34: #{char_parser_forward.20} parent=1 // pred_check
      _
    $region35: #{char_parser_forward.20} parent=1 // pred_check_branch
      %1017 = sbr.rel (0) target = $region37
    $region36: #{char_parser_forward.20} parent=1 // pred_region
      %1018 = dma.done [#allocation5], 32
    $region37: #{char_parser_forward.20} parent=1 // pred_fallthru
      _
    %1019 = vsyncpa [#allocation5], 1

// kernel: char_parser_forward.23
$region0: #{char_parser_forward.23}
  #allocation0 [shape = 'u32[]', space=smem, size = 0x4, offset = 0x4, fixed_abs, tag = 'smem constant byte address 0x4 - core index']
  #allocation1 [shape = 'u32[144,128]{1,0:T(1,128)}', space=vmem, size = 0x12000, scoped, tag = 'internal scratch']
  %s0 = inlined_call_operand.vmem [shape: f32[16,64], index: 0, kind: input, shape index: {}]
  %s1 = inlined_call_operand.vmem [shape: f32[64,128], index: 1, kind: input, shape index: {}]
  %s2 = inlined_call_operand.vmem [shape: f32[1,128], index: 2, kind: input, shape index: {}]
  %s3 = inlined_call_operand.vmem [shape: f32[16,128], index: 3, kind: output, shape index: {}]
  %s4 = sld [smem:[#allocation0]]
  $region22: #{char_parser_forward.23} parent=0
    _
  %s6 = ssub.s32 1, %s4
  %s7 = scalar_select 0, %s6, %s4
  // Predicated region
  $region2: #{char_parser_forward.23} parent=0 // pred_check
    _
  $region3: #{char_parser_forward.23} parent=0 // pred_check_branch
    %9 = sbr.rel (0) target = $region5
  $region4: #{char_parser_forward.23} parent=0 // pred_region
    _
  $region5: #{char_parser_forward.23} parent=0 // pred_fallthru
    _
  // Predicated region
  $region6: #{char_parser_forward.23} parent=0 // pred_check
    _
  $region7: #{char_parser_forward.23} parent=0 // pred_check_branch
    %11 = sbr.rel (0) target = $region9
  $region8: #{char_parser_forward.23} parent=0 // pred_region
    _
  $region9: #{char_parser_forward.23} parent=0 // pred_fallthru
    _
  // Predicated region
  $region10: #{char_parser_forward.23} parent=0 // pred_check
    _
  $region11: #{char_parser_forward.23} parent=0 // pred_check_branch
    %13 = sbr.rel (0) target = $region13
  $region12: #{char_parser_forward.23} parent=0 // pred_region
    _
  $region13: #{char_parser_forward.23} parent=0 // pred_fallthru
    _
  %v14 = vld [vmem:[%s0] sm:$0xff]
  %v15 = vld [vmem:[%s0 + $0x8] sm:$0xff]
  %v16 = vld [vmem:[%s1] sm:$0xff]
  %v17 = vld [vmem:[%s1 + $0x8] sm:$0xff]
  %v18 = vld [vmem:[%s1 + $0x10] sm:$0xff]
  %v19 = vld [vmem:[%s1 + $0x18] sm:$0xff]
  %v20 = vld [vmem:[%s1 + $0x20] sm:$0xff]
  %v21 = vld [vmem:[%s1 + $0x28] sm:$0xff]
  %v22 = vld [vmem:[%s1 + $0x30] sm:$0xff]
  %v23 = vld [vmem:[%s1 + $0x38] sm:$0xff]
  %v24 = vld [vmem:[%s2] sm:$0x1]
  %v26 = vlaneseq
  %v27 = vshrl.u32 %v26, 7
  %v28 = vsub.s32 0, %v27
  %v29 = vrot.slane %v24, %v28
  %vm31 = vcmask 523264
  %v33 = vsel %vm31, %v14, 0
  %v36 = vsel %vm31, %v15, 0
  %38 = vmatprep.subr.mxu0 0.0
  %39 = vmatpush1.msra.mxu0 %v16
  %40 = vmatprep.subr.mxu0 0.0
  %41 = vmatpush1.msra.mxu0 %v17
  %42 = vmatprep.subr.mxu0 0.0
  %43 = vmatpush1.msra.mxu0 %v18
  %44 = vmatprep.subr.mxu0 0.0
  %45 = vmatpush1.msra.mxu0 %v19
  %46 = vmatprep.subr.mxu0 0.0
  %47 = vmatpush1.msra.mxu0 %v20
  %48 = vmatprep.subr.mxu0 0.0
  %49 = vmatpush1.msra.mxu0 %v21
  %50 = vmatprep.subr.mxu0 0.0
  %51 = vmatpush1.msra.mxu0 %v22
  %52 = vmatprep.subr.mxu0 0.0
  %53 = vmatpush1.msra.mxu0 %v23
  %54 = vmatprep.subr.mxu0 0.0
  %55 = vmatpush1.msra.mxu0 0.0
  %56 = vmatprep.subr.mxu0 0.0
  %57 = vmatpush1.msra.mxu0 0.0
  %58 = vmatprep.subr.mxu0 0.0
  %59 = vmatpush1.msra.mxu0 0.0
  %60 = vmatprep.subr.mxu0 0.0
  %61 = vmatpush1.msra.mxu0 0.0
  %62 = vmatprep.subr.mxu0 0.0
  %63 = vmatpush1.msra.mxu0 0.0
  %64 = vmatprep.subr.mxu0 0.0
  %65 = vmatpush1.msra.mxu0 0.0
  %66 = vmatprep.subr.mxu0 0.0
  %67 = vmatpush1.msra.mxu0 0.0
  %68 = vmatprep.subr.mxu0 0.0
  %69 = vmatpush1.msra.mxu0 0.0
  %70 = vmatprep.subr.mxu0 0.0
  %71 = vmatpush1.msra.mxu0 0.0
  %72 = vmatprep.subr.mxu0 0.0
  %73 = vmatpush1.msra.mxu0 0.0
  %74 = vmatprep.subr.mxu0 0.0
  %75 = vmatpush1.msra.mxu0 0.0
  %76 = vmatprep.subr.mxu0 0.0
  %77 = vmatpush1.msra.mxu0 0.0
  %78 = vmatprep.subr.mxu0 0.0
  %79 = vmatpush1.msra.mxu0 0.0
  %80 = vmatprep.subr.mxu0 0.0
  %81 = vmatpush1.msra.mxu0 0.0
  %82 = vmatprep.subr.mxu0 0.0
  %83 = vmatpush1.msra.mxu0 0.0
  %84 = vmatprep.subr.mxu0 0.0
  %85 = vmatpush1.msra.mxu0 0.0
  %86 = vmatprep.subr.mxu0 0.0
  %87 = vmatpush1.msra.mxu0 0.0
  %88 = vmatprep.subr.mxu0 0.0
  %89 = vmatpush1.msra.mxu0 0.0
  %90 = vmatprep.subr.mxu0 0.0
  %91 = vmatpush1.msra.mxu0 0.0
  %92 = vmatprep.subr.mxu0 0.0
  %93 = vmatpush1.msra.mxu0 0.0
  %94 = vmatprep.subr.mxu0 0.0
  %95 = vmatpush1.msra.mxu0 0.0
  %96 = vmatprep.subr.mxu0 0.0
  %97 = vmatpush1.msra.mxu0 0.0
  %98 = vmatprep.subr.mxu0 0.0
  %99 = vmatpush1.msra.mxu0 0.0
  %100 = vmatprep.subr.mxu0 0.0
  %101 = vmatpush1.msra.mxu0 0.0
  %102 = vmatprep.mubr.f32.mxu0 0.0
  %103 = vmatmul.mubr.f32.gmra.mrb[0].mxu0 %v33
  %v104 = vpop.f32.mrb[0].mxu0
  %v105 = vadd.f32 %v29, %v104
  %v106 = vpop.f32.mrb[0].mxu0
  %107 = vmatprep.mubr.f32.mxu0 0.0
  %108 = vmatmul.mubr.f32.gmra.mrb[0].mxu0 %v36
  %v109 = vpop.f32.mrb[0].mxu0
  %v110 = vadd.f32 %v29, %v109
  %v111 = vpop.f32.mrb[0].mxu0
  %112 = vdwg.mxu0
  %113 = vst [vmem:[%s3] sm:$0xff] %v105
  %114 = vst [vmem:[%s3 + $0x8] sm:$0xff] %v110
  // Predicated region
  $region14: #{char_parser_forward.23} parent=0 // pred_check
    _
  $region15: #{char_parser_forward.23} parent=0 // pred_check_branch
    %116 = sbr.rel (0) target = $region17
  $region16: #{char_parser_forward.23} parent=0 // pred_region
    _
  $region17: #{char_parser_forward.23} parent=0 // pred_fallthru
    _
  // Predicated region
  $region18: #{char_parser_forward.23} parent=0 // pred_check
    _
  $region19: #{char_parser_forward.23} parent=0 // pred_check_branch
    %118 = sbr.rel (0) target = $region21
  $region20: #{char_parser_forward.23} parent=0 // pred_region
    _
  $region21: #{char_parser_forward.23} parent=0 // pred_fallthru
    _

// kernel: char_parser_forward.27
$region0: #{char_parser_forward.27}
  #allocation0 [shape = 'u32[]', space=smem, size = 0x4, offset = 0x4, fixed_abs, tag = 'smem constant byte address 0x4 - core index']
  #allocation1 [shape = 'u32[144,128]{1,0:T(1,128)}', space=vmem, size = 0x12000, scoped, tag = 'internal scratch']
  %s0 = inlined_call_operand.vmem [shape: f32[16,64], index: 0, kind: input, shape index: {}]
  %s1 = inlined_call_operand.vmem [shape: f32[64,128], index: 1, kind: input, shape index: {}]
  %s2 = inlined_call_operand.vmem [shape: f32[1,128], index: 2, kind: input, shape index: {}]
  %s3 = inlined_call_operand.vmem [shape: f32[16,128], index: 3, kind: output, shape index: {}]
  %s4 = sld [smem:[#allocation0]]
  $region22: #{char_parser_forward.27} parent=0
    _
  %s6 = ssub.s32 1, %s4
  %s7 = scalar_select 0, %s6, %s4
  // Predicated region
  $region2: #{char_parser_forward.27} parent=0 // pred_check
    _
  $region3: #{char_parser_forward.27} parent=0 // pred_check_branch
    %9 = sbr.rel (0) target = $region5
  $region4: #{char_parser_forward.27} parent=0 // pred_region
    _
  $region5: #{char_parser_forward.27} parent=0 // pred_fallthru
    _
  // Predicated region
  $region6: #{char_parser_forward.27} parent=0 // pred_check
    _
  $region7: #{char_parser_forward.27} parent=0 // pred_check_branch
    %11 = sbr.rel (0) target = $region9
  $region8: #{char_parser_forward.27} parent=0 // pred_region
    _
  $region9: #{char_parser_forward.27} parent=0 // pred_fallthru
    _
  // Predicated region
  $region10: #{char_parser_forward.27} parent=0 // pred_check
    _
  $region11: #{char_parser_forward.27} parent=0 // pred_check_branch
    %13 = sbr.rel (0) target = $region13
  $region12: #{char_parser_forward.27} parent=0 // pred_region
    _
  $region13: #{char_parser_forward.27} parent=0 // pred_fallthru
    _
  %v14 = vld [vmem:[%s0] sm:$0xff]
  %v15 = vld [vmem:[%s0 + $0x8] sm:$0xff]
  %v16 = vld [vmem:[%s1] sm:$0xff]
  %v17 = vld [vmem:[%s1 + $0x8] sm:$0xff]
  %v18 = vld [vmem:[%s1 + $0x10] sm:$0xff]
  %v19 = vld [vmem:[%s1 + $0x18] sm:$0xff]
  %v20 = vld [vmem:[%s1 + $0x20] sm:$0xff]
  %v21 = vld [vmem:[%s1 + $0x28] sm:$0xff]
  %v22 = vld [vmem:[%s1 + $0x30] sm:$0xff]
  %v23 = vld [vmem:[%s1 + $0x38] sm:$0xff]
  %v24 = vld [vmem:[%s2] sm:$0x1]
  %v26 = vlaneseq
  %v27 = vshrl.u32 %v26, 7
  %v28 = vsub.s32 0, %v27
  %v29 = vrot.slane %v24, %v28
  %vm31 = vcmask 523264
  %v33 = vsel %vm31, %v14, 0
  %v36 = vsel %vm31, %v15, 0
  %38 = vmatprep.subr.mxu0 0.0
  %39 = vmatpush1.msra.mxu0 %v16
  %40 = vmatprep.subr.mxu0 0.0
  %41 = vmatpush1.msra.mxu0 %v17
  %42 = vmatprep.subr.mxu0 0.0
  %43 = vmatpush1.msra.mxu0 %v18
  %44 = vmatprep.subr.mxu0 0.0
  %45 = vmatpush1.msra.mxu0 %v19
  %46 = vmatprep.subr.mxu0 0.0
  %47 = vmatpush1.msra.mxu0 %v20
  %48 = vmatprep.subr.mxu0 0.0
  %49 = vmatpush1.msra.mxu0 %v21
  %50 = vmatprep.subr.mxu0 0.0
  %51 = vmatpush1.msra.mxu0 %v22
  %52 = vmatprep.subr.mxu0 0.0
  %53 = vmatpush1.msra.mxu0 %v23
  %54 = vmatprep.subr.mxu0 0.0
  %55 = vmatpush1.msra.mxu0 0.0
  %56 = vmatprep.subr.mxu0 0.0
  %57 = vmatpush1.msra.mxu0 0.0
  %58 = vmatprep.subr.mxu0 0.0
  %59 = vmatpush1.msra.mxu0 0.0
  %60 = vmatprep.subr.mxu0 0.0
  %61 = vmatpush1.msra.mxu0 0.0
  %62 = vmatprep.subr.mxu0 0.0
  %63 = vmatpush1.msra.mxu0 0.0
  %64 = vmatprep.subr.mxu0 0.0
  %65 = vmatpush1.msra.mxu0 0.0
  %66 = vmatprep.subr.mxu0 0.0
  %67 = vmatpush1.msra.mxu0 0.0
  %68 = vmatprep.subr.mxu0 0.0
  %69 = vmatpush1.msra.mxu0 0.0
  %70 = vmatprep.subr.mxu0 0.0
  %71 = vmatpush1.msra.mxu0 0.0
  %72 = vmatprep.subr.mxu0 0.0
  %73 = vmatpush1.msra.mxu0 0.0
  %74 = vmatprep.subr.mxu0 0.0
  %75 = vmatpush1.msra.mxu0 0.0
  %76 = vmatprep.subr.mxu0 0.0
  %77 = vmatpush1.msra.mxu0 0.0
  %78 = vmatprep.subr.mxu0 0.0
  %79 = vmatpush1.msra.mxu0 0.0
  %80 = vmatprep.subr.mxu0 0.0
  %81 = vmatpush1.msra.mxu0 0.0
  %82 = vmatprep.subr.mxu0 0.0
  %83 = vmatpush1.msra.mxu0 0.0
  %84 = vmatprep.subr.mxu0 0.0
  %85 = vmatpush1.msra.mxu0 0.0
  %86 = vmatprep.subr.mxu0 0.0
  %87 = vmatpush1.msra.mxu0 0.0
  %88 = vmatprep.subr.mxu0 0.0
  %89 = vmatpush1.msra.mxu0 0.0
  %90 = vmatprep.subr.mxu0 0.0
  %91 = vmatpush1.msra.mxu0 0.0
  %92 = vmatprep.subr.mxu0 0.0
  %93 = vmatpush1.msra.mxu0 0.0
  %94 = vmatprep.subr.mxu0 0.0
  %95 = vmatpush1.msra.mxu0 0.0
  %96 = vmatprep.subr.mxu0 0.0
  %97 = vmatpush1.msra.mxu0 0.0
  %98 = vmatprep.subr.mxu0 0.0
  %99 = vmatpush1.msra.mxu0 0.0
  %100 = vmatprep.subr.mxu0 0.0
  %101 = vmatpush1.msra.mxu0 0.0
  %102 = vmatprep.mubr.f32.mxu0 0.0
  %103 = vmatmul.mubr.f32.gmra.mrb[0].mxu0 %v33
  %v104 = vpop.f32.mrb[0].mxu0
  %v105 = vadd.f32 %v29, %v104
  %v106 = vpop.f32.mrb[0].mxu0
  %107 = vmatprep.mubr.f32.mxu0 0.0
  %108 = vmatmul.mubr.f32.gmra.mrb[0].mxu0 %v36
  %v109 = vpop.f32.mrb[0].mxu0
  %v110 = vadd.f32 %v29, %v109
  %v111 = vpop.f32.mrb[0].mxu0
  %112 = vdwg.mxu0
  %vm113 = vcmp.gt.f32.partialorder %v105, 0.0
  %vm114 = vcmp.gt.f32.partialorder %v110, 0.0
  %v115 = vmul.f32 %v105, 0.1
  %v116 = vmul.f32 %v110, 0.1
  %v117 = vsel %vm113, %v105, %v115
  %v118 = vsel %vm114, %v110, %v116
  %119 = vst [vmem:[%s3] sm:$0xff] %v117
  %120 = vst [vmem:[%s3 + $0x8] sm:$0xff] %v118
  // Predicated region
  $region14: #{char_parser_forward.27} parent=0 // pred_check
    _
  $region15: #{char_parser_forward.27} parent=0 // pred_check_branch
    %122 = sbr.rel (0) target = $region17
  $region16: #{char_parser_forward.27} parent=0 // pred_region
    _
  $region17: #{char_parser_forward.27} parent=0 // pred_fallthru
    _
  // Predicated region
  $region18: #{char_parser_forward.27} parent=0 // pred_check
    _
  $region19: #{char_parser_forward.27} parent=0 // pred_check_branch
    %124 = sbr.rel (0) target = $region21
  $region20: #{char_parser_forward.27} parent=0 // pred_region
    _
  $region21: #{char_parser_forward.27} parent=0 // pred_fallthru
    _

// kernel: char_parser_forward.22
$region0: #{char_parser_forward.22}
  #allocation0 [shape = 'u32[]', space=smem, size = 0x4, offset = 0x4, fixed_abs, tag = 'smem constant byte address 0x4 - core index']
  #allocation1 [shape = 'u32[144,128]{1,0:T(1,128)}', space=vmem, size = 0x12000, scoped, tag = 'internal scratch']
  #allocation2 [shape = 'f32[2,32]{1,0:T(2,128)}', space=vmem, size = 0x400, scoped, tag = 'scratch operand']
  #allocation3 [shape = 'f32[2,32]{1,0:T(2,128)}', space=vmem, size = 0x400, scoped, tag = 'scratch operand']
  %s0 = inlined_call_operand.vmem [shape: f32[8,2,128], index: 0, kind: input, shape index: {}]
  %s1 = inlined_call_operand.vmem [shape: f32[32,128], index: 1, kind: input, shape index: {}]
  %s2 = inlined_call_operand.vmem [shape: s32[2,1], index: 2, kind: input, shape index: {}]
  %s3 = inlined_call_operand.vmem [shape: f32[8,2,32], index: 3, kind: output, shape index: {0}]
  %s4 = inlined_call_operand.hbm [shape: f32[2,32], index: 4, kind: output, shape index: {1}]
  %5 = xla_tuple %s3, %s4
  %s6 = sld [smem:[#allocation0]]
  $region38: #{char_parser_forward.22} parent=0
    _
  %s8 = ssub.s32 1, %s6
  %s9 = scalar_select 0, %s8, %s6
  $region1: #{char_parser_forward.22} parent=0
    #allocation4 [shape = 'u8[1024]{0}', space=vmem, size = 0x400, scoped, tag = 'output window, operand 1, single buffered']
    #allocation5 [shape = 's32[1]{0}', space=sflag, size = 0x4, scoped, tag = 'scoped memory for char_parser_forward.22']
    %10 = vsyncpa [#allocation5], 0
    // Predicated region
    $region2: #{char_parser_forward.22} parent=1 // pred_check
      _
    $region3: #{char_parser_forward.22} parent=1 // pred_check_branch
      %12 = sbr.rel (0) target = $region5
    $region4: #{char_parser_forward.22} parent=1 // pred_region
      %s13 = ssub.s32 0, 0
      %s14 = smul.u32 8, %s13
      %p15 = scmp.lt.s32.totalorder %s14, 7
      %s16 = scalar_select %p15, %s14, 7
      %s17 = smul.addr %s16, 2
      %s18 = scalar_lea.vmem %s0, %s17
      %s19 = ssub.s32 0, 0
      %s20 = smul.u32 8, %s19
    $region5: #{char_parser_forward.22} parent=1 // pred_fallthru
      _
    // Predicated region
    $region6: #{char_parser_forward.22} parent=1 // pred_check
      _
    $region7: #{char_parser_forward.22} parent=1 // pred_check_branch
      %22 = sbr.rel (0) target = $region9
    $region8: #{char_parser_forward.22} parent=1 // pred_region
      _
    $region9: #{char_parser_forward.22} parent=1 // pred_fallthru
      _
    // Predicated region
    $region10: #{char_parser_forward.22} parent=1 // pred_check
      _
    $region11: #{char_parser_forward.22} parent=1 // pred_check_branch
      %24 = sbr.rel (0) target = $region13
    $region12: #{char_parser_forward.22} parent=1 // pred_region
      _
    $region13: #{char_parser_forward.22} parent=1 // pred_fallthru
      _
    %s25 = ssub.s32 0, 0
    %s26 = smul.u32 8, %s25
    %p27 = scmp.lt.s32.totalorder %s26, 7
    %s28 = scalar_select %p27, %s26, 7
    %s29 = smul.addr %s28, 2
    %s30 = scalar_lea.vmem %s0, %s29
    %s31 = ssub.s32 0, 0
    %s32 = smul.u32 8, %s31
    %p33 = scmp.lt.s32.totalorder %s32, 7
    %s34 = scalar_select %p33, %s32, 7
    %s35 = smul.addr %s34, 2
    %s36 = scalar_lea.vmem %s3, %s35
    %s37 = ssub.s32 0, 0
    %s38 = smul.u32 8, %s37
    %p39 = scmp.lt.s32.totalorder %s38, 7
    %s40 = scalar_select %p39, %s38, 7
    %s41 = smul.addr %s40, 2
    %s42 = scalar_lea.vmem %s0, %s41
    %s43 = ssub.s32 0, 0
    %s44 = smul.u32 8, %s43
    %s45 = ssub.s32 0, 0
    %s46 = smul.u32 8, %s45
    %p47 = scmp.lt.s32.totalorder %s46, 7
    %s48 = scalar_select %p47, %s46, 7
    %s49 = smul.addr %s48, 2
    %s50 = scalar_lea.vmem %s3, %s49
    %s51 = ssub.s32 0, 0
    %s52 = smul.u32 8, %s51
    %s53 = ssub.s32 0, 0
    %s54 = smul.u32 %s53, 8
    %p55 = scmp.eq.s32.totalorder 0, 0
    // Predicated region
    $region14: #{char_parser_forward.22} parent=1 // pred_check
      %p56 = pneg %p55
    $region15: #{char_parser_forward.22} parent=1 // pred_check_branch
      %58 = sbr.rel (%p56) target = $region17
    $region16: #{char_parser_forward.22} parent=1 // pred_region
      %vm59 = vcmask 254976
      %60 = vst.msk [vmem:[#allocation2] sm:$0x3] %vm59, 0.0
      %61 = vst.msk [vmem:[#allocation3] sm:$0x3] %vm59, 0.0
    $region17: #{char_parser_forward.22} parent=1 // pred_fallthru
      _
    %v62 = vld [vmem:[#allocation2] sm:$0x3]
    %v63 = vld [vmem:[#allocation3] sm:$0x3]
    %v64 = vld [vmem:[%s2] sm:$0x3]
    %v65 = vld [vmem:[%s1] sm:$0xff]
    %v66 = vld [vmem:[%s1 + $0x8] sm:$0xff]
    %v67 = vld [vmem:[%s1 + $0x10] sm:$0xff]
    %v68 = vld [vmem:[%s1 + $0x18] sm:$0xff]
    %s69 = scalar_lea.vmem %s42, 14
    %v70 = vld [vmem:[%s69] sm:$0x3]
    %vm71 = vcmask 261120
    %v73 = vsel %vm71, %v62, 0
    %75 = vmatprep.subr.mxu0 0.0
    %76 = vmatpush1.msra.mxu0 %v65
    %77 = vmatprep.subr.mxu0 0.0
    %78 = vmatpush1.msra.mxu0 %v66
    %79 = vmatprep.subr.mxu0 0.0
    %80 = vmatpush1.msra.mxu0 %v67
    %81 = vmatprep.subr.mxu0 0.0
    %82 = vmatpush1.msra.mxu0 %v68
    %83 = vmatprep.subr.mxu0 0.0
    %84 = vmatpush1.msra.mxu0 0.0
    %85 = vmatprep.subr.mxu0 0.0
    %86 = vmatpush1.msra.mxu0 0.0
    %87 = vmatprep.subr.mxu0 0.0
    %88 = vmatpush1.msra.mxu0 0.0
    %89 = vmatprep.subr.mxu0 0.0
    %90 = vmatpush1.msra.mxu0 0.0
    %91 = vmatprep.subr.mxu0 0.0
    %92 = vmatpush1.msra.mxu0 0.0
    %93 = vmatprep.subr.mxu0 0.0
    %94 = vmatpush1.msra.mxu0 0.0
    %95 = vmatprep.subr.mxu0 0.0
    %96 = vmatpush1.msra.mxu0 0.0
    %97 = vmatprep.subr.mxu0 0.0
    %98 = vmatpush1.msra.mxu0 0.0
    %99 = vmatprep.subr.mxu0 0.0
    %100 = vmatpush1.msra.mxu0 0.0
    %101 = vmatprep.subr.mxu0 0.0
    %102 = vmatpush1.msra.mxu0 0.0
    %103 = vmatprep.subr.mxu0 0.0
    %104 = vmatpush1.msra.mxu0 0.0
    %105 = vmatprep.subr.mxu0 0.0
    %106 = vmatpush1.msra.mxu0 0.0
    %107 = vmatprep.subr.mxu0 0.0
    %108 = vmatpush1.msra.mxu0 0.0
    %109 = vmatprep.subr.mxu0 0.0
    %110 = vmatpush1.msra.mxu0 0.0
    %111 = vmatprep.subr.mxu0 0.0
    %112 = vmatpush1.msra.mxu0 0.0
    %113 = vmatprep.subr.mxu0 0.0
    %114 = vmatpush1.msra.mxu0 0.0
    %115 = vmatprep.subr.mxu0 0.0
    %116 = vmatpush1.msra.mxu0 0.0
    %117 = vmatprep.subr.mxu0 0.0
    %118 = vmatpush1.msra.mxu0 0.0
    %119 = vmatprep.subr.mxu0 0.0
    %120 = vmatpush1.msra.mxu0 0.0
    %121 = vmatprep.subr.mxu0 0.0
    %122 = vmatpush1.msra.mxu0 0.0
    %123 = vmatprep.subr.mxu0 0.0
    %124 = vmatpush1.msra.mxu0 0.0
    %125 = vmatprep.subr.mxu0 0.0
    %126 = vmatpush1.msra.mxu0 0.0
    %127 = vmatprep.subr.mxu0 0.0
    %128 = vmatpush1.msra.mxu0 0.0
    %129 = vmatprep.subr.mxu0 0.0
    %130 = vmatpush1.msra.mxu0 0.0
    %131 = vmatprep.subr.mxu0 0.0
    %132 = vmatpush1.msra.mxu0 0.0
    %133 = vmatprep.subr.mxu0 0.0
    %134 = vmatpush1.msra.mxu0 0.0
    %135 = vmatprep.subr.mxu0 0.0
    %136 = vmatpush1.msra.mxu0 0.0
    %137 = vmatprep.subr.mxu0 0.0
    %138 = vmatpush1.msra.mxu0 0.0
    %139 = vmatprep.mubr.f32.mxu0 0.0
    %140 = vmatmul.mubr.f32.gmra.mrb[0].mxu0 %v73
    %v141 = vpop.f32.mrb[0].mxu0
    %v142 = vadd.f32 0.0, %v141
    %v143 = vpop.f32.mrb[0].mxu0
    %144 = vdwg.mxu0
    %v145 = vadd.f32 %v70, %v142
    %v146 = vxor.u32 %v145, 2147483648
    %v147 = vmul.f32 %v146, 1.442695
    %v148 = vpow.pop %v147
    %v149 = vadd.f32 %v148, 1.0
    %v150 = vrcp.pop %v149
    %v151 = vmul.f32 1.0, %v150
    %v152 = vtanh.pop %v145
    %154 = vrot.lane.b32.xlu0 %v63, 32
    %v155 = vpop.permute.xlu0 %154
    %v157 = vmul.f32 %v151, %v155
    %159 = vrot.lane.b32.xlu0 %v152, 64
    %v160 = vpop.permute.xlu0 %159
    %v162 = vmul.f32 %v151, %v160
    %164 = vrot.lane.b32.xlu0 %v162, 32
    %v165 = vpop.permute.xlu0 %164
    %v167 = vadd.f32 %v157, %v165
    %v168 = vtanh.pop %v167
    %170 = vrot.lane.b32.xlu0 %v168, 64
    %v171 = vpop.permute.xlu0 %170
    %v173 = vmul.f32 %v151, %v171
    %s174 = sadd.s32 %s54, 7
    %v175 = vstv %s174
    %vm176 = vcmp.gt.s32.totalorder %v64, %v175
    %v177 = vsel %vm176, 1, 0
    %178 = vset.pattern.permute.xlu0 0
    %179 = vperm.xlu0 %178, %v177
    %v180 = vpop.permute.xlu0 %179
    %vm181 = vcmp.eq.s32.totalorder %v180, 1
    %182 = vrot.lane.b32.xlu0 %v62, 96
    %v183 = vpop.permute.xlu0 %182
    %v185 = vsel %vm181, %v173, %v183
    %v186 = vsel %vm181, %v167, %v155
    %v187 = vsel %vm181, %v173, 0.0
    %189 = vrot.lane.b32.xlu0 %v187, 32
    %v190 = vpop.permute.xlu0 %189
    %s192 = scalar_lea.vmem %s50, 14
    %vm193 = vcmask 254976
    %194 = vst.msk [vmem:[%s192] sm:$0x3] %vm193, %v190
    %s195 = scalar_lea.vmem %s42, 12
    %v196 = vld [vmem:[%s195] sm:$0x3]
    %198 = vrot.lane.b32.xlu0 %v185, 32
    %v199 = vpop.permute.xlu0 %198
    %v200 = vsel %vm71, %v199, 0
    %202 = vmatprep.subr.mxu0 0.0
    %203 = vmatpush1.msra.mxu0 %v65
    %204 = vmatprep.subr.mxu0 0.0
    %205 = vmatpush1.msra.mxu0 %v66
    %206 = vmatprep.subr.mxu0 0.0
    %207 = vmatpush1.msra.mxu0 %v67
    %208 = vmatprep.subr.mxu0 0.0
    %209 = vmatpush1.msra.mxu0 %v68
    %210 = vmatprep.subr.mxu0 0.0
    %211 = vmatpush1.msra.mxu0 0.0
    %212 = vmatprep.subr.mxu0 0.0
    %213 = vmatpush1.msra.mxu0 0.0
    %214 = vmatprep.subr.mxu0 0.0
    %215 = vmatpush1.msra.mxu0 0.0
    %216 = vmatprep.subr.mxu0 0.0
    %217 = vmatpush1.msra.mxu0 0.0
    %218 = vmatprep.subr.mxu0 0.0
    %219 = vmatpush1.msra.mxu0 0.0
    %220 = vmatprep.subr.mxu0 0.0
    %221 = vmatpush1.msra.mxu0 0.0
    %222 = vmatprep.subr.mxu0 0.0
    %223 = vmatpush1.msra.mxu0 0.0
    %224 = vmatprep.subr.mxu0 0.0
    %225 = vmatpush1.msra.mxu0 0.0
    %226 = vmatprep.subr.mxu0 0.0
    %227 = vmatpush1.msra.mxu0 0.0
    %228 = vmatprep.subr.mxu0 0.0
    %229 = vmatpush1.msra.mxu0 0.0
    %230 = vmatprep.subr.mxu0 0.0
    %231 = vmatpush1.msra.mxu0 0.0
    %232 = vmatprep.subr.mxu0 0.0
    %233 = vmatpush1.msra.mxu0 0.0
    %234 = vmatprep.subr.mxu0 0.0
    %235 = vmatpush1.msra.mxu0 0.0
    %236 = vmatprep.subr.mxu0 0.0
    %237 = vmatpush1.msra.mxu0 0.0
    %238 = vmatprep.subr.mxu0 0.0
    %239 = vmatpush1.msra.mxu0 0.0
    %240 = vmatprep.subr.mxu0 0.0
    %241 = vmatpush1.msra.mxu0 0.0
    %242 = vmatprep.subr.mxu0 0.0
    %243 = vmatpush1.msra.mxu0 0.0
    %244 = vmatprep.subr.mxu0 0.0
    %245 = vmatpush1.msra.mxu0 0.0
    %246 = vmatprep.subr.mxu0 0.0
    %247 = vmatpush1.msra.mxu0 0.0
    %248 = vmatprep.subr.mxu0 0.0
    %249 = vmatpush1.msra.mxu0 0.0
    %250 = vmatprep.subr.mxu0 0.0
    %251 = vmatpush1.msra.mxu0 0.0
    %252 = vmatprep.subr.mxu0 0.0
    %253 = vmatpush1.msra.mxu0 0.0
    %254 = vmatprep.subr.mxu0 0.0
    %255 = vmatpush1.msra.mxu0 0.0
    %256 = vmatprep.subr.mxu0 0.0
    %257 = vmatpush1.msra.mxu0 0.0
    %258 = vmatprep.subr.mxu0 0.0
    %259 = vmatpush1.msra.mxu0 0.0
    %260 = vmatprep.subr.mxu0 0.0
    %261 = vmatpush1.msra.mxu0 0.0
    %262 = vmatprep.subr.mxu0 0.0
    %263 = vmatpush1.msra.mxu0 0.0
    %264 = vmatprep.subr.mxu0 0.0
    %265 = vmatpush1.msra.mxu0 0.0
    %266 = vmatprep.mubr.f32.mxu0 0.0
    %267 = vmatmul.mubr.f32.gmra.mrb[0].mxu0 %v200
    %v268 = vpop.f32.mrb[0].mxu0
    %v269 = vadd.f32 0.0, %v268
    %v270 = vpop.f32.mrb[0].mxu0
    %271 = vdwg.mxu0
    %v272 = vadd.f32 %v196, %v269
    %v273 = vxor.u32 %v272, 2147483648
    %v274 = vmul.f32 %v273, 1.442695
    %v275 = vpow.pop %v274
    %v276 = vadd.f32 %v275, 1.0
    %v277 = vrcp.pop %v276
    %v278 = vmul.f32 1.0, %v277
    %v279 = vtanh.pop %v272
    %v280 = vmul.f32 %v278, %v186
    %282 = vrot.lane.b32.xlu0 %v279, 64
    %v283 = vpop.permute.xlu0 %282
    %v285 = vmul.f32 %v278, %v283
    %287 = vrot.lane.b32.xlu0 %v285, 32
    %v288 = vpop.permute.xlu0 %287
    %v290 = vadd.f32 %v280, %v288
    %v291 = vtanh.pop %v290
    %293 = vrot.lane.b32.xlu0 %v291, 64
    %v294 = vpop.permute.xlu0 %293
    %v296 = vmul.f32 %v278, %v294
    %s297 = sadd.s32 %s54, 6
    %v298 = vstv %s297
    %vm299 = vcmp.gt.s32.totalorder %v64, %v298
    %v300 = vsel %vm299, 1, 0
    %301 = vset.pattern.permute.xlu0 0
    %302 = vperm.xlu0 %301, %v300
    %v303 = vpop.permute.xlu0 %302
    %vm304 = vcmp.eq.s32.totalorder %v303, 1
    %v305 = vsel %vm304, %v296, %v185
    %v306 = vsel %vm304, %v290, %v186
    %v307 = vsel %vm304, %v296, 0.0
    %309 = vrot.lane.b32.xlu0 %v307, 32
    %v310 = vpop.permute.xlu0 %309
    %s312 = scalar_lea.vmem %s50, 12
    %313 = vst.msk [vmem:[%s312] sm:$0x3] %vm193, %v310
    %s314 = scalar_lea.vmem %s42, 10
    %v315 = vld [vmem:[%s314] sm:$0x3]
    %317 = vrot.lane.b32.xlu0 %v305, 32
    %v318 = vpop.permute.xlu0 %317
    %v319 = vsel %vm71, %v318, 0
    %321 = vmatprep.subr.mxu0 0.0
    %322 = vmatpush1.msra.mxu0 %v65
    %323 = vmatprep.subr.mxu0 0.0
    %324 = vmatpush1.msra.mxu0 %v66
    %325 = vmatprep.subr.mxu0 0.0
    %326 = vmatpush1.msra.mxu0 %v67
    %327 = vmatprep.subr.mxu0 0.0
    %328 = vmatpush1.msra.mxu0 %v68
    %329 = vmatprep.subr.mxu0 0.0
    %330 = vmatpush1.msra.mxu0 0.0
    %331 = vmatprep.subr.mxu0 0.0
    %332 = vmatpush1.msra.mxu0 0.0
    %333 = vmatprep.subr.mxu0 0.0
    %334 = vmatpush1.msra.mxu0 0.0
    %335 = vmatprep.subr.mxu0 0.0
    %336 = vmatpush1.msra.mxu0 0.0
    %337 = vmatprep.subr.mxu0 0.0
    %338 = vmatpush1.msra.mxu0 0.0
    %339 = vmatprep.subr.mxu0 0.0
    %340 = vmatpush1.msra.mxu0 0.0
    %341 = vmatprep.subr.mxu0 0.0
    %342 = vmatpush1.msra.mxu0 0.0
    %343 = vmatprep.subr.mxu0 0.0
    %344 = vmatpush1.msra.mxu0 0.0
    %345 = vmatprep.subr.mxu0 0.0
    %346 = vmatpush1.msra.mxu0 0.0
    %347 = vmatprep.subr.mxu0 0.0
    %348 = vmatpush1.msra.mxu0 0.0
    %349 = vmatprep.subr.mxu0 0.0
    %350 = vmatpush1.msra.mxu0 0.0
    %351 = vmatprep.subr.mxu0 0.0
    %352 = vmatpush1.msra.mxu0 0.0
    %353 = vmatprep.subr.mxu0 0.0
    %354 = vmatpush1.msra.mxu0 0.0
    %355 = vmatprep.subr.mxu0 0.0
    %356 = vmatpush1.msra.mxu0 0.0
    %357 = vmatprep.subr.mxu0 0.0
    %358 = vmatpush1.msra.mxu0 0.0
    %359 = vmatprep.subr.mxu0 0.0
    %360 = vmatpush1.msra.mxu0 0.0
    %361 = vmatprep.subr.mxu0 0.0
    %362 = vmatpush1.msra.mxu0 0.0
    %363 = vmatprep.subr.mxu0 0.0
    %364 = vmatpush1.msra.mxu0 0.0
    %365 = vmatprep.subr.mxu0 0.0
    %366 = vmatpush1.msra.mxu0 0.0
    %367 = vmatprep.subr.mxu0 0.0
    %368 = vmatpush1.msra.mxu0 0.0
    %369 = vmatprep.subr.mxu0 0.0
    %370 = vmatpush1.msra.mxu0 0.0
    %371 = vmatprep.subr.mxu0 0.0
    %372 = vmatpush1.msra.mxu0 0.0
    %373 = vmatprep.subr.mxu0 0.0
    %374 = vmatpush1.msra.mxu0 0.0
    %375 = vmatprep.subr.mxu0 0.0
    %376 = vmatpush1.msra.mxu0 0.0
    %377 = vmatprep.subr.mxu0 0.0
    %378 = vmatpush1.msra.mxu0 0.0
    %379 = vmatprep.subr.mxu0 0.0
    %380 = vmatpush1.msra.mxu0 0.0
    %381 = vmatprep.subr.mxu0 0.0
    %382 = vmatpush1.msra.mxu0 0.0
    %383 = vmatprep.subr.mxu0 0.0
    %384 = vmatpush1.msra.mxu0 0.0
    %385 = vmatprep.mubr.f32.mxu0 0.0
    %386 = vmatmul.mubr.f32.gmra.mrb[0].mxu0 %v319
    %v387 = vpop.f32.mrb[0].mxu0
    %v388 = vadd.f32 0.0, %v387
    %v389 = vpop.f32.mrb[0].mxu0
    %390 = vdwg.mxu0
    %v391 = vadd.f32 %v315, %v388
    %v392 = vxor.u32 %v391, 2147483648
    %v393 = vmul.f32 %v392, 1.442695
    %v394 = vpow.pop %v393
    %v395 = vadd.f32 %v394, 1.0
    %v396 = vrcp.pop %v395
    %v397 = vmul.f32 1.0, %v396
    %v398 = vtanh.pop %v391
    %v399 = vmul.f32 %v397, %v306
    %401 = vrot.lane.b32.xlu0 %v398, 64
    %v402 = vpop.permute.xlu0 %401
    %v404 = vmul.f32 %v397, %v402
    %406 = vrot.lane.b32.xlu0 %v404, 32
    %v407 = vpop.permute.xlu0 %406
    %v409 = vadd.f32 %v399, %v407
    %v410 = vtanh.pop %v409
    %412 = vrot.lane.b32.xlu0 %v410, 64
    %v413 = vpop.permute.xlu0 %412
    %v415 = vmul.f32 %v397, %v413
    %s416 = sadd.s32 %s54, 5
    %v417 = vstv %s416
    %vm418 = vcmp.gt.s32.totalorder %v64, %v417
    %v419 = vsel %vm418, 1, 0
    %420 = vset.pattern.permute.xlu0 0
    %421 = vperm.xlu0 %420, %v419
    %v422 = vpop.permute.xlu0 %421
    %vm423 = vcmp.eq.s32.totalorder %v422, 1
    %v424 = vsel %vm423, %v415, %v305
    %v425 = vsel %vm423, %v409, %v306
    %v426 = vsel %vm423, %v415, 0.0
    %428 = vrot.lane.b32.xlu0 %v426, 32
    %v429 = vpop.permute.xlu0 %428
    %s431 = scalar_lea.vmem %s50, 10
    %432 = vst.msk [vmem:[%s431] sm:$0x3] %vm193, %v429
    %s433 = scalar_lea.vmem %s42, 8
    %v434 = vld [vmem:[%s433] sm:$0x3]
    %436 = vrot.lane.b32.xlu0 %v424, 32
    %v437 = vpop.permute.xlu0 %436
    %v438 = vsel %vm71, %v437, 0
    %440 = vmatprep.subr.mxu0 0.0
    %441 = vmatpush1.msra.mxu0 %v65
    %442 = vmatprep.subr.mxu0 0.0
    %443 = vmatpush1.msra.mxu0 %v66
    %444 = vmatprep.subr.mxu0 0.0
    %445 = vmatpush1.msra.mxu0 %v67
    %446 = vmatprep.subr.mxu0 0.0
    %447 = vmatpush1.msra.mxu0 %v68
    %448 = vmatprep.subr.mxu0 0.0
    %449 = vmatpush1.msra.mxu0 0.0
    %450 = vmatprep.subr.mxu0 0.0
    %451 = vmatpush1.msra.mxu0 0.0
    %452 = vmatprep.subr.mxu0 0.0
    %453 = vmatpush1.msra.mxu0 0.0
    %454 = vmatprep.subr.mxu0 0.0
    %455 = vmatpush1.msra.mxu0 0.0
    %456 = vmatprep.subr.mxu0 0.0
    %457 = vmatpush1.msra.mxu0 0.0
    %458 = vmatprep.subr.mxu0 0.0
    %459 = vmatpush1.msra.mxu0 0.0
    %460 = vmatprep.subr.mxu0 0.0
    %461 = vmatpush1.msra.mxu0 0.0
    %462 = vmatprep.subr.mxu0 0.0
    %463 = vmatpush1.msra.mxu0 0.0
    %464 = vmatprep.subr.mxu0 0.0
    %465 = vmatpush1.msra.mxu0 0.0
    %466 = vmatprep.subr.mxu0 0.0
    %467 = vmatpush1.msra.mxu0 0.0
    %468 = vmatprep.subr.mxu0 0.0
    %469 = vmatpush1.msra.mxu0 0.0
    %470 = vmatprep.subr.mxu0 0.0
    %471 = vmatpush1.msra.mxu0 0.0
    %472 = vmatprep.subr.mxu0 0.0
    %473 = vmatpush1.msra.mxu0 0.0
    %474 = vmatprep.subr.mxu0 0.0
    %475 = vmatpush1.msra.mxu0 0.0
    %476 = vmatprep.subr.mxu0 0.0
    %477 = vmatpush1.msra.mxu0 0.0
    %478 = vmatprep.subr.mxu0 0.0
    %479 = vmatpush1.msra.mxu0 0.0
    %480 = vmatprep.subr.mxu0 0.0
    %481 = vmatpush1.msra.mxu0 0.0
    %482 = vmatprep.subr.mxu0 0.0
    %483 = vmatpush1.msra.mxu0 0.0
    %484 = vmatprep.subr.mxu0 0.0
    %485 = vmatpush1.msra.mxu0 0.0
    %486 = vmatprep.subr.mxu0 0.0
    %487 = vmatpush1.msra.mxu0 0.0
    %488 = vmatprep.subr.mxu0 0.0
    %489 = vmatpush1.msra.mxu0 0.0
    %490 = vmatprep.subr.mxu0 0.0
    %491 = vmatpush1.msra.mxu0 0.0
    %492 = vmatprep.subr.mxu0 0.0
    %493 = vmatpush1.msra.mxu0 0.0
    %494 = vmatprep.subr.mxu0 0.0
    %495 = vmatpush1.msra.mxu0 0.0
    %496 = vmatprep.subr.mxu0 0.0
    %497 = vmatpush1.msra.mxu0 0.0
    %498 = vmatprep.subr.mxu0 0.0
    %499 = vmatpush1.msra.mxu0 0.0
    %500 = vmatprep.subr.mxu0 0.0
    %501 = vmatpush1.msra.mxu0 0.0
    %502 = vmatprep.subr.mxu0 0.0
    %503 = vmatpush1.msra.mxu0 0.0
    %504 = vmatprep.mubr.f32.mxu0 0.0
    %505 = vmatmul.mubr.f32.gmra.mrb[0].mxu0 %v438
    %v506 = vpop.f32.mrb[0].mxu0
    %v507 = vadd.f32 0.0, %v506
    %v508 = vpop.f32.mrb[0].mxu0
    %509 = vdwg.mxu0
    %v510 = vadd.f32 %v434, %v507
    %v511 = vxor.u32 %v510, 2147483648
    %v512 = vmul.f32 %v511, 1.442695
    %v513 = vpow.pop %v512
    %v514 = vadd.f32 %v513, 1.0
    %v515 = vrcp.pop %v514
    %v516 = vmul.f32 1.0, %v515
    %v517 = vtanh.pop %v510
    %v518 = vmul.f32 %v516, %v425
    %520 = vrot.lane.b32.xlu0 %v517, 64
    %v521 = vpop.permute.xlu0 %520
    %v523 = vmul.f32 %v516, %v521
    %525 = vrot.lane.b32.xlu0 %v523, 32
    %v526 = vpop.permute.xlu0 %525
    %v528 = vadd.f32 %v518, %v526
    %v529 = vtanh.pop %v528
    %531 = vrot.lane.b32.xlu0 %v529, 64
    %v532 = vpop.permute.xlu0 %531
    %v534 = vmul.f32 %v516, %v532
    %s535 = sadd.s32 %s54, 4
    %v536 = vstv %s535
    %vm537 = vcmp.gt.s32.totalorder %v64, %v536
    %v538 = vsel %vm537, 1, 0
    %539 = vset.pattern.permute.xlu0 0
    %540 = vperm.xlu0 %539, %v538
    %v541 = vpop.permute.xlu0 %540
    %vm542 = vcmp.eq.s32.totalorder %v541, 1
    %v543 = vsel %vm542, %v534, %v424
    %v544 = vsel %vm542, %v528, %v425
    %v545 = vsel %vm542, %v534, 0.0
    %547 = vrot.lane.b32.xlu0 %v545, 32
    %v548 = vpop.permute.xlu0 %547
    %s550 = scalar_lea.vmem %s50, 8
    %551 = vst.msk [vmem:[%s550] sm:$0x3] %vm193, %v548
    %s552 = scalar_lea.vmem %s42, 6
    %v553 = vld [vmem:[%s552] sm:$0x3]
    %555 = vrot.lane.b32.xlu0 %v543, 32
    %v556 = vpop.permute.xlu0 %555
    %v557 = vsel %vm71, %v556, 0
    %559 = vmatprep.subr.mxu0 0.0
    %560 = vmatpush1.msra.mxu0 %v65
    %561 = vmatprep.subr.mxu0 0.0
    %562 = vmatpush1.msra.mxu0 %v66
    %563 = vmatprep.subr.mxu0 0.0
    %564 = vmatpush1.msra.mxu0 %v67
    %565 = vmatprep.subr.mxu0 0.0
    %566 = vmatpush1.msra.mxu0 %v68
    %567 = vmatprep.subr.mxu0 0.0
    %568 = vmatpush1.msra.mxu0 0.0
    %569 = vmatprep.subr.mxu0 0.0
    %570 = vmatpush1.msra.mxu0 0.0
    %571 = vmatprep.subr.mxu0 0.0
    %572 = vmatpush1.msra.mxu0 0.0
    %573 = vmatprep.subr.mxu0 0.0
    %574 = vmatpush1.msra.mxu0 0.0
    %575 = vmatprep.subr.mxu0 0.0
    %576 = vmatpush1.msra.mxu0 0.0
    %577 = vmatprep.subr.mxu0 0.0
    %578 = vmatpush1.msra.mxu0 0.0
    %579 = vmatprep.subr.mxu0 0.0
    %580 = vmatpush1.msra.mxu0 0.0
    %581 = vmatprep.subr.mxu0 0.0
    %582 = vmatpush1.msra.mxu0 0.0
    %583 = vmatprep.subr.mxu0 0.0
    %584 = vmatpush1.msra.mxu0 0.0
    %585 = vmatprep.subr.mxu0 0.0
    %586 = vmatpush1.msra.mxu0 0.0
    %587 = vmatprep.subr.mxu0 0.0
    %588 = vmatpush1.msra.mxu0 0.0
    %589 = vmatprep.subr.mxu0 0.0
    %590 = vmatpush1.msra.mxu0 0.0
    %591 = vmatprep.subr.mxu0 0.0
    %592 = vmatpush1.msra.mxu0 0.0
    %593 = vmatprep.subr.mxu0 0.0
    %594 = vmatpush1.msra.mxu0 0.0
    %595 = vmatprep.subr.mxu0 0.0
    %596 = vmatpush1.msra.mxu0 0.0
    %597 = vmatprep.subr.mxu0 0.0
    %598 = vmatpush1.msra.mxu0 0.0
    %599 = vmatprep.subr.mxu0 0.0
    %600 = vmatpush1.msra.mxu0 0.0
    %601 = vmatprep.subr.mxu0 0.0
    %602 = vmatpush1.msra.mxu0 0.0
    %603 = vmatprep.subr.mxu0 0.0
    %604 = vmatpush1.msra.mxu0 0.0
    %605 = vmatprep.subr.mxu0 0.0
    %606 = vmatpush1.msra.mxu0 0.0
    %607 = vmatprep.subr.mxu0 0.0
    %608 = vmatpush1.msra.mxu0 0.0
    %609 = vmatprep.subr.mxu0 0.0
    %610 = vmatpush1.msra.mxu0 0.0
    %611 = vmatprep.subr.mxu0 0.0
    %612 = vmatpush1.msra.mxu0 0.0
    %613 = vmatprep.subr.mxu0 0.0
    %614 = vmatpush1.msra.mxu0 0.0
    %615 = vmatprep.subr.mxu0 0.0
    %616 = vmatpush1.msra.mxu0 0.0
    %617 = vmatprep.subr.mxu0 0.0
    %618 = vmatpush1.msra.mxu0 0.0
    %619 = vmatprep.subr.mxu0 0.0
    %620 = vmatpush1.msra.mxu0 0.0
    %621 = vmatprep.subr.mxu0 0.0
    %622 = vmatpush1.msra.mxu0 0.0
    %623 = vmatprep.mubr.f32.mxu0 0.0
    %624 = vmatmul.mubr.f32.gmra.mrb[0].mxu0 %v557
    %v625 = vpop.f32.mrb[0].mxu0
    %v626 = vadd.f32 0.0, %v625
    %v627 = vpop.f32.mrb[0].mxu0
    %628 = vdwg.mxu0
    %v629 = vadd.f32 %v553, %v626
    %v630 = vxor.u32 %v629, 2147483648
    %v631 = vmul.f32 %v630, 1.442695
    %v632 = vpow.pop %v631
    %v633 = vadd.f32 %v632, 1.0
    %v634 = vrcp.pop %v633
    %v635 = vmul.f32 1.0, %v634
    %v636 = vtanh.pop %v629
    %v637 = vmul.f32 %v635, %v544
    %639 = vrot.lane.b32.xlu0 %v636, 64
    %v640 = vpop.permute.xlu0 %639
    %v642 = vmul.f32 %v635, %v640
    %644 = vrot.lane.b32.xlu0 %v642, 32
    %v645 = vpop.permute.xlu0 %644
    %v647 = vadd.f32 %v637, %v645
    %v648 = vtanh.pop %v647
    %650 = vrot.lane.b32.xlu0 %v648, 64
    %v651 = vpop.permute.xlu0 %650
    %v653 = vmul.f32 %v635, %v651
    %s654 = sadd.s32 %s54, 3
    %v655 = vstv %s654
    %vm656 = vcmp.gt.s32.totalorder %v64, %v655
    %v657 = vsel %vm656, 1, 0
    %658 = vset.pattern.permute.xlu0 0
    %659 = vperm.xlu0 %658, %v657
    %v660 = vpop.permute.xlu0 %659
    %vm661 = vcmp.eq.s32.totalorder %v660, 1
    %v662 = vsel %vm661, %v653, %v543
    %v663 = vsel %vm661, %v647, %v544
    %v664 = vsel %vm661, %v653, 0.0
    %666 = vrot.lane.b32.xlu0 %v664, 32
    %v667 = vpop.permute.xlu0 %666
    %s669 = scalar_lea.vmem %s50, 6
    %670 = vst.msk [vmem:[%s669] sm:$0x3] %vm193, %v667
    %s671 = scalar_lea.vmem %s42, 4
    %v672 = vld [vmem:[%s671] sm:$0x3]
    %674 = vrot.lane.b32.xlu0 %v662, 32
    %v675 = vpop.permute.xlu0 %674
    %v676 = vsel %vm71, %v675, 0
    %678 = vmatprep.subr.mxu0 0.0
    %679 = vmatpush1.msra.mxu0 %v65
    %680 = vmatprep.subr.mxu0 0.0
    %681 = vmatpush1.msra.mxu0 %v66
    %682 = vmatprep.subr.mxu0 0.0
    %683 = vmatpush1.msra.mxu0 %v67
    %684 = vmatprep.subr.mxu0 0.0
    %685 = vmatpush1.msra.mxu0 %v68
    %686 = vmatprep.subr.mxu0 0.0
    %687 = vmatpush1.msra.mxu0 0.0
    %688 = vmatprep.subr.mxu0 0.0
    %689 = vmatpush1.msra.mxu0 0.0
    %690 = vmatprep.subr.mxu0 0.0
    %691 = vmatpush1.msra.mxu0 0.0
    %692 = vmatprep.subr.mxu0 0.0
    %693 = vmatpush1.msra.mxu0 0.0
    %694 = vmatprep.subr.mxu0 0.0
    %695 = vmatpush1.msra.mxu0 0.0
    %696 = vmatprep.subr.mxu0 0.0
    %697 = vmatpush1.msra.mxu0 0.0
    %698 = vmatprep.subr.mxu0 0.0
    %699 = vmatpush1.msra.mxu0 0.0
    %700 = vmatprep.subr.mxu0 0.0
    %701 = vmatpush1.msra.mxu0 0.0
    %702 = vmatprep.subr.mxu0 0.0
    %703 = vmatpush1.msra.mxu0 0.0
    %704 = vmatprep.subr.mxu0 0.0
    %705 = vmatpush1.msra.mxu0 0.0
    %706 = vmatprep.subr.mxu0 0.0
    %707 = vmatpush1.msra.mxu0 0.0
    %708 = vmatprep.subr.mxu0 0.0
    %709 = vmatpush1.msra.mxu0 0.0
    %710 = vmatprep.subr.mxu0 0.0
    %711 = vmatpush1.msra.mxu0 0.0
    %712 = vmatprep.subr.mxu0 0.0
    %713 = vmatpush1.msra.mxu0 0.0
    %714 = vmatprep.subr.mxu0 0.0
    %715 = vmatpush1.msra.mxu0 0.0
    %716 = vmatprep.subr.mxu0 0.0
    %717 = vmatpush1.msra.mxu0 0.0
    %718 = vmatprep.subr.mxu0 0.0
    %719 = vmatpush1.msra.mxu0 0.0
    %720 = vmatprep.subr.mxu0 0.0
    %721 = vmatpush1.msra.mxu0 0.0
    %722 = vmatprep.subr.mxu0 0.0
    %723 = vmatpush1.msra.mxu0 0.0
    %724 = vmatprep.subr.mxu0 0.0
    %725 = vmatpush1.msra.mxu0 0.0
    %726 = vmatprep.subr.mxu0 0.0
    %727 = vmatpush1.msra.mxu0 0.0
    %728 = vmatprep.subr.mxu0 0.0
    %729 = vmatpush1.msra.mxu0 0.0
    %730 = vmatprep.subr.mxu0 0.0
    %731 = vmatpush1.msra.mxu0 0.0
    %732 = vmatprep.subr.mxu0 0.0
    %733 = vmatpush1.msra.mxu0 0.0
    %734 = vmatprep.subr.mxu0 0.0
    %735 = vmatpush1.msra.mxu0 0.0
    %736 = vmatprep.subr.mxu0 0.0
    %737 = vmatpush1.msra.mxu0 0.0
    %738 = vmatprep.subr.mxu0 0.0
    %739 = vmatpush1.msra.mxu0 0.0
    %740 = vmatprep.subr.mxu0 0.0
    %741 = vmatpush1.msra.mxu0 0.0
    %742 = vmatprep.mubr.f32.mxu0 0.0
    %743 = vmatmul.mubr.f32.gmra.mrb[0].mxu0 %v676
    %v744 = vpop.f32.mrb[0].mxu0
    %v745 = vadd.f32 0.0, %v744
    %v746 = vpop.f32.mrb[0].mxu0
    %747 = vdwg.mxu0
    %v748 = vadd.f32 %v672, %v745
    %v749 = vxor.u32 %v748, 2147483648
    %v750 = vmul.f32 %v749, 1.442695
    %v751 = vpow.pop %v750
    %v752 = vadd.f32 %v751, 1.0
    %v753 = vrcp.pop %v752
    %v754 = vmul.f32 1.0, %v753
    %v755 = vtanh.pop %v748
    %v756 = vmul.f32 %v754, %v663
    %758 = vrot.lane.b32.xlu0 %v755, 64
    %v759 = vpop.permute.xlu0 %758
    %v761 = vmul.f32 %v754, %v759
    %763 = vrot.lane.b32.xlu0 %v761, 32
    %v764 = vpop.permute.xlu0 %763
    %v766 = vadd.f32 %v756, %v764
    %v767 = vtanh.pop %v766
    %769 = vrot.lane.b32.xlu0 %v767, 64
    %v770 = vpop.permute.xlu0 %769
    %v772 = vmul.f32 %v754, %v770
    %s773 = sadd.s32 %s54, 2
    %v774 = vstv %s773
    %vm775 = vcmp.gt.s32.totalorder %v64, %v774
    %v776 = vsel %vm775, 1, 0
    %777 = vset.pattern.permute.xlu0 0
    %778 = vperm.xlu0 %777, %v776
    %v779 = vpop.permute.xlu0 %778
    %vm780 = vcmp.eq.s32.totalorder %v779, 1
    %v781 = vsel %vm780, %v772, %v662
    %v782 = vsel %vm780, %v766, %v663
    %v783 = vsel %vm780, %v772, 0.0
    %785 = vrot.lane.b32.xlu0 %v783, 32
    %v786 = vpop.permute.xlu0 %785
    %s788 = scalar_lea.vmem %s50, 4
    %789 = vst.msk [vmem:[%s788] sm:$0x3] %vm193, %v786
    %s790 = scalar_lea.vmem %s42, 2
    %v791 = vld [vmem:[%s790] sm:$0x3]
    %793 = vrot.lane.b32.xlu0 %v781, 32
    %v794 = vpop.permute.xlu0 %793
    %v795 = vsel %vm71, %v794, 0
    %797 = vmatprep.subr.mxu0 0.0
    %798 = vmatpush1.msra.mxu0 %v65
    %799 = vmatprep.subr.mxu0 0.0
    %800 = vmatpush1.msra.mxu0 %v66
    %801 = vmatprep.subr.mxu0 0.0
    %802 = vmatpush1.msra.mxu0 %v67
    %803 = vmatprep.subr.mxu0 0.0
    %804 = vmatpush1.msra.mxu0 %v68
    %805 = vmatprep.subr.mxu0 0.0
    %806 = vmatpush1.msra.mxu0 0.0
    %807 = vmatprep.subr.mxu0 0.0
    %808 = vmatpush1.msra.mxu0 0.0
    %809 = vmatprep.subr.mxu0 0.0
    %810 = vmatpush1.msra.mxu0 0.0
    %811 = vmatprep.subr.mxu0 0.0
    %812 = vmatpush1.msra.mxu0 0.0
    %813 = vmatprep.subr.mxu0 0.0
    %814 = vmatpush1.msra.mxu0 0.0
    %815 = vmatprep.subr.mxu0 0.0
    %816 = vmatpush1.msra.mxu0 0.0
    %817 = vmatprep.subr.mxu0 0.0
    %818 = vmatpush1.msra.mxu0 0.0
    %819 = vmatprep.subr.mxu0 0.0
    %820 = vmatpush1.msra.mxu0 0.0
    %821 = vmatprep.subr.mxu0 0.0
    %822 = vmatpush1.msra.mxu0 0.0
    %823 = vmatprep.subr.mxu0 0.0
    %824 = vmatpush1.msra.mxu0 0.0
    %825 = vmatprep.subr.mxu0 0.0
    %826 = vmatpush1.msra.mxu0 0.0
    %827 = vmatprep.subr.mxu0 0.0
    %828 = vmatpush1.msra.mxu0 0.0
    %829 = vmatprep.subr.mxu0 0.0
    %830 = vmatpush1.msra.mxu0 0.0
    %831 = vmatprep.subr.mxu0 0.0
    %832 = vmatpush1.msra.mxu0 0.0
    %833 = vmatprep.subr.mxu0 0.0
    %834 = vmatpush1.msra.mxu0 0.0
    %835 = vmatprep.subr.mxu0 0.0
    %836 = vmatpush1.msra.mxu0 0.0
    %837 = vmatprep.subr.mxu0 0.0
    %838 = vmatpush1.msra.mxu0 0.0
    %839 = vmatprep.subr.mxu0 0.0
    %840 = vmatpush1.msra.mxu0 0.0
    %841 = vmatprep.subr.mxu0 0.0
    %842 = vmatpush1.msra.mxu0 0.0
    %843 = vmatprep.subr.mxu0 0.0
    %844 = vmatpush1.msra.mxu0 0.0
    %845 = vmatprep.subr.mxu0 0.0
    %846 = vmatpush1.msra.mxu0 0.0
    %847 = vmatprep.subr.mxu0 0.0
    %848 = vmatpush1.msra.mxu0 0.0
    %849 = vmatprep.subr.mxu0 0.0
    %850 = vmatpush1.msra.mxu0 0.0
    %851 = vmatprep.subr.mxu0 0.0
    %852 = vmatpush1.msra.mxu0 0.0
    %853 = vmatprep.subr.mxu0 0.0
    %854 = vmatpush1.msra.mxu0 0.0
    %855 = vmatprep.subr.mxu0 0.0
    %856 = vmatpush1.msra.mxu0 0.0
    %857 = vmatprep.subr.mxu0 0.0
    %858 = vmatpush1.msra.mxu0 0.0
    %859 = vmatprep.subr.mxu0 0.0
    %860 = vmatpush1.msra.mxu0 0.0
    %861 = vmatprep.mubr.f32.mxu0 0.0
    %862 = vmatmul.mubr.f32.gmra.mrb[0].mxu0 %v795
    %v863 = vpop.f32.mrb[0].mxu0
    %v864 = vadd.f32 0.0, %v863
    %v865 = vpop.f32.mrb[0].mxu0
    %866 = vdwg.mxu0
    %v867 = vadd.f32 %v791, %v864
    %v868 = vxor.u32 %v867, 2147483648
    %v869 = vmul.f32 %v868, 1.442695
    %v870 = vpow.pop %v869
    %v871 = vadd.f32 %v870, 1.0
    %v872 = vrcp.pop %v871
    %v873 = vmul.f32 1.0, %v872
    %v874 = vtanh.pop %v867
    %v875 = vmul.f32 %v873, %v782
    %877 = vrot.lane.b32.xlu0 %v874, 64
    %v878 = vpop.permute.xlu0 %877
    %v880 = vmul.f32 %v873, %v878
    %882 = vrot.lane.b32.xlu0 %v880, 32
    %v883 = vpop.permute.xlu0 %882
    %v885 = vadd.f32 %v875, %v883
    %v886 = vtanh.pop %v885
    %888 = vrot.lane.b32.xlu0 %v886, 64
    %v889 = vpop.permute.xlu0 %888
    %v891 = vmul.f32 %v873, %v889
    %s892 = sadd.s32 %s54, 1
    %v893 = vstv %s892
    %vm894 = vcmp.gt.s32.totalorder %v64, %v893
    %v895 = vsel %vm894, 1, 0
    %896 = vset.pattern.permute.xlu0 0
    %897 = vperm.xlu0 %896, %v895
    %v898 = vpop.permute.xlu0 %897
    %vm899 = vcmp.eq.s32.totalorder %v898, 1
    %v900 = vsel %vm899, %v891, %v781
    %v901 = vsel %vm899, %v885, %v782
    %v902 = vsel %vm899, %v891, 0.0
    %904 = vrot.lane.b32.xlu0 %v902, 32
    %v905 = vpop.permute.xlu0 %904
    %s907 = scalar_lea.vmem %s50, 2
    %908 = vst.msk [vmem:[%s907] sm:$0x3] %vm193, %v905
    %v909 = vld [vmem:[%s42] sm:$0x3]
    %911 = vrot.lane.b32.xlu0 %v900, 32
    %v912 = vpop.permute.xlu0 %911
    %v913 = vsel %vm71, %v912, 0
    %915 = vmatprep.subr.mxu0 0.0
    %916 = vmatpush1.msra.mxu0 %v65
    %917 = vmatprep.subr.mxu0 0.0
    %918 = vmatpush1.msra.mxu0 %v66
    %919 = vmatprep.subr.mxu0 0.0
    %920 = vmatpush1.msra.mxu0 %v67
    %921 = vmatprep.subr.mxu0 0.0
    %922 = vmatpush1.msra.mxu0 %v68
    %923 = vmatprep.subr.mxu0 0.0
    %924 = vmatpush1.msra.mxu0 0.0
    %925 = vmatprep.subr.mxu0 0.0
    %926 = vmatpush1.msra.mxu0 0.0
    %927 = vmatprep.subr.mxu0 0.0
    %928 = vmatpush1.msra.mxu0 0.0
    %929 = vmatprep.subr.mxu0 0.0
    %930 = vmatpush1.msra.mxu0 0.0
    %931 = vmatprep.subr.mxu0 0.0
    %932 = vmatpush1.msra.mxu0 0.0
    %933 = vmatprep.subr.mxu0 0.0
    %934 = vmatpush1.msra.mxu0 0.0
    %935 = vmatprep.subr.mxu0 0.0
    %936 = vmatpush1.msra.mxu0 0.0
    %937 = vmatprep.subr.mxu0 0.0
    %938 = vmatpush1.msra.mxu0 0.0
    %939 = vmatprep.subr.mxu0 0.0
    %940 = vmatpush1.msra.mxu0 0.0
    %941 = vmatprep.subr.mxu0 0.0
    %942 = vmatpush1.msra.mxu0 0.0
    %943 = vmatprep.subr.mxu0 0.0
    %944 = vmatpush1.msra.mxu0 0.0
    %945 = vmatprep.subr.mxu0 0.0
    %946 = vmatpush1.msra.mxu0 0.0
    %947 = vmatprep.subr.mxu0 0.0
    %948 = vmatpush1.msra.mxu0 0.0
    %949 = vmatprep.subr.mxu0 0.0
    %950 = vmatpush1.msra.mxu0 0.0
    %951 = vmatprep.subr.mxu0 0.0
    %952 = vmatpush1.msra.mxu0 0.0
    %953 = vmatprep.subr.mxu0 0.0
    %954 = vmatpush1.msra.mxu0 0.0
    %955 = vmatprep.subr.mxu0 0.0
    %956 = vmatpush1.msra.mxu0 0.0
    %957 = vmatprep.subr.mxu0 0.0
    %958 = vmatpush1.msra.mxu0 0.0
    %959 = vmatprep.subr.mxu0 0.0
    %960 = vmatpush1.msra.mxu0 0.0
    %961 = vmatprep.subr.mxu0 0.0
    %962 = vmatpush1.msra.mxu0 0.0
    %963 = vmatprep.subr.mxu0 0.0
    %964 = vmatpush1.msra.mxu0 0.0
    %965 = vmatprep.subr.mxu0 0.0
    %966 = vmatpush1.msra.mxu0 0.0
    %967 = vmatprep.subr.mxu0 0.0
    %968 = vmatpush1.msra.mxu0 0.0
    %969 = vmatprep.subr.mxu0 0.0
    %970 = vmatpush1.msra.mxu0 0.0
    %971 = vmatprep.subr.mxu0 0.0
    %972 = vmatpush1.msra.mxu0 0.0
    %973 = vmatprep.subr.mxu0 0.0
    %974 = vmatpush1.msra.mxu0 0.0
    %975 = vmatprep.subr.mxu0 0.0
    %976 = vmatpush1.msra.mxu0 0.0
    %977 = vmatprep.subr.mxu0 0.0
    %978 = vmatpush1.msra.mxu0 0.0
    %979 = vmatprep.mubr.f32.mxu0 0.0
    %980 = vmatmul.mubr.f32.gmra.mrb[0].mxu0 %v913
    %v981 = vpop.f32.mrb[0].mxu0
    %v982 = vadd.f32 0.0, %v981
    %v983 = vpop.f32.mrb[0].mxu0
    %984 = vdwg.mxu0
    %v985 = vadd.f32 %v909, %v982
    %v986 = vxor.u32 %v985, 2147483648
    %v987 = vmul.f32 %v986, 1.442695
    %v988 = vpow.pop %v987
    %v989 = vadd.f32 %v988, 1.0
    %v990 = vrcp.pop %v989
    %v991 = vmul.f32 1.0, %v990
    %v992 = vtanh.pop %v985
    %v993 = vmul.f32 %v991, %v901
    %995 = vrot.lane.b32.xlu0 %v992, 64
    %v996 = vpop.permute.xlu0 %995
    %v998 = vmul.f32 %v991, %v996
    %1000 = vrot.lane.b32.xlu0 %v998, 32
    %v1001 = vpop.permute.xlu0 %1000
    %v1003 = vadd.f32 %v993, %v1001
    %v1004 = vtanh.pop %v1003
    %1006 = vrot.lane.b32.xlu0 %v1004, 64
    %v1007 = vpop.permute.xlu0 %1006
    %v1009 = vmul.f32 %v991, %v1007
    %v1010 = vstv %s54
    %vm1011 = vcmp.gt.s32.totalorder %v64, %v1010
    %v1012 = vsel %vm1011, 1, 0
    %1013 = vset.pattern.permute.xlu0 0
    %1014 = vperm.xlu0 %1013, %v1012
    %v1015 = vpop.permute.xlu0 %1014
    %vm1016 = vcmp.eq.s32.totalorder %v1015, 1
    %v1017 = vsel %vm1016, %v1009, %v900
    %v1018 = vsel %vm1016, %v1003, %v901
    %v1019 = vsel %vm1016, %v1009, 0.0
    %1021 = vrot.lane.b32.xlu0 %v1019, 32
    %v1022 = vpop.permute.xlu0 %1021
    %1024 = vst.msk [vmem:[%s50] sm:$0x3] %vm193, %v1022
    %1026 = vrot.lane.b32.xlu0 %v1017, 32
    %v1027 = vpop.permute.xlu0 %1026
    %1029 = vst.msk [vmem:[#allocation2] sm:$0x3] %vm193, %v1027
    %1031 = vrot.lane.b32.xlu0 %v1018, 96
    %v1032 = vpop.permute.xlu0 %1031
    %1034 = vst.msk [vmem:[#allocation3] sm:$0x3] %vm193, %v1032
    // Predicated region
    $region18: #{char_parser_forward.22} parent=1 // pred_check
      %p1035 = pneg %p55
    $region19: #{char_parser_forward.22} parent=1 // pred_check_branch
      %1037 = sbr.rel (%p1035) target = $region21
    $region20: #{char_parser_forward.22} parent=1 // pred_region
      %1038 = vst.msk [vmem:[#allocation4] sm:$0x3] %vm193, %v1027
    $region21: #{char_parser_forward.22} parent=1 // pred_fallthru
      _
    %s1039 = ssub.s32 0, 0
    %s1040 = smul.u32 8, %s1039
    %p1041 = scmp.lt.s32.totalorder %s1040, 7
    %s1042 = scalar_select %p1041, %s1040, 7
    %s1043 = smul.addr %s1042, 2
    %s1044 = scalar_lea.vmem %s3, %s1043
    // Predicated region
    $region22: #{char_parser_forward.22} parent=1 // pred_check
      _
    $region23: #{char_parser_forward.22} parent=1 // pred_check_branch
      %1046 = sbr.rel (0) target = $region25
    $region24: #{char_parser_forward.22} parent=1 // pred_region
      %s1047 = ssub.s32 0, 0
      %s1048 = smul.u32 8, %s1047
    $region25: #{char_parser_forward.22} parent=1 // pred_fallthru
      _
    // Predicated region
    $region26: #{char_parser_forward.22} parent=1 // pred_check
      _
    $region27: #{char_parser_forward.22} parent=1 // pred_check_branch
      %1050 = sbr.rel (0) target = $region29
    $region28: #{char_parser_forward.22} parent=1 // pred_region
      %s1052 = ssub.s32 32, 32
      %1053 = vsyncadd [#allocation5], %s1052
      %s1055 = sshll.u32 [#allocation4], 4
      %s1056 = int_to_ptr.vmem [resolvable:$true] %s1055
      %1058 = dma.vmem_to_hbm [thread:$0]  %s1056, 32, %s4, [#allocation5]
    $region29: #{char_parser_forward.22} parent=1 // pred_fallthru
      _
    // Predicated region
    $region30: #{char_parser_forward.22} parent=1 // pred_check
      _
    $region31: #{char_parser_forward.22} parent=1 // pred_check_branch
      %1060 = sbr.rel (0) target = $region33
    $region32: #{char_parser_forward.22} parent=1 // pred_region
      %s1061 = ssub.s32 0, 0
      %s1062 = smul.u32 8, %s1061
      %p1063 = scmp.lt.s32.totalorder %s1062, 7
      %s1064 = scalar_select %p1063, %s1062, 7
      %s1065 = smul.addr %s1064, 2
      %s1066 = scalar_lea.vmem %s3, %s1065
    $region33: #{char_parser_forward.22} parent=1 // pred_fallthru
      _
    // Predicated region
    $region34: #{char_parser_forward.22} parent=1 // pred_check
      _
    $region35: #{char_parser_forward.22} parent=1 // pred_check_branch
      %1068 = sbr.rel (0) target = $region37
    $region36: #{char_parser_forward.22} parent=1 // pred_region
      %1069 = dma.done [#allocation5], 32
    $region37: #{char_parser_forward.22} parent=1 // pred_fallthru
      _
    %1070 = vsyncpa [#allocation5], 1

// kernel: char_parser_forward.29
$region0: #{char_parser_forward.29}
  #allocation0 [shape = 'u32[]', space=smem, size = 0x4, offset = 0x4, fixed_abs, tag = 'smem constant byte address 0x4 - core index']
  #allocation1 [shape = 'u32[144,128]{1,0:T(1,128)}', space=vmem, size = 0x12000, scoped, tag = 'internal scratch']
  %s0 = inlined_call_operand.vmem [shape: f32[2,8,17], index: 0, kind: input, shape index: {}]
  %s1 = inlined_call_operand.vmem [shape: f32[17,68], index: 1, kind: input, shape index: {}]
  %s2 = inlined_call_operand.vmem [shape: f32[2,8,17], index: 2, kind: input, shape index: {}]
  %s3 = inlined_call_operand.vmem [shape: f32[2,4,8,8], index: 3, kind: output, shape index: {}]
  %s4 = sld [smem:[#allocation0]]
  $region22: #{char_parser_forward.29} parent=0
    _
  %s6 = ssub.s32 1, %s4
  %s7 = scalar_select 0, %s6, %s4
  // Predicated region
  $region2: #{char_parser_forward.29} parent=0 // pred_check
    _
  $region3: #{char_parser_forward.29} parent=0 // pred_check_branch
    %9 = sbr.rel (0) target = $region5
  $region4: #{char_parser_forward.29} parent=0 // pred_region
    _
  $region5: #{char_parser_forward.29} parent=0 // pred_fallthru
    _
  // Predicated region
  $region6: #{char_parser_forward.29} parent=0 // pred_check
    _
  $region7: #{char_parser_forward.29} parent=0 // pred_check_branch
    %11 = sbr.rel (0) target = $region9
  $region8: #{char_parser_forward.29} parent=0 // pred_region
    _
  $region9: #{char_parser_forward.29} parent=0 // pred_fallthru
    _
  // Predicated region
  $region10: #{char_parser_forward.29} parent=0 // pred_check
    _
  $region11: #{char_parser_forward.29} parent=0 // pred_check_branch
    %13 = sbr.rel (0) target = $region13
  $region12: #{char_parser_forward.29} parent=0 // pred_region
    _
  $region13: #{char_parser_forward.29} parent=0 // pred_fallthru
    _
  %v14 = vld [vmem:[%s0] sm:$0xff]
  %v15 = vld [vmem:[%s0 + $0x8] sm:$0xff]
  %v16 = vld [vmem:[%s1] sm:$0xff]
  %v17 = vld [vmem:[%s1 + $0x8] sm:$0xff]
  %v18 = vld [vmem:[%s1 + $0x10] sm:$0x1]
  %vm19 = vcmask 138240
  %v21 = vsel %vm19, %v14, 0
  %v24 = vsel %vm19, %v15, 0
  %vm26 = vcmask 1040384
  %v28 = vsel %vm26, %v18, 0
  %30 = vmatprep.subr.mxu0 0.0
  %31 = vmatpush1.msra.mxu0 %v16
  %32 = vmatprep.subr.mxu0 0.0
  %33 = vmatpush1.msra.mxu0 %v17
  %34 = vmatprep.subr.mxu0 0.0
  %35 = vmatpush1.msra.mxu0 %v28
  %36 = vmatprep.subr.mxu0 0.0
  %37 = vmatpush1.msra.mxu0 0.0
  %38 = vmatprep.subr.mxu0 0.0
  %39 = vmatpush1.msra.mxu0 0.0
  %40 = vmatprep.subr.mxu0 0.0
  %41 = vmatpush1.msra.mxu0 0.0
  %42 = vmatprep.subr.mxu0 0.0
  %43 = vmatpush1.msra.mxu0 0.0
  %44 = vmatprep.subr.mxu0 0.0
  %45 = vmatpush1.msra.mxu0 0.0
  %46 = vmatprep.subr.mxu0 0.0
  %47 = vmatpush1.msra.mxu0 0.0
  %48 = vmatprep.subr.mxu0 0.0
  %49 = vmatpush1.msra.mxu0 0.0
  %50 = vmatprep.subr.mxu0 0.0
  %51 = vmatpush1.msra.mxu0 0.0
  %52 = vmatprep.subr.mxu0 0.0
  %53 = vmatpush1.msra.mxu0 0.0
  %54 = vmatprep.subr.mxu0 0.0
  %55 = vmatpush1.msra.mxu0 0.0
  %56 = vmatprep.subr.mxu0 0.0
  %57 = vmatpush1.msra.mxu0 0.0
  %58 = vmatprep.subr.mxu0 0.0
  %59 = vmatpush1.msra.mxu0 0.0
  %60 = vmatprep.subr.mxu0 0.0
  %61 = vmatpush1.msra.mxu0 0.0
  %62 = vmatprep.subr.mxu0 0.0
  %63 = vmatpush1.msra.mxu0 0.0
  %64 = vmatprep.subr.mxu0 0.0
  %65 = vmatpush1.msra.mxu0 0.0
  %66 = vmatprep.subr.mxu0 0.0
  %67 = vmatpush1.msra.mxu0 0.0
  %68 = vmatprep.subr.mxu0 0.0
  %69 = vmatpush1.msra.mxu0 0.0
  %70 = vmatprep.subr.mxu0 0.0
  %71 = vmatpush1.msra.mxu0 0.0
  %72 = vmatprep.subr.mxu0 0.0
  %73 = vmatpush1.msra.mxu0 0.0
  %74 = vmatprep.subr.mxu0 0.0
  %75 = vmatpush1.msra.mxu0 0.0
  %76 = vmatprep.subr.mxu0 0.0
  %77 = vmatpush1.msra.mxu0 0.0
  %78 = vmatprep.subr.mxu0 0.0
  %79 = vmatpush1.msra.mxu0 0.0
  %80 = vmatprep.subr.mxu0 0.0
  %81 = vmatpush1.msra.mxu0 0.0
  %82 = vmatprep.subr.mxu0 0.0
  %83 = vmatpush1.msra.mxu0 0.0
  %84 = vmatprep.subr.mxu0 0.0
  %85 = vmatpush1.msra.mxu0 0.0
  %86 = vmatprep.subr.mxu0 0.0
  %87 = vmatpush1.msra.mxu0 0.0
  %88 = vmatprep.subr.mxu0 0.0
  %89 = vmatpush1.msra.mxu0 0.0
  %90 = vmatprep.subr.mxu0 0.0
  %91 = vmatpush1.msra.mxu0 0.0
  %92 = vmatprep.subr.mxu0 0.0
  %93 = vmatpush1.msra.mxu0 0.0
  %94 = vmatprep.mubr.f32.mxu0 0.0
  %95 = vmatmul.mubr.f32.gmra.mrb[0].mxu0 %v21
  %v96 = vpop.f32.mrb[0].mxu0
  %v97 = vadd.f32 0.0, %v96
  %v98 = vpop.f32.mrb[0].mxu0
  %99 = vmatprep.mubr.f32.mxu0 0.0
  %100 = vmatmul.mubr.f32.gmra.mrb[0].mxu0 %v24
  %v101 = vpop.f32.mrb[0].mxu0
  %v102 = vadd.f32 0.0, %v101
  %v103 = vpop.f32.mrb[0].mxu0
  %104 = vdwg.mxu0
  %v105 = vld [vmem:[%s2] sm:$0xff]
  %v106 = vld [vmem:[%s2 + $0x8] sm:$0xff]
  %v108 = vsel %vm19, %v97, 0
  %v111 = vsel %vm19, %v105, 0
  %113 = vmatprep.subr.mxu0 0.0
  %114 = vmatpush1.xpose.msra.mxu0 %v111
  %115 = vmatprep.subr.mxu0 0.0
  %116 = vmatpush1.xpose.msra.mxu0 0.0
  %117 = vmatprep.subr.mxu0 0.0
  %118 = vmatpush1.xpose.msra.mxu0 0.0
  %119 = vmatprep.subr.mxu0 0.0
  %120 = vmatpush1.xpose.msra.mxu0 0.0
  %121 = vmatprep.subr.mxu0 0.0
  %122 = vmatpush1.xpose.msra.mxu0 0.0
  %123 = vmatprep.subr.mxu0 0.0
  %124 = vmatpush1.xpose.msra.mxu0 0.0
  %125 = vmatprep.subr.mxu0 0.0
  %126 = vmatpush1.xpose.msra.mxu0 0.0
  %127 = vmatprep.subr.mxu0 0.0
  %128 = vmatpush1.xpose.msra.mxu0 0.0
  %129 = vmatprep.subr.mxu0 0.0
  %130 = vmatpush1.xpose.msra.mxu0 0.0
  %131 = vmatprep.subr.mxu0 0.0
  %132 = vmatpush1.xpose.msra.mxu0 0.0
  %133 = vmatprep.subr.mxu0 0.0
  %134 = vmatpush1.xpose.msra.mxu0 0.0
  %135 = vmatprep.subr.mxu0 0.0
  %136 = vmatpush1.xpose.msra.mxu0 0.0
  %137 = vmatprep.subr.mxu0 0.0
  %138 = vmatpush1.xpose.msra.mxu0 0.0
  %139 = vmatprep.subr.mxu0 0.0
  %140 = vmatpush1.xpose.msra.mxu0 0.0
  %141 = vmatprep.subr.mxu0 0.0
  %142 = vmatpush1.xpose.msra.mxu0 0.0
  %143 = vmatprep.subr.mxu0 0.0
  %144 = vmatpush1.xpose.msra.mxu0 0.0
  %145 = vmatprep.subr.mxu0 0.0
  %146 = vmatpush1.xpose.msra.mxu0 0.0
  %147 = vmatprep.subr.mxu0 0.0
  %148 = vmatpush1.xpose.msra.mxu0 0.0
  %149 = vmatprep.subr.mxu0 0.0
  %150 = vmatpush1.xpose.msra.mxu0 0.0
  %151 = vmatprep.subr.mxu0 0.0
  %152 = vmatpush1.xpose.msra.mxu0 0.0
  %153 = vmatprep.subr.mxu0 0.0
  %154 = vmatpush1.xpose.msra.mxu0 0.0
  %155 = vmatprep.subr.mxu0 0.0
  %156 = vmatpush1.xpose.msra.mxu0 0.0
  %157 = vmatprep.subr.mxu0 0.0
  %158 = vmatpush1.xpose.msra.mxu0 0.0
  %159 = vmatprep.subr.mxu0 0.0
  %160 = vmatpush1.xpose.msra.mxu0 0.0
  %161 = vmatprep.subr.mxu0 0.0
  %162 = vmatpush1.xpose.msra.mxu0 0.0
  %163 = vmatprep.subr.mxu0 0.0
  %164 = vmatpush1.xpose.msra.mxu0 0.0
  %165 = vmatprep.subr.mxu0 0.0
  %166 = vmatpush1.xpose.msra.mxu0 0.0
  %167 = vmatprep.subr.mxu0 0.0
  %168 = vmatpush1.xpose.msra.mxu0 0.0
  %169 = vmatprep.subr.mxu0 0.0
  %170 = vmatpush1.xpose.msra.mxu0 0.0
  %171 = vmatprep.subr.mxu0 0.0
  %172 = vmatpush1.xpose.msra.mxu0 0.0
  %173 = vmatprep.subr.mxu0 0.0
  %174 = vmatpush1.xpose.msra.mxu0 0.0
  %175 = vmatprep.subr.mxu0 0.0
  %176 = vmatpush1.xpose.msra.mxu0 0.0
  %177 = vmatprep.mubr.f32.mxu0 0.0
  %178 = vmatmul.mubr.f32.gmra.mrb[0].mxu0 %v108
  %v179 = vpop.f32.mrb[0].mxu0
  %v180 = vadd.f32 0.0, %v179
  %v181 = vpop.f32.mrb[0].mxu0
  %182 = vdwg.mxu0
  %v184 = vsel %vm19, %v102, 0
  %v187 = vsel %vm19, %v106, 0
  %189 = vmatprep.subr.mxu0 0.0
  %190 = vmatpush1.xpose.msra.mxu0 %v187
  %191 = vmatprep.subr.mxu0 0.0
  %192 = vmatpush1.xpose.msra.mxu0 0.0
  %193 = vmatprep.subr.mxu0 0.0
  %194 = vmatpush1.xpose.msra.mxu0 0.0
  %195 = vmatprep.subr.mxu0 0.0
  %196 = vmatpush1.xpose.msra.mxu0 0.0
  %197 = vmatprep.subr.mxu0 0.0
  %198 = vmatpush1.xpose.msra.mxu0 0.0
  %199 = vmatprep.subr.mxu0 0.0
  %200 = vmatpush1.xpose.msra.mxu0 0.0
  %201 = vmatprep.subr.mxu0 0.0
  %202 = vmatpush1.xpose.msra.mxu0 0.0
  %203 = vmatprep.subr.mxu0 0.0
  %204 = vmatpush1.xpose.msra.mxu0 0.0
  %205 = vmatprep.subr.mxu0 0.0
  %206 = vmatpush1.xpose.msra.mxu0 0.0
  %207 = vmatprep.subr.mxu0 0.0
  %208 = vmatpush1.xpose.msra.mxu0 0.0
  %209 = vmatprep.subr.mxu0 0.0
  %210 = vmatpush1.xpose.msra.mxu0 0.0
  %211 = vmatprep.subr.mxu0 0.0
  %212 = vmatpush1.xpose.msra.mxu0 0.0
  %213 = vmatprep.subr.mxu0 0.0
  %214 = vmatpush1.xpose.msra.mxu0 0.0
  %215 = vmatprep.subr.mxu0 0.0
  %216 = vmatpush1.xpose.msra.mxu0 0.0
  %217 = vmatprep.subr.mxu0 0.0
  %218 = vmatpush1.xpose.msra.mxu0 0.0
  %219 = vmatprep.subr.mxu0 0.0
  %220 = vmatpush1.xpose.msra.mxu0 0.0
  %221 = vmatprep.subr.mxu0 0.0
  %222 = vmatpush1.xpose.msra.mxu0 0.0
  %223 = vmatprep.subr.mxu0 0.0
  %224 = vmatpush1.xpose.msra.mxu0 0.0
  %225 = vmatprep.subr.mxu0 0.0
  %226 = vmatpush1.xpose.msra.mxu0 0.0
  %227 = vmatprep.subr.mxu0 0.0
  %228 = vmatpush1.xpose.msra.mxu0 0.0
  %229 = vmatprep.subr.mxu0 0.0
  %230 = vmatpush1.xpose.msra.mxu0 0.0
  %231 = vmatprep.subr.mxu0 0.0
  %232 = vmatpush1.xpose.msra.mxu0 0.0
  %233 = vmatprep.subr.mxu0 0.0
  %234 = vmatpush1.xpose.msra.mxu0 0.0
  %235 = vmatprep.subr.mxu0 0.0
  %236 = vmatpush1.xpose.msra.mxu0 0.0
  %237 = vmatprep.subr.mxu0 0.0
  %238 = vmatpush1.xpose.msra.mxu0 0.0
  %239 = vmatprep.subr.mxu0 0.0
  %240 = vmatpush1.xpose.msra.mxu0 0.0
  %241 = vmatprep.subr.mxu0 0.0
  %242 = vmatpush1.xpose.msra.mxu0 0.0
  %243 = vmatprep.subr.mxu0 0.0
  %244 = vmatpush1.xpose.msra.mxu0 0.0
  %245 = vmatprep.subr.mxu0 0.0
  %246 = vmatpush1.xpose.msra.mxu0 0.0
  %247 = vmatprep.subr.mxu0 0.0
  %248 = vmatpush1.xpose.msra.mxu0 0.0
  %249 = vmatprep.subr.mxu0 0.0
  %250 = vmatpush1.xpose.msra.mxu0 0.0
  %251 = vmatprep.subr.mxu0 0.0
  %252 = vmatpush1.xpose.msra.mxu0 0.0
  %253 = vmatprep.mubr.f32.mxu0 0.0
  %254 = vmatmul.mubr.f32.gmra.mrb[0].mxu0 %v184
  %v255 = vpop.f32.mrb[0].mxu0
  %v256 = vadd.f32 0.0, %v255
  %v257 = vpop.f32.mrb[0].mxu0
  %258 = vdwg.mxu0
  %259 = vrot.lane.b32.xlu0 %v97, 111
  %v260 = vpop.permute.xlu0 %259
  %v261 = vsel %vm19, %v260, 0
  %263 = vmatprep.subr.mxu0 0.0
  %264 = vmatpush1.xpose.msra.mxu0 %v111
  %265 = vmatprep.subr.mxu0 0.0
  %266 = vmatpush1.xpose.msra.mxu0 0.0
  %267 = vmatprep.subr.mxu0 0.0
  %268 = vmatpush1.xpose.msra.mxu0 0.0
  %269 = vmatprep.subr.mxu0 0.0
  %270 = vmatpush1.xpose.msra.mxu0 0.0
  %271 = vmatprep.subr.mxu0 0.0
  %272 = vmatpush1.xpose.msra.mxu0 0.0
  %273 = vmatprep.subr.mxu0 0.0
  %274 = vmatpush1.xpose.msra.mxu0 0.0
  %275 = vmatprep.subr.mxu0 0.0
  %276 = vmatpush1.xpose.msra.mxu0 0.0
  %277 = vmatprep.subr.mxu0 0.0
  %278 = vmatpush1.xpose.msra.mxu0 0.0
  %279 = vmatprep.subr.mxu0 0.0
  %280 = vmatpush1.xpose.msra.mxu0 0.0
  %281 = vmatprep.subr.mxu0 0.0
  %282 = vmatpush1.xpose.msra.mxu0 0.0
  %283 = vmatprep.subr.mxu0 0.0
  %284 = vmatpush1.xpose.msra.mxu0 0.0
  %285 = vmatprep.subr.mxu0 0.0
  %286 = vmatpush1.xpose.msra.mxu0 0.0
  %287 = vmatprep.subr.mxu0 0.0
  %288 = vmatpush1.xpose.msra.mxu0 0.0
  %289 = vmatprep.subr.mxu0 0.0
  %290 = vmatpush1.xpose.msra.mxu0 0.0
  %291 = vmatprep.subr.mxu0 0.0
  %292 = vmatpush1.xpose.msra.mxu0 0.0
  %293 = vmatprep.subr.mxu0 0.0
  %294 = vmatpush1.xpose.msra.mxu0 0.0
  %295 = vmatprep.subr.mxu0 0.0
  %296 = vmatpush1.xpose.msra.mxu0 0.0
  %297 = vmatprep.subr.mxu0 0.0
  %298 = vmatpush1.xpose.msra.mxu0 0.0
  %299 = vmatprep.subr.mxu0 0.0
  %300 = vmatpush1.xpose.msra.mxu0 0.0
  %301 = vmatprep.subr.mxu0 0.0
  %302 = vmatpush1.xpose.msra.mxu0 0.0
  %303 = vmatprep.subr.mxu0 0.0
  %304 = vmatpush1.xpose.msra.mxu0 0.0
  %305 = vmatprep.subr.mxu0 0.0
  %306 = vmatpush1.xpose.msra.mxu0 0.0
  %307 = vmatprep.subr.mxu0 0.0
  %308 = vmatpush1.xpose.msra.mxu0 0.0
  %309 = vmatprep.subr.mxu0 0.0
  %310 = vmatpush1.xpose.msra.mxu0 0.0
  %311 = vmatprep.subr.mxu0 0.0
  %312 = vmatpush1.xpose.msra.mxu0 0.0
  %313 = vmatprep.subr.mxu0 0.0
  %314 = vmatpush1.xpose.msra.mxu0 0.0
  %315 = vmatprep.subr.mxu0 0.0
  %316 = vmatpush1.xpose.msra.mxu0 0.0
  %317 = vmatprep.subr.mxu0 0.0
  %318 = vmatpush1.xpose.msra.mxu0 0.0
  %319 = vmatprep.subr.mxu0 0.0
  %320 = vmatpush1.xpose.msra.mxu0 0.0
  %321 = vmatprep.subr.mxu0 0.0
  %322 = vmatpush1.xpose.msra.mxu0 0.0
  %323 = vmatprep.subr.mxu0 0.0
  %324 = vmatpush1.xpose.msra.mxu0 0.0
  %325 = vmatprep.subr.mxu0 0.0
  %326 = vmatpush1.xpose.msra.mxu0 0.0
  %327 = vmatprep.mubr.f32.mxu0 0.0
  %328 = vmatmul.mubr.f32.gmra.mrb[0].mxu0 %v261
  %v329 = vpop.f32.mrb[0].mxu0
  %v330 = vadd.f32 0.0, %v329
  %v331 = vpop.f32.mrb[0].mxu0
  %332 = vdwg.mxu0
  %333 = vrot.lane.b32.xlu0 %v102, 111
  %v334 = vpop.permute.xlu0 %333
  %v335 = vsel %vm19, %v334, 0
  %337 = vmatprep.subr.mxu0 0.0
  %338 = vmatpush1.xpose.msra.mxu0 %v187
  %339 = vmatprep.subr.mxu0 0.0
  %340 = vmatpush1.xpose.msra.mxu0 0.0
  %341 = vmatprep.subr.mxu0 0.0
  %342 = vmatpush1.xpose.msra.mxu0 0.0
  %343 = vmatprep.subr.mxu0 0.0
  %344 = vmatpush1.xpose.msra.mxu0 0.0
  %345 = vmatprep.subr.mxu0 0.0
  %346 = vmatpush1.xpose.msra.mxu0 0.0
  %347 = vmatprep.subr.mxu0 0.0
  %348 = vmatpush1.xpose.msra.mxu0 0.0
  %349 = vmatprep.subr.mxu0 0.0
  %350 = vmatpush1.xpose.msra.mxu0 0.0
  %351 = vmatprep.subr.mxu0 0.0
  %352 = vmatpush1.xpose.msra.mxu0 0.0
  %353 = vmatprep.subr.mxu0 0.0
  %354 = vmatpush1.xpose.msra.mxu0 0.0
  %355 = vmatprep.subr.mxu0 0.0
  %356 = vmatpush1.xpose.msra.mxu0 0.0
  %357 = vmatprep.subr.mxu0 0.0
  %358 = vmatpush1.xpose.msra.mxu0 0.0
  %359 = vmatprep.subr.mxu0 0.0
  %360 = vmatpush1.xpose.msra.mxu0 0.0
  %361 = vmatprep.subr.mxu0 0.0
  %362 = vmatpush1.xpose.msra.mxu0 0.0
  %363 = vmatprep.subr.mxu0 0.0
  %364 = vmatpush1.xpose.msra.mxu0 0.0
  %365 = vmatprep.subr.mxu0 0.0
  %366 = vmatpush1.xpose.msra.mxu0 0.0
  %367 = vmatprep.subr.mxu0 0.0
  %368 = vmatpush1.xpose.msra.mxu0 0.0
  %369 = vmatprep.subr.mxu0 0.0
  %370 = vmatpush1.xpose.msra.mxu0 0.0
  %371 = vmatprep.subr.mxu0 0.0
  %372 = vmatpush1.xpose.msra.mxu0 0.0
  %373 = vmatprep.subr.mxu0 0.0
  %374 = vmatpush1.xpose.msra.mxu0 0.0
  %375 = vmatprep.subr.mxu0 0.0
  %376 = vmatpush1.xpose.msra.mxu0 0.0
  %377 = vmatprep.subr.mxu0 0.0
  %378 = vmatpush1.xpose.msra.mxu0 0.0
  %379 = vmatprep.subr.mxu0 0.0
  %380 = vmatpush1.xpose.msra.mxu0 0.0
  %381 = vmatprep.subr.mxu0 0.0
  %382 = vmatpush1.xpose.msra.mxu0 0.0
  %383 = vmatprep.subr.mxu0 0.0
  %384 = vmatpush1.xpose.msra.mxu0 0.0
  %385 = vmatprep.subr.mxu0 0.0
  %386 = vmatpush1.xpose.msra.mxu0 0.0
  %387 = vmatprep.subr.mxu0 0.0
  %388 = vmatpush1.xpose.msra.mxu0 0.0
  %389 = vmatprep.subr.mxu0 0.0
  %390 = vmatpush1.xpose.msra.mxu0 0.0
  %391 = vmatprep.subr.mxu0 0.0
  %392 = vmatpush1.xpose.msra.mxu0 0.0
  %393 = vmatprep.subr.mxu0 0.0
  %394 = vmatpush1.xpose.msra.mxu0 0.0
  %395 = vmatprep.subr.mxu0 0.0
  %396 = vmatpush1.xpose.msra.mxu0 0.0
  %397 = vmatprep.subr.mxu0 0.0
  %398 = vmatpush1.xpose.msra.mxu0 0.0
  %399 = vmatprep.subr.mxu0 0.0
  %400 = vmatpush1.xpose.msra.mxu0 0.0
  %401 = vmatprep.mubr.f32.mxu0 0.0
  %402 = vmatmul.mubr.f32.gmra.mrb[0].mxu0 %v335
  %v403 = vpop.f32.mrb[0].mxu0
  %v404 = vadd.f32 0.0, %v403
  %v405 = vpop.f32.mrb[0].mxu0
  %406 = vdwg.mxu0
  %407 = vrot.lane.b32.xlu0 %v97, 94
  %v408 = vpop.permute.xlu0 %407
  %v409 = vsel %vm19, %v408, 0
  %411 = vmatprep.subr.mxu0 0.0
  %412 = vmatpush1.xpose.msra.mxu0 %v111
  %413 = vmatprep.subr.mxu0 0.0
  %414 = vmatpush1.xpose.msra.mxu0 0.0
  %415 = vmatprep.subr.mxu0 0.0
  %416 = vmatpush1.xpose.msra.mxu0 0.0
  %417 = vmatprep.subr.mxu0 0.0
  %418 = vmatpush1.xpose.msra.mxu0 0.0
  %419 = vmatprep.subr.mxu0 0.0
  %420 = vmatpush1.xpose.msra.mxu0 0.0
  %421 = vmatprep.subr.mxu0 0.0
  %422 = vmatpush1.xpose.msra.mxu0 0.0
  %423 = vmatprep.subr.mxu0 0.0
  %424 = vmatpush1.xpose.msra.mxu0 0.0
  %425 = vmatprep.subr.mxu0 0.0
  %426 = vmatpush1.xpose.msra.mxu0 0.0
  %427 = vmatprep.subr.mxu0 0.0
  %428 = vmatpush1.xpose.msra.mxu0 0.0
  %429 = vmatprep.subr.mxu0 0.0
  %430 = vmatpush1.xpose.msra.mxu0 0.0
  %431 = vmatprep.subr.mxu0 0.0
  %432 = vmatpush1.xpose.msra.mxu0 0.0
  %433 = vmatprep.subr.mxu0 0.0
  %434 = vmatpush1.xpose.msra.mxu0 0.0
  %435 = vmatprep.subr.mxu0 0.0
  %436 = vmatpush1.xpose.msra.mxu0 0.0
  %437 = vmatprep.subr.mxu0 0.0
  %438 = vmatpush1.xpose.msra.mxu0 0.0
  %439 = vmatprep.subr.mxu0 0.0
  %440 = vmatpush1.xpose.msra.mxu0 0.0
  %441 = vmatprep.subr.mxu0 0.0
  %442 = vmatpush1.xpose.msra.mxu0 0.0
  %443 = vmatprep.subr.mxu0 0.0
  %444 = vmatpush1.xpose.msra.mxu0 0.0
  %445 = vmatprep.subr.mxu0 0.0
  %446 = vmatpush1.xpose.msra.mxu0 0.0
  %447 = vmatprep.subr.mxu0 0.0
  %448 = vmatpush1.xpose.msra.mxu0 0.0
  %449 = vmatprep.subr.mxu0 0.0
  %450 = vmatpush1.xpose.msra.mxu0 0.0
  %451 = vmatprep.subr.mxu0 0.0
  %452 = vmatpush1.xpose.msra.mxu0 0.0
  %453 = vmatprep.subr.mxu0 0.0
  %454 = vmatpush1.xpose.msra.mxu0 0.0
  %455 = vmatprep.subr.mxu0 0.0
  %456 = vmatpush1.xpose.msra.mxu0 0.0
  %457 = vmatprep.subr.mxu0 0.0
  %458 = vmatpush1.xpose.msra.mxu0 0.0
  %459 = vmatprep.subr.mxu0 0.0
  %460 = vmatpush1.xpose.msra.mxu0 0.0
  %461 = vmatprep.subr.mxu0 0.0
  %462 = vmatpush1.xpose.msra.mxu0 0.0
  %463 = vmatprep.subr.mxu0 0.0
  %464 = vmatpush1.xpose.msra.mxu0 0.0
  %465 = vmatprep.subr.mxu0 0.0
  %466 = vmatpush1.xpose.msra.mxu0 0.0
  %467 = vmatprep.subr.mxu0 0.0
  %468 = vmatpush1.xpose.msra.mxu0 0.0
  %469 = vmatprep.subr.mxu0 0.0
  %470 = vmatpush1.xpose.msra.mxu0 0.0
  %471 = vmatprep.subr.mxu0 0.0
  %472 = vmatpush1.xpose.msra.mxu0 0.0
  %473 = vmatprep.subr.mxu0 0.0
  %474 = vmatpush1.xpose.msra.mxu0 0.0
  %475 = vmatprep.mubr.f32.mxu0 0.0
  %476 = vmatmul.mubr.f32.gmra.mrb[0].mxu0 %v409
  %v477 = vpop.f32.mrb[0].mxu0
  %v478 = vadd.f32 0.0, %v477
  %v479 = vpop.f32.mrb[0].mxu0
  %480 = vdwg.mxu0
  %481 = vrot.lane.b32.xlu0 %v102, 94
  %v482 = vpop.permute.xlu0 %481
  %v483 = vsel %vm19, %v482, 0
  %485 = vmatprep.subr.mxu0 0.0
  %486 = vmatpush1.xpose.msra.mxu0 %v187
  %487 = vmatprep.subr.mxu0 0.0
  %488 = vmatpush1.xpose.msra.mxu0 0.0
  %489 = vmatprep.subr.mxu0 0.0
  %490 = vmatpush1.xpose.msra.mxu0 0.0
  %491 = vmatprep.subr.mxu0 0.0
  %492 = vmatpush1.xpose.msra.mxu0 0.0
  %493 = vmatprep.subr.mxu0 0.0
  %494 = vmatpush1.xpose.msra.mxu0 0.0
  %495 = vmatprep.subr.mxu0 0.0
  %496 = vmatpush1.xpose.msra.mxu0 0.0
  %497 = vmatprep.subr.mxu0 0.0
  %498 = vmatpush1.xpose.msra.mxu0 0.0
  %499 = vmatprep.subr.mxu0 0.0
  %500 = vmatpush1.xpose.msra.mxu0 0.0
  %501 = vmatprep.subr.mxu0 0.0
  %502 = vmatpush1.xpose.msra.mxu0 0.0
  %503 = vmatprep.subr.mxu0 0.0
  %504 = vmatpush1.xpose.msra.mxu0 0.0
  %505 = vmatprep.subr.mxu0 0.0
  %506 = vmatpush1.xpose.msra.mxu0 0.0
  %507 = vmatprep.subr.mxu0 0.0
  %508 = vmatpush1.xpose.msra.mxu0 0.0
  %509 = vmatprep.subr.mxu0 0.0
  %510 = vmatpush1.xpose.msra.mxu0 0.0
  %511 = vmatprep.subr.mxu0 0.0
  %512 = vmatpush1.xpose.msra.mxu0 0.0
  %513 = vmatprep.subr.mxu0 0.0
  %514 = vmatpush1.xpose.msra.mxu0 0.0
  %515 = vmatprep.subr.mxu0 0.0
  %516 = vmatpush1.xpose.msra.mxu0 0.0
  %517 = vmatprep.subr.mxu0 0.0
  %518 = vmatpush1.xpose.msra.mxu0 0.0
  %519 = vmatprep.subr.mxu0 0.0
  %520 = vmatpush1.xpose.msra.mxu0 0.0
  %521 = vmatprep.subr.mxu0 0.0
  %522 = vmatpush1.xpose.msra.mxu0 0.0
  %523 = vmatprep.subr.mxu0 0.0
  %524 = vmatpush1.xpose.msra.mxu0 0.0
  %525 = vmatprep.subr.mxu0 0.0
  %526 = vmatpush1.xpose.msra.mxu0 0.0
  %527 = vmatprep.subr.mxu0 0.0
  %528 = vmatpush1.xpose.msra.mxu0 0.0
  %529 = vmatprep.subr.mxu0 0.0
  %530 = vmatpush1.xpose.msra.mxu0 0.0
  %531 = vmatprep.subr.mxu0 0.0
  %532 = vmatpush1.xpose.msra.mxu0 0.0
  %533 = vmatprep.subr.mxu0 0.0
  %534 = vmatpush1.xpose.msra.mxu0 0.0
  %535 = vmatprep.subr.mxu0 0.0
  %536 = vmatpush1.xpose.msra.mxu0 0.0
  %537 = vmatprep.subr.mxu0 0.0
  %538 = vmatpush1.xpose.msra.mxu0 0.0
  %539 = vmatprep.subr.mxu0 0.0
  %540 = vmatpush1.xpose.msra.mxu0 0.0
  %541 = vmatprep.subr.mxu0 0.0
  %542 = vmatpush1.xpose.msra.mxu0 0.0
  %543 = vmatprep.subr.mxu0 0.0
  %544 = vmatpush1.xpose.msra.mxu0 0.0
  %545 = vmatprep.subr.mxu0 0.0
  %546 = vmatpush1.xpose.msra.mxu0 0.0
  %547 = vmatprep.subr.mxu0 0.0
  %548 = vmatpush1.xpose.msra.mxu0 0.0
  %549 = vmatprep.mubr.f32.mxu0 0.0
  %550 = vmatmul.mubr.f32.gmra.mrb[0].mxu0 %v483
  %v551 = vpop.f32.mrb[0].mxu0
  %v552 = vadd.f32 0.0, %v551
  %v553 = vpop.f32.mrb[0].mxu0
  %554 = vdwg.mxu0
  %555 = vrot.lane.b32.xlu0 %v97, 77
  %v556 = vpop.permute.xlu0 %555
  %v557 = vsel %vm19, %v556, 0
  %559 = vmatprep.subr.mxu0 0.0
  %560 = vmatpush1.xpose.msra.mxu0 %v111
  %561 = vmatprep.subr.mxu0 0.0
  %562 = vmatpush1.xpose.msra.mxu0 0.0
  %563 = vmatprep.subr.mxu0 0.0
  %564 = vmatpush1.xpose.msra.mxu0 0.0
  %565 = vmatprep.subr.mxu0 0.0
  %566 = vmatpush1.xpose.msra.mxu0 0.0
  %567 = vmatprep.subr.mxu0 0.0
  %568 = vmatpush1.xpose.msra.mxu0 0.0
  %569 = vmatprep.subr.mxu0 0.0
  %570 = vmatpush1.xpose.msra.mxu0 0.0
  %571 = vmatprep.subr.mxu0 0.0
  %572 = vmatpush1.xpose.msra.mxu0 0.0
  %573 = vmatprep.subr.mxu0 0.0
  %574 = vmatpush1.xpose.msra.mxu0 0.0
  %575 = vmatprep.subr.mxu0 0.0
  %576 = vmatpush1.xpose.msra.mxu0 0.0
  %577 = vmatprep.subr.mxu0 0.0
  %578 = vmatpush1.xpose.msra.mxu0 0.0
  %579 = vmatprep.subr.mxu0 0.0
  %580 = vmatpush1.xpose.msra.mxu0 0.0
  %581 = vmatprep.subr.mxu0 0.0
  %582 = vmatpush1.xpose.msra.mxu0 0.0
  %583 = vmatprep.subr.mxu0 0.0
  %584 = vmatpush1.xpose.msra.mxu0 0.0
  %585 = vmatprep.subr.mxu0 0.0
  %586 = vmatpush1.xpose.msra.mxu0 0.0
  %587 = vmatprep.subr.mxu0 0.0
  %588 = vmatpush1.xpose.msra.mxu0 0.0
  %589 = vmatprep.subr.mxu0 0.0
  %590 = vmatpush1.xpose.msra.mxu0 0.0
  %591 = vmatprep.subr.mxu0 0.0
  %592 = vmatpush1.xpose.msra.mxu0 0.0
  %593 = vmatprep.subr.mxu0 0.0
  %594 = vmatpush1.xpose.msra.mxu0 0.0
  %595 = vmatprep.subr.mxu0 0.0
  %596 = vmatpush1.xpose.msra.mxu0 0.0
  %597 = vmatprep.subr.mxu0 0.0
  %598 = vmatpush1.xpose.msra.mxu0 0.0
  %599 = vmatprep.subr.mxu0 0.0
  %600 = vmatpush1.xpose.msra.mxu0 0.0
  %601 = vmatprep.subr.mxu0 0.0
  %602 = vmatpush1.xpose.msra.mxu0 0.0
  %603 = vmatprep.subr.mxu0 0.0
  %604 = vmatpush1.xpose.msra.mxu0 0.0
  %605 = vmatprep.subr.mxu0 0.0
  %606 = vmatpush1.xpose.msra.mxu0 0.0
  %607 = vmatprep.subr.mxu0 0.0
  %608 = vmatpush1.xpose.msra.mxu0 0.0
  %609 = vmatprep.subr.mxu0 0.0
  %610 = vmatpush1.xpose.msra.mxu0 0.0
  %611 = vmatprep.subr.mxu0 0.0
  %612 = vmatpush1.xpose.msra.mxu0 0.0
  %613 = vmatprep.subr.mxu0 0.0
  %614 = vmatpush1.xpose.msra.mxu0 0.0
  %615 = vmatprep.subr.mxu0 0.0
  %616 = vmatpush1.xpose.msra.mxu0 0.0
  %617 = vmatprep.subr.mxu0 0.0
  %618 = vmatpush1.xpose.msra.mxu0 0.0
  %619 = vmatprep.subr.mxu0 0.0
  %620 = vmatpush1.xpose.msra.mxu0 0.0
  %621 = vmatprep.subr.mxu0 0.0
  %622 = vmatpush1.xpose.msra.mxu0 0.0
  %623 = vmatprep.mubr.f32.mxu0 0.0
  %624 = vmatmul.mubr.f32.gmra.mrb[0].mxu0 %v557
  %v625 = vpop.f32.mrb[0].mxu0
  %v626 = vadd.f32 0.0, %v625
  %v627 = vpop.f32.mrb[0].mxu0
  %628 = vdwg.mxu0
  %629 = vrot.lane.b32.xlu0 %v102, 77
  %v630 = vpop.permute.xlu0 %629
  %v631 = vsel %vm19, %v630, 0
  %633 = vmatprep.subr.mxu0 0.0
  %634 = vmatpush1.xpose.msra.mxu0 %v187
  %635 = vmatprep.subr.mxu0 0.0
  %636 = vmatpush1.xpose.msra.mxu0 0.0
  %637 = vmatprep.subr.mxu0 0.0
  %638 = vmatpush1.xpose.msra.mxu0 0.0
  %639 = vmatprep.subr.mxu0 0.0
  %640 = vmatpush1.xpose.msra.mxu0 0.0
  %641 = vmatprep.subr.mxu0 0.0
  %642 = vmatpush1.xpose.msra.mxu0 0.0
  %643 = vmatprep.subr.mxu0 0.0
  %644 = vmatpush1.xpose.msra.mxu0 0.0
  %645 = vmatprep.subr.mxu0 0.0
  %646 = vmatpush1.xpose.msra.mxu0 0.0
  %647 = vmatprep.subr.mxu0 0.0
  %648 = vmatpush1.xpose.msra.mxu0 0.0
  %649 = vmatprep.subr.mxu0 0.0
  %650 = vmatpush1.xpose.msra.mxu0 0.0
  %651 = vmatprep.subr.mxu0 0.0
  %652 = vmatpush1.xpose.msra.mxu0 0.0
  %653 = vmatprep.subr.mxu0 0.0
  %654 = vmatpush1.xpose.msra.mxu0 0.0
  %655 = vmatprep.subr.mxu0 0.0
  %656 = vmatpush1.xpose.msra.mxu0 0.0
  %657 = vmatprep.subr.mxu0 0.0
  %658 = vmatpush1.xpose.msra.mxu0 0.0
  %659 = vmatprep.subr.mxu0 0.0
  %660 = vmatpush1.xpose.msra.mxu0 0.0
  %661 = vmatprep.subr.mxu0 0.0
  %662 = vmatpush1.xpose.msra.mxu0 0.0
  %663 = vmatprep.subr.mxu0 0.0
  %664 = vmatpush1.xpose.msra.mxu0 0.0
  %665 = vmatprep.subr.mxu0 0.0
  %666 = vmatpush1.xpose.msra.mxu0 0.0
  %667 = vmatprep.subr.mxu0 0.0
  %668 = vmatpush1.xpose.msra.mxu0 0.0
  %669 = vmatprep.subr.mxu0 0.0
  %670 = vmatpush1.xpose.msra.mxu0 0.0
  %671 = vmatprep.subr.mxu0 0.0
  %672 = vmatpush1.xpose.msra.mxu0 0.0
  %673 = vmatprep.subr.mxu0 0.0
  %674 = vmatpush1.xpose.msra.mxu0 0.0
  %675 = vmatprep.subr.mxu0 0.0
  %676 = vmatpush1.xpose.msra.mxu0 0.0
  %677 = vmatprep.subr.mxu0 0.0
  %678 = vmatpush1.xpose.msra.mxu0 0.0
  %679 = vmatprep.subr.mxu0 0.0
  %680 = vmatpush1.xpose.msra.mxu0 0.0
  %681 = vmatprep.subr.mxu0 0.0
  %682 = vmatpush1.xpose.msra.mxu0 0.0
  %683 = vmatprep.subr.mxu0 0.0
  %684 = vmatpush1.xpose.msra.mxu0 0.0
  %685 = vmatprep.subr.mxu0 0.0
  %686 = vmatpush1.xpose.msra.mxu0 0.0
  %687 = vmatprep.subr.mxu0 0.0
  %688 = vmatpush1.xpose.msra.mxu0 0.0
  %689 = vmatprep.subr.mxu0 0.0
  %690 = vmatpush1.xpose.msra.mxu0 0.0
  %691 = vmatprep.subr.mxu0 0.0
  %692 = vmatpush1.xpose.msra.mxu0 0.0
  %693 = vmatprep.subr.mxu0 0.0
  %694 = vmatpush1.xpose.msra.mxu0 0.0
  %695 = vmatprep.subr.mxu0 0.0
  %696 = vmatpush1.xpose.msra.mxu0 0.0
  %697 = vmatprep.mubr.f32.mxu0 0.0
  %698 = vmatmul.mubr.f32.gmra.mrb[0].mxu0 %v631
  %v699 = vpop.f32.mrb[0].mxu0
  %v700 = vadd.f32 0.0, %v699
  %v701 = vpop.f32.mrb[0].mxu0
  %702 = vdwg.mxu0
  %vm703 = vcmask 64512
  %704 = vst.msk [vmem:[%s3] sm:$0xff] %vm703, %v180
  %705 = vst.msk [vmem:[%s3 + $0x8] sm:$0xff] %vm703, %v330
  %706 = vst.msk [vmem:[%s3 + $0x10] sm:$0xff] %vm703, %v478
  %707 = vst.msk [vmem:[%s3 + $0x18] sm:$0xff] %vm703, %v626
  %708 = vst.msk [vmem:[%s3 + $0x20] sm:$0xff] %vm703, %v256
  %709 = vst.msk [vmem:[%s3 + $0x28] sm:$0xff] %vm703, %v404
  %710 = vst.msk [vmem:[%s3 + $0x30] sm:$0xff] %vm703, %v552
  %711 = vst.msk [vmem:[%s3 + $0x38] sm:$0xff] %vm703, %v700
  // Predicated region
  $region14: #{char_parser_forward.29} parent=0 // pred_check
    _
  $region15: #{char_parser_forward.29} parent=0 // pred_check_branch
    %713 = sbr.rel (0) target = $region17
  $region16: #{char_parser_forward.29} parent=0 // pred_region
    _
  $region17: #{char_parser_forward.29} parent=0 // pred_fallthru
    _
  // Predicated region
  $region18: #{char_parser_forward.29} parent=0 // pred_check
    _
  $region19: #{char_parser_forward.29} parent=0 // pred_check_branch
    %715 = sbr.rel (0) target = $region21
  $region20: #{char_parser_forward.29} parent=0 // pred_region
    _
  $region21: #{char_parser_forward.29} parent=0 // pred_fallthru
    _

// kernel: char_parser_forward.28
$region0: #{char_parser_forward.28}
  #allocation0 [shape = 'u32[]', space=smem, size = 0x4, offset = 0x4, fixed_abs, tag = 'smem constant byte address 0x4 - core index']
  #allocation1 [shape = 'u32[144,128]{1,0:T(1,128)}', space=vmem, size = 0x12000, scoped, tag = 'internal scratch']
  %s0 = inlined_call_operand.vmem [shape: f32[2,8,33], index: 0, kind: input, shape index: {}]
  %s1 = inlined_call_operand.vmem [shape: f32[33,32], index: 1, kind: input, shape index: {}]
  %s2 = inlined_call_operand.vmem [shape: f32[2,8,32], index: 2, kind: input, shape index: {}]
  %s3 = inlined_call_operand.vmem [shape: f32[2,8,8], index: 3, kind: output, shape index: {}]
  %s4 = sld [smem:[#allocation0]]
  $region22: #{char_parser_forward.28} parent=0
    _
  %s6 = ssub.s32 1, %s4
  %s7 = scalar_select 0, %s6, %s4
  // Predicated region
  $region2: #{char_parser_forward.28} parent=0 // pred_check
    _
  $region3: #{char_parser_forward.28} parent=0 // pred_check_branch
    %9 = sbr.rel (0) target = $region5
  $region4: #{char_parser_forward.28} parent=0 // pred_region
    _
  $region5: #{char_parser_forward.28} parent=0 // pred_fallthru
    _
  // Predicated region
  $region6: #{char_parser_forward.28} parent=0 // pred_check
    _
  $region7: #{char_parser_forward.28} parent=0 // pred_check_branch
    %11 = sbr.rel (0) target = $region9
  $region8: #{char_parser_forward.28} parent=0 // pred_region
    _
  $region9: #{char_parser_forward.28} parent=0 // pred_fallthru
    _
  // Predicated region
  $region10: #{char_parser_forward.28} parent=0 // pred_check
    _
  $region11: #{char_parser_forward.28} parent=0 // pred_check_branch
    %13 = sbr.rel (0) target = $region13
  $region12: #{char_parser_forward.28} parent=0 // pred_region
    _
  $region13: #{char_parser_forward.28} parent=0 // pred_fallthru
    _
  %v14 = vld [vmem:[%s0] sm:$0xff]
  %v15 = vld [vmem:[%s0 + $0x8] sm:$0xff]
  %v16 = vld [vmem:[%s1] sm:$0xff]
  %v17 = vld [vmem:[%s1 + $0x8] sm:$0xff]
  %v18 = vld [vmem:[%s1 + $0x10] sm:$0xff]
  %v19 = vld [vmem:[%s1 + $0x18] sm:$0xff]
  %v20 = vld [vmem:[%s1 + $0x20] sm:$0x1]
  %vm21 = vcmask 269312
  %v23 = vsel %vm21, %v14, 0
  %v26 = vsel %vm21, %v15, 0
  %vm28 = vcmask 1040384
  %v30 = vsel %vm28, %v20, 0
  %32 = vmatprep.subr.mxu0 0.0
  %33 = vmatpush1.msra.mxu0 %v16
  %34 = vmatprep.subr.mxu0 0.0
  %35 = vmatpush1.msra.mxu0 %v17
  %36 = vmatprep.subr.mxu0 0.0
  %37 = vmatpush1.msra.mxu0 %v18
  %38 = vmatprep.subr.mxu0 0.0
  %39 = vmatpush1.msra.mxu0 %v19
  %40 = vmatprep.subr.mxu0 0.0
  %41 = vmatpush1.msra.mxu0 %v30
  %42 = vmatprep.subr.mxu0 0.0
  %43 = vmatpush1.msra.mxu0 0.0
  %44 = vmatprep.subr.mxu0 0.0
  %45 = vmatpush1.msra.mxu0 0.0
  %46 = vmatprep.subr.mxu0 0.0
  %47 = vmatpush1.msra.mxu0 0.0
  %48 = vmatprep.subr.mxu0 0.0
  %49 = vmatpush1.msra.mxu0 0.0
  %50 = vmatprep.subr.mxu0 0.0
  %51 = vmatpush1.msra.mxu0 0.0
  %52 = vmatprep.subr.mxu0 0.0
  %53 = vmatpush1.msra.mxu0 0.0
  %54 = vmatprep.subr.mxu0 0.0
  %55 = vmatpush1.msra.mxu0 0.0
  %56 = vmatprep.subr.mxu0 0.0
  %57 = vmatpush1.msra.mxu0 0.0
  %58 = vmatprep.subr.mxu0 0.0
  %59 = vmatpush1.msra.mxu0 0.0
  %60 = vmatprep.subr.mxu0 0.0
  %61 = vmatpush1.msra.mxu0 0.0
  %62 = vmatprep.subr.mxu0 0.0
  %63 = vmatpush1.msra.mxu0 0.0
  %64 = vmatprep.subr.mxu0 0.0
  %65 = vmatpush1.msra.mxu0 0.0
  %66 = vmatprep.subr.mxu0 0.0
  %67 = vmatpush1.msra.mxu0 0.0
  %68 = vmatprep.subr.mxu0 0.0
  %69 = vmatpush1.msra.mxu0 0.0
  %70 = vmatprep.subr.mxu0 0.0
  %71 = vmatpush1.msra.mxu0 0.0
  %72 = vmatprep.subr.mxu0 0.0
  %73 = vmatpush1.msra.mxu0 0.0
  %74 = vmatprep.subr.mxu0 0.0
  %75 = vmatpush1.msra.mxu0 0.0
  %76 = vmatprep.subr.mxu0 0.0
  %77 = vmatpush1.msra.mxu0 0.0
  %78 = vmatprep.subr.mxu0 0.0
  %79 = vmatpush1.msra.mxu0 0.0
  %80 = vmatprep.subr.mxu0 0.0
  %81 = vmatpush1.msra.mxu0 0.0
  %82 = vmatprep.subr.mxu0 0.0
  %83 = vmatpush1.msra.mxu0 0.0
  %84 = vmatprep.subr.mxu0 0.0
  %85 = vmatpush1.msra.mxu0 0.0
  %86 = vmatprep.subr.mxu0 0.0
  %87 = vmatpush1.msra.mxu0 0.0
  %88 = vmatprep.subr.mxu0 0.0
  %89 = vmatpush1.msra.mxu0 0.0
  %90 = vmatprep.subr.mxu0 0.0
  %91 = vmatpush1.msra.mxu0 0.0
  %92 = vmatprep.subr.mxu0 0.0
  %93 = vmatpush1.msra.mxu0 0.0
  %94 = vmatprep.subr.mxu0 0.0
  %95 = vmatpush1.msra.mxu0 0.0
  %96 = vmatprep.mubr.f32.mxu0 0.0
  %97 = vmatmul.mubr.f32.gmra.mrb[0].mxu0 %v23
  %v98 = vpop.f32.mrb[0].mxu0
  %v99 = vadd.f32 0.0, %v98
  %v100 = vpop.f32.mrb[0].mxu0
  %101 = vmatprep.mubr.f32.mxu0 0.0
  %102 = vmatmul.mubr.f32.gmra.mrb[0].mxu0 %v26
  %v103 = vpop.f32.mrb[0].mxu0
  %v104 = vadd.f32 0.0, %v103
  %v105 = vpop.f32.mrb[0].mxu0
  %106 = vdwg.mxu0
  %v107 = vld [vmem:[%s2] sm:$0xff]
  %v108 = vld [vmem:[%s2 + $0x8] sm:$0xff]
  %vm109 = vcmask 261120
  %v111 = vsel %vm109, %v99, 0
  %v114 = vsel %vm109, %v107, 0
  %116 = vmatprep.subr.mxu0 0.0
  %117 = vmatpush1.xpose.msra.mxu0 %v114
  %118 = vmatprep.subr.mxu0 0.0
  %119 = vmatpush1.xpose.msra.mxu0 0.0
  %120 = vmatprep.subr.mxu0 0.0
  %121 = vmatpush1.xpose.msra.mxu0 0.0
  %122 = vmatprep.subr.mxu0 0.0
  %123 = vmatpush1.xpose.msra.mxu0 0.0
  %124 = vmatprep.subr.mxu0 0.0
  %125 = vmatpush1.xpose.msra.mxu0 0.0
  %126 = vmatprep.subr.mxu0 0.0
  %127 = vmatpush1.xpose.msra.mxu0 0.0
  %128 = vmatprep.subr.mxu0 0.0
  %129 = vmatpush1.xpose.msra.mxu0 0.0
  %130 = vmatprep.subr.mxu0 0.0
  %131 = vmatpush1.xpose.msra.mxu0 0.0
  %132 = vmatprep.subr.mxu0 0.0
  %133 = vmatpush1.xpose.msra.mxu0 0.0
  %134 = vmatprep.subr.mxu0 0.0
  %135 = vmatpush1.xpose.msra.mxu0 0.0
  %136 = vmatprep.subr.mxu0 0.0
  %137 = vmatpush1.xpose.msra.mxu0 0.0
  %138 = vmatprep.subr.mxu0 0.0
  %139 = vmatpush1.xpose.msra.mxu0 0.0
  %140 = vmatprep.subr.mxu0 0.0
  %141 = vmatpush1.xpose.msra.mxu0 0.0
  %142 = vmatprep.subr.mxu0 0.0
  %143 = vmatpush1.xpose.msra.mxu0 0.0
  %144 = vmatprep.subr.mxu0 0.0
  %145 = vmatpush1.xpose.msra.mxu0 0.0
  %146 = vmatprep.subr.mxu0 0.0
  %147 = vmatpush1.xpose.msra.mxu0 0.0
  %148 = vmatprep.subr.mxu0 0.0
  %149 = vmatpush1.xpose.msra.mxu0 0.0
  %150 = vmatprep.subr.mxu0 0.0
  %151 = vmatpush1.xpose.msra.mxu0 0.0
  %152 = vmatprep.subr.mxu0 0.0
  %153 = vmatpush1.xpose.msra.mxu0 0.0
  %154 = vmatprep.subr.mxu0 0.0
  %155 = vmatpush1.xpose.msra.mxu0 0.0
  %156 = vmatprep.subr.mxu0 0.0
  %157 = vmatpush1.xpose.msra.mxu0 0.0
  %158 = vmatprep.subr.mxu0 0.0
  %159 = vmatpush1.xpose.msra.mxu0 0.0
  %160 = vmatprep.subr.mxu0 0.0
  %161 = vmatpush1.xpose.msra.mxu0 0.0
  %162 = vmatprep.subr.mxu0 0.0
  %163 = vmatpush1.xpose.msra.mxu0 0.0
  %164 = vmatprep.subr.mxu0 0.0
  %165 = vmatpush1.xpose.msra.mxu0 0.0
  %166 = vmatprep.subr.mxu0 0.0
  %167 = vmatpush1.xpose.msra.mxu0 0.0
  %168 = vmatprep.subr.mxu0 0.0
  %169 = vmatpush1.xpose.msra.mxu0 0.0
  %170 = vmatprep.subr.mxu0 0.0
  %171 = vmatpush1.xpose.msra.mxu0 0.0
  %172 = vmatprep.subr.mxu0 0.0
  %173 = vmatpush1.xpose.msra.mxu0 0.0
  %174 = vmatprep.subr.mxu0 0.0
  %175 = vmatpush1.xpose.msra.mxu0 0.0
  %176 = vmatprep.subr.mxu0 0.0
  %177 = vmatpush1.xpose.msra.mxu0 0.0
  %178 = vmatprep.subr.mxu0 0.0
  %179 = vmatpush1.xpose.msra.mxu0 0.0
  %180 = vmatprep.mubr.f32.mxu0 0.0
  %181 = vmatmul.mubr.f32.gmra.mrb[0].mxu0 %v111
  %v182 = vpop.f32.mrb[0].mxu0
  %v183 = vadd.f32 0.0, %v182
  %v184 = vpop.f32.mrb[0].mxu0
  %185 = vdwg.mxu0
  %v187 = vsel %vm109, %v104, 0
  %v190 = vsel %vm109, %v108, 0
  %192 = vmatprep.subr.mxu0 0.0
  %193 = vmatpush1.xpose.msra.mxu0 %v190
  %194 = vmatprep.subr.mxu0 0.0
  %195 = vmatpush1.xpose.msra.mxu0 0.0
  %196 = vmatprep.subr.mxu0 0.0
  %197 = vmatpush1.xpose.msra.mxu0 0.0
  %198 = vmatprep.subr.mxu0 0.0
  %199 = vmatpush1.xpose.msra.mxu0 0.0
  %200 = vmatprep.subr.mxu0 0.0
  %201 = vmatpush1.xpose.msra.mxu0 0.0
  %202 = vmatprep.subr.mxu0 0.0
  %203 = vmatpush1.xpose.msra.mxu0 0.0
  %204 = vmatprep.subr.mxu0 0.0
  %205 = vmatpush1.xpose.msra.mxu0 0.0
  %206 = vmatprep.subr.mxu0 0.0
  %207 = vmatpush1.xpose.msra.mxu0 0.0
  %208 = vmatprep.subr.mxu0 0.0
  %209 = vmatpush1.xpose.msra.mxu0 0.0
  %210 = vmatprep.subr.mxu0 0.0
  %211 = vmatpush1.xpose.msra.mxu0 0.0
  %212 = vmatprep.subr.mxu0 0.0
  %213 = vmatpush1.xpose.msra.mxu0 0.0
  %214 = vmatprep.subr.mxu0 0.0
  %215 = vmatpush1.xpose.msra.mxu0 0.0
  %216 = vmatprep.subr.mxu0 0.0
  %217 = vmatpush1.xpose.msra.mxu0 0.0
  %218 = vmatprep.subr.mxu0 0.0
  %219 = vmatpush1.xpose.msra.mxu0 0.0
  %220 = vmatprep.subr.mxu0 0.0
  %221 = vmatpush1.xpose.msra.mxu0 0.0
  %222 = vmatprep.subr.mxu0 0.0
  %223 = vmatpush1.xpose.msra.mxu0 0.0
  %224 = vmatprep.subr.mxu0 0.0
  %225 = vmatpush1.xpose.msra.mxu0 0.0
  %226 = vmatprep.subr.mxu0 0.0
  %227 = vmatpush1.xpose.msra.mxu0 0.0
  %228 = vmatprep.subr.mxu0 0.0
  %229 = vmatpush1.xpose.msra.mxu0 0.0
  %230 = vmatprep.subr.mxu0 0.0
  %231 = vmatpush1.xpose.msra.mxu0 0.0
  %232 = vmatprep.subr.mxu0 0.0
  %233 = vmatpush1.xpose.msra.mxu0 0.0
  %234 = vmatprep.subr.mxu0 0.0
  %235 = vmatpush1.xpose.msra.mxu0 0.0
  %236 = vmatprep.subr.mxu0 0.0
  %237 = vmatpush1.xpose.msra.mxu0 0.0
  %238 = vmatprep.subr.mxu0 0.0
  %239 = vmatpush1.xpose.msra.mxu0 0.0
  %240 = vmatprep.subr.mxu0 0.0
  %241 = vmatpush1.xpose.msra.mxu0 0.0
  %242 = vmatprep.subr.mxu0 0.0
  %243 = vmatpush1.xpose.msra.mxu0 0.0
  %244 = vmatprep.subr.mxu0 0.0
  %245 = vmatpush1.xpose.msra.mxu0 0.0
  %246 = vmatprep.subr.mxu0 0.0
  %247 = vmatpush1.xpose.msra.mxu0 0.0
  %248 = vmatprep.subr.mxu0 0.0
  %249 = vmatpush1.xpose.msra.mxu0 0.0
  %250 = vmatprep.subr.mxu0 0.0
  %251 = vmatpush1.xpose.msra.mxu0 0.0
  %252 = vmatprep.subr.mxu0 0.0
  %253 = vmatpush1.xpose.msra.mxu0 0.0
  %254 = vmatprep.subr.mxu0 0.0
  %255 = vmatpush1.xpose.msra.mxu0 0.0
  %256 = vmatprep.mubr.f32.mxu0 0.0
  %257 = vmatmul.mubr.f32.gmra.mrb[0].mxu0 %v187
  %v258 = vpop.f32.mrb[0].mxu0
  %v259 = vadd.f32 0.0, %v258
  %v260 = vpop.f32.mrb[0].mxu0
  %261 = vdwg.mxu0
  %vm262 = vcmask 64512
  %263 = vst.msk [vmem:[%s3] sm:$0xff] %vm262, %v183
  %264 = vst.msk [vmem:[%s3 + $0x8] sm:$0xff] %vm262, %v259
  // Predicated region
  $region14: #{char_parser_forward.28} parent=0 // pred_check
    _
  $region15: #{char_parser_forward.28} parent=0 // pred_check_branch
    %266 = sbr.rel (0) target = $region17
  $region16: #{char_parser_forward.28} parent=0 // pred_region
    _
  $region17: #{char_parser_forward.28} parent=0 // pred_fallthru
    _
  // Predicated region
  $region18: #{char_parser_forward.28} parent=0 // pred_check
    _
  $region19: #{char_parser_forward.28} parent=0 // pred_check_branch
    %268 = sbr.rel (0) target = $region21
  $region20: #{char_parser_forward.28} parent=0 // pred_region
    _
  $region21: #{char_parser_forward.28} parent=0 // pred_fallthru
    _

</llo_original>
